<compile_context>
chip_gen: v7x
topology: tpu7x:2x2x1
jax: 0.10.0
libtpu: 0.0.40
codegen_flags: <defaults>
</compile_context>

<pallas_src>
import functools

import jax
import jax.numpy as jnp
from jax.experimental import pallas as pl
from jax.experimental.pallas import tpu as pltpu


_INV_SQRT2 = 0.7071067811865476


def _gelu(x):
    # PyTorch nn.GELU() is the exact erf-based GELU.  lax.erf has no guaranteed
    # Mosaic lowering, so use the Abramowitz-Stegun 7.1.26 rational
    # approximation (max abs erf error ~1.5e-7).  The divide is routed to the
    # EUP via pl.reciprocal(approx=True), off the saturated VALU slot.
    z = jnp.abs(x) * _INV_SQRT2
    t = pl.reciprocal(1.0 + 0.3275911 * z, approx=True)
    poly = ((((1.061405429 * t - 1.453152027) * t + 1.421413741) * t
             - 0.284496736) * t + 0.254829592) * t
    erf_abs = 1.0 - poly * jnp.exp(-z * z)
    erf = jnp.where(x >= 0.0, erf_abs, -erf_abs)
    return 0.5 * x * (1.0 + erf)


def _atrous_mlp_kernel(xt_ref, w1_ref, dw1_ref, bp1_ref, dw2_ref, bp2_ref,
                       wf2a_ref, wf2b_ref, bf2_ref, o_ref):
    # xt_ref: (1, 1, tH+4, Wp, Cin_p) bf16 row tile (2-row / 2-col halo inside,
    #         channel index C is the interior flag that carries the fc1 bias).
    # o_ref : (1, tH, W, Cout_p) f32, lane-dense (Cout_p % 128 == 0).
    _, _, tHp, Wp, Cin = xt_ref.shape
    tH = tHp - 4
    W = o_ref.shape[2]
    Cout = o_ref.shape[3]
    c2p = bp1_ref.shape[-1]                    # grouped-conv width (128-padded)

    # ---- fc1 (1x1 conv) + bias + GELU: one bf16 MXU matmul, f32 accumulate --
    # Columns [0:c2p] / [c2p:2*c2p] are the de-interleaved even / odd fc1
    # outputs, i.e. the first / second input channel of every conv group.  The
    # bias is the weight row of the interior-flag channel, so the zero-padded
    # border comes out of GELU as exactly 0 (PyTorch conv zero-padding) with no
    # mask work.
    xp = xt_ref[0, 0].reshape(tHp * Wp, Cin)                       # bf16
    y = jnp.dot(xp, w1_ref[...], preferred_element_type=jnp.float32)
    y = _gelu(y).reshape(tHp, Wp, 2 * c2p)

    def grouped_conv_branch(dw_ref, b_ref, base, dil):
        # 3x3 grouped conv (groups = 2*dim, 2 inputs per group) + bias + GELU.
        # The 3 W-axis shifts are hoisted out of the 9-tap loop, so the hot
        # loop only does cheap H-offset slices of pre-shifted slabs.
        # TODO(synk): on VALU-saturated configs route these 3 shifts through
        # pltpu.roll (idle XLU slot) and run the tap MACs in bf16 on v6e/v7x
        # (keep f32 on v5e, which has no bf16 VPU).
        shifted = [y[:, base + q * dil:base + q * dil + W, :] for q in range(3)]
        dw = dw_ref[...]
        acc = None
        for p in range(3):
            r0 = base + p * dil
            for q in range(3):
                term = dw[3 * p + q] * shifted[q][r0:r0 + tH]
                acc = term if acc is None else acc + term      # init from tap 0
        a = acc[:, :, :c2p] + acc[:, :, c2p:]   # sum the 2 inputs of each group
        return _gelu(a + b_ref[...])

    # pos1 (pad=1, dil=1) then pos2 (pad=2, dil=2) as two sequential passes so
    # x1 is dead before x2 is built (shorter live ranges, lower VMEM peak); fc2
    # is K-split over cat([x1, x2]) so the concat is never materialized.
    x1 = grouped_conv_branch(dw1_ref, bp1_ref, base=1, dil=1)
    out = jnp.dot(x1.reshape(tH * W, c2p).astype(jnp.bfloat16), wf2a_ref[...],
                  preferred_element_type=jnp.float32)
    x2 = grouped_conv_branch(dw2_ref, bp2_ref, base=0, dil=2)
    out = out + jnp.dot(x2.reshape(tH * W, c2p).astype(jnp.bfloat16),
                        wf2b_ref[...], preferred_element_type=jnp.float32)
    o_ref[0] = (out + bf2_ref[...]).reshape(tH, W, Cout)


def _round_up(x, m):
    return (x + m - 1) // m * m


def _pick_tile_rows(H, W, c2p):
    # ~8 live f32 slabs of roughly (row, W, 2*c2p) per tile; keep the per-tile
    # working set around ~12 MiB so the double-buffered I/O blocks + weights
    # stay well inside the 48 MiB VMEM request (v7x has only 64 MiB physical;
    # v5e/v6e have 128 MiB and could use larger tiles).
    budget = 12 * 1024 * 1024
    per_row = 8 * (W + 8) * (2 * c2p) * 4
    t = max(8, (budget // per_row) // 8 * 8)
    return int(min(t, _round_up(H, 8)))


def atrous_mlp_forward(x_nchw, params, tile_rows=None):
    """NCHW forward pass of AtrousMLP via one fused Pallas TPU kernel."""
    B, C, H, W = x_nchw.shape
    Cm = params['fc1_w'].shape[0]            # dim * mlp_ratio
    C2 = params['pos1_w'].shape[0]           # dim * 2
    assert Cm == 2 * C2, "mlp_ratio must be 4 so each pos-conv group has 2 inputs"

    # ---- padded, lane/sublane-friendly sizes --------------------------------
    C2p = _round_up(C2, 128)                 # grouped-conv channels on lanes
    Cin_p = _round_up(C + 1, 128)            # input channels + interior flag
    Cout_p = _round_up(C, 128)               # lane-dense output store
    tH = tile_rows if tile_rows is not None else _pick_tile_rows(H, W, C2p)
    Ht = _round_up(H, tH)
    nH = Ht // tH
    Wp = _round_up(W + 4, 8)                 # sublane-aligned padded width
    f32 = jnp.float32

    # ---- parameter re-layout (pure glue, done once under jit) ---------------
    # fc1: (Cm,C,1,1) 1x1 conv -> one (Cin_p, 2*C2p) matmul slab.  Columns are
    # de-interleaved (even -> first-in-group, odd -> second-in-group) and the
    # bias is folded in as the weight row of the interior-flag channel (row C).
    w1 = jnp.transpose(params['fc1_w'][:, :, 0, 0], (1, 0))           # (C, Cm)
    b1 = params['fc1_b']
    w1m = jnp.zeros((Cin_p, 2 * C2p), f32)
    w1m = w1m.at[:C, :C2].set(w1[:, 0::2]).at[:C, C2p:C2p + C2].set(w1[:, 1::2])
    w1m = w1m.at[C, :C2].set(b1[0::2]).at[C, C2p:C2p + C2].set(b1[1::2])
    w1m = w1m.astype(jnp.bfloat16)

    def _dw(wt):   # (C2, 2, 3, 3) -> (9, 2*C2p): taps major, channels on lanes
        w = jnp.transpose(wt, (2, 3, 0, 1)).reshape(9, C2, 2)
        z = jnp.zeros((9, 2 * C2p), f32)
        return z.at[:, :C2].set(w[..., 0]).at[:, C2p:C2p + C2].set(w[..., 1])
    dw1, dw2 = _dw(params['pos1_w']), _dw(params['pos2_w'])
    bp1 = jnp.zeros((1, C2p), f32).at[0, :C2].set(params['pos1_b'])
    bp2 = jnp.zeros((1, C2p), f32).at[0, :C2].set(params['pos2_b'])

    # fc2: K-split over cat([x1, x2], ch) -> an x1 slab and an x2 slab (bf16).
    w2 = jnp.transpose(params['fc2_w'][:, :, 0, 0], (1, 0))           # (Cm, C)
    wf2a = jnp.zeros((C2p, Cout_p), f32).at[:C2, :C].set(w2[:C2]).astype(jnp.bfloat16)
    wf2b = jnp.zeros((C2p, Cout_p), f32).at[:C2, :C].set(w2[C2:]).astype(jnp.bfloat16)
    bf2 = jnp.zeros((1, Cout_p), f32).at[0, :C].set(params['fc2_b'])

    # ---- input: NCHW->NHWC, interior flag, pad, bf16, overlapping row tiles --
    x = jnp.transpose(x_nchw, (0, 2, 3, 1)).astype(f32)
    flag = jnp.ones((B, H, W, 1), f32)       # 1 inside the image, 0 in padding
    xa = jnp.concatenate([x, flag], axis=-1)
    xa = jnp.pad(xa, ((0, 0), (2, 2 + Ht - H), (2, Wp - W - 2),
                      (0, Cin_p - C - 1))).astype(jnp.bfloat16)
    # Overlapping (2-row halo each side) tiles so the kernel BlockSpec stays a
    # plain non-overlapping tiling with automatic double-buffered pipelining.
    # TODO(synk): for very large H replace this duplicated-tile HBM layout with
    # a manual halo DMA from a pl.ANY input to avoid the (tH+4)/tH read inflate.
    x_tiles = jnp.stack([xa[:, r * tH:r * tH + tH + 4] for r in range(nH)],
                        axis=1)              # (B, nH, tH+4, Wp, Cin_p)

    def _full(a):
        return pl.BlockSpec(a.shape, lambda b, i, _n=a.ndim: (0,) * _n)

    n_pad_pix = B * nH * (tH + 4) * Wp
    n_pix = B * Ht * W
    cost = pl.CostEstimate(
        flops=int(2 * n_pad_pix * Cin_p * 2 * C2p          # fc1 matmul
                  + 72 * n_pix * C2p                       # 2 convs x 9 taps x 2 in
                  + 4 * n_pix * C2p * Cout_p),             # fc2 (two K halves)
        transcendentals=int(2 * n_pad_pix * 2 * C2p + 4 * n_pix * C2p),
        bytes_accessed=int(x_tiles.size * 2 + n_pix * Cout_p * 4
                           + (w1m.size + wf2a.size + wf2b.size) * 2
                           + (dw1.size + dw2.size) * 4))

    out = pl.pallas_call(
        _atrous_mlp_kernel,
        grid=(B, nH),
        in_specs=[pl.BlockSpec((1, 1, tH + 4, Wp, Cin_p),
                               lambda b, i: (b, i, 0, 0, 0)),
                  _full(w1m), _full(dw1), _full(bp1), _full(dw2), _full(bp2),
                  _full(wf2a), _full(wf2b), _full(bf2)],
        out_specs=pl.BlockSpec((1, tH, W, Cout_p), lambda b, i: (b, i, 0, 0)),
        out_shape=jax.ShapeDtypeStruct((B, Ht, W, Cout_p), jnp.float32),
        compiler_params=pltpu.CompilerParams(
            # every (batch, row-tile) step is independent -> megacore-friendly
            dimension_semantics=("parallel", "parallel"),
            # 48 MiB: headroom on v7x's 64 MiB physical VMEM; v5e/v6e (128 MiB)
            # can raise this together with a larger row tile.
            vmem_limit_bytes=48 * 1024 * 1024),
        cost_estimate=cost,
    )(x_tiles, w1m, dw1, bp1, dw2, bp2, wf2a, wf2b, bf2)

    out = out[:, :H, :, :C]                  # drop row / lane padding
    return jnp.transpose(out, (0, 3, 1, 2))  # back to NCHW


def init_params(key, dim, mlp_ratio=4):
    """Deterministic parameters with the exact PyTorch weight shapes."""
    hidden = dim * mlp_ratio
    c2 = dim * 2
    ks = jax.random.split(key, 8)
    std = 0.1
    return {
        'fc1_w': jax.random.normal(ks[0], (hidden, dim, 1, 1), jnp.float32) * std,
        'fc1_b': jax.random.normal(ks[1], (hidden,), jnp.float32) * std,
        'pos1_w': jax.random.normal(ks[2], (c2, 2, 3, 3), jnp.float32) * std,
        'pos1_b': jax.random.normal(ks[3], (c2,), jnp.float32) * std,
        'pos2_w': jax.random.normal(ks[4], (c2, 2, 3, 3), jnp.float32) * std,
        'pos2_b': jax.random.normal(ks[5], (c2,), jnp.float32) * std,
        'fc2_w': jax.random.normal(ks[6], (dim, hidden, 1, 1), jnp.float32) * std,
        'fc2_b': jax.random.normal(ks[7], (dim,), jnp.float32) * std,
    }


def atrous_mlp_reference(x_nchw, params):
    """Pure-JAX (non-Pallas) reference with PyTorch Conv2d semantics."""
    x = x_nchw.astype(jnp.float32)
    B, C, H, W = x.shape
    y = (jnp.einsum('oc,bchw->bohw', params['fc1_w'][:, :, 0, 0], x)
         + params['fc1_b'][None, :, None, None])
    y = jax.nn.gelu(y, approximate=False)

    def grouped3x3(inp, w, b, dil, pad):
        c2 = w.shape[0]
        yp = jnp.pad(inp, ((0, 0), (0, 0), (pad, pad), (pad, pad)))
        outs = []
        for g in range(c2):                   # group g uses inputs 2g, 2g+1
            acc = jnp.zeros((B, H, W), jnp.float32)
            for ci in range(2):
                src = yp[:, 2 * g + ci]
                for p in range(3):
                    for q in range(3):
                        acc = acc + w[g, ci, p, q] * src[:, p * dil:p * dil + H,
                                                         q * dil:q * dil + W]
            outs.append(acc + b[g])
        return jax.nn.gelu(jnp.stack(outs, axis=1), approximate=False)

    x1 = grouped3x3(y, params['pos1_w'], params['pos1_b'], dil=1, pad=1)
    x2 = grouped3x3(y, params['pos2_w'], params['pos2_b'], dil=2, pad=2)
    xa = jnp.concatenate([x1, x2], axis=1)
    return (jnp.einsum('oc,bchw->bohw', params['fc2_w'][:, :, 0, 0], xa)
            + params['fc2_b'][None, :, None, None])


if __name__ == "__main__":
    key = jax.random.PRNGKey(0)
    kp, kx = jax.random.split(key)

    B, C, H, W = 2, 4, 16, 16        # dim = 4, mlp_ratio = 4 -> hidden = 16
    params = init_params(kp, dim=C, mlp_ratio=4)
    x = jax.random.normal(kx, (B, C, H, W), jnp.float32)

    # tile_rows=8 -> grid (B=2, H/8=2): exercises the row-tiled / halo path.
    fwd = jax.jit(functools.partial(atrous_mlp_forward, tile_rows=8))
    y = jax.block_until_ready(fwd(x, params))
    assert y.shape == (B, C, H, W), y.shape
    assert bool(jnp.all(jnp.isfinite(y)))

    ref = jax.jit(atrous_mlp_reference)(x, params)
    max_err = float(jnp.max(jnp.abs(y - ref)))
    # bf16 MXU operands + approximate erf -> tolerance, not bit-exactness.
    assert bool(jnp.allclose(y, ref, rtol=2e-2, atol=3e-3)), max_err
    print("KERNEL_OK")
</pallas_src>

<mosaic_0001>
module attributes {stable_mosaic.version = 11 : i64} {
  func.func @_atrous_mlp_kernel(%arg0: i32, %arg1: i32, %arg2: memref<1x1x12x24x128xbf16, #tpu.memory_space<vmem>>, %arg3: memref<128x256xbf16, #tpu.memory_space<vmem>>, %arg4: memref<9x256xf32, #tpu.memory_space<vmem>>, %arg5: memref<1x128xf32, #tpu.memory_space<vmem>>, %arg6: memref<9x256xf32, #tpu.memory_space<vmem>>, %arg7: memref<1x128xf32, #tpu.memory_space<vmem>>, %arg8: memref<128x128xbf16, #tpu.memory_space<vmem>>, %arg9: memref<128x128xbf16, #tpu.memory_space<vmem>>, %arg10: memref<1x128xf32, #tpu.memory_space<vmem>>, %arg11: memref<1x8x16x128xf32, #tpu.memory_space<vmem>>) attributes {dimension_semantics = [#tpu.dimension_semantics<parallel>, #tpu.dimension_semantics<parallel>], iteration_bounds = array<i64: 2, 2>, scalar_prefetch = 0 : i64, scratch_operands = 0 : i64, tpu.core_type = #tpu.core_type<tc>, window_params = [{transform_indices = @transform_0, window_bounds = array<i64: 1, 1, 12, 24, 128>}, {pipeline_mode = #tpu.pipeline_mode<synchronous>, transform_indices = @transform_1, window_bounds = array<i64: 128, 256>}, {pipeline_mode = #tpu.pipeline_mode<synchronous>, transform_indices = @transform_2, window_bounds = array<i64: 9, 256>}, {pipeline_mode = #tpu.pipeline_mode<synchronous>, transform_indices = @transform_3, window_bounds = array<i64: 1, 128>}, {pipeline_mode = #tpu.pipeline_mode<synchronous>, transform_indices = @transform_4, window_bounds = array<i64: 9, 256>}, {pipeline_mode = #tpu.pipeline_mode<synchronous>, transform_indices = @transform_5, window_bounds = array<i64: 1, 128>}, {pipeline_mode = #tpu.pipeline_mode<synchronous>, transform_indices = @transform_6, window_bounds = array<i64: 128, 128>}, {pipeline_mode = #tpu.pipeline_mode<synchronous>, transform_indices = @transform_7, window_bounds = array<i64: 128, 128>}, {pipeline_mode = #tpu.pipeline_mode<synchronous>, transform_indices = @transform_8, window_bounds = array<i64: 1, 128>}, {transform_indices = @transform_9, window_bounds = array<i64: 1, 8, 16, 128>}]} {
    %c0 = arith.constant 0 : index
    %c0_0 = arith.constant 0 : index
    %c0_1 = arith.constant 0 : index
    %c0_2 = arith.constant 0 : index
    %c0_3 = arith.constant 0 : index
    %0 = vector.load %arg2[%c0, %c0_0, %c0_1, %c0_2, %c0_3] : memref<1x1x12x24x128xbf16, #tpu.memory_space<vmem>>, vector<1x1x12x24x128xbf16>
    %1 = vector.shape_cast %0 : vector<1x1x12x24x128xbf16> to vector<12x24x128xbf16>
    %2 = vector.shape_cast %1 : vector<12x24x128xbf16> to vector<288x128xbf16>
    %c0_4 = arith.constant 0 : index
    %c0_5 = arith.constant 0 : index
    %3 = vector.load %arg3[%c0_4, %c0_5] : memref<128x256xbf16, #tpu.memory_space<vmem>>, vector<128x256xbf16>
    %cst = arith.constant dense<0.000000e+00> : vector<288x256xf32>
    %4 = tpu.matmul %2, %3, %cst {dimension_numbers = #tpu.dot_dimension_numbers<[1], [0], [0], [1], [0, 0, 1, 1], [], []>} : vector<288x128xbf16>, vector<128x256xbf16>, vector<288x256xf32> -> vector<288x256xf32>
    %5 = math.absf %4 : vector<288x256xf32>
    %cst_6 = arith.constant 0.707106769 : f32
    %6 = vector.broadcast %cst_6 : f32 to vector<288x256xf32>
    %7 = arith.mulf %5, %6 : vector<288x256xf32>
    %cst_7 = arith.constant 0.327591091 : f32
    %8 = vector.broadcast %cst_7 : f32 to vector<288x256xf32>
    %9 = arith.mulf %8, %7 : vector<288x256xf32>
    %cst_8 = arith.constant 1.000000e+00 : f32
    %10 = vector.broadcast %cst_8 : f32 to vector<288x256xf32>
    %11 = arith.addf %10, %9 : vector<288x256xf32>
    %12 = tpu.reciprocal %11 {approx = true} : vector<288x256xf32> -> vector<288x256xf32>
    %cst_9 = arith.constant 1.06140542 : f32
    %13 = vector.broadcast %cst_9 : f32 to vector<288x256xf32>
    %14 = arith.mulf %13, %12 : vector<288x256xf32>
    %cst_10 = arith.constant 1.45315206 : f32
    %15 = vector.broadcast %cst_10 : f32 to vector<288x256xf32>
    %16 = arith.subf %14, %15 : vector<288x256xf32>
    %17 = arith.mulf %16, %12 : vector<288x256xf32>
    %cst_11 = arith.constant 1.42141378 : f32
    %18 = vector.broadcast %cst_11 : f32 to vector<288x256xf32>
    %19 = arith.addf %17, %18 : vector<288x256xf32>
    %20 = arith.mulf %19, %12 : vector<288x256xf32>
    %cst_12 = arith.constant 0.284496725 : f32
    %21 = vector.broadcast %cst_12 : f32 to vector<288x256xf32>
    %22 = arith.subf %20, %21 : vector<288x256xf32>
    %23 = arith.mulf %22, %12 : vector<288x256xf32>
    %cst_13 = arith.constant 0.254829586 : f32
    %24 = vector.broadcast %cst_13 : f32 to vector<288x256xf32>
    %25 = arith.addf %23, %24 : vector<288x256xf32>
    %26 = arith.mulf %25, %12 : vector<288x256xf32>
    %cst_14 = arith.constant 0.000000e+00 : f32
    %27 = vector.broadcast %cst_14 : f32 to vector<288x256xf32>
    %28 = arith.subf %27, %7 : vector<288x256xf32>
    %29 = arith.mulf %28, %7 : vector<288x256xf32>
    %30 = math.exp %29 : vector<288x256xf32>
    %31 = arith.mulf %26, %30 : vector<288x256xf32>
    %cst_15 = arith.constant 1.000000e+00 : f32
    %32 = vector.broadcast %cst_15 : f32 to vector<288x256xf32>
    %33 = arith.subf %32, %31 : vector<288x256xf32>
    %cst_16 = arith.constant 0.000000e+00 : f32
    %34 = vector.broadcast %cst_16 : f32 to vector<288x256xf32>
    %35 = arith.cmpf oge, %4, %34 : vector<288x256xf32>
    %cst_17 = arith.constant 0.000000e+00 : f32
    %36 = vector.broadcast %cst_17 : f32 to vector<288x256xf32>
    %37 = arith.subf %36, %33 : vector<288x256xf32>
    %38 = arith.select %35, %33, %37 : vector<288x256xi1>, vector<288x256xf32>
    %cst_18 = arith.constant 5.000000e-01 : f32
    %39 = vector.broadcast %cst_18 : f32 to vector<288x256xf32>
    %40 = arith.mulf %39, %4 : vector<288x256xf32>
    %cst_19 = arith.constant 1.000000e+00 : f32
    %41 = vector.broadcast %cst_19 : f32 to vector<288x256xf32>
    %42 = arith.addf %41, %38 : vector<288x256xf32>
    %43 = arith.mulf %40, %42 : vector<288x256xf32>
    %44 = vector.shape_cast %43 : vector<288x256xf32> to vector<12x24x256xf32>
    %45 = vector.extract_strided_slice %44 {offsets = [0, 1, 0], sizes = [12, 16, 256], strides = [1, 1, 1]} : vector<12x24x256xf32> to vector<12x16x256xf32>
    %46 = vector.extract_strided_slice %44 {offsets = [0, 2, 0], sizes = [12, 16, 256], strides = [1, 1, 1]} : vector<12x24x256xf32> to vector<12x16x256xf32>
    %47 = vector.extract_strided_slice %44 {offsets = [0, 3, 0], sizes = [12, 16, 256], strides = [1, 1, 1]} : vector<12x24x256xf32> to vector<12x16x256xf32>
    %c0_20 = arith.constant 0 : index
    %c0_21 = arith.constant 0 : index
    %48 = vector.load %arg4[%c0_20, %c0_21] : memref<9x256xf32, #tpu.memory_space<vmem>>, vector<9x256xf32>
    %49 = vector.extract_strided_slice %48 {offsets = [0, 0], sizes = [1, 256], strides = [1, 1]} : vector<9x256xf32> to vector<1x256xf32>
    %50 = vector.shape_cast %49 : vector<1x256xf32> to vector<256xf32>
    %51 = vector.extract_strided_slice %45 {offsets = [1, 0, 0], sizes = [8, 16, 256], strides = [1, 1, 1]} : vector<12x16x256xf32> to vector<8x16x256xf32>
    %52 = vector.shape_cast %50 : vector<256xf32> to vector<1x1x256xf32>
    %53 = vector.broadcast %52 : vector<1x1x256xf32> to vector<8x16x256xf32>
    %54 = arith.mulf %53, %51 : vector<8x16x256xf32>
    %55 = vector.extract_strided_slice %48 {offsets = [1, 0], sizes = [1, 256], strides = [1, 1]} : vector<9x256xf32> to vector<1x256xf32>
    %56 = vector.shape_cast %55 : vector<1x256xf32> to vector<256xf32>
    %57 = vector.extract_strided_slice %46 {offsets = [1, 0, 0], sizes = [8, 16, 256], strides = [1, 1, 1]} : vector<12x16x256xf32> to vector<8x16x256xf32>
    %58 = vector.shape_cast %56 : vector<256xf32> to vector<1x1x256xf32>
    %59 = vector.broadcast %58 : vector<1x1x256xf32> to vector<8x16x256xf32>
    %60 = arith.mulf %59, %57 : vector<8x16x256xf32>
    %61 = arith.addf %54, %60 : vector<8x16x256xf32>
    %62 = vector.extract_strided_slice %48 {offsets = [2, 0], sizes = [1, 256], strides = [1, 1]} : vector<9x256xf32> to vector<1x256xf32>
    %63 = vector.shape_cast %62 : vector<1x256xf32> to vector<256xf32>
    %64 = vector.extract_strided_slice %47 {offsets = [1, 0, 0], sizes = [8, 16, 256], strides = [1, 1, 1]} : vector<12x16x256xf32> to vector<8x16x256xf32>
    %65 = vector.shape_cast %63 : vector<256xf32> to vector<1x1x256xf32>
    %66 = vector.broadcast %65 : vector<1x1x256xf32> to vector<8x16x256xf32>
    %67 = arith.mulf %66, %64 : vector<8x16x256xf32>
    %68 = arith.addf %61, %67 : vector<8x16x256xf32>
    %69 = vector.extract_strided_slice %48 {offsets = [3, 0], sizes = [1, 256], strides = [1, 1]} : vector<9x256xf32> to vector<1x256xf32>
    %70 = vector.shape_cast %69 : vector<1x256xf32> to vector<256xf32>
    %71 = vector.extract_strided_slice %45 {offsets = [2, 0, 0], sizes = [8, 16, 256], strides = [1, 1, 1]} : vector<12x16x256xf32> to vector<8x16x256xf32>
    %72 = vector.shape_cast %70 : vector<256xf32> to vector<1x1x256xf32>
    %73 = vector.broadcast %72 : vector<1x1x256xf32> to vector<8x16x256xf32>
    %74 = arith.mulf %73, %71 : vector<8x16x256xf32>
    %75 = arith.addf %68, %74 : vector<8x16x256xf32>
    %76 = vector.extract_strided_slice %48 {offsets = [4, 0], sizes = [1, 256], strides = [1, 1]} : vector<9x256xf32> to vector<1x256xf32>
    %77 = vector.shape_cast %76 : vector<1x256xf32> to vector<256xf32>
    %78 = vector.extract_strided_slice %46 {offsets = [2, 0, 0], sizes = [8, 16, 256], strides = [1, 1, 1]} : vector<12x16x256xf32> to vector<8x16x256xf32>
    %79 = vector.shape_cast %77 : vector<256xf32> to vector<1x1x256xf32>
    %80 = vector.broadcast %79 : vector<1x1x256xf32> to vector<8x16x256xf32>
    %81 = arith.mulf %80, %78 : vector<8x16x256xf32>
    %82 = arith.addf %75, %81 : vector<8x16x256xf32>
    %83 = vector.extract_strided_slice %48 {offsets = [5, 0], sizes = [1, 256], strides = [1, 1]} : vector<9x256xf32> to vector<1x256xf32>
    %84 = vector.shape_cast %83 : vector<1x256xf32> to vector<256xf32>
    %85 = vector.extract_strided_slice %47 {offsets = [2, 0, 0], sizes = [8, 16, 256], strides = [1, 1, 1]} : vector<12x16x256xf32> to vector<8x16x256xf32>
    %86 = vector.shape_cast %84 : vector<256xf32> to vector<1x1x256xf32>
    %87 = vector.broadcast %86 : vector<1x1x256xf32> to vector<8x16x256xf32>
    %88 = arith.mulf %87, %85 : vector<8x16x256xf32>
    %89 = arith.addf %82, %88 : vector<8x16x256xf32>
    %90 = vector.extract_strided_slice %48 {offsets = [6, 0], sizes = [1, 256], strides = [1, 1]} : vector<9x256xf32> to vector<1x256xf32>
    %91 = vector.shape_cast %90 : vector<1x256xf32> to vector<256xf32>
    %92 = vector.extract_strided_slice %45 {offsets = [3, 0, 0], sizes = [8, 16, 256], strides = [1, 1, 1]} : vector<12x16x256xf32> to vector<8x16x256xf32>
    %93 = vector.shape_cast %91 : vector<256xf32> to vector<1x1x256xf32>
    %94 = vector.broadcast %93 : vector<1x1x256xf32> to vector<8x16x256xf32>
    %95 = arith.mulf %94, %92 : vector<8x16x256xf32>
    %96 = arith.addf %89, %95 : vector<8x16x256xf32>
    %97 = vector.extract_strided_slice %48 {offsets = [7, 0], sizes = [1, 256], strides = [1, 1]} : vector<9x256xf32> to vector<1x256xf32>
    %98 = vector.shape_cast %97 : vector<1x256xf32> to vector<256xf32>
    %99 = vector.extract_strided_slice %46 {offsets = [3, 0, 0], sizes = [8, 16, 256], strides = [1, 1, 1]} : vector<12x16x256xf32> to vector<8x16x256xf32>
    %100 = vector.shape_cast %98 : vector<256xf32> to vector<1x1x256xf32>
    %101 = vector.broadcast %100 : vector<1x1x256xf32> to vector<8x16x256xf32>
    %102 = arith.mulf %101, %99 : vector<8x16x256xf32>
    %103 = arith.addf %96, %102 : vector<8x16x256xf32>
    %104 = vector.extract_strided_slice %48 {offsets = [8, 0], sizes = [1, 256], strides = [1, 1]} : vector<9x256xf32> to vector<1x256xf32>
    %105 = vector.shape_cast %104 : vector<1x256xf32> to vector<256xf32>
    %106 = vector.extract_strided_slice %47 {offsets = [3, 0, 0], sizes = [8, 16, 256], strides = [1, 1, 1]} : vector<12x16x256xf32> to vector<8x16x256xf32>
    %107 = vector.shape_cast %105 : vector<256xf32> to vector<1x1x256xf32>
    %108 = vector.broadcast %107 : vector<1x1x256xf32> to vector<8x16x256xf32>
    %109 = arith.mulf %108, %106 : vector<8x16x256xf32>
    %110 = arith.addf %103, %109 : vector<8x16x256xf32>
    %111 = vector.extract_strided_slice %110 {offsets = [0, 0, 0], sizes = [8, 16, 128], strides = [1, 1, 1]} : vector<8x16x256xf32> to vector<8x16x128xf32>
    %112 = vector.extract_strided_slice %110 {offsets = [0, 0, 128], sizes = [8, 16, 128], strides = [1, 1, 1]} : vector<8x16x256xf32> to vector<8x16x128xf32>
    %113 = arith.addf %111, %112 : vector<8x16x128xf32>
    %c0_22 = arith.constant 0 : index
    %c0_23 = arith.constant 0 : index
    %114 = vector.load %arg5[%c0_22, %c0_23] : memref<1x128xf32, #tpu.memory_space<vmem>>, vector<1x128xf32>
    %115 = vector.shape_cast %114 : vector<1x128xf32> to vector<1x1x128xf32>
    %116 = vector.broadcast %115 : vector<1x1x128xf32> to vector<8x16x128xf32>
    %117 = arith.addf %113, %116 : vector<8x16x128xf32>
    %118 = math.absf %117 : vector<8x16x128xf32>
    %cst_24 = arith.constant 0.707106769 : f32
    %119 = vector.broadcast %cst_24 : f32 to vector<8x16x128xf32>
    %120 = arith.mulf %118, %119 : vector<8x16x128xf32>
    %cst_25 = arith.constant 0.327591091 : f32
    %121 = vector.broadcast %cst_25 : f32 to vector<8x16x128xf32>
    %122 = arith.mulf %121, %120 : vector<8x16x128xf32>
    %cst_26 = arith.constant 1.000000e+00 : f32
    %123 = vector.broadcast %cst_26 : f32 to vector<8x16x128xf32>
    %124 = arith.addf %123, %122 : vector<8x16x128xf32>
    %125 = tpu.reciprocal %124 {approx = true} : vector<8x16x128xf32> -> vector<8x16x128xf32>
    %cst_27 = arith.constant 1.06140542 : f32
    %126 = vector.broadcast %cst_27 : f32 to vector<8x16x128xf32>
    %127 = arith.mulf %126, %125 : vector<8x16x128xf32>
    %cst_28 = arith.constant 1.45315206 : f32
    %128 = vector.broadcast %cst_28 : f32 to vector<8x16x128xf32>
    %129 = arith.subf %127, %128 : vector<8x16x128xf32>
    %130 = arith.mulf %129, %125 : vector<8x16x128xf32>
    %cst_29 = arith.constant 1.42141378 : f32
    %131 = vector.broadcast %cst_29 : f32 to vector<8x16x128xf32>
    %132 = arith.addf %130, %131 : vector<8x16x128xf32>
    %133 = arith.mulf %132, %125 : vector<8x16x128xf32>
    %cst_30 = arith.constant 0.284496725 : f32
    %134 = vector.broadcast %cst_30 : f32 to vector<8x16x128xf32>
    %135 = arith.subf %133, %134 : vector<8x16x128xf32>
    %136 = arith.mulf %135, %125 : vector<8x16x128xf32>
    %cst_31 = arith.constant 0.254829586 : f32
    %137 = vector.broadcast %cst_31 : f32 to vector<8x16x128xf32>
    %138 = arith.addf %136, %137 : vector<8x16x128xf32>
    %139 = arith.mulf %138, %125 : vector<8x16x128xf32>
    %cst_32 = arith.constant 0.000000e+00 : f32
    %140 = vector.broadcast %cst_32 : f32 to vector<8x16x128xf32>
    %141 = arith.subf %140, %120 : vector<8x16x128xf32>
    %142 = arith.mulf %141, %120 : vector<8x16x128xf32>
    %143 = math.exp %142 : vector<8x16x128xf32>
    %144 = arith.mulf %139, %143 : vector<8x16x128xf32>
    %cst_33 = arith.constant 1.000000e+00 : f32
    %145 = vector.broadcast %cst_33 : f32 to vector<8x16x128xf32>
    %146 = arith.subf %145, %144 : vector<8x16x128xf32>
    %cst_34 = arith.constant 0.000000e+00 : f32
    %147 = vector.broadcast %cst_34 : f32 to vector<8x16x128xf32>
    %148 = arith.cmpf oge, %117, %147 : vector<8x16x128xf32>
    %cst_35 = arith.constant 0.000000e+00 : f32
    %149 = vector.broadcast %cst_35 : f32 to vector<8x16x128xf32>
    %150 = arith.subf %149, %146 : vector<8x16x128xf32>
    %151 = arith.select %148, %146, %150 : vector<8x16x128xi1>, vector<8x16x128xf32>
    %cst_36 = arith.constant 5.000000e-01 : f32
    %152 = vector.broadcast %cst_36 : f32 to vector<8x16x128xf32>
    %153 = arith.mulf %152, %117 : vector<8x16x128xf32>
    %cst_37 = arith.constant 1.000000e+00 : f32
    %154 = vector.broadcast %cst_37 : f32 to vector<8x16x128xf32>
    %155 = arith.addf %154, %151 : vector<8x16x128xf32>
    %156 = arith.mulf %153, %155 : vector<8x16x128xf32>
    %157 = vector.shape_cast %156 : vector<8x16x128xf32> to vector<128x128xf32>
    %158 = arith.truncf %157 : vector<128x128xf32> to vector<128x128xbf16>
    %c0_38 = arith.constant 0 : index
    %c0_39 = arith.constant 0 : index
    %159 = vector.load %arg8[%c0_38, %c0_39] : memref<128x128xbf16, #tpu.memory_space<vmem>>, vector<128x128xbf16>
    %cst_40 = arith.constant dense<0.000000e+00> : vector<128x128xf32>
    %160 = tpu.matmul %158, %159, %cst_40 {dimension_numbers = #tpu.dot_dimension_numbers<[1], [0], [0], [1], [0, 0, 1, 1], [], []>} : vector<128x128xbf16>, vector<128x128xbf16>, vector<128x128xf32> -> vector<128x128xf32>
    %161 = vector.extract_strided_slice %44 {offsets = [0, 0, 0], sizes = [12, 16, 256], strides = [1, 1, 1]} : vector<12x24x256xf32> to vector<12x16x256xf32>
    %162 = vector.extract_strided_slice %44 {offsets = [0, 2, 0], sizes = [12, 16, 256], strides = [1, 1, 1]} : vector<12x24x256xf32> to vector<12x16x256xf32>
    %163 = vector.extract_strided_slice %44 {offsets = [0, 4, 0], sizes = [12, 16, 256], strides = [1, 1, 1]} : vector<12x24x256xf32> to vector<12x16x256xf32>
    %c0_41 = arith.constant 0 : index
    %c0_42 = arith.constant 0 : index
    %164 = vector.load %arg6[%c0_41, %c0_42] : memref<9x256xf32, #tpu.memory_space<vmem>>, vector<9x256xf32>
    %165 = vector.extract_strided_slice %164 {offsets = [0, 0], sizes = [1, 256], strides = [1, 1]} : vector<9x256xf32> to vector<1x256xf32>
    %166 = vector.shape_cast %165 : vector<1x256xf32> to vector<256xf32>
    %167 = vector.extract_strided_slice %161 {offsets = [0, 0, 0], sizes = [8, 16, 256], strides = [1, 1, 1]} : vector<12x16x256xf32> to vector<8x16x256xf32>
    %168 = vector.shape_cast %166 : vector<256xf32> to vector<1x1x256xf32>
    %169 = vector.broadcast %168 : vector<1x1x256xf32> to vector<8x16x256xf32>
    %170 = arith.mulf %169, %167 : vector<8x16x256xf32>
    %171 = vector.extract_strided_slice %164 {offsets = [1, 0], sizes = [1, 256], strides = [1, 1]} : vector<9x256xf32> to vector<1x256xf32>
    %172 = vector.shape_cast %171 : vector<1x256xf32> to vector<256xf32>
    %173 = vector.extract_strided_slice %162 {offsets = [0, 0, 0], sizes = [8, 16, 256], strides = [1, 1, 1]} : vector<12x16x256xf32> to vector<8x16x256xf32>
    %174 = vector.shape_cast %172 : vector<256xf32> to vector<1x1x256xf32>
    %175 = vector.broadcast %174 : vector<1x1x256xf32> to vector<8x16x256xf32>
    %176 = arith.mulf %175, %173 : vector<8x16x256xf32>
    %177 = arith.addf %170, %176 : vector<8x16x256xf32>
    %178 = vector.extract_strided_slice %164 {offsets = [2, 0], sizes = [1, 256], strides = [1, 1]} : vector<9x256xf32> to vector<1x256xf32>
    %179 = vector.shape_cast %178 : vector<1x256xf32> to vector<256xf32>
    %180 = vector.extract_strided_slice %163 {offsets = [0, 0, 0], sizes = [8, 16, 256], strides = [1, 1, 1]} : vector<12x16x256xf32> to vector<8x16x256xf32>
    %181 = vector.shape_cast %179 : vector<256xf32> to vector<1x1x256xf32>
    %182 = vector.broadcast %181 : vector<1x1x256xf32> to vector<8x16x256xf32>
    %183 = arith.mulf %182, %180 : vector<8x16x256xf32>
    %184 = arith.addf %177, %183 : vector<8x16x256xf32>
    %185 = vector.extract_strided_slice %164 {offsets = [3, 0], sizes = [1, 256], strides = [1, 1]} : vector<9x256xf32> to vector<1x256xf32>
    %186 = vector.shape_cast %185 : vector<1x256xf32> to vector<256xf32>
    %187 = vector.extract_strided_slice %161 {offsets = [2, 0, 0], sizes = [8, 16, 256], strides = [1, 1, 1]} : vector<12x16x256xf32> to vector<8x16x256xf32>
    %188 = vector.shape_cast %186 : vector<256xf32> to vector<1x1x256xf32>
    %189 = vector.broadcast %188 : vector<1x1x256xf32> to vector<8x16x256xf32>
    %190 = arith.mulf %189, %187 : vector<8x16x256xf32>
    %191 = arith.addf %184, %190 : vector<8x16x256xf32>
    %192 = vector.extract_strided_slice %164 {offsets = [4, 0], sizes = [1, 256], strides = [1, 1]} : vector<9x256xf32> to vector<1x256xf32>
    %193 = vector.shape_cast %192 : vector<1x256xf32> to vector<256xf32>
    %194 = vector.extract_strided_slice %162 {offsets = [2, 0, 0], sizes = [8, 16, 256], strides = [1, 1, 1]} : vector<12x16x256xf32> to vector<8x16x256xf32>
    %195 = vector.shape_cast %193 : vector<256xf32> to vector<1x1x256xf32>
    %196 = vector.broadcast %195 : vector<1x1x256xf32> to vector<8x16x256xf32>
    %197 = arith.mulf %196, %194 : vector<8x16x256xf32>
    %198 = arith.addf %191, %197 : vector<8x16x256xf32>
    %199 = vector.extract_strided_slice %164 {offsets = [5, 0], sizes = [1, 256], strides = [1, 1]} : vector<9x256xf32> to vector<1x256xf32>
    %200 = vector.shape_cast %199 : vector<1x256xf32> to vector<256xf32>
    %201 = vector.extract_strided_slice %163 {offsets = [2, 0, 0], sizes = [8, 16, 256], strides = [1, 1, 1]} : vector<12x16x256xf32> to vector<8x16x256xf32>
    %202 = vector.shape_cast %200 : vector<256xf32> to vector<1x1x256xf32>
    %203 = vector.broadcast %202 : vector<1x1x256xf32> to vector<8x16x256xf32>
    %204 = arith.mulf %203, %201 : vector<8x16x256xf32>
    %205 = arith.addf %198, %204 : vector<8x16x256xf32>
    %206 = vector.extract_strided_slice %164 {offsets = [6, 0], sizes = [1, 256], strides = [1, 1]} : vector<9x256xf32> to vector<1x256xf32>
    %207 = vector.shape_cast %206 : vector<1x256xf32> to vector<256xf32>
    %208 = vector.extract_strided_slice %161 {offsets = [4, 0, 0], sizes = [8, 16, 256], strides = [1, 1, 1]} : vector<12x16x256xf32> to vector<8x16x256xf32>
    %209 = vector.shape_cast %207 : vector<256xf32> to vector<1x1x256xf32>
    %210 = vector.broadcast %209 : vector<1x1x256xf32> to vector<8x16x256xf32>
    %211 = arith.mulf %210, %208 : vector<8x16x256xf32>
    %212 = arith.addf %205, %211 : vector<8x16x256xf32>
    %213 = vector.extract_strided_slice %164 {offsets = [7, 0], sizes = [1, 256], strides = [1, 1]} : vector<9x256xf32> to vector<1x256xf32>
    %214 = vector.shape_cast %213 : vector<1x256xf32> to vector<256xf32>
    %215 = vector.extract_strided_slice %162 {offsets = [4, 0, 0], sizes = [8, 16, 256], strides = [1, 1, 1]} : vector<12x16x256xf32> to vector<8x16x256xf32>
    %216 = vector.shape_cast %214 : vector<256xf32> to vector<1x1x256xf32>
    %217 = vector.broadcast %216 : vector<1x1x256xf32> to vector<8x16x256xf32>
    %218 = arith.mulf %217, %215 : vector<8x16x256xf32>
    %219 = arith.addf %212, %218 : vector<8x16x256xf32>
    %220 = vector.extract_strided_slice %164 {offsets = [8, 0], sizes = [1, 256], strides = [1, 1]} : vector<9x256xf32> to vector<1x256xf32>
    %221 = vector.shape_cast %220 : vector<1x256xf32> to vector<256xf32>
    %222 = vector.extract_strided_slice %163 {offsets = [4, 0, 0], sizes = [8, 16, 256], strides = [1, 1, 1]} : vector<12x16x256xf32> to vector<8x16x256xf32>
    %223 = vector.shape_cast %221 : vector<256xf32> to vector<1x1x256xf32>
    %224 = vector.broadcast %223 : vector<1x1x256xf32> to vector<8x16x256xf32>
    %225 = arith.mulf %224, %222 : vector<8x16x256xf32>
    %226 = arith.addf %219, %225 : vector<8x16x256xf32>
    %227 = vector.extract_strided_slice %226 {offsets = [0, 0, 0], sizes = [8, 16, 128], strides = [1, 1, 1]} : vector<8x16x256xf32> to vector<8x16x128xf32>
    %228 = vector.extract_strided_slice %226 {offsets = [0, 0, 128], sizes = [8, 16, 128], strides = [1, 1, 1]} : vector<8x16x256xf32> to vector<8x16x128xf32>
    %229 = arith.addf %227, %228 : vector<8x16x128xf32>
    %c0_43 = arith.constant 0 : index
    %c0_44 = arith.constant 0 : index
    %230 = vector.load %arg7[%c0_43, %c0_44] : memref<1x128xf32, #tpu.memory_space<vmem>>, vector<1x128xf32>
    %231 = vector.shape_cast %230 : vector<1x128xf32> to vector<1x1x128xf32>
    %232 = vector.broadcast %231 : vector<1x1x128xf32> to vector<8x16x128xf32>
    %233 = arith.addf %229, %232 : vector<8x16x128xf32>
    %234 = math.absf %233 : vector<8x16x128xf32>
    %cst_45 = arith.constant 0.707106769 : f32
    %235 = vector.broadcast %cst_45 : f32 to vector<8x16x128xf32>
    %236 = arith.mulf %234, %235 : vector<8x16x128xf32>
    %cst_46 = arith.constant 0.327591091 : f32
    %237 = vector.broadcast %cst_46 : f32 to vector<8x16x128xf32>
    %238 = arith.mulf %237, %236 : vector<8x16x128xf32>
    %cst_47 = arith.constant 1.000000e+00 : f32
    %239 = vector.broadcast %cst_47 : f32 to vector<8x16x128xf32>
    %240 = arith.addf %239, %238 : vector<8x16x128xf32>
    %241 = tpu.reciprocal %240 {approx = true} : vector<8x16x128xf32> -> vector<8x16x128xf32>
    %cst_48 = arith.constant 1.06140542 : f32
    %242 = vector.broadcast %cst_48 : f32 to vector<8x16x128xf32>
    %243 = arith.mulf %242, %241 : vector<8x16x128xf32>
    %cst_49 = arith.constant 1.45315206 : f32
    %244 = vector.broadcast %cst_49 : f32 to vector<8x16x128xf32>
    %245 = arith.subf %243, %244 : vector<8x16x128xf32>
    %246 = arith.mulf %245, %241 : vector<8x16x128xf32>
    %cst_50 = arith.constant 1.42141378 : f32
    %247 = vector.broadcast %cst_50 : f32 to vector<8x16x128xf32>
    %248 = arith.addf %246, %247 : vector<8x16x128xf32>
    %249 = arith.mulf %248, %241 : vector<8x16x128xf32>
    %cst_51 = arith.constant 0.284496725 : f32
    %250 = vector.broadcast %cst_51 : f32 to vector<8x16x128xf32>
    %251 = arith.subf %249, %250 : vector<8x16x128xf32>
    %252 = arith.mulf %251, %241 : vector<8x16x128xf32>
    %cst_52 = arith.constant 0.254829586 : f32
    %253 = vector.broadcast %cst_52 : f32 to vector<8x16x128xf32>
    %254 = arith.addf %252, %253 : vector<8x16x128xf32>
    %255 = arith.mulf %254, %241 : vector<8x16x128xf32>
    %cst_53 = arith.constant 0.000000e+00 : f32
    %256 = vector.broadcast %cst_53 : f32 to vector<8x16x128xf32>
    %257 = arith.subf %256, %236 : vector<8x16x128xf32>
    %258 = arith.mulf %257, %236 : vector<8x16x128xf32>
    %259 = math.exp %258 : vector<8x16x128xf32>
    %260 = arith.mulf %255, %259 : vector<8x16x128xf32>
    %cst_54 = arith.constant 1.000000e+00 : f32
    %261 = vector.broadcast %cst_54 : f32 to vector<8x16x128xf32>
    %262 = arith.subf %261, %260 : vector<8x16x128xf32>
    %cst_55 = arith.constant 0.000000e+00 : f32
    %263 = vector.broadcast %cst_55 : f32 to vector<8x16x128xf32>
    %264 = arith.cmpf oge, %233, %263 : vector<8x16x128xf32>
    %cst_56 = arith.constant 0.000000e+00 : f32
    %265 = vector.broadcast %cst_56 : f32 to vector<8x16x128xf32>
    %266 = arith.subf %265, %262 : vector<8x16x128xf32>
    %267 = arith.select %264, %262, %266 : vector<8x16x128xi1>, vector<8x16x128xf32>
    %cst_57 = arith.constant 5.000000e-01 : f32
    %268 = vector.broadcast %cst_57 : f32 to vector<8x16x128xf32>
    %269 = arith.mulf %268, %233 : vector<8x16x128xf32>
    %cst_58 = arith.constant 1.000000e+00 : f32
    %270 = vector.broadcast %cst_58 : f32 to vector<8x16x128xf32>
    %271 = arith.addf %270, %267 : vector<8x16x128xf32>
    %272 = arith.mulf %269, %271 : vector<8x16x128xf32>
    %273 = vector.shape_cast %272 : vector<8x16x128xf32> to vector<128x128xf32>
    %274 = arith.truncf %273 : vector<128x128xf32> to vector<128x128xbf16>
    %c0_59 = arith.constant 0 : index
    %c0_60 = arith.constant 0 : index
    %275 = vector.load %arg9[%c0_59, %c0_60] : memref<128x128xbf16, #tpu.memory_space<vmem>>, vector<128x128xbf16>
    %cst_61 = arith.constant dense<0.000000e+00> : vector<128x128xf32>
    %276 = tpu.matmul %274, %275, %cst_61 {dimension_numbers = #tpu.dot_dimension_numbers<[1], [0], [0], [1], [0, 0, 1, 1], [], []>} : vector<128x128xbf16>, vector<128x128xbf16>, vector<128x128xf32> -> vector<128x128xf32>
    %277 = arith.addf %160, %276 : vector<128x128xf32>
    %c0_62 = arith.constant 0 : index
    %c0_63 = arith.constant 0 : index
    %278 = vector.load %arg10[%c0_62, %c0_63] : memref<1x128xf32, #tpu.memory_space<vmem>>, vector<1x128xf32>
    %279 = vector.broadcast %278 : vector<1x128xf32> to vector<128x128xf32>
    %280 = arith.addf %277, %279 : vector<128x128xf32>
    %281 = vector.shape_cast %280 : vector<128x128xf32> to vector<8x16x128xf32>
    %c0_64 = arith.constant 0 : index
    %c0_65 = arith.constant 0 : index
    %c0_66 = arith.constant 0 : index
    %c0_67 = arith.constant 0 : index
    %282 = vector.load %arg11[%c0_64, %c0_65, %c0_66, %c0_67] : memref<1x8x16x128xf32, #tpu.memory_space<vmem>>, vector<1x8x16x128xf32>
    %283 = vector.shape_cast %282 : vector<1x8x16x128xf32> to vector<8x16x128xf32>
    %284 = vector.shape_cast %281 : vector<8x16x128xf32> to vector<1x8x16x128xf32>
    tpu.vector_store %arg11[%c0_64, %c0_65, %c0_66, %c0_67], %284 {strides = array<i32>} : memref<1x8x16x128xf32, #tpu.memory_space<vmem>>, vector<1x8x16x128xf32>,
    return
  }
  func.func @transform_0(%arg0: i32, %arg1: i32) -> (i32, i32, i32, i32, i32) {
    %c0_i32 = arith.constant 0 : i32
    %c0_i32_0 = arith.constant 0 : i32
    %c0_i32_1 = arith.constant 0 : i32
    %c0_i32_2 = arith.constant 0 : i32
    return %arg0, %arg1, %c0_i32, %c0_i32_0, %c0_i32_1 : i32, i32, i32, i32, i32
  }
  func.func @transform_1(%arg0: i32, %arg1: i32) -> (i32, i32) {
    %c0_i32 = arith.constant 0 : i32
    %c0_i32_0 = arith.constant 0 : i32
    %c0_i32_1 = arith.constant 0 : i32
    return %c0_i32, %c0_i32_0 : i32, i32
  }
  func.func @transform_2(%arg0: i32, %arg1: i32) -> (i32, i32) {
    %c0_i32 = arith.constant 0 : i32
    %c0_i32_0 = arith.constant 0 : i32
    %c0_i32_1 = arith.constant 0 : i32
    return %c0_i32, %c0_i32_0 : i32, i32
  }
  func.func @transform_3(%arg0: i32, %arg1: i32) -> (i32, i32) {
    %c0_i32 = arith.constant 0 : i32
    %c0_i32_0 = arith.constant 0 : i32
    %c0_i32_1 = arith.constant 0 : i32
    return %c0_i32, %c0_i32_0 : i32, i32
  }
  func.func @transform_4(%arg0: i32, %arg1: i32) -> (i32, i32) {
    %c0_i32 = arith.constant 0 : i32
    %c0_i32_0 = arith.constant 0 : i32
    %c0_i32_1 = arith.constant 0 : i32
    return %c0_i32, %c0_i32_0 : i32, i32
  }
  func.func @transform_5(%arg0: i32, %arg1: i32) -> (i32, i32) {
    %c0_i32 = arith.constant 0 : i32
    %c0_i32_0 = arith.constant 0 : i32
    %c0_i32_1 = arith.constant 0 : i32
    return %c0_i32, %c0_i32_0 : i32, i32
  }
  func.func @transform_6(%arg0: i32, %arg1: i32) -> (i32, i32) {
    %c0_i32 = arith.constant 0 : i32
    %c0_i32_0 = arith.constant 0 : i32
    %c0_i32_1 = arith.constant 0 : i32
    return %c0_i32, %c0_i32_0 : i32, i32
  }
  func.func @transform_7(%arg0: i32, %arg1: i32) -> (i32, i32) {
    %c0_i32 = arith.constant 0 : i32
    %c0_i32_0 = arith.constant 0 : i32
    %c0_i32_1 = arith.constant 0 : i32
    return %c0_i32, %c0_i32_0 : i32, i32
  }
  func.func @transform_8(%arg0: i32, %arg1: i32) -> (i32, i32) {
    %c0_i32 = arith.constant 0 : i32
    %c0_i32_0 = arith.constant 0 : i32
    %c0_i32_1 = arith.constant 0 : i32
    return %c0_i32, %c0_i32_0 : i32, i32
  }
  func.func @transform_9(%arg0: i32, %arg1: i32) -> (i32, i32, i32, i32) {
    %c0_i32 = arith.constant 0 : i32
    %c0_i32_0 = arith.constant 0 : i32
    %c0_i32_1 = arith.constant 0 : i32
    return %arg0, %arg1, %c0_i32, %c0_i32_0 : i32, i32, i32, i32
  }
}

</mosaic_0001>

<llo_original>
// kernel: atrous_mlp_forward.1
$region0: #{atrous_mlp_forward.1}
  #allocation0 [shape = 'u32[]', space=smem, size = 0x4, offset = 0x4, fixed_abs, tag = 'smem constant byte address 0x4 - core index']
  #allocation1 [shape = 'u32[144,128]{1,0:T(1,128)}', space=vmem, size = 0x12000, scoped, tag = 'internal scratch']
  %s0 = inlined_call_operand.vmem [shape: bf16[2,2,12,24,128], index: 0, kind: input, shape index: {}]
  %s1 = inlined_call_operand.vmem [shape: bf16[128,256], index: 1, kind: input, shape index: {}]
  %s2 = inlined_call_operand.vmem [shape: f32[9,256], index: 2, kind: input, shape index: {}]
  %s3 = inlined_call_operand.vmem [shape: f32[1,128], index: 3, kind: input, shape index: {}]
  %s4 = inlined_call_operand.vmem [shape: f32[9,256], index: 4, kind: input, shape index: {}]
  %s5 = inlined_call_operand.vmem [shape: f32[1,128], index: 5, kind: input, shape index: {}]
  %s6 = inlined_call_operand.vmem [shape: bf16[128,128], index: 6, kind: input, shape index: {}]
  %s7 = inlined_call_operand.vmem [shape: bf16[128,128], index: 7, kind: input, shape index: {}]
  %s8 = inlined_call_operand.vmem [shape: f32[1,128], index: 8, kind: input, shape index: {}]
  %s9 = inlined_call_operand.vmem [shape: f32[2,16,16,128], index: 9, kind: output, shape index: {}]
  %s10 = sld [smem:[#allocation0]]
  $region69: #{atrous_mlp_forward.1} parent=0
    _
  %s12 = ssub.s32 1, %s10
  %s13 = scalar_select 0, %s12, %s10
  loop: start=0, step=1, limit=6
  $region2: #{atrous_mlp_forward.1} parent=0 // loop_pre_header
    _
  $region3: #{atrous_mlp_forward.1} parent=0 // loop_header
    %s15 = sphi 0, %s19
    %p16 = scmp.ge.s32.totalorder %s15, 6
    %s22 = sphi 0, %s34
    %s23 = sphi 0, %s30
    %s24 = sphi 0, %s22
    %s25 = sphi 0, %s23
    %s26 = sphi 0, %s24
    %s27 = sphi 0, %s25
    %s39 = sphi 0, %s41
    %s42 = sphi 0, %s39
    %s43 = sphi 0, %s42
    %s59 = sphi 0, %s43
    %s63 = sphi 0, %s63
    %s65 = sphi 0, %s63
    %s66 = sphi 0, %s65
    %s80 = sphi 0, %s66
    %s84 = sphi 0, %s84
    %s86 = sphi 0, %s84
    %s87 = sphi 0, %s86
    %s101 = sphi 0, %s87
    %s105 = sphi 0, %s105
    %s107 = sphi 0, %s105
    %s108 = sphi 0, %s107
    %s122 = sphi 0, %s108
    %s126 = sphi 0, %s126
    %s128 = sphi 0, %s126
    %s129 = sphi 0, %s128
    %s143 = sphi 0, %s129
    %s147 = sphi 0, %s147
    %s149 = sphi 0, %s147
    %s150 = sphi 0, %s149
    %s164 = sphi 0, %s150
    %s168 = sphi 0, %s168
    %s170 = sphi 0, %s168
    %s171 = sphi 0, %s170
    %s185 = sphi 0, %s171
    %s189 = sphi 0, %s189
    %s191 = sphi 0, %s189
    %s192 = sphi 0, %s191
    %s206 = sphi 0, %s192
    %s210 = sphi 0, %s210
    %s212 = sphi 0, %s210
    %s213 = sphi 0, %s212
    %s227 = sphi 0, %s213
    %s235 = sphi 0, %s237
    %s238 = sphi 0, %s235
    %s239 = sphi 0, %s238
    %s255 = sphi 0, %s239
  $region4: #{atrous_mlp_forward.1} parent=0 // loop_header_branch
    %18 = sbr.rel (%p16) target = $region8
  $region5: #{atrous_mlp_forward.1} parent=0 // loop_body
    %s20 = ssub.s32 %s15, 1
    %s21 = ssub.s32 %s15, 2
    %s28 = sadd.s32 1, %s23
    %p29 = scmp.ge.s32.totalorder %s28, 2
    %s30 = scalar_select %p29, 0, %s28
    %s31 = sadd.s32 1, %s22
    %s32 = scalar_select %p29, %s31, %s22
    %p33 = scmp.ge.s32.totalorder %s32, 2
    %s34 = scalar_select %p33, 0, %s32
    %s35 = ssub.s32 %s22, %s34
    %s36 = ssub.s32 %s23, %s30
    %s37 = sor.u32 %s35, %s36
    %p38 = scmp.eq.s32.totalorder %s37, 0
    %s40 = sadd.s32 %s39, 1
    %s41 = scalar_select %p38, %s39, %s40
    %p44 = pneg %p38
    %p45 = scmp.eq.s32.totalorder %s15, 3
    %p46 = por %p44, %p45
    %p47 = scmp.ne.s32.totalorder %s39, %s42
    %p48 = scmp.eq.s32.totalorder %s15, 0
    %p49 = por %p47, %p48
    %p50 = scmp.ne.s32.totalorder %s39, %s42
    %p51 = scmp.eq.s32.totalorder %s20, 3
    %p52 = por %p50, %p51
    %p53 = scmp.ne.s32.totalorder %s42, %s43
    %p54 = scmp.eq.s32.totalorder %s20, 0
    %p55 = por %p53, %p54
    %p56 = scmp.ne.s32.totalorder %s42, %s43
    %p57 = scmp.eq.s32.totalorder %s21, 3
    %p58 = por %p56, %p57
    %p60 = scmp.ne.s32.totalorder %s43, %s59
    %p61 = scmp.eq.s32.totalorder %s21, 0
    %p62 = por %p60, %p61
    %s64 = sadd.s32 %s63, 1
    %p67 = scmp.eq.s32.totalorder %s15, 3
    %p68 = scmp.ne.s32.totalorder %s63, %s65
    %p69 = scmp.eq.s32.totalorder %s15, 0
    %p70 = por %p68, %p69
    %p71 = scmp.ne.s32.totalorder %s63, %s65
    %p72 = scmp.eq.s32.totalorder %s20, 3
    %p73 = por %p71, %p72
    %p74 = scmp.ne.s32.totalorder %s65, %s66
    %p75 = scmp.eq.s32.totalorder %s20, 0
    %p76 = por %p74, %p75
    %p77 = scmp.ne.s32.totalorder %s65, %s66
    %p78 = scmp.eq.s32.totalorder %s21, 3
    %p79 = por %p77, %p78
    %p81 = scmp.ne.s32.totalorder %s66, %s80
    %p82 = scmp.eq.s32.totalorder %s21, 0
    %p83 = por %p81, %p82
    %s85 = sadd.s32 %s84, 1
    %p88 = scmp.eq.s32.totalorder %s15, 3
    %p89 = scmp.ne.s32.totalorder %s84, %s86
    %p90 = scmp.eq.s32.totalorder %s15, 0
    %p91 = por %p89, %p90
    %p92 = scmp.ne.s32.totalorder %s84, %s86
    %p93 = scmp.eq.s32.totalorder %s20, 3
    %p94 = por %p92, %p93
    %p95 = scmp.ne.s32.totalorder %s86, %s87
    %p96 = scmp.eq.s32.totalorder %s20, 0
    %p97 = por %p95, %p96
    %p98 = scmp.ne.s32.totalorder %s86, %s87
    %p99 = scmp.eq.s32.totalorder %s21, 3
    %p100 = por %p98, %p99
    %p102 = scmp.ne.s32.totalorder %s87, %s101
    %p103 = scmp.eq.s32.totalorder %s21, 0
    %p104 = por %p102, %p103
    %s106 = sadd.s32 %s105, 1
    %p109 = scmp.eq.s32.totalorder %s15, 3
    %p110 = scmp.ne.s32.totalorder %s105, %s107
    %p111 = scmp.eq.s32.totalorder %s15, 0
    %p112 = por %p110, %p111
    %p113 = scmp.ne.s32.totalorder %s105, %s107
    %p114 = scmp.eq.s32.totalorder %s20, 3
    %p115 = por %p113, %p114
    %p116 = scmp.ne.s32.totalorder %s107, %s108
    %p117 = scmp.eq.s32.totalorder %s20, 0
    %p118 = por %p116, %p117
    %p119 = scmp.ne.s32.totalorder %s107, %s108
    %p120 = scmp.eq.s32.totalorder %s21, 3
    %p121 = por %p119, %p120
    %p123 = scmp.ne.s32.totalorder %s108, %s122
    %p124 = scmp.eq.s32.totalorder %s21, 0
    %p125 = por %p123, %p124
    %s127 = sadd.s32 %s126, 1
    %p130 = scmp.eq.s32.totalorder %s15, 3
    %p131 = scmp.ne.s32.totalorder %s126, %s128
    %p132 = scmp.eq.s32.totalorder %s15, 0
    %p133 = por %p131, %p132
    %p134 = scmp.ne.s32.totalorder %s126, %s128
    %p135 = scmp.eq.s32.totalorder %s20, 3
    %p136 = por %p134, %p135
    %p137 = scmp.ne.s32.totalorder %s128, %s129
    %p138 = scmp.eq.s32.totalorder %s20, 0
    %p139 = por %p137, %p138
    %p140 = scmp.ne.s32.totalorder %s128, %s129
    %p141 = scmp.eq.s32.totalorder %s21, 3
    %p142 = por %p140, %p141
    %p144 = scmp.ne.s32.totalorder %s129, %s143
    %p145 = scmp.eq.s32.totalorder %s21, 0
    %p146 = por %p144, %p145
    %s148 = sadd.s32 %s147, 1
    %p151 = scmp.eq.s32.totalorder %s15, 3
    %p152 = scmp.ne.s32.totalorder %s147, %s149
    %p153 = scmp.eq.s32.totalorder %s15, 0
    %p154 = por %p152, %p153
    %p155 = scmp.ne.s32.totalorder %s147, %s149
    %p156 = scmp.eq.s32.totalorder %s20, 3
    %p157 = por %p155, %p156
    %p158 = scmp.ne.s32.totalorder %s149, %s150
    %p159 = scmp.eq.s32.totalorder %s20, 0
    %p160 = por %p158, %p159
    %p161 = scmp.ne.s32.totalorder %s149, %s150
    %p162 = scmp.eq.s32.totalorder %s21, 3
    %p163 = por %p161, %p162
    %p165 = scmp.ne.s32.totalorder %s150, %s164
    %p166 = scmp.eq.s32.totalorder %s21, 0
    %p167 = por %p165, %p166
    %s169 = sadd.s32 %s168, 1
    %p172 = scmp.eq.s32.totalorder %s15, 3
    %p173 = scmp.ne.s32.totalorder %s168, %s170
    %p174 = scmp.eq.s32.totalorder %s15, 0
    %p175 = por %p173, %p174
    %p176 = scmp.ne.s32.totalorder %s168, %s170
    %p177 = scmp.eq.s32.totalorder %s20, 3
    %p178 = por %p176, %p177
    %p179 = scmp.ne.s32.totalorder %s170, %s171
    %p180 = scmp.eq.s32.totalorder %s20, 0
    %p181 = por %p179, %p180
    %p182 = scmp.ne.s32.totalorder %s170, %s171
    %p183 = scmp.eq.s32.totalorder %s21, 3
    %p184 = por %p182, %p183
    %p186 = scmp.ne.s32.totalorder %s171, %s185
    %p187 = scmp.eq.s32.totalorder %s21, 0
    %p188 = por %p186, %p187
    %s190 = sadd.s32 %s189, 1
    %p193 = scmp.eq.s32.totalorder %s15, 3
    %p194 = scmp.ne.s32.totalorder %s189, %s191
    %p195 = scmp.eq.s32.totalorder %s15, 0
    %p196 = por %p194, %p195
    %p197 = scmp.ne.s32.totalorder %s189, %s191
    %p198 = scmp.eq.s32.totalorder %s20, 3
    %p199 = por %p197, %p198
    %p200 = scmp.ne.s32.totalorder %s191, %s192
    %p201 = scmp.eq.s32.totalorder %s20, 0
    %p202 = por %p200, %p201
    %p203 = scmp.ne.s32.totalorder %s191, %s192
    %p204 = scmp.eq.s32.totalorder %s21, 3
    %p205 = por %p203, %p204
    %p207 = scmp.ne.s32.totalorder %s192, %s206
    %p208 = scmp.eq.s32.totalorder %s21, 0
    %p209 = por %p207, %p208
    %s211 = sadd.s32 %s210, 1
    %p214 = scmp.eq.s32.totalorder %s15, 3
    %p215 = scmp.ne.s32.totalorder %s210, %s212
    %p216 = scmp.eq.s32.totalorder %s15, 0
    %p217 = por %p215, %p216
    %p218 = scmp.ne.s32.totalorder %s210, %s212
    %p219 = scmp.eq.s32.totalorder %s20, 3
    %p220 = por %p218, %p219
    %p221 = scmp.ne.s32.totalorder %s212, %s213
    %p222 = scmp.eq.s32.totalorder %s20, 0
    %p223 = por %p221, %p222
    %p224 = scmp.ne.s32.totalorder %s212, %s213
    %p225 = scmp.eq.s32.totalorder %s21, 3
    %p226 = por %p224, %p225
    %p228 = scmp.ne.s32.totalorder %s213, %s227
    %p229 = scmp.eq.s32.totalorder %s21, 0
    %p230 = por %p228, %p229
    %s231 = ssub.s32 %s22, %s34
    %s232 = ssub.s32 %s23, %s30
    %s233 = sor.u32 %s231, %s232
    %p234 = scmp.eq.s32.totalorder %s233, 0
    %s236 = sadd.s32 %s235, 1
    %s237 = scalar_select %p234, %s235, %s236
    %p240 = pneg %p234
    %p241 = scmp.eq.s32.totalorder %s15, 3
    %p242 = por %p240, %p241
    %p243 = scmp.ne.s32.totalorder %s235, %s238
    %p244 = scmp.eq.s32.totalorder %s15, 0
    %p245 = por %p243, %p244
    %p246 = scmp.ne.s32.totalorder %s235, %s238
    %p247 = scmp.eq.s32.totalorder %s20, 3
    %p248 = por %p246, %p247
    %p249 = scmp.ne.s32.totalorder %s238, %s239
    %p250 = scmp.eq.s32.totalorder %s20, 0
    %p251 = por %p249, %p250
    %p252 = scmp.ne.s32.totalorder %s238, %s239
    %p253 = scmp.eq.s32.totalorder %s21, 3
    %p254 = por %p252, %p253
    %p256 = scmp.ne.s32.totalorder %s239, %s255
    %p257 = scmp.eq.s32.totalorder %s21, 0
    %p258 = por %p256, %p257
    %p259 = scmp.le.s32.totalorder 1, %s15
    %p260 = scmp.lt.s32.totalorder %s15, 5
    %p261 = pnand %p259, %p260
    %p262 = pneg %p261
    // Predicated region
    $region9: #{atrous_mlp_forward.1} parent=5 // pred_check
      _
    $region10: #{atrous_mlp_forward.1} parent=5 // pred_check_branch
      %264 = sbr.rel (%p261) target = $region12
    $region11: #{atrous_mlp_forward.1} parent=5 // pred_region
      %s265 = ssub.s32 %s15, 1
      // Predicated region
      $region13: #{atrous_mlp_forward.1} parent=11 // pred_check
        %p266 = pneg %p76
      $region14: #{atrous_mlp_forward.1} parent=11 // pred_check_branch
        %268 = sbr.rel (%p266) target = $region16
      $region15: #{atrous_mlp_forward.1} parent=11 // pred_region
        _
      $region16: #{atrous_mlp_forward.1} parent=11 // pred_fallthru
        _
      // Predicated region
      $region17: #{atrous_mlp_forward.1} parent=11 // pred_check
        %p269 = pneg %p97
      $region18: #{atrous_mlp_forward.1} parent=11 // pred_check_branch
        %271 = sbr.rel (%p269) target = $region20
      $region19: #{atrous_mlp_forward.1} parent=11 // pred_region
        _
      $region20: #{atrous_mlp_forward.1} parent=11 // pred_fallthru
        _
      // Predicated region
      $region21: #{atrous_mlp_forward.1} parent=11 // pred_check
        %p272 = pneg %p118
      $region22: #{atrous_mlp_forward.1} parent=11 // pred_check_branch
        %274 = sbr.rel (%p272) target = $region24
      $region23: #{atrous_mlp_forward.1} parent=11 // pred_region
        _
      $region24: #{atrous_mlp_forward.1} parent=11 // pred_fallthru
        _
      // Predicated region
      $region25: #{atrous_mlp_forward.1} parent=11 // pred_check
        %p275 = pneg %p139
      $region26: #{atrous_mlp_forward.1} parent=11 // pred_check_branch
        %277 = sbr.rel (%p275) target = $region28
      $region27: #{atrous_mlp_forward.1} parent=11 // pred_region
        _
      $region28: #{atrous_mlp_forward.1} parent=11 // pred_fallthru
        _
      // Predicated region
      $region29: #{atrous_mlp_forward.1} parent=11 // pred_check
        %p278 = pneg %p160
      $region30: #{atrous_mlp_forward.1} parent=11 // pred_check_branch
        %280 = sbr.rel (%p278) target = $region32
      $region31: #{atrous_mlp_forward.1} parent=11 // pred_region
        _
      $region32: #{atrous_mlp_forward.1} parent=11 // pred_fallthru
        _
      // Predicated region
      $region33: #{atrous_mlp_forward.1} parent=11 // pred_check
        %p281 = pneg %p181
      $region34: #{atrous_mlp_forward.1} parent=11 // pred_check_branch
        %283 = sbr.rel (%p281) target = $region36
      $region35: #{atrous_mlp_forward.1} parent=11 // pred_region
        _
      $region36: #{atrous_mlp_forward.1} parent=11 // pred_fallthru
        _
      // Predicated region
      $region37: #{atrous_mlp_forward.1} parent=11 // pred_check
        %p284 = pneg %p202
      $region38: #{atrous_mlp_forward.1} parent=11 // pred_check_branch
        %286 = sbr.rel (%p284) target = $region40
      $region39: #{atrous_mlp_forward.1} parent=11 // pred_region
        _
      $region40: #{atrous_mlp_forward.1} parent=11 // pred_fallthru
        _
      // Predicated region
      $region41: #{atrous_mlp_forward.1} parent=11 // pred_check
        %p287 = pneg %p223
      $region42: #{atrous_mlp_forward.1} parent=11 // pred_check_branch
        %289 = sbr.rel (%p287) target = $region44
      $region43: #{atrous_mlp_forward.1} parent=11 // pred_region
        _
      $region44: #{atrous_mlp_forward.1} parent=11 // pred_fallthru
        _
    $region12: #{atrous_mlp_forward.1} parent=5 // pred_fallthru
      _
    %p290 = scmp.lt.s32.totalorder %s15, 4
    // Predicated region
    $region45: #{atrous_mlp_forward.1} parent=5 // pred_check
      %p291 = pneg %p290
    $region46: #{atrous_mlp_forward.1} parent=5 // pred_check_branch
      %293 = sbr.rel (%p291) target = $region48
    $region47: #{atrous_mlp_forward.1} parent=5 // pred_region
      // Predicated region
      $region49: #{atrous_mlp_forward.1} parent=47 // pred_check
        %p294 = pneg %p49
      $region50: #{atrous_mlp_forward.1} parent=47 // pred_check_branch
        %296 = sbr.rel (%p294) target = $region52
      $region51: #{atrous_mlp_forward.1} parent=47 // pred_region
        %p297 = scmp.lt.s32.totalorder %s22, 1
        %s298 = scalar_select %p297, %s22, 1
        %p299 = scmp.lt.s32.totalorder %s23, 1
        %s300 = scalar_select %p299, %s23, 1
        %s301 = smul.addr %s300, 36
        %s302 = smul.addr %s298, 72
        %s303 = sadd.s32 %s301, %s302
        %s304 = smul.addr %s303, 4
        %s305 = scalar_lea.vmem %s0, %s304
      $region52: #{atrous_mlp_forward.1} parent=47 // pred_fallthru
        _
    $region48: #{atrous_mlp_forward.1} parent=5 // pred_fallthru
      _
    %p306 = scmp.le.s32.totalorder 1, %s15
    %p307 = scmp.lt.s32.totalorder %s15, 5
    %p308 = pnand %p306, %p307
    %p309 = pneg %p308
    // Predicated region
    $region53: #{atrous_mlp_forward.1} parent=5 // pred_check
      _
    $region54: #{atrous_mlp_forward.1} parent=5 // pred_check_branch
      %311 = sbr.rel (%p308) target = $region56
    $region55: #{atrous_mlp_forward.1} parent=5 // pred_region
      %s312 = ssub.s32 %s15, 1
      %p313 = scmp.lt.s32.totalorder %s24, 1
      %s314 = scalar_select %p313, %s24, 1
      %p315 = scmp.lt.s32.totalorder %s25, 1
      %s316 = scalar_select %p315, %s25, 1
      %s317 = smul.addr %s316, 36
      %s318 = smul.addr %s314, 72
      %s319 = sadd.s32 %s317, %s318
      %s320 = smul.addr %s319, 4
      %s321 = scalar_lea.vmem %s0, %s320
      %p322 = pneg %p55
      %p323 = pneg %p52
      %p324 = pneg %p76
      %p325 = pneg %p73
      %p326 = pneg %p97
      %p327 = pneg %p94
      %p328 = pneg %p118
      %p329 = pneg %p115
      %p330 = pneg %p139
      %p331 = pneg %p136
      %p332 = pneg %p160
      %p333 = pneg %p157
      %p334 = pneg %p181
      %p335 = pneg %p178
      %p336 = pneg %p202
      %p337 = pneg %p199
      %p338 = pneg %p223
      %p339 = pneg %p220
      %p340 = pneg %p251
      %p341 = pneg %p248
      %s342 = smul.u32 8, %s25
      %p343 = scmp.lt.s32.totalorder %s24, 1
      %s344 = scalar_select %p343, %s24, 1
      %p345 = scmp.lt.s32.totalorder %s342, 15
      %s346 = scalar_select %p345, %s342, 15
      %s347 = smul.addr %s346, 2
      %s348 = smul.addr %s344, 32
      %s349 = sadd.s32 %s347, %s348
      %s350 = smul.addr %s349, 8
      %s351 = scalar_lea.vmem %s9, %s350
      %p352 = scmp.lt.s32.totalorder %s24, 1
      %s353 = scalar_select %p352, %s24, 1
      %p354 = scmp.lt.s32.totalorder %s25, 1
      %s355 = scalar_select %p354, %s25, 1
      %s356 = smul.addr %s355, 36
      %s357 = smul.addr %s353, 72
      %s358 = sadd.s32 %s356, %s357
      %s359 = smul.addr %s358, 4
      %s360 = scalar_lea.vmem %s0, %s359
      %s361 = smul.u32 8, %s25
      %p362 = scmp.lt.s32.totalorder %s24, 1
      %s363 = scalar_select %p362, %s24, 1
      %p364 = scmp.lt.s32.totalorder %s361, 15
      %s365 = scalar_select %p364, %s361, 15
      %s366 = smul.addr %s365, 2
      %s367 = smul.addr %s363, 32
      %s368 = sadd.s32 %s366, %s367
      %s369 = smul.addr %s368, 8
      %s370 = scalar_lea.vmem %s9, %s369
      %s371 = smul.u32 8, %s25
      %v373 = vld [vmem:[%s360] sm:$0xf]
      %v374 = vld [vmem:[%s360 + $0x4] sm:$0xf]
      %v375 = vld [vmem:[%s360 + $0x8] sm:$0xf]
      %v376 = vld [vmem:[%s360 + $0xc] sm:$0xf]
      %v377 = vld [vmem:[%s360 + $0x10] sm:$0xf]
      %v378 = vld [vmem:[%s360 + $0x14] sm:$0xf]
      %v379 = vld [vmem:[%s360 + $0x18] sm:$0xf]
      %v380 = vld [vmem:[%s360 + $0x1c] sm:$0xf]
      %v381 = vld [vmem:[%s360 + $0x20] sm:$0xf]
      %v382 = vld [vmem:[%s360 + $0x24] sm:$0xf]
      %v383 = vld [vmem:[%s360 + $0x28] sm:$0xf]
      %v384 = vld [vmem:[%s360 + $0x2c] sm:$0xf]
      %v385 = vld [vmem:[%s360 + $0x30] sm:$0xf]
      %v386 = vld [vmem:[%s360 + $0x34] sm:$0xf]
      %v387 = vld [vmem:[%s360 + $0x38] sm:$0xf]
      %v388 = vld [vmem:[%s360 + $0x3c] sm:$0xf]
      %v389 = vld [vmem:[%s360 + $0x40] sm:$0xf]
      %v390 = vld [vmem:[%s360 + $0x44] sm:$0xf]
      %v391 = vld [vmem:[%s360 + $0x48] sm:$0xf]
      %v392 = vld [vmem:[%s360 + $0x4c] sm:$0xf]
      %v393 = vld [vmem:[%s360 + $0x50] sm:$0xf]
      %v394 = vld [vmem:[%s360 + $0x54] sm:$0xf]
      %v395 = vld [vmem:[%s360 + $0x58] sm:$0xf]
      %v396 = vld [vmem:[%s360 + $0x5c] sm:$0xf]
      %v397 = vld [vmem:[%s360 + $0x60] sm:$0xf]
      %v398 = vld [vmem:[%s360 + $0x64] sm:$0xf]
      %v399 = vld [vmem:[%s360 + $0x68] sm:$0xf]
      %v400 = vld [vmem:[%s360 + $0x6c] sm:$0xf]
      %v401 = vld [vmem:[%s360 + $0x70] sm:$0xf]
      %v402 = vld [vmem:[%s360 + $0x74] sm:$0xf]
      %v403 = vld [vmem:[%s360 + $0x78] sm:$0xf]
      %v404 = vld [vmem:[%s360 + $0x7c] sm:$0xf]
      %v405 = vld [vmem:[%s360 + $0x80] sm:$0xf]
      %v406 = vld [vmem:[%s360 + $0x84] sm:$0xf]
      %v407 = vld [vmem:[%s360 + $0x88] sm:$0xf]
      %v408 = vld [vmem:[%s360 + $0x8c] sm:$0xf]
      %v409 = vld [vmem:[%s1] sm:$0xff]
      %v410 = vld [vmem:[%s1 + $0x8] sm:$0xff]
      %v411 = vld [vmem:[%s1 + $0x10] sm:$0xff]
      %v412 = vld [vmem:[%s1 + $0x18] sm:$0xff]
      %v413 = vld [vmem:[%s1 + $0x20] sm:$0xff]
      %v414 = vld [vmem:[%s1 + $0x28] sm:$0xff]
      %v415 = vld [vmem:[%s1 + $0x30] sm:$0xff]
      %v416 = vld [vmem:[%s1 + $0x38] sm:$0xff]
      %v417 = vld [vmem:[%s1 + $0x40] sm:$0xff]
      %v418 = vld [vmem:[%s1 + $0x48] sm:$0xff]
      %v419 = vld [vmem:[%s1 + $0x50] sm:$0xff]
      %v420 = vld [vmem:[%s1 + $0x58] sm:$0xff]
      %v421 = vld [vmem:[%s1 + $0x60] sm:$0xff]
      %v422 = vld [vmem:[%s1 + $0x68] sm:$0xff]
      %v423 = vld [vmem:[%s1 + $0x70] sm:$0xff]
      %v424 = vld [vmem:[%s1 + $0x78] sm:$0xff]
      %v461 = vunpack.c.l.b16 %v373
      %v462 = vunpack.c.l.b16 %v374
      %v463 = vunpack.c.l.b16 %v375
      %v464 = vunpack.c.l.b16 %v376
      %v465 = vunpack.c.l.b16 %v377
      %v466 = vunpack.c.l.b16 %v378
      %v467 = vunpack.c.l.b16 %v379
      %v468 = vunpack.c.l.b16 %v380
      %v469 = vunpack.c.l.b16 %v381
      %v470 = vunpack.c.l.b16 %v382
      %v471 = vunpack.c.l.b16 %v383
      %v472 = vunpack.c.l.b16 %v384
      %v473 = vunpack.c.l.b16 %v385
      %v474 = vunpack.c.l.b16 %v386
      %v475 = vunpack.c.l.b16 %v387
      %v476 = vunpack.c.l.b16 %v388
      %v477 = vunpack.c.l.b16 %v389
      %v478 = vunpack.c.l.b16 %v390
      %v479 = vunpack.c.l.b16 %v391
      %v480 = vunpack.c.l.b16 %v392
      %v481 = vunpack.c.l.b16 %v393
      %v482 = vunpack.c.l.b16 %v394
      %v483 = vunpack.c.l.b16 %v395
      %v484 = vunpack.c.l.b16 %v396
      %v485 = vunpack.c.l.b16 %v397
      %v486 = vunpack.c.l.b16 %v398
      %v487 = vunpack.c.l.b16 %v399
      %v488 = vunpack.c.l.b16 %v400
      %v489 = vunpack.c.l.b16 %v401
      %v490 = vunpack.c.l.b16 %v402
      %v491 = vunpack.c.l.b16 %v403
      %v492 = vunpack.c.l.b16 %v404
      %v493 = vunpack.c.l.b16 %v405
      %v494 = vunpack.c.l.b16 %v406
      %v495 = vunpack.c.l.b16 %v407
      %v496 = vunpack.c.l.b16 %v408
      %v497 = vpack.c.b16 %v462, %v461
      %v498 = vpack.c.b16 %v464, %v463
      %v499 = vpack.c.b16 %v466, %v465
      %v500 = vpack.c.b16 %v468, %v467
      %v501 = vpack.c.b16 %v470, %v469
      %v502 = vpack.c.b16 %v472, %v471
      %v503 = vpack.c.b16 %v474, %v473
      %v504 = vpack.c.b16 %v476, %v475
      %v505 = vpack.c.b16 %v478, %v477
      %v506 = vpack.c.b16 %v480, %v479
      %v507 = vpack.c.b16 %v482, %v481
      %v508 = vpack.c.b16 %v484, %v483
      %v509 = vpack.c.b16 %v486, %v485
      %v510 = vpack.c.b16 %v488, %v487
      %v511 = vpack.c.b16 %v490, %v489
      %v512 = vpack.c.b16 %v492, %v491
      %v513 = vpack.c.b16 %v494, %v493
      %v514 = vpack.c.b16 %v496, %v495
      %v549 = vunpack.c.l.b16 %v409
      %v550 = vunpack.c.h.b16 %v409
      %v551 = vunpack.c.l.b16 %v410
      %v552 = vunpack.c.h.b16 %v410
      %v553 = vunpack.c.l.b16 %v411
      %v554 = vunpack.c.h.b16 %v411
      %v555 = vunpack.c.l.b16 %v412
      %v556 = vunpack.c.h.b16 %v412
      %v557 = vunpack.c.l.b16 %v413
      %v558 = vunpack.c.h.b16 %v413
      %v559 = vunpack.c.l.b16 %v414
      %v560 = vunpack.c.h.b16 %v414
      %v561 = vunpack.c.l.b16 %v415
      %v562 = vunpack.c.h.b16 %v415
      %v563 = vunpack.c.l.b16 %v416
      %v564 = vunpack.c.h.b16 %v416
      %v565 = vunpack.c.l.b16 %v417
      %v566 = vunpack.c.h.b16 %v417
      %v567 = vunpack.c.l.b16 %v418
      %v568 = vunpack.c.h.b16 %v418
      %v569 = vunpack.c.l.b16 %v419
      %v570 = vunpack.c.h.b16 %v419
      %v571 = vunpack.c.l.b16 %v420
      %v572 = vunpack.c.h.b16 %v420
      %v573 = vunpack.c.l.b16 %v421
      %v574 = vunpack.c.h.b16 %v421
      %v575 = vunpack.c.l.b16 %v422
      %v576 = vunpack.c.h.b16 %v422
      %v577 = vunpack.c.l.b16 %v423
      %v578 = vunpack.c.h.b16 %v423
      %v579 = vunpack.c.l.b16 %v424
      %v580 = vunpack.c.h.b16 %v424
      %v581 = vpack.c.b16 %v551, %v549
      %v582 = vpack.c.b16 %v552, %v550
      %v583 = vpack.c.b16 %v555, %v553
      %v584 = vpack.c.b16 %v556, %v554
      %v585 = vpack.c.b16 %v559, %v557
      %v586 = vpack.c.b16 %v560, %v558
      %v587 = vpack.c.b16 %v563, %v561
      %v588 = vpack.c.b16 %v564, %v562
      %v589 = vpack.c.b16 %v567, %v565
      %v590 = vpack.c.b16 %v568, %v566
      %v591 = vpack.c.b16 %v571, %v569
      %v592 = vpack.c.b16 %v572, %v570
      %v593 = vpack.c.b16 %v575, %v573
      %v594 = vpack.c.b16 %v576, %v574
      %v595 = vpack.c.b16 %v579, %v577
      %v596 = vpack.c.b16 %v580, %v578
      %613 = vmatprep.subr.bf16.mxu0 %v582
      %614 = vmatpush1.bf16.msra.mxu0 %v581
      %615 = vmatprep.subr.bf16.mxu0 %v584
      %616 = vmatpush1.bf16.msra.mxu0 %v583
      %617 = vmatprep.subr.bf16.mxu0 %v586
      %618 = vmatpush1.bf16.msra.mxu0 %v585
      %619 = vmatprep.subr.bf16.mxu0 %v588
      %620 = vmatpush1.bf16.msra.mxu0 %v587
      %621 = vmatprep.subr.bf16.mxu0 %v590
      %622 = vmatpush1.bf16.msra.mxu0 %v589
      %623 = vmatprep.subr.bf16.mxu0 %v592
      %624 = vmatpush1.bf16.msra.mxu0 %v591
      %625 = vmatprep.subr.bf16.mxu0 %v594
      %626 = vmatpush1.bf16.msra.mxu0 %v593
      %627 = vmatprep.subr.bf16.mxu0 %v596
      %628 = vmatpush1.bf16.msra.mxu0 %v595
      %629 = vmatprep.subr.bf16.mxu0 0
      %630 = vmatpush1.bf16.msra.mxu0 0
      %631 = vmatprep.subr.bf16.mxu0 0
      %632 = vmatpush1.bf16.msra.mxu0 0
      %633 = vmatprep.subr.bf16.mxu0 0
      %634 = vmatpush1.bf16.msra.mxu0 0
      %635 = vmatprep.subr.bf16.mxu0 0
      %636 = vmatpush1.bf16.msra.mxu0 0
      %637 = vmatprep.subr.bf16.mxu0 0
      %638 = vmatpush1.bf16.msra.mxu0 0
      %639 = vmatprep.subr.bf16.mxu0 0
      %640 = vmatpush1.bf16.msra.mxu0 0
      %641 = vmatprep.subr.bf16.mxu0 0
      %642 = vmatpush1.bf16.msra.mxu0 0
      %643 = vmatprep.subr.bf16.mxu0 0
      %644 = vmatpush1.bf16.msra.mxu0 0
      %645 = vmatprep.mubr.bf16.mxu0 0
      %646 = vmatmul.mubr.bf16.gmra.mrb[0].mxu0 %v497
      %v647 = vpop.f32.mrb[0].mxu0
      %v648 = vadd.f32 0.0, %v647
      %v649 = vpop.f32.mrb[0].mxu0
      %v650 = vadd.f32 0.0, %v649
      %v651 = vpop.f32.mrb[0].mxu0
      %v652 = vadd.f32 0.0, %v651
      %v653 = vpop.f32.mrb[0].mxu0
      %v654 = vadd.f32 0.0, %v653
      %655 = vmatprep.mubr.bf16.mxu0 0
      %656 = vmatmul.mubr.bf16.gmra.mrb[0].mxu0 %v498
      %v657 = vpop.f32.mrb[0].mxu0
      %v658 = vadd.f32 0.0, %v657
      %v659 = vpop.f32.mrb[0].mxu0
      %v660 = vadd.f32 0.0, %v659
      %v661 = vpop.f32.mrb[0].mxu0
      %v662 = vadd.f32 0.0, %v661
      %v663 = vpop.f32.mrb[0].mxu0
      %v664 = vadd.f32 0.0, %v663
      %665 = vmatprep.mubr.bf16.mxu0 0
      %666 = vmatmul.mubr.bf16.gmra.mrb[0].mxu0 %v499
      %v667 = vpop.f32.mrb[0].mxu0
      %v668 = vadd.f32 0.0, %v667
      %v669 = vpop.f32.mrb[0].mxu0
      %v670 = vadd.f32 0.0, %v669
      %v671 = vpop.f32.mrb[0].mxu0
      %v672 = vadd.f32 0.0, %v671
      %v673 = vpop.f32.mrb[0].mxu0
      %v674 = vadd.f32 0.0, %v673
      %675 = vmatprep.mubr.bf16.mxu0 0
      %676 = vmatmul.mubr.bf16.gmra.mrb[0].mxu0 %v500
      %v677 = vpop.f32.mrb[0].mxu0
      %v678 = vadd.f32 0.0, %v677
      %v679 = vpop.f32.mrb[0].mxu0
      %v680 = vadd.f32 0.0, %v679
      %v681 = vpop.f32.mrb[0].mxu0
      %v682 = vadd.f32 0.0, %v681
      %v683 = vpop.f32.mrb[0].mxu0
      %v684 = vadd.f32 0.0, %v683
      %685 = vmatprep.mubr.bf16.mxu0 0
      %686 = vmatmul.mubr.bf16.gmra.mrb[0].mxu0 %v501
      %v687 = vpop.f32.mrb[0].mxu0
      %v688 = vadd.f32 0.0, %v687
      %v689 = vpop.f32.mrb[0].mxu0
      %v690 = vadd.f32 0.0, %v689
      %v691 = vpop.f32.mrb[0].mxu0
      %v692 = vadd.f32 0.0, %v691
      %v693 = vpop.f32.mrb[0].mxu0
      %v694 = vadd.f32 0.0, %v693
      %695 = vmatprep.mubr.bf16.mxu0 0
      %696 = vmatmul.mubr.bf16.gmra.mrb[0].mxu0 %v502
      %v697 = vpop.f32.mrb[0].mxu0
      %v698 = vadd.f32 0.0, %v697
      %v699 = vpop.f32.mrb[0].mxu0
      %v700 = vadd.f32 0.0, %v699
      %v701 = vpop.f32.mrb[0].mxu0
      %v702 = vadd.f32 0.0, %v701
      %v703 = vpop.f32.mrb[0].mxu0
      %v704 = vadd.f32 0.0, %v703
      %705 = vmatprep.mubr.bf16.mxu0 0
      %706 = vmatmul.mubr.bf16.gmra.mrb[0].mxu0 %v503
      %v707 = vpop.f32.mrb[0].mxu0
      %v708 = vadd.f32 0.0, %v707
      %v709 = vpop.f32.mrb[0].mxu0
      %v710 = vadd.f32 0.0, %v709
      %v711 = vpop.f32.mrb[0].mxu0
      %v712 = vadd.f32 0.0, %v711
      %v713 = vpop.f32.mrb[0].mxu0
      %v714 = vadd.f32 0.0, %v713
      %715 = vmatprep.mubr.bf16.mxu0 0
      %716 = vmatmul.mubr.bf16.gmra.mrb[0].mxu0 %v504
      %v717 = vpop.f32.mrb[0].mxu0
      %v718 = vadd.f32 0.0, %v717
      %v719 = vpop.f32.mrb[0].mxu0
      %v720 = vadd.f32 0.0, %v719
      %v721 = vpop.f32.mrb[0].mxu0
      %v722 = vadd.f32 0.0, %v721
      %v723 = vpop.f32.mrb[0].mxu0
      %v724 = vadd.f32 0.0, %v723
      %725 = vmatprep.mubr.bf16.mxu0 0
      %726 = vmatmul.mubr.bf16.gmra.mrb[0].mxu0 %v505
      %v727 = vpop.f32.mrb[0].mxu0
      %v728 = vadd.f32 0.0, %v727
      %v729 = vpop.f32.mrb[0].mxu0
      %v730 = vadd.f32 0.0, %v729
      %v731 = vpop.f32.mrb[0].mxu0
      %v732 = vadd.f32 0.0, %v731
      %v733 = vpop.f32.mrb[0].mxu0
      %v734 = vadd.f32 0.0, %v733
      %735 = vmatprep.mubr.bf16.mxu0 0
      %736 = vmatmul.mubr.bf16.gmra.mrb[0].mxu0 %v506
      %v737 = vpop.f32.mrb[0].mxu0
      %v738 = vadd.f32 0.0, %v737
      %v739 = vpop.f32.mrb[0].mxu0
      %v740 = vadd.f32 0.0, %v739
      %v741 = vpop.f32.mrb[0].mxu0
      %v742 = vadd.f32 0.0, %v741
      %v743 = vpop.f32.mrb[0].mxu0
      %v744 = vadd.f32 0.0, %v743
      %745 = vmatprep.mubr.bf16.mxu0 0
      %746 = vmatmul.mubr.bf16.gmra.mrb[0].mxu0 %v507
      %v747 = vpop.f32.mrb[0].mxu0
      %v748 = vadd.f32 0.0, %v747
      %v749 = vpop.f32.mrb[0].mxu0
      %v750 = vadd.f32 0.0, %v749
      %v751 = vpop.f32.mrb[0].mxu0
      %v752 = vadd.f32 0.0, %v751
      %v753 = vpop.f32.mrb[0].mxu0
      %v754 = vadd.f32 0.0, %v753
      %755 = vmatprep.mubr.bf16.mxu0 0
      %756 = vmatmul.mubr.bf16.gmra.mrb[0].mxu0 %v508
      %v757 = vpop.f32.mrb[0].mxu0
      %v758 = vadd.f32 0.0, %v757
      %v759 = vpop.f32.mrb[0].mxu0
      %v760 = vadd.f32 0.0, %v759
      %v761 = vpop.f32.mrb[0].mxu0
      %v762 = vadd.f32 0.0, %v761
      %v763 = vpop.f32.mrb[0].mxu0
      %v764 = vadd.f32 0.0, %v763
      %765 = vmatprep.mubr.bf16.mxu0 0
      %766 = vmatmul.mubr.bf16.gmra.mrb[0].mxu0 %v509
      %v767 = vpop.f32.mrb[0].mxu0
      %v768 = vadd.f32 0.0, %v767
      %v769 = vpop.f32.mrb[0].mxu0
      %v770 = vadd.f32 0.0, %v769
      %v771 = vpop.f32.mrb[0].mxu0
      %v772 = vadd.f32 0.0, %v771
      %v773 = vpop.f32.mrb[0].mxu0
      %v774 = vadd.f32 0.0, %v773
      %775 = vmatprep.mubr.bf16.mxu0 0
      %776 = vmatmul.mubr.bf16.gmra.mrb[0].mxu0 %v510
      %v777 = vpop.f32.mrb[0].mxu0
      %v778 = vadd.f32 0.0, %v777
      %v779 = vpop.f32.mrb[0].mxu0
      %v780 = vadd.f32 0.0, %v779
      %v781 = vpop.f32.mrb[0].mxu0
      %v782 = vadd.f32 0.0, %v781
      %v783 = vpop.f32.mrb[0].mxu0
      %v784 = vadd.f32 0.0, %v783
      %785 = vmatprep.mubr.bf16.mxu0 0
      %786 = vmatmul.mubr.bf16.gmra.mrb[0].mxu0 %v511
      %v787 = vpop.f32.mrb[0].mxu0
      %v788 = vadd.f32 0.0, %v787
      %v789 = vpop.f32.mrb[0].mxu0
      %v790 = vadd.f32 0.0, %v789
      %v791 = vpop.f32.mrb[0].mxu0
      %v792 = vadd.f32 0.0, %v791
      %v793 = vpop.f32.mrb[0].mxu0
      %v794 = vadd.f32 0.0, %v793
      %795 = vmatprep.mubr.bf16.mxu0 0
      %796 = vmatmul.mubr.bf16.gmra.mrb[0].mxu0 %v512
      %v797 = vpop.f32.mrb[0].mxu0
      %v798 = vadd.f32 0.0, %v797
      %v799 = vpop.f32.mrb[0].mxu0
      %v800 = vadd.f32 0.0, %v799
      %v801 = vpop.f32.mrb[0].mxu0
      %v802 = vadd.f32 0.0, %v801
      %v803 = vpop.f32.mrb[0].mxu0
      %v804 = vadd.f32 0.0, %v803
      %805 = vmatprep.mubr.bf16.mxu0 0
      %806 = vmatmul.mubr.bf16.gmra.mrb[0].mxu0 %v513
      %v807 = vpop.f32.mrb[0].mxu0
      %v808 = vadd.f32 0.0, %v807
      %v809 = vpop.f32.mrb[0].mxu0
      %v810 = vadd.f32 0.0, %v809
      %v811 = vpop.f32.mrb[0].mxu0
      %v812 = vadd.f32 0.0, %v811
      %v813 = vpop.f32.mrb[0].mxu0
      %v814 = vadd.f32 0.0, %v813
      %815 = vmatprep.mubr.bf16.mxu0 0
      %816 = vmatmul.mubr.bf16.gmra.mrb[0].mxu0 %v514
      %v817 = vpop.f32.mrb[0].mxu0
      %v818 = vadd.f32 0.0, %v817
      %v819 = vpop.f32.mrb[0].mxu0
      %v820 = vadd.f32 0.0, %v819
      %v821 = vpop.f32.mrb[0].mxu0
      %v822 = vadd.f32 0.0, %v821
      %v823 = vpop.f32.mrb[0].mxu0
      %v824 = vadd.f32 0.0, %v823
      %825 = vdwg.mxu0
      %v826 = vand.u32 2147483647, %v648
      %v827 = vand.u32 2147483647, %v650
      %v828 = vand.u32 2147483647, %v652
      %v829 = vand.u32 2147483647, %v654
      %v830 = vand.u32 2147483647, %v658
      %v831 = vand.u32 2147483647, %v660
      %v832 = vand.u32 2147483647, %v662
      %v833 = vand.u32 2147483647, %v664
      %v834 = vand.u32 2147483647, %v668
      %v835 = vand.u32 2147483647, %v670
      %v836 = vand.u32 2147483647, %v672
      %v837 = vand.u32 2147483647, %v674
      %v838 = vand.u32 2147483647, %v678
      %v839 = vand.u32 2147483647, %v680
      %v840 = vand.u32 2147483647, %v682
      %v841 = vand.u32 2147483647, %v684
      %v842 = vand.u32 2147483647, %v688
      %v843 = vand.u32 2147483647, %v690
      %v844 = vand.u32 2147483647, %v692
      %v845 = vand.u32 2147483647, %v694
      %v846 = vand.u32 2147483647, %v698
      %v847 = vand.u32 2147483647, %v700
      %v848 = vand.u32 2147483647, %v702
      %v849 = vand.u32 2147483647, %v704
      %v850 = vand.u32 2147483647, %v708
      %v851 = vand.u32 2147483647, %v710
      %v852 = vand.u32 2147483647, %v712
      %v853 = vand.u32 2147483647, %v714
      %v854 = vand.u32 2147483647, %v718
      %v855 = vand.u32 2147483647, %v720
      %v856 = vand.u32 2147483647, %v722
      %v857 = vand.u32 2147483647, %v724
      %v858 = vand.u32 2147483647, %v728
      %v859 = vand.u32 2147483647, %v730
      %v860 = vand.u32 2147483647, %v732
      %v861 = vand.u32 2147483647, %v734
      %v862 = vand.u32 2147483647, %v738
      %v863 = vand.u32 2147483647, %v740
      %v864 = vand.u32 2147483647, %v742
      %v865 = vand.u32 2147483647, %v744
      %v866 = vand.u32 2147483647, %v748
      %v867 = vand.u32 2147483647, %v750
      %v868 = vand.u32 2147483647, %v752
      %v869 = vand.u32 2147483647, %v754
      %v870 = vand.u32 2147483647, %v758
      %v871 = vand.u32 2147483647, %v760
      %v872 = vand.u32 2147483647, %v762
      %v873 = vand.u32 2147483647, %v764
      %v874 = vand.u32 2147483647, %v768
      %v875 = vand.u32 2147483647, %v770
      %v876 = vand.u32 2147483647, %v772
      %v877 = vand.u32 2147483647, %v774
      %v878 = vand.u32 2147483647, %v778
      %v879 = vand.u32 2147483647, %v780
      %v880 = vand.u32 2147483647, %v782
      %v881 = vand.u32 2147483647, %v784
      %v882 = vand.u32 2147483647, %v788
      %v883 = vand.u32 2147483647, %v790
      %v884 = vand.u32 2147483647, %v792
      %v885 = vand.u32 2147483647, %v794
      %v886 = vand.u32 2147483647, %v798
      %v887 = vand.u32 2147483647, %v800
      %v888 = vand.u32 2147483647, %v802
      %v889 = vand.u32 2147483647, %v804
      %v890 = vand.u32 2147483647, %v808
      %v891 = vand.u32 2147483647, %v810
      %v892 = vand.u32 2147483647, %v812
      %v893 = vand.u32 2147483647, %v814
      %v894 = vand.u32 2147483647, %v818
      %v895 = vand.u32 2147483647, %v820
      %v896 = vand.u32 2147483647, %v822
      %v897 = vand.u32 2147483647, %v824
      %v898 = vmul.f32 %v826, 0.70710677
      %v899 = vmul.f32 %v827, 0.70710677
      %v900 = vmul.f32 %v828, 0.70710677
      %v901 = vmul.f32 %v829, 0.70710677
      %v902 = vmul.f32 %v830, 0.70710677
      %v903 = vmul.f32 %v831, 0.70710677
      %v904 = vmul.f32 %v832, 0.70710677
      %v905 = vmul.f32 %v833, 0.70710677
      %v906 = vmul.f32 %v834, 0.70710677
      %v907 = vmul.f32 %v835, 0.70710677
      %v908 = vmul.f32 %v836, 0.70710677
      %v909 = vmul.f32 %v837, 0.70710677
      %v910 = vmul.f32 %v838, 0.70710677
      %v911 = vmul.f32 %v839, 0.70710677
      %v912 = vmul.f32 %v840, 0.70710677
      %v913 = vmul.f32 %v841, 0.70710677
      %v914 = vmul.f32 %v842, 0.70710677
      %v915 = vmul.f32 %v843, 0.70710677
      %v916 = vmul.f32 %v844, 0.70710677
      %v917 = vmul.f32 %v845, 0.70710677
      %v918 = vmul.f32 %v846, 0.70710677
      %v919 = vmul.f32 %v847, 0.70710677
      %v920 = vmul.f32 %v848, 0.70710677
      %v921 = vmul.f32 %v849, 0.70710677
      %v922 = vmul.f32 %v850, 0.70710677
      %v923 = vmul.f32 %v851, 0.70710677
      %v924 = vmul.f32 %v852, 0.70710677
      %v925 = vmul.f32 %v853, 0.70710677
      %v926 = vmul.f32 %v854, 0.70710677
      %v927 = vmul.f32 %v855, 0.70710677
      %v928 = vmul.f32 %v856, 0.70710677
      %v929 = vmul.f32 %v857, 0.70710677
      %v930 = vmul.f32 %v858, 0.70710677
      %v931 = vmul.f32 %v859, 0.70710677
      %v932 = vmul.f32 %v860, 0.70710677
      %v933 = vmul.f32 %v861, 0.70710677
      %v934 = vmul.f32 %v862, 0.70710677
      %v935 = vmul.f32 %v863, 0.70710677
      %v936 = vmul.f32 %v864, 0.70710677
      %v937 = vmul.f32 %v865, 0.70710677
      %v938 = vmul.f32 %v866, 0.70710677
      %v939 = vmul.f32 %v867, 0.70710677
      %v940 = vmul.f32 %v868, 0.70710677
      %v941 = vmul.f32 %v869, 0.70710677
      %v942 = vmul.f32 %v870, 0.70710677
      %v943 = vmul.f32 %v871, 0.70710677
      %v944 = vmul.f32 %v872, 0.70710677
      %v945 = vmul.f32 %v873, 0.70710677
      %v946 = vmul.f32 %v874, 0.70710677
      %v947 = vmul.f32 %v875, 0.70710677
      %v948 = vmul.f32 %v876, 0.70710677
      %v949 = vmul.f32 %v877, 0.70710677
      %v950 = vmul.f32 %v878, 0.70710677
      %v951 = vmul.f32 %v879, 0.70710677
      %v952 = vmul.f32 %v880, 0.70710677
      %v953 = vmul.f32 %v881, 0.70710677
      %v954 = vmul.f32 %v882, 0.70710677
      %v955 = vmul.f32 %v883, 0.70710677
      %v956 = vmul.f32 %v884, 0.70710677
      %v957 = vmul.f32 %v885, 0.70710677
      %v958 = vmul.f32 %v886, 0.70710677
      %v959 = vmul.f32 %v887, 0.70710677
      %v960 = vmul.f32 %v888, 0.70710677
      %v961 = vmul.f32 %v889, 0.70710677
      %v962 = vmul.f32 %v890, 0.70710677
      %v963 = vmul.f32 %v891, 0.70710677
      %v964 = vmul.f32 %v892, 0.70710677
      %v965 = vmul.f32 %v893, 0.70710677
      %v966 = vmul.f32 %v894, 0.70710677
      %v967 = vmul.f32 %v895, 0.70710677
      %v968 = vmul.f32 %v896, 0.70710677
      %v969 = vmul.f32 %v897, 0.70710677
      %v970 = vmul.f32 %v898, 0.3275911
      %v971 = vmul.f32 %v899, 0.3275911
      %v972 = vmul.f32 %v900, 0.3275911
      %v973 = vmul.f32 %v901, 0.3275911
      %v974 = vmul.f32 %v902, 0.3275911
      %v975 = vmul.f32 %v903, 0.3275911
      %v976 = vmul.f32 %v904, 0.3275911
      %v977 = vmul.f32 %v905, 0.3275911
      %v978 = vmul.f32 %v906, 0.3275911
      %v979 = vmul.f32 %v907, 0.3275911
      %v980 = vmul.f32 %v908, 0.3275911
      %v981 = vmul.f32 %v909, 0.3275911
      %v982 = vmul.f32 %v910, 0.3275911
      %v983 = vmul.f32 %v911, 0.3275911
      %v984 = vmul.f32 %v912, 0.3275911
      %v985 = vmul.f32 %v913, 0.3275911
      %v986 = vmul.f32 %v914, 0.3275911
      %v987 = vmul.f32 %v915, 0.3275911
      %v988 = vmul.f32 %v916, 0.3275911
      %v989 = vmul.f32 %v917, 0.3275911
      %v990 = vmul.f32 %v918, 0.3275911
      %v991 = vmul.f32 %v919, 0.3275911
      %v992 = vmul.f32 %v920, 0.3275911
      %v993 = vmul.f32 %v921, 0.3275911
      %v994 = vmul.f32 %v922, 0.3275911
      %v995 = vmul.f32 %v923, 0.3275911
      %v996 = vmul.f32 %v924, 0.3275911
      %v997 = vmul.f32 %v925, 0.3275911
      %v998 = vmul.f32 %v926, 0.3275911
      %v999 = vmul.f32 %v927, 0.3275911
      %v1000 = vmul.f32 %v928, 0.3275911
      %v1001 = vmul.f32 %v929, 0.3275911
      %v1002 = vmul.f32 %v930, 0.3275911
      %v1003 = vmul.f32 %v931, 0.3275911
      %v1004 = vmul.f32 %v932, 0.3275911
      %v1005 = vmul.f32 %v933, 0.3275911
      %v1006 = vmul.f32 %v934, 0.3275911
      %v1007 = vmul.f32 %v935, 0.3275911
      %v1008 = vmul.f32 %v936, 0.3275911
      %v1009 = vmul.f32 %v937, 0.3275911
      %v1010 = vmul.f32 %v938, 0.3275911
      %v1011 = vmul.f32 %v939, 0.3275911
      %v1012 = vmul.f32 %v940, 0.3275911
      %v1013 = vmul.f32 %v941, 0.3275911
      %v1014 = vmul.f32 %v942, 0.3275911
      %v1015 = vmul.f32 %v943, 0.3275911
      %v1016 = vmul.f32 %v944, 0.3275911
      %v1017 = vmul.f32 %v945, 0.3275911
      %v1018 = vmul.f32 %v946, 0.3275911
      %v1019 = vmul.f32 %v947, 0.3275911
      %v1020 = vmul.f32 %v948, 0.3275911
      %v1021 = vmul.f32 %v949, 0.3275911
      %v1022 = vmul.f32 %v950, 0.3275911
      %v1023 = vmul.f32 %v951, 0.3275911
      %v1024 = vmul.f32 %v952, 0.3275911
      %v1025 = vmul.f32 %v953, 0.3275911
      %v1026 = vmul.f32 %v954, 0.3275911
      %v1027 = vmul.f32 %v955, 0.3275911
      %v1028 = vmul.f32 %v956, 0.3275911
      %v1029 = vmul.f32 %v957, 0.3275911
      %v1030 = vmul.f32 %v958, 0.3275911
      %v1031 = vmul.f32 %v959, 0.3275911
      %v1032 = vmul.f32 %v960, 0.3275911
      %v1033 = vmul.f32 %v961, 0.3275911
      %v1034 = vmul.f32 %v962, 0.3275911
      %v1035 = vmul.f32 %v963, 0.3275911
      %v1036 = vmul.f32 %v964, 0.3275911
      %v1037 = vmul.f32 %v965, 0.3275911
      %v1038 = vmul.f32 %v966, 0.3275911
      %v1039 = vmul.f32 %v967, 0.3275911
      %v1040 = vmul.f32 %v968, 0.3275911
      %v1041 = vmul.f32 %v969, 0.3275911
      %v1042 = vadd.f32 %v970, 1.0
      %v1043 = vadd.f32 %v971, 1.0
      %v1044 = vadd.f32 %v972, 1.0
      %v1045 = vadd.f32 %v973, 1.0
      %v1046 = vadd.f32 %v974, 1.0
      %v1047 = vadd.f32 %v975, 1.0
      %v1048 = vadd.f32 %v976, 1.0
      %v1049 = vadd.f32 %v977, 1.0
      %v1050 = vadd.f32 %v978, 1.0
      %v1051 = vadd.f32 %v979, 1.0
      %v1052 = vadd.f32 %v980, 1.0
      %v1053 = vadd.f32 %v981, 1.0
      %v1054 = vadd.f32 %v982, 1.0
      %v1055 = vadd.f32 %v983, 1.0
      %v1056 = vadd.f32 %v984, 1.0
      %v1057 = vadd.f32 %v985, 1.0
      %v1058 = vadd.f32 %v986, 1.0
      %v1059 = vadd.f32 %v987, 1.0
      %v1060 = vadd.f32 %v988, 1.0
      %v1061 = vadd.f32 %v989, 1.0
      %v1062 = vadd.f32 %v990, 1.0
      %v1063 = vadd.f32 %v991, 1.0
      %v1064 = vadd.f32 %v992, 1.0
      %v1065 = vadd.f32 %v993, 1.0
      %v1066 = vadd.f32 %v994, 1.0
      %v1067 = vadd.f32 %v995, 1.0
      %v1068 = vadd.f32 %v996, 1.0
      %v1069 = vadd.f32 %v997, 1.0
      %v1070 = vadd.f32 %v998, 1.0
      %v1071 = vadd.f32 %v999, 1.0
      %v1072 = vadd.f32 %v1000, 1.0
      %v1073 = vadd.f32 %v1001, 1.0
      %v1074 = vadd.f32 %v1002, 1.0
      %v1075 = vadd.f32 %v1003, 1.0
      %v1076 = vadd.f32 %v1004, 1.0
      %v1077 = vadd.f32 %v1005, 1.0
      %v1078 = vadd.f32 %v1006, 1.0
      %v1079 = vadd.f32 %v1007, 1.0
      %v1080 = vadd.f32 %v1008, 1.0
      %v1081 = vadd.f32 %v1009, 1.0
      %v1082 = vadd.f32 %v1010, 1.0
      %v1083 = vadd.f32 %v1011, 1.0
      %v1084 = vadd.f32 %v1012, 1.0
      %v1085 = vadd.f32 %v1013, 1.0
      %v1086 = vadd.f32 %v1014, 1.0
      %v1087 = vadd.f32 %v1015, 1.0
      %v1088 = vadd.f32 %v1016, 1.0
      %v1089 = vadd.f32 %v1017, 1.0
      %v1090 = vadd.f32 %v1018, 1.0
      %v1091 = vadd.f32 %v1019, 1.0
      %v1092 = vadd.f32 %v1020, 1.0
      %v1093 = vadd.f32 %v1021, 1.0
      %v1094 = vadd.f32 %v1022, 1.0
      %v1095 = vadd.f32 %v1023, 1.0
      %v1096 = vadd.f32 %v1024, 1.0
      %v1097 = vadd.f32 %v1025, 1.0
      %v1098 = vadd.f32 %v1026, 1.0
      %v1099 = vadd.f32 %v1027, 1.0
      %v1100 = vadd.f32 %v1028, 1.0
      %v1101 = vadd.f32 %v1029, 1.0
      %v1102 = vadd.f32 %v1030, 1.0
      %v1103 = vadd.f32 %v1031, 1.0
      %v1104 = vadd.f32 %v1032, 1.0
      %v1105 = vadd.f32 %v1033, 1.0
      %v1106 = vadd.f32 %v1034, 1.0
      %v1107 = vadd.f32 %v1035, 1.0
      %v1108 = vadd.f32 %v1036, 1.0
      %v1109 = vadd.f32 %v1037, 1.0
      %v1110 = vadd.f32 %v1038, 1.0
      %v1111 = vadd.f32 %v1039, 1.0
      %v1112 = vadd.f32 %v1040, 1.0
      %v1113 = vadd.f32 %v1041, 1.0
      %v1114 = vrcp.pop %v1042
      %v1115 = vrcp.pop %v1043
      %v1116 = vrcp.pop %v1044
      %v1117 = vrcp.pop %v1045
      %v1118 = vrcp.pop %v1046
      %v1119 = vrcp.pop %v1047
      %v1120 = vrcp.pop %v1048
      %v1121 = vrcp.pop %v1049
      %v1122 = vrcp.pop %v1050
      %v1123 = vrcp.pop %v1051
      %v1124 = vrcp.pop %v1052
      %v1125 = vrcp.pop %v1053
      %v1126 = vrcp.pop %v1054
      %v1127 = vrcp.pop %v1055
      %v1128 = vrcp.pop %v1056
      %v1129 = vrcp.pop %v1057
      %v1130 = vrcp.pop %v1058
      %v1131 = vrcp.pop %v1059
      %v1132 = vrcp.pop %v1060
      %v1133 = vrcp.pop %v1061
      %v1134 = vrcp.pop %v1062
      %v1135 = vrcp.pop %v1063
      %v1136 = vrcp.pop %v1064
      %v1137 = vrcp.pop %v1065
      %v1138 = vrcp.pop %v1066
      %v1139 = vrcp.pop %v1067
      %v1140 = vrcp.pop %v1068
      %v1141 = vrcp.pop %v1069
      %v1142 = vrcp.pop %v1070
      %v1143 = vrcp.pop %v1071
      %v1144 = vrcp.pop %v1072
      %v1145 = vrcp.pop %v1073
      %v1146 = vrcp.pop %v1074
      %v1147 = vrcp.pop %v1075
      %v1148 = vrcp.pop %v1076
      %v1149 = vrcp.pop %v1077
      %v1150 = vrcp.pop %v1078
      %v1151 = vrcp.pop %v1079
      %v1152 = vrcp.pop %v1080
      %v1153 = vrcp.pop %v1081
      %v1154 = vrcp.pop %v1082
      %v1155 = vrcp.pop %v1083
      %v1156 = vrcp.pop %v1084
      %v1157 = vrcp.pop %v1085
      %v1158 = vrcp.pop %v1086
      %v1159 = vrcp.pop %v1087
      %v1160 = vrcp.pop %v1088
      %v1161 = vrcp.pop %v1089
      %v1162 = vrcp.pop %v1090
      %v1163 = vrcp.pop %v1091
      %v1164 = vrcp.pop %v1092
      %v1165 = vrcp.pop %v1093
      %v1166 = vrcp.pop %v1094
      %v1167 = vrcp.pop %v1095
      %v1168 = vrcp.pop %v1096
      %v1169 = vrcp.pop %v1097
      %v1170 = vrcp.pop %v1098
      %v1171 = vrcp.pop %v1099
      %v1172 = vrcp.pop %v1100
      %v1173 = vrcp.pop %v1101
      %v1174 = vrcp.pop %v1102
      %v1175 = vrcp.pop %v1103
      %v1176 = vrcp.pop %v1104
      %v1177 = vrcp.pop %v1105
      %v1178 = vrcp.pop %v1106
      %v1179 = vrcp.pop %v1107
      %v1180 = vrcp.pop %v1108
      %v1181 = vrcp.pop %v1109
      %v1182 = vrcp.pop %v1110
      %v1183 = vrcp.pop %v1111
      %v1184 = vrcp.pop %v1112
      %v1185 = vrcp.pop %v1113
      %v1186 = vmul.f32 %v1114, 1.0614054
      %v1187 = vmul.f32 %v1115, 1.0614054
      %v1188 = vmul.f32 %v1116, 1.0614054
      %v1189 = vmul.f32 %v1117, 1.0614054
      %v1190 = vmul.f32 %v1118, 1.0614054
      %v1191 = vmul.f32 %v1119, 1.0614054
      %v1192 = vmul.f32 %v1120, 1.0614054
      %v1193 = vmul.f32 %v1121, 1.0614054
      %v1194 = vmul.f32 %v1122, 1.0614054
      %v1195 = vmul.f32 %v1123, 1.0614054
      %v1196 = vmul.f32 %v1124, 1.0614054
      %v1197 = vmul.f32 %v1125, 1.0614054
      %v1198 = vmul.f32 %v1126, 1.0614054
      %v1199 = vmul.f32 %v1127, 1.0614054
      %v1200 = vmul.f32 %v1128, 1.0614054
      %v1201 = vmul.f32 %v1129, 1.0614054
      %v1202 = vmul.f32 %v1130, 1.0614054
      %v1203 = vmul.f32 %v1131, 1.0614054
      %v1204 = vmul.f32 %v1132, 1.0614054
      %v1205 = vmul.f32 %v1133, 1.0614054
      %v1206 = vmul.f32 %v1134, 1.0614054
      %v1207 = vmul.f32 %v1135, 1.0614054
      %v1208 = vmul.f32 %v1136, 1.0614054
      %v1209 = vmul.f32 %v1137, 1.0614054
      %v1210 = vmul.f32 %v1138, 1.0614054
      %v1211 = vmul.f32 %v1139, 1.0614054
      %v1212 = vmul.f32 %v1140, 1.0614054
      %v1213 = vmul.f32 %v1141, 1.0614054
      %v1214 = vmul.f32 %v1142, 1.0614054
      %v1215 = vmul.f32 %v1143, 1.0614054
      %v1216 = vmul.f32 %v1144, 1.0614054
      %v1217 = vmul.f32 %v1145, 1.0614054
      %v1218 = vmul.f32 %v1146, 1.0614054
      %v1219 = vmul.f32 %v1147, 1.0614054
      %v1220 = vmul.f32 %v1148, 1.0614054
      %v1221 = vmul.f32 %v1149, 1.0614054
      %v1222 = vmul.f32 %v1150, 1.0614054
      %v1223 = vmul.f32 %v1151, 1.0614054
      %v1224 = vmul.f32 %v1152, 1.0614054
      %v1225 = vmul.f32 %v1153, 1.0614054
      %v1226 = vmul.f32 %v1154, 1.0614054
      %v1227 = vmul.f32 %v1155, 1.0614054
      %v1228 = vmul.f32 %v1156, 1.0614054
      %v1229 = vmul.f32 %v1157, 1.0614054
      %v1230 = vmul.f32 %v1158, 1.0614054
      %v1231 = vmul.f32 %v1159, 1.0614054
      %v1232 = vmul.f32 %v1160, 1.0614054
      %v1233 = vmul.f32 %v1161, 1.0614054
      %v1234 = vmul.f32 %v1162, 1.0614054
      %v1235 = vmul.f32 %v1163, 1.0614054
      %v1236 = vmul.f32 %v1164, 1.0614054
      %v1237 = vmul.f32 %v1165, 1.0614054
      %v1238 = vmul.f32 %v1166, 1.0614054
      %v1239 = vmul.f32 %v1167, 1.0614054
      %v1240 = vmul.f32 %v1168, 1.0614054
      %v1241 = vmul.f32 %v1169, 1.0614054
      %v1242 = vmul.f32 %v1170, 1.0614054
      %v1243 = vmul.f32 %v1171, 1.0614054
      %v1244 = vmul.f32 %v1172, 1.0614054
      %v1245 = vmul.f32 %v1173, 1.0614054
      %v1246 = vmul.f32 %v1174, 1.0614054
      %v1247 = vmul.f32 %v1175, 1.0614054
      %v1248 = vmul.f32 %v1176, 1.0614054
      %v1249 = vmul.f32 %v1177, 1.0614054
      %v1250 = vmul.f32 %v1178, 1.0614054
      %v1251 = vmul.f32 %v1179, 1.0614054
      %v1252 = vmul.f32 %v1180, 1.0614054
      %v1253 = vmul.f32 %v1181, 1.0614054
      %v1254 = vmul.f32 %v1182, 1.0614054
      %v1255 = vmul.f32 %v1183, 1.0614054
      %v1256 = vmul.f32 %v1184, 1.0614054
      %v1257 = vmul.f32 %v1185, 1.0614054
      %v1258 = vsub.f32 %v1186, 1.4531521
      %v1259 = vsub.f32 %v1187, 1.4531521
      %v1260 = vsub.f32 %v1188, 1.4531521
      %v1261 = vsub.f32 %v1189, 1.4531521
      %v1262 = vsub.f32 %v1190, 1.4531521
      %v1263 = vsub.f32 %v1191, 1.4531521
      %v1264 = vsub.f32 %v1192, 1.4531521
      %v1265 = vsub.f32 %v1193, 1.4531521
      %v1266 = vsub.f32 %v1194, 1.4531521
      %v1267 = vsub.f32 %v1195, 1.4531521
      %v1268 = vsub.f32 %v1196, 1.4531521
      %v1269 = vsub.f32 %v1197, 1.4531521
      %v1270 = vsub.f32 %v1198, 1.4531521
      %v1271 = vsub.f32 %v1199, 1.4531521
      %v1272 = vsub.f32 %v1200, 1.4531521
      %v1273 = vsub.f32 %v1201, 1.4531521
      %v1274 = vsub.f32 %v1202, 1.4531521
      %v1275 = vsub.f32 %v1203, 1.4531521
      %v1276 = vsub.f32 %v1204, 1.4531521
      %v1277 = vsub.f32 %v1205, 1.4531521
      %v1278 = vsub.f32 %v1206, 1.4531521
      %v1279 = vsub.f32 %v1207, 1.4531521
      %v1280 = vsub.f32 %v1208, 1.4531521
      %v1281 = vsub.f32 %v1209, 1.4531521
      %v1282 = vsub.f32 %v1210, 1.4531521
      %v1283 = vsub.f32 %v1211, 1.4531521
      %v1284 = vsub.f32 %v1212, 1.4531521
      %v1285 = vsub.f32 %v1213, 1.4531521
      %v1286 = vsub.f32 %v1214, 1.4531521
      %v1287 = vsub.f32 %v1215, 1.4531521
      %v1288 = vsub.f32 %v1216, 1.4531521
      %v1289 = vsub.f32 %v1217, 1.4531521
      %v1290 = vsub.f32 %v1218, 1.4531521
      %v1291 = vsub.f32 %v1219, 1.4531521
      %v1292 = vsub.f32 %v1220, 1.4531521
      %v1293 = vsub.f32 %v1221, 1.4531521
      %v1294 = vsub.f32 %v1222, 1.4531521
      %v1295 = vsub.f32 %v1223, 1.4531521
      %v1296 = vsub.f32 %v1224, 1.4531521
      %v1297 = vsub.f32 %v1225, 1.4531521
      %v1298 = vsub.f32 %v1226, 1.4531521
      %v1299 = vsub.f32 %v1227, 1.4531521
      %v1300 = vsub.f32 %v1228, 1.4531521
      %v1301 = vsub.f32 %v1229, 1.4531521
      %v1302 = vsub.f32 %v1230, 1.4531521
      %v1303 = vsub.f32 %v1231, 1.4531521
      %v1304 = vsub.f32 %v1232, 1.4531521
      %v1305 = vsub.f32 %v1233, 1.4531521
      %v1306 = vsub.f32 %v1234, 1.4531521
      %v1307 = vsub.f32 %v1235, 1.4531521
      %v1308 = vsub.f32 %v1236, 1.4531521
      %v1309 = vsub.f32 %v1237, 1.4531521
      %v1310 = vsub.f32 %v1238, 1.4531521
      %v1311 = vsub.f32 %v1239, 1.4531521
      %v1312 = vsub.f32 %v1240, 1.4531521
      %v1313 = vsub.f32 %v1241, 1.4531521
      %v1314 = vsub.f32 %v1242, 1.4531521
      %v1315 = vsub.f32 %v1243, 1.4531521
      %v1316 = vsub.f32 %v1244, 1.4531521
      %v1317 = vsub.f32 %v1245, 1.4531521
      %v1318 = vsub.f32 %v1246, 1.4531521
      %v1319 = vsub.f32 %v1247, 1.4531521
      %v1320 = vsub.f32 %v1248, 1.4531521
      %v1321 = vsub.f32 %v1249, 1.4531521
      %v1322 = vsub.f32 %v1250, 1.4531521
      %v1323 = vsub.f32 %v1251, 1.4531521
      %v1324 = vsub.f32 %v1252, 1.4531521
      %v1325 = vsub.f32 %v1253, 1.4531521
      %v1326 = vsub.f32 %v1254, 1.4531521
      %v1327 = vsub.f32 %v1255, 1.4531521
      %v1328 = vsub.f32 %v1256, 1.4531521
      %v1329 = vsub.f32 %v1257, 1.4531521
      %v1330 = vmul.f32 %v1258, %v1114
      %v1331 = vmul.f32 %v1259, %v1115
      %v1332 = vmul.f32 %v1260, %v1116
      %v1333 = vmul.f32 %v1261, %v1117
      %v1334 = vmul.f32 %v1262, %v1118
      %v1335 = vmul.f32 %v1263, %v1119
      %v1336 = vmul.f32 %v1264, %v1120
      %v1337 = vmul.f32 %v1265, %v1121
      %v1338 = vmul.f32 %v1266, %v1122
      %v1339 = vmul.f32 %v1267, %v1123
      %v1340 = vmul.f32 %v1268, %v1124
      %v1341 = vmul.f32 %v1269, %v1125
      %v1342 = vmul.f32 %v1270, %v1126
      %v1343 = vmul.f32 %v1271, %v1127
      %v1344 = vmul.f32 %v1272, %v1128
      %v1345 = vmul.f32 %v1273, %v1129
      %v1346 = vmul.f32 %v1274, %v1130
      %v1347 = vmul.f32 %v1275, %v1131
      %v1348 = vmul.f32 %v1276, %v1132
      %v1349 = vmul.f32 %v1277, %v1133
      %v1350 = vmul.f32 %v1278, %v1134
      %v1351 = vmul.f32 %v1279, %v1135
      %v1352 = vmul.f32 %v1280, %v1136
      %v1353 = vmul.f32 %v1281, %v1137
      %v1354 = vmul.f32 %v1282, %v1138
      %v1355 = vmul.f32 %v1283, %v1139
      %v1356 = vmul.f32 %v1284, %v1140
      %v1357 = vmul.f32 %v1285, %v1141
      %v1358 = vmul.f32 %v1286, %v1142
      %v1359 = vmul.f32 %v1287, %v1143
      %v1360 = vmul.f32 %v1288, %v1144
      %v1361 = vmul.f32 %v1289, %v1145
      %v1362 = vmul.f32 %v1290, %v1146
      %v1363 = vmul.f32 %v1291, %v1147
      %v1364 = vmul.f32 %v1292, %v1148
      %v1365 = vmul.f32 %v1293, %v1149
      %v1366 = vmul.f32 %v1294, %v1150
      %v1367 = vmul.f32 %v1295, %v1151
      %v1368 = vmul.f32 %v1296, %v1152
      %v1369 = vmul.f32 %v1297, %v1153
      %v1370 = vmul.f32 %v1298, %v1154
      %v1371 = vmul.f32 %v1299, %v1155
      %v1372 = vmul.f32 %v1300, %v1156
      %v1373 = vmul.f32 %v1301, %v1157
      %v1374 = vmul.f32 %v1302, %v1158
      %v1375 = vmul.f32 %v1303, %v1159
      %v1376 = vmul.f32 %v1304, %v1160
      %v1377 = vmul.f32 %v1305, %v1161
      %v1378 = vmul.f32 %v1306, %v1162
      %v1379 = vmul.f32 %v1307, %v1163
      %v1380 = vmul.f32 %v1308, %v1164
      %v1381 = vmul.f32 %v1309, %v1165
      %v1382 = vmul.f32 %v1310, %v1166
      %v1383 = vmul.f32 %v1311, %v1167
      %v1384 = vmul.f32 %v1312, %v1168
      %v1385 = vmul.f32 %v1313, %v1169
      %v1386 = vmul.f32 %v1314, %v1170
      %v1387 = vmul.f32 %v1315, %v1171
      %v1388 = vmul.f32 %v1316, %v1172
      %v1389 = vmul.f32 %v1317, %v1173
      %v1390 = vmul.f32 %v1318, %v1174
      %v1391 = vmul.f32 %v1319, %v1175
      %v1392 = vmul.f32 %v1320, %v1176
      %v1393 = vmul.f32 %v1321, %v1177
      %v1394 = vmul.f32 %v1322, %v1178
      %v1395 = vmul.f32 %v1323, %v1179
      %v1396 = vmul.f32 %v1324, %v1180
      %v1397 = vmul.f32 %v1325, %v1181
      %v1398 = vmul.f32 %v1326, %v1182
      %v1399 = vmul.f32 %v1327, %v1183
      %v1400 = vmul.f32 %v1328, %v1184
      %v1401 = vmul.f32 %v1329, %v1185
      %v1402 = vadd.f32 %v1330, 1.4214138
      %v1403 = vadd.f32 %v1331, 1.4214138
      %v1404 = vadd.f32 %v1332, 1.4214138
      %v1405 = vadd.f32 %v1333, 1.4214138
      %v1406 = vadd.f32 %v1334, 1.4214138
      %v1407 = vadd.f32 %v1335, 1.4214138
      %v1408 = vadd.f32 %v1336, 1.4214138
      %v1409 = vadd.f32 %v1337, 1.4214138
      %v1410 = vadd.f32 %v1338, 1.4214138
      %v1411 = vadd.f32 %v1339, 1.4214138
      %v1412 = vadd.f32 %v1340, 1.4214138
      %v1413 = vadd.f32 %v1341, 1.4214138
      %v1414 = vadd.f32 %v1342, 1.4214138
      %v1415 = vadd.f32 %v1343, 1.4214138
      %v1416 = vadd.f32 %v1344, 1.4214138
      %v1417 = vadd.f32 %v1345, 1.4214138
      %v1418 = vadd.f32 %v1346, 1.4214138
      %v1419 = vadd.f32 %v1347, 1.4214138
      %v1420 = vadd.f32 %v1348, 1.4214138
      %v1421 = vadd.f32 %v1349, 1.4214138
      %v1422 = vadd.f32 %v1350, 1.4214138
      %v1423 = vadd.f32 %v1351, 1.4214138
      %v1424 = vadd.f32 %v1352, 1.4214138
      %v1425 = vadd.f32 %v1353, 1.4214138
      %v1426 = vadd.f32 %v1354, 1.4214138
      %v1427 = vadd.f32 %v1355, 1.4214138
      %v1428 = vadd.f32 %v1356, 1.4214138
      %v1429 = vadd.f32 %v1357, 1.4214138
      %v1430 = vadd.f32 %v1358, 1.4214138
      %v1431 = vadd.f32 %v1359, 1.4214138
      %v1432 = vadd.f32 %v1360, 1.4214138
      %v1433 = vadd.f32 %v1361, 1.4214138
      %v1434 = vadd.f32 %v1362, 1.4214138
      %v1435 = vadd.f32 %v1363, 1.4214138
      %v1436 = vadd.f32 %v1364, 1.4214138
      %v1437 = vadd.f32 %v1365, 1.4214138
      %v1438 = vadd.f32 %v1366, 1.4214138
      %v1439 = vadd.f32 %v1367, 1.4214138
      %v1440 = vadd.f32 %v1368, 1.4214138
      %v1441 = vadd.f32 %v1369, 1.4214138
      %v1442 = vadd.f32 %v1370, 1.4214138
      %v1443 = vadd.f32 %v1371, 1.4214138
      %v1444 = vadd.f32 %v1372, 1.4214138
      %v1445 = vadd.f32 %v1373, 1.4214138
      %v1446 = vadd.f32 %v1374, 1.4214138
      %v1447 = vadd.f32 %v1375, 1.4214138
      %v1448 = vadd.f32 %v1376, 1.4214138
      %v1449 = vadd.f32 %v1377, 1.4214138
      %v1450 = vadd.f32 %v1378, 1.4214138
      %v1451 = vadd.f32 %v1379, 1.4214138
      %v1452 = vadd.f32 %v1380, 1.4214138
      %v1453 = vadd.f32 %v1381, 1.4214138
      %v1454 = vadd.f32 %v1382, 1.4214138
      %v1455 = vadd.f32 %v1383, 1.4214138
      %v1456 = vadd.f32 %v1384, 1.4214138
      %v1457 = vadd.f32 %v1385, 1.4214138
      %v1458 = vadd.f32 %v1386, 1.4214138
      %v1459 = vadd.f32 %v1387, 1.4214138
      %v1460 = vadd.f32 %v1388, 1.4214138
      %v1461 = vadd.f32 %v1389, 1.4214138
      %v1462 = vadd.f32 %v1390, 1.4214138
      %v1463 = vadd.f32 %v1391, 1.4214138
      %v1464 = vadd.f32 %v1392, 1.4214138
      %v1465 = vadd.f32 %v1393, 1.4214138
      %v1466 = vadd.f32 %v1394, 1.4214138
      %v1467 = vadd.f32 %v1395, 1.4214138
      %v1468 = vadd.f32 %v1396, 1.4214138
      %v1469 = vadd.f32 %v1397, 1.4214138
      %v1470 = vadd.f32 %v1398, 1.4214138
      %v1471 = vadd.f32 %v1399, 1.4214138
      %v1472 = vadd.f32 %v1400, 1.4214138
      %v1473 = vadd.f32 %v1401, 1.4214138
      %v1474 = vmul.f32 %v1402, %v1114
      %v1475 = vmul.f32 %v1403, %v1115
      %v1476 = vmul.f32 %v1404, %v1116
      %v1477 = vmul.f32 %v1405, %v1117
      %v1478 = vmul.f32 %v1406, %v1118
      %v1479 = vmul.f32 %v1407, %v1119
      %v1480 = vmul.f32 %v1408, %v1120
      %v1481 = vmul.f32 %v1409, %v1121
      %v1482 = vmul.f32 %v1410, %v1122
      %v1483 = vmul.f32 %v1411, %v1123
      %v1484 = vmul.f32 %v1412, %v1124
      %v1485 = vmul.f32 %v1413, %v1125
      %v1486 = vmul.f32 %v1414, %v1126
      %v1487 = vmul.f32 %v1415, %v1127
      %v1488 = vmul.f32 %v1416, %v1128
      %v1489 = vmul.f32 %v1417, %v1129
      %v1490 = vmul.f32 %v1418, %v1130
      %v1491 = vmul.f32 %v1419, %v1131
      %v1492 = vmul.f32 %v1420, %v1132
      %v1493 = vmul.f32 %v1421, %v1133
      %v1494 = vmul.f32 %v1422, %v1134
      %v1495 = vmul.f32 %v1423, %v1135
      %v1496 = vmul.f32 %v1424, %v1136
      %v1497 = vmul.f32 %v1425, %v1137
      %v1498 = vmul.f32 %v1426, %v1138
      %v1499 = vmul.f32 %v1427, %v1139
      %v1500 = vmul.f32 %v1428, %v1140
      %v1501 = vmul.f32 %v1429, %v1141
      %v1502 = vmul.f32 %v1430, %v1142
      %v1503 = vmul.f32 %v1431, %v1143
      %v1504 = vmul.f32 %v1432, %v1144
      %v1505 = vmul.f32 %v1433, %v1145
      %v1506 = vmul.f32 %v1434, %v1146
      %v1507 = vmul.f32 %v1435, %v1147
      %v1508 = vmul.f32 %v1436, %v1148
      %v1509 = vmul.f32 %v1437, %v1149
      %v1510 = vmul.f32 %v1438, %v1150
      %v1511 = vmul.f32 %v1439, %v1151
      %v1512 = vmul.f32 %v1440, %v1152
      %v1513 = vmul.f32 %v1441, %v1153
      %v1514 = vmul.f32 %v1442, %v1154
      %v1515 = vmul.f32 %v1443, %v1155
      %v1516 = vmul.f32 %v1444, %v1156
      %v1517 = vmul.f32 %v1445, %v1157
      %v1518 = vmul.f32 %v1446, %v1158
      %v1519 = vmul.f32 %v1447, %v1159
      %v1520 = vmul.f32 %v1448, %v1160
      %v1521 = vmul.f32 %v1449, %v1161
      %v1522 = vmul.f32 %v1450, %v1162
      %v1523 = vmul.f32 %v1451, %v1163
      %v1524 = vmul.f32 %v1452, %v1164
      %v1525 = vmul.f32 %v1453, %v1165
      %v1526 = vmul.f32 %v1454, %v1166
      %v1527 = vmul.f32 %v1455, %v1167
      %v1528 = vmul.f32 %v1456, %v1168
      %v1529 = vmul.f32 %v1457, %v1169
      %v1530 = vmul.f32 %v1458, %v1170
      %v1531 = vmul.f32 %v1459, %v1171
      %v1532 = vmul.f32 %v1460, %v1172
      %v1533 = vmul.f32 %v1461, %v1173
      %v1534 = vmul.f32 %v1462, %v1174
      %v1535 = vmul.f32 %v1463, %v1175
      %v1536 = vmul.f32 %v1464, %v1176
      %v1537 = vmul.f32 %v1465, %v1177
      %v1538 = vmul.f32 %v1466, %v1178
      %v1539 = vmul.f32 %v1467, %v1179
      %v1540 = vmul.f32 %v1468, %v1180
      %v1541 = vmul.f32 %v1469, %v1181
      %v1542 = vmul.f32 %v1470, %v1182
      %v1543 = vmul.f32 %v1471, %v1183
      %v1544 = vmul.f32 %v1472, %v1184
      %v1545 = vmul.f32 %v1473, %v1185
      %v1546 = vsub.f32 %v1474, 0.28449672
      %v1547 = vsub.f32 %v1475, 0.28449672
      %v1548 = vsub.f32 %v1476, 0.28449672
      %v1549 = vsub.f32 %v1477, 0.28449672
      %v1550 = vsub.f32 %v1478, 0.28449672
      %v1551 = vsub.f32 %v1479, 0.28449672
      %v1552 = vsub.f32 %v1480, 0.28449672
      %v1553 = vsub.f32 %v1481, 0.28449672
      %v1554 = vsub.f32 %v1482, 0.28449672
      %v1555 = vsub.f32 %v1483, 0.28449672
      %v1556 = vsub.f32 %v1484, 0.28449672
      %v1557 = vsub.f32 %v1485, 0.28449672
      %v1558 = vsub.f32 %v1486, 0.28449672
      %v1559 = vsub.f32 %v1487, 0.28449672
      %v1560 = vsub.f32 %v1488, 0.28449672
      %v1561 = vsub.f32 %v1489, 0.28449672
      %v1562 = vsub.f32 %v1490, 0.28449672
      %v1563 = vsub.f32 %v1491, 0.28449672
      %v1564 = vsub.f32 %v1492, 0.28449672
      %v1565 = vsub.f32 %v1493, 0.28449672
      %v1566 = vsub.f32 %v1494, 0.28449672
      %v1567 = vsub.f32 %v1495, 0.28449672
      %v1568 = vsub.f32 %v1496, 0.28449672
      %v1569 = vsub.f32 %v1497, 0.28449672
      %v1570 = vsub.f32 %v1498, 0.28449672
      %v1571 = vsub.f32 %v1499, 0.28449672
      %v1572 = vsub.f32 %v1500, 0.28449672
      %v1573 = vsub.f32 %v1501, 0.28449672
      %v1574 = vsub.f32 %v1502, 0.28449672
      %v1575 = vsub.f32 %v1503, 0.28449672
      %v1576 = vsub.f32 %v1504, 0.28449672
      %v1577 = vsub.f32 %v1505, 0.28449672
      %v1578 = vsub.f32 %v1506, 0.28449672
      %v1579 = vsub.f32 %v1507, 0.28449672
      %v1580 = vsub.f32 %v1508, 0.28449672
      %v1581 = vsub.f32 %v1509, 0.28449672
      %v1582 = vsub.f32 %v1510, 0.28449672
      %v1583 = vsub.f32 %v1511, 0.28449672
      %v1584 = vsub.f32 %v1512, 0.28449672
      %v1585 = vsub.f32 %v1513, 0.28449672
      %v1586 = vsub.f32 %v1514, 0.28449672
      %v1587 = vsub.f32 %v1515, 0.28449672
      %v1588 = vsub.f32 %v1516, 0.28449672
      %v1589 = vsub.f32 %v1517, 0.28449672
      %v1590 = vsub.f32 %v1518, 0.28449672
      %v1591 = vsub.f32 %v1519, 0.28449672
      %v1592 = vsub.f32 %v1520, 0.28449672
      %v1593 = vsub.f32 %v1521, 0.28449672
      %v1594 = vsub.f32 %v1522, 0.28449672
      %v1595 = vsub.f32 %v1523, 0.28449672
      %v1596 = vsub.f32 %v1524, 0.28449672
      %v1597 = vsub.f32 %v1525, 0.28449672
      %v1598 = vsub.f32 %v1526, 0.28449672
      %v1599 = vsub.f32 %v1527, 0.28449672
      %v1600 = vsub.f32 %v1528, 0.28449672
      %v1601 = vsub.f32 %v1529, 0.28449672
      %v1602 = vsub.f32 %v1530, 0.28449672
      %v1603 = vsub.f32 %v1531, 0.28449672
      %v1604 = vsub.f32 %v1532, 0.28449672
      %v1605 = vsub.f32 %v1533, 0.28449672
      %v1606 = vsub.f32 %v1534, 0.28449672
      %v1607 = vsub.f32 %v1535, 0.28449672
      %v1608 = vsub.f32 %v1536, 0.28449672
      %v1609 = vsub.f32 %v1537, 0.28449672
      %v1610 = vsub.f32 %v1538, 0.28449672
      %v1611 = vsub.f32 %v1539, 0.28449672
      %v1612 = vsub.f32 %v1540, 0.28449672
      %v1613 = vsub.f32 %v1541, 0.28449672
      %v1614 = vsub.f32 %v1542, 0.28449672
      %v1615 = vsub.f32 %v1543, 0.28449672
      %v1616 = vsub.f32 %v1544, 0.28449672
      %v1617 = vsub.f32 %v1545, 0.28449672
      %v1618 = vmul.f32 %v1546, %v1114
      %v1619 = vmul.f32 %v1547, %v1115
      %v1620 = vmul.f32 %v1548, %v1116
      %v1621 = vmul.f32 %v1549, %v1117
      %v1622 = vmul.f32 %v1550, %v1118
      %v1623 = vmul.f32 %v1551, %v1119
      %v1624 = vmul.f32 %v1552, %v1120
      %v1625 = vmul.f32 %v1553, %v1121
      %v1626 = vmul.f32 %v1554, %v1122
      %v1627 = vmul.f32 %v1555, %v1123
      %v1628 = vmul.f32 %v1556, %v1124
      %v1629 = vmul.f32 %v1557, %v1125
      %v1630 = vmul.f32 %v1558, %v1126
      %v1631 = vmul.f32 %v1559, %v1127
      %v1632 = vmul.f32 %v1560, %v1128
      %v1633 = vmul.f32 %v1561, %v1129
      %v1634 = vmul.f32 %v1562, %v1130
      %v1635 = vmul.f32 %v1563, %v1131
      %v1636 = vmul.f32 %v1564, %v1132
      %v1637 = vmul.f32 %v1565, %v1133
      %v1638 = vmul.f32 %v1566, %v1134
      %v1639 = vmul.f32 %v1567, %v1135
      %v1640 = vmul.f32 %v1568, %v1136
      %v1641 = vmul.f32 %v1569, %v1137
      %v1642 = vmul.f32 %v1570, %v1138
      %v1643 = vmul.f32 %v1571, %v1139
      %v1644 = vmul.f32 %v1572, %v1140
      %v1645 = vmul.f32 %v1573, %v1141
      %v1646 = vmul.f32 %v1574, %v1142
      %v1647 = vmul.f32 %v1575, %v1143
      %v1648 = vmul.f32 %v1576, %v1144
      %v1649 = vmul.f32 %v1577, %v1145
      %v1650 = vmul.f32 %v1578, %v1146
      %v1651 = vmul.f32 %v1579, %v1147
      %v1652 = vmul.f32 %v1580, %v1148
      %v1653 = vmul.f32 %v1581, %v1149
      %v1654 = vmul.f32 %v1582, %v1150
      %v1655 = vmul.f32 %v1583, %v1151
      %v1656 = vmul.f32 %v1584, %v1152
      %v1657 = vmul.f32 %v1585, %v1153
      %v1658 = vmul.f32 %v1586, %v1154
      %v1659 = vmul.f32 %v1587, %v1155
      %v1660 = vmul.f32 %v1588, %v1156
      %v1661 = vmul.f32 %v1589, %v1157
      %v1662 = vmul.f32 %v1590, %v1158
      %v1663 = vmul.f32 %v1591, %v1159
      %v1664 = vmul.f32 %v1592, %v1160
      %v1665 = vmul.f32 %v1593, %v1161
      %v1666 = vmul.f32 %v1594, %v1162
      %v1667 = vmul.f32 %v1595, %v1163
      %v1668 = vmul.f32 %v1596, %v1164
      %v1669 = vmul.f32 %v1597, %v1165
      %v1670 = vmul.f32 %v1598, %v1166
      %v1671 = vmul.f32 %v1599, %v1167
      %v1672 = vmul.f32 %v1600, %v1168
      %v1673 = vmul.f32 %v1601, %v1169
      %v1674 = vmul.f32 %v1602, %v1170
      %v1675 = vmul.f32 %v1603, %v1171
      %v1676 = vmul.f32 %v1604, %v1172
      %v1677 = vmul.f32 %v1605, %v1173
      %v1678 = vmul.f32 %v1606, %v1174
      %v1679 = vmul.f32 %v1607, %v1175
      %v1680 = vmul.f32 %v1608, %v1176
      %v1681 = vmul.f32 %v1609, %v1177
      %v1682 = vmul.f32 %v1610, %v1178
      %v1683 = vmul.f32 %v1611, %v1179
      %v1684 = vmul.f32 %v1612, %v1180
      %v1685 = vmul.f32 %v1613, %v1181
      %v1686 = vmul.f32 %v1614, %v1182
      %v1687 = vmul.f32 %v1615, %v1183
      %v1688 = vmul.f32 %v1616, %v1184
      %v1689 = vmul.f32 %v1617, %v1185
      %v1690 = vadd.f32 %v1618, 0.2548296
      %v1691 = vadd.f32 %v1619, 0.2548296
      %v1692 = vadd.f32 %v1620, 0.2548296
      %v1693 = vadd.f32 %v1621, 0.2548296
      %v1694 = vadd.f32 %v1622, 0.2548296
      %v1695 = vadd.f32 %v1623, 0.2548296
      %v1696 = vadd.f32 %v1624, 0.2548296
      %v1697 = vadd.f32 %v1625, 0.2548296
      %v1698 = vadd.f32 %v1626, 0.2548296
      %v1699 = vadd.f32 %v1627, 0.2548296
      %v1700 = vadd.f32 %v1628, 0.2548296
      %v1701 = vadd.f32 %v1629, 0.2548296
      %v1702 = vadd.f32 %v1630, 0.2548296
      %v1703 = vadd.f32 %v1631, 0.2548296
      %v1704 = vadd.f32 %v1632, 0.2548296
      %v1705 = vadd.f32 %v1633, 0.2548296
      %v1706 = vadd.f32 %v1634, 0.2548296
      %v1707 = vadd.f32 %v1635, 0.2548296
      %v1708 = vadd.f32 %v1636, 0.2548296
      %v1709 = vadd.f32 %v1637, 0.2548296
      %v1710 = vadd.f32 %v1638, 0.2548296
      %v1711 = vadd.f32 %v1639, 0.2548296
      %v1712 = vadd.f32 %v1640, 0.2548296
      %v1713 = vadd.f32 %v1641, 0.2548296
      %v1714 = vadd.f32 %v1642, 0.2548296
      %v1715 = vadd.f32 %v1643, 0.2548296
      %v1716 = vadd.f32 %v1644, 0.2548296
      %v1717 = vadd.f32 %v1645, 0.2548296
      %v1718 = vadd.f32 %v1646, 0.2548296
      %v1719 = vadd.f32 %v1647, 0.2548296
      %v1720 = vadd.f32 %v1648, 0.2548296
      %v1721 = vadd.f32 %v1649, 0.2548296
      %v1722 = vadd.f32 %v1650, 0.2548296
      %v1723 = vadd.f32 %v1651, 0.2548296
      %v1724 = vadd.f32 %v1652, 0.2548296
      %v1725 = vadd.f32 %v1653, 0.2548296
      %v1726 = vadd.f32 %v1654, 0.2548296
      %v1727 = vadd.f32 %v1655, 0.2548296
      %v1728 = vadd.f32 %v1656, 0.2548296
      %v1729 = vadd.f32 %v1657, 0.2548296
      %v1730 = vadd.f32 %v1658, 0.2548296
      %v1731 = vadd.f32 %v1659, 0.2548296
      %v1732 = vadd.f32 %v1660, 0.2548296
      %v1733 = vadd.f32 %v1661, 0.2548296
      %v1734 = vadd.f32 %v1662, 0.2548296
      %v1735 = vadd.f32 %v1663, 0.2548296
      %v1736 = vadd.f32 %v1664, 0.2548296
      %v1737 = vadd.f32 %v1665, 0.2548296
      %v1738 = vadd.f32 %v1666, 0.2548296
      %v1739 = vadd.f32 %v1667, 0.2548296
      %v1740 = vadd.f32 %v1668, 0.2548296
      %v1741 = vadd.f32 %v1669, 0.2548296
      %v1742 = vadd.f32 %v1670, 0.2548296
      %v1743 = vadd.f32 %v1671, 0.2548296
      %v1744 = vadd.f32 %v1672, 0.2548296
      %v1745 = vadd.f32 %v1673, 0.2548296
      %v1746 = vadd.f32 %v1674, 0.2548296
      %v1747 = vadd.f32 %v1675, 0.2548296
      %v1748 = vadd.f32 %v1676, 0.2548296
      %v1749 = vadd.f32 %v1677, 0.2548296
      %v1750 = vadd.f32 %v1678, 0.2548296
      %v1751 = vadd.f32 %v1679, 0.2548296
      %v1752 = vadd.f32 %v1680, 0.2548296
      %v1753 = vadd.f32 %v1681, 0.2548296
      %v1754 = vadd.f32 %v1682, 0.2548296
      %v1755 = vadd.f32 %v1683, 0.2548296
      %v1756 = vadd.f32 %v1684, 0.2548296
      %v1757 = vadd.f32 %v1685, 0.2548296
      %v1758 = vadd.f32 %v1686, 0.2548296
      %v1759 = vadd.f32 %v1687, 0.2548296
      %v1760 = vadd.f32 %v1688, 0.2548296
      %v1761 = vadd.f32 %v1689, 0.2548296
      %v1762 = vmul.f32 %v1690, %v1114
      %v1763 = vmul.f32 %v1691, %v1115
      %v1764 = vmul.f32 %v1692, %v1116
      %v1765 = vmul.f32 %v1693, %v1117
      %v1766 = vmul.f32 %v1694, %v1118
      %v1767 = vmul.f32 %v1695, %v1119
      %v1768 = vmul.f32 %v1696, %v1120
      %v1769 = vmul.f32 %v1697, %v1121
      %v1770 = vmul.f32 %v1698, %v1122
      %v1771 = vmul.f32 %v1699, %v1123
      %v1772 = vmul.f32 %v1700, %v1124
      %v1773 = vmul.f32 %v1701, %v1125
      %v1774 = vmul.f32 %v1702, %v1126
      %v1775 = vmul.f32 %v1703, %v1127
      %v1776 = vmul.f32 %v1704, %v1128
      %v1777 = vmul.f32 %v1705, %v1129
      %v1778 = vmul.f32 %v1706, %v1130
      %v1779 = vmul.f32 %v1707, %v1131
      %v1780 = vmul.f32 %v1708, %v1132
      %v1781 = vmul.f32 %v1709, %v1133
      %v1782 = vmul.f32 %v1710, %v1134
      %v1783 = vmul.f32 %v1711, %v1135
      %v1784 = vmul.f32 %v1712, %v1136
      %v1785 = vmul.f32 %v1713, %v1137
      %v1786 = vmul.f32 %v1714, %v1138
      %v1787 = vmul.f32 %v1715, %v1139
      %v1788 = vmul.f32 %v1716, %v1140
      %v1789 = vmul.f32 %v1717, %v1141
      %v1790 = vmul.f32 %v1718, %v1142
      %v1791 = vmul.f32 %v1719, %v1143
      %v1792 = vmul.f32 %v1720, %v1144
      %v1793 = vmul.f32 %v1721, %v1145
      %v1794 = vmul.f32 %v1722, %v1146
      %v1795 = vmul.f32 %v1723, %v1147
      %v1796 = vmul.f32 %v1724, %v1148
      %v1797 = vmul.f32 %v1725, %v1149
      %v1798 = vmul.f32 %v1726, %v1150
      %v1799 = vmul.f32 %v1727, %v1151
      %v1800 = vmul.f32 %v1728, %v1152
      %v1801 = vmul.f32 %v1729, %v1153
      %v1802 = vmul.f32 %v1730, %v1154
      %v1803 = vmul.f32 %v1731, %v1155
      %v1804 = vmul.f32 %v1732, %v1156
      %v1805 = vmul.f32 %v1733, %v1157
      %v1806 = vmul.f32 %v1734, %v1158
      %v1807 = vmul.f32 %v1735, %v1159
      %v1808 = vmul.f32 %v1736, %v1160
      %v1809 = vmul.f32 %v1737, %v1161
      %v1810 = vmul.f32 %v1738, %v1162
      %v1811 = vmul.f32 %v1739, %v1163
      %v1812 = vmul.f32 %v1740, %v1164
      %v1813 = vmul.f32 %v1741, %v1165
      %v1814 = vmul.f32 %v1742, %v1166
      %v1815 = vmul.f32 %v1743, %v1167
      %v1816 = vmul.f32 %v1744, %v1168
      %v1817 = vmul.f32 %v1745, %v1169
      %v1818 = vmul.f32 %v1746, %v1170
      %v1819 = vmul.f32 %v1747, %v1171
      %v1820 = vmul.f32 %v1748, %v1172
      %v1821 = vmul.f32 %v1749, %v1173
      %v1822 = vmul.f32 %v1750, %v1174
      %v1823 = vmul.f32 %v1751, %v1175
      %v1824 = vmul.f32 %v1752, %v1176
      %v1825 = vmul.f32 %v1753, %v1177
      %v1826 = vmul.f32 %v1754, %v1178
      %v1827 = vmul.f32 %v1755, %v1179
      %v1828 = vmul.f32 %v1756, %v1180
      %v1829 = vmul.f32 %v1757, %v1181
      %v1830 = vmul.f32 %v1758, %v1182
      %v1831 = vmul.f32 %v1759, %v1183
      %v1832 = vmul.f32 %v1760, %v1184
      %v1833 = vmul.f32 %v1761, %v1185
      %v1834 = vsub.f32 0.0, %v898
      %v1835 = vsub.f32 0.0, %v899
      %v1836 = vsub.f32 0.0, %v900
      %v1837 = vsub.f32 0.0, %v901
      %v1838 = vsub.f32 0.0, %v902
      %v1839 = vsub.f32 0.0, %v903
      %v1840 = vsub.f32 0.0, %v904
      %v1841 = vsub.f32 0.0, %v905
      %v1842 = vsub.f32 0.0, %v906
      %v1843 = vsub.f32 0.0, %v907
      %v1844 = vsub.f32 0.0, %v908
      %v1845 = vsub.f32 0.0, %v909
      %v1846 = vsub.f32 0.0, %v910
      %v1847 = vsub.f32 0.0, %v911
      %v1848 = vsub.f32 0.0, %v912
      %v1849 = vsub.f32 0.0, %v913
      %v1850 = vsub.f32 0.0, %v914
      %v1851 = vsub.f32 0.0, %v915
      %v1852 = vsub.f32 0.0, %v916
      %v1853 = vsub.f32 0.0, %v917
      %v1854 = vsub.f32 0.0, %v918
      %v1855 = vsub.f32 0.0, %v919
      %v1856 = vsub.f32 0.0, %v920
      %v1857 = vsub.f32 0.0, %v921
      %v1858 = vsub.f32 0.0, %v922
      %v1859 = vsub.f32 0.0, %v923
      %v1860 = vsub.f32 0.0, %v924
      %v1861 = vsub.f32 0.0, %v925
      %v1862 = vsub.f32 0.0, %v926
      %v1863 = vsub.f32 0.0, %v927
      %v1864 = vsub.f32 0.0, %v928
      %v1865 = vsub.f32 0.0, %v929
      %v1866 = vsub.f32 0.0, %v930
      %v1867 = vsub.f32 0.0, %v931
      %v1868 = vsub.f32 0.0, %v932
      %v1869 = vsub.f32 0.0, %v933
      %v1870 = vsub.f32 0.0, %v934
      %v1871 = vsub.f32 0.0, %v935
      %v1872 = vsub.f32 0.0, %v936
      %v1873 = vsub.f32 0.0, %v937
      %v1874 = vsub.f32 0.0, %v938
      %v1875 = vsub.f32 0.0, %v939
      %v1876 = vsub.f32 0.0, %v940
      %v1877 = vsub.f32 0.0, %v941
      %v1878 = vsub.f32 0.0, %v942
      %v1879 = vsub.f32 0.0, %v943
      %v1880 = vsub.f32 0.0, %v944
      %v1881 = vsub.f32 0.0, %v945
      %v1882 = vsub.f32 0.0, %v946
      %v1883 = vsub.f32 0.0, %v947
      %v1884 = vsub.f32 0.0, %v948
      %v1885 = vsub.f32 0.0, %v949
      %v1886 = vsub.f32 0.0, %v950
      %v1887 = vsub.f32 0.0, %v951
      %v1888 = vsub.f32 0.0, %v952
      %v1889 = vsub.f32 0.0, %v953
      %v1890 = vsub.f32 0.0, %v954
      %v1891 = vsub.f32 0.0, %v955
      %v1892 = vsub.f32 0.0, %v956
      %v1893 = vsub.f32 0.0, %v957
      %v1894 = vsub.f32 0.0, %v958
      %v1895 = vsub.f32 0.0, %v959
      %v1896 = vsub.f32 0.0, %v960
      %v1897 = vsub.f32 0.0, %v961
      %v1898 = vsub.f32 0.0, %v962
      %v1899 = vsub.f32 0.0, %v963
      %v1900 = vsub.f32 0.0, %v964
      %v1901 = vsub.f32 0.0, %v965
      %v1902 = vsub.f32 0.0, %v966
      %v1903 = vsub.f32 0.0, %v967
      %v1904 = vsub.f32 0.0, %v968
      %v1905 = vsub.f32 0.0, %v969
      %v1906 = vmul.f32 %v1834, %v898
      %v1907 = vmul.f32 %v1835, %v899
      %v1908 = vmul.f32 %v1836, %v900
      %v1909 = vmul.f32 %v1837, %v901
      %v1910 = vmul.f32 %v1838, %v902
      %v1911 = vmul.f32 %v1839, %v903
      %v1912 = vmul.f32 %v1840, %v904
      %v1913 = vmul.f32 %v1841, %v905
      %v1914 = vmul.f32 %v1842, %v906
      %v1915 = vmul.f32 %v1843, %v907
      %v1916 = vmul.f32 %v1844, %v908
      %v1917 = vmul.f32 %v1845, %v909
      %v1918 = vmul.f32 %v1846, %v910
      %v1919 = vmul.f32 %v1847, %v911
      %v1920 = vmul.f32 %v1848, %v912
      %v1921 = vmul.f32 %v1849, %v913
      %v1922 = vmul.f32 %v1850, %v914
      %v1923 = vmul.f32 %v1851, %v915
      %v1924 = vmul.f32 %v1852, %v916
      %v1925 = vmul.f32 %v1853, %v917
      %v1926 = vmul.f32 %v1854, %v918
      %v1927 = vmul.f32 %v1855, %v919
      %v1928 = vmul.f32 %v1856, %v920
      %v1929 = vmul.f32 %v1857, %v921
      %v1930 = vmul.f32 %v1858, %v922
      %v1931 = vmul.f32 %v1859, %v923
      %v1932 = vmul.f32 %v1860, %v924
      %v1933 = vmul.f32 %v1861, %v925
      %v1934 = vmul.f32 %v1862, %v926
      %v1935 = vmul.f32 %v1863, %v927
      %v1936 = vmul.f32 %v1864, %v928
      %v1937 = vmul.f32 %v1865, %v929
      %v1938 = vmul.f32 %v1866, %v930
      %v1939 = vmul.f32 %v1867, %v931
      %v1940 = vmul.f32 %v1868, %v932
      %v1941 = vmul.f32 %v1869, %v933
      %v1942 = vmul.f32 %v1870, %v934
      %v1943 = vmul.f32 %v1871, %v935
      %v1944 = vmul.f32 %v1872, %v936
      %v1945 = vmul.f32 %v1873, %v937
      %v1946 = vmul.f32 %v1874, %v938
      %v1947 = vmul.f32 %v1875, %v939
      %v1948 = vmul.f32 %v1876, %v940
      %v1949 = vmul.f32 %v1877, %v941
      %v1950 = vmul.f32 %v1878, %v942
      %v1951 = vmul.f32 %v1879, %v943
      %v1952 = vmul.f32 %v1880, %v944
      %v1953 = vmul.f32 %v1881, %v945
      %v1954 = vmul.f32 %v1882, %v946
      %v1955 = vmul.f32 %v1883, %v947
      %v1956 = vmul.f32 %v1884, %v948
      %v1957 = vmul.f32 %v1885, %v949
      %v1958 = vmul.f32 %v1886, %v950
      %v1959 = vmul.f32 %v1887, %v951
      %v1960 = vmul.f32 %v1888, %v952
      %v1961 = vmul.f32 %v1889, %v953
      %v1962 = vmul.f32 %v1890, %v954
      %v1963 = vmul.f32 %v1891, %v955
      %v1964 = vmul.f32 %v1892, %v956
      %v1965 = vmul.f32 %v1893, %v957
      %v1966 = vmul.f32 %v1894, %v958
      %v1967 = vmul.f32 %v1895, %v959
      %v1968 = vmul.f32 %v1896, %v960
      %v1969 = vmul.f32 %v1897, %v961
      %v1970 = vmul.f32 %v1898, %v962
      %v1971 = vmul.f32 %v1899, %v963
      %v1972 = vmul.f32 %v1900, %v964
      %v1973 = vmul.f32 %v1901, %v965
      %v1974 = vmul.f32 %v1902, %v966
      %v1975 = vmul.f32 %v1903, %v967
      %v1976 = vmul.f32 %v1904, %v968
      %v1977 = vmul.f32 %v1905, %v969
      %v1978 = vmul.f32 %v1906, 1.442695
      %v1979 = vpow.pop %v1978
      %v1980 = vmul.f32 %v1907, 1.442695
      %v1981 = vpow.pop %v1980
      %v1982 = vmul.f32 %v1908, 1.442695
      %v1983 = vpow.pop %v1982
      %v1984 = vmul.f32 %v1909, 1.442695
      %v1985 = vpow.pop %v1984
      %v1986 = vmul.f32 %v1910, 1.442695
      %v1987 = vpow.pop %v1986
      %v1988 = vmul.f32 %v1911, 1.442695
      %v1989 = vpow.pop %v1988
      %v1990 = vmul.f32 %v1912, 1.442695
      %v1991 = vpow.pop %v1990
      %v1992 = vmul.f32 %v1913, 1.442695
      %v1993 = vpow.pop %v1992
      %v1994 = vmul.f32 %v1914, 1.442695
      %v1995 = vpow.pop %v1994
      %v1996 = vmul.f32 %v1915, 1.442695
      %v1997 = vpow.pop %v1996
      %v1998 = vmul.f32 %v1916, 1.442695
      %v1999 = vpow.pop %v1998
      %v2000 = vmul.f32 %v1917, 1.442695
      %v2001 = vpow.pop %v2000
      %v2002 = vmul.f32 %v1918, 1.442695
      %v2003 = vpow.pop %v2002
      %v2004 = vmul.f32 %v1919, 1.442695
      %v2005 = vpow.pop %v2004
      %v2006 = vmul.f32 %v1920, 1.442695
      %v2007 = vpow.pop %v2006
      %v2008 = vmul.f32 %v1921, 1.442695
      %v2009 = vpow.pop %v2008
      %v2010 = vmul.f32 %v1922, 1.442695
      %v2011 = vpow.pop %v2010
      %v2012 = vmul.f32 %v1923, 1.442695
      %v2013 = vpow.pop %v2012
      %v2014 = vmul.f32 %v1924, 1.442695
      %v2015 = vpow.pop %v2014
      %v2016 = vmul.f32 %v1925, 1.442695
      %v2017 = vpow.pop %v2016
      %v2018 = vmul.f32 %v1926, 1.442695
      %v2019 = vpow.pop %v2018
      %v2020 = vmul.f32 %v1927, 1.442695
      %v2021 = vpow.pop %v2020
      %v2022 = vmul.f32 %v1928, 1.442695
      %v2023 = vpow.pop %v2022
      %v2024 = vmul.f32 %v1929, 1.442695
      %v2025 = vpow.pop %v2024
      %v2026 = vmul.f32 %v1930, 1.442695
      %v2027 = vpow.pop %v2026
      %v2028 = vmul.f32 %v1931, 1.442695
      %v2029 = vpow.pop %v2028
      %v2030 = vmul.f32 %v1932, 1.442695
      %v2031 = vpow.pop %v2030
      %v2032 = vmul.f32 %v1933, 1.442695
      %v2033 = vpow.pop %v2032
      %v2034 = vmul.f32 %v1934, 1.442695
      %v2035 = vpow.pop %v2034
      %v2036 = vmul.f32 %v1935, 1.442695
      %v2037 = vpow.pop %v2036
      %v2038 = vmul.f32 %v1936, 1.442695
      %v2039 = vpow.pop %v2038
      %v2040 = vmul.f32 %v1937, 1.442695
      %v2041 = vpow.pop %v2040
      %v2042 = vmul.f32 %v1938, 1.442695
      %v2043 = vpow.pop %v2042
      %v2044 = vmul.f32 %v1939, 1.442695
      %v2045 = vpow.pop %v2044
      %v2046 = vmul.f32 %v1940, 1.442695
      %v2047 = vpow.pop %v2046
      %v2048 = vmul.f32 %v1941, 1.442695
      %v2049 = vpow.pop %v2048
      %v2050 = vmul.f32 %v1942, 1.442695
      %v2051 = vpow.pop %v2050
      %v2052 = vmul.f32 %v1943, 1.442695
      %v2053 = vpow.pop %v2052
      %v2054 = vmul.f32 %v1944, 1.442695
      %v2055 = vpow.pop %v2054
      %v2056 = vmul.f32 %v1945, 1.442695
      %v2057 = vpow.pop %v2056
      %v2058 = vmul.f32 %v1946, 1.442695
      %v2059 = vpow.pop %v2058
      %v2060 = vmul.f32 %v1947, 1.442695
      %v2061 = vpow.pop %v2060
      %v2062 = vmul.f32 %v1948, 1.442695
      %v2063 = vpow.pop %v2062
      %v2064 = vmul.f32 %v1949, 1.442695
      %v2065 = vpow.pop %v2064
      %v2066 = vmul.f32 %v1950, 1.442695
      %v2067 = vpow.pop %v2066
      %v2068 = vmul.f32 %v1951, 1.442695
      %v2069 = vpow.pop %v2068
      %v2070 = vmul.f32 %v1952, 1.442695
      %v2071 = vpow.pop %v2070
      %v2072 = vmul.f32 %v1953, 1.442695
      %v2073 = vpow.pop %v2072
      %v2074 = vmul.f32 %v1954, 1.442695
      %v2075 = vpow.pop %v2074
      %v2076 = vmul.f32 %v1955, 1.442695
      %v2077 = vpow.pop %v2076
      %v2078 = vmul.f32 %v1956, 1.442695
      %v2079 = vpow.pop %v2078
      %v2080 = vmul.f32 %v1957, 1.442695
      %v2081 = vpow.pop %v2080
      %v2082 = vmul.f32 %v1958, 1.442695
      %v2083 = vpow.pop %v2082
      %v2084 = vmul.f32 %v1959, 1.442695
      %v2085 = vpow.pop %v2084
      %v2086 = vmul.f32 %v1960, 1.442695
      %v2087 = vpow.pop %v2086
      %v2088 = vmul.f32 %v1961, 1.442695
      %v2089 = vpow.pop %v2088
      %v2090 = vmul.f32 %v1962, 1.442695
      %v2091 = vpow.pop %v2090
      %v2092 = vmul.f32 %v1963, 1.442695
      %v2093 = vpow.pop %v2092
      %v2094 = vmul.f32 %v1964, 1.442695
      %v2095 = vpow.pop %v2094
      %v2096 = vmul.f32 %v1965, 1.442695
      %v2097 = vpow.pop %v2096
      %v2098 = vmul.f32 %v1966, 1.442695
      %v2099 = vpow.pop %v2098
      %v2100 = vmul.f32 %v1967, 1.442695
      %v2101 = vpow.pop %v2100
      %v2102 = vmul.f32 %v1968, 1.442695
      %v2103 = vpow.pop %v2102
      %v2104 = vmul.f32 %v1969, 1.442695
      %v2105 = vpow.pop %v2104
      %v2106 = vmul.f32 %v1970, 1.442695
      %v2107 = vpow.pop %v2106
      %v2108 = vmul.f32 %v1971, 1.442695
      %v2109 = vpow.pop %v2108
      %v2110 = vmul.f32 %v1972, 1.442695
      %v2111 = vpow.pop %v2110
      %v2112 = vmul.f32 %v1973, 1.442695
      %v2113 = vpow.pop %v2112
      %v2114 = vmul.f32 %v1974, 1.442695
      %v2115 = vpow.pop %v2114
      %v2116 = vmul.f32 %v1975, 1.442695
      %v2117 = vpow.pop %v2116
      %v2118 = vmul.f32 %v1976, 1.442695
      %v2119 = vpow.pop %v2118
      %v2120 = vmul.f32 %v1977, 1.442695
      %v2121 = vpow.pop %v2120
      %v2122 = vmul.f32 %v1762, %v1979
      %v2123 = vmul.f32 %v1763, %v1981
      %v2124 = vmul.f32 %v1764, %v1983
      %v2125 = vmul.f32 %v1765, %v1985
      %v2126 = vmul.f32 %v1766, %v1987
      %v2127 = vmul.f32 %v1767, %v1989
      %v2128 = vmul.f32 %v1768, %v1991
      %v2129 = vmul.f32 %v1769, %v1993
      %v2130 = vmul.f32 %v1770, %v1995
      %v2131 = vmul.f32 %v1771, %v1997
      %v2132 = vmul.f32 %v1772, %v1999
      %v2133 = vmul.f32 %v1773, %v2001
      %v2134 = vmul.f32 %v1774, %v2003
      %v2135 = vmul.f32 %v1775, %v2005
      %v2136 = vmul.f32 %v1776, %v2007
      %v2137 = vmul.f32 %v1777, %v2009
      %v2138 = vmul.f32 %v1778, %v2011
      %v2139 = vmul.f32 %v1779, %v2013
      %v2140 = vmul.f32 %v1780, %v2015
      %v2141 = vmul.f32 %v1781, %v2017
      %v2142 = vmul.f32 %v1782, %v2019
      %v2143 = vmul.f32 %v1783, %v2021
      %v2144 = vmul.f32 %v1784, %v2023
      %v2145 = vmul.f32 %v1785, %v2025
      %v2146 = vmul.f32 %v1786, %v2027
      %v2147 = vmul.f32 %v1787, %v2029
      %v2148 = vmul.f32 %v1788, %v2031
      %v2149 = vmul.f32 %v1789, %v2033
      %v2150 = vmul.f32 %v1790, %v2035
      %v2151 = vmul.f32 %v1791, %v2037
      %v2152 = vmul.f32 %v1792, %v2039
      %v2153 = vmul.f32 %v1793, %v2041
      %v2154 = vmul.f32 %v1794, %v2043
      %v2155 = vmul.f32 %v1795, %v2045
      %v2156 = vmul.f32 %v1796, %v2047
      %v2157 = vmul.f32 %v1797, %v2049
      %v2158 = vmul.f32 %v1798, %v2051
      %v2159 = vmul.f32 %v1799, %v2053
      %v2160 = vmul.f32 %v1800, %v2055
      %v2161 = vmul.f32 %v1801, %v2057
      %v2162 = vmul.f32 %v1802, %v2059
      %v2163 = vmul.f32 %v1803, %v2061
      %v2164 = vmul.f32 %v1804, %v2063
      %v2165 = vmul.f32 %v1805, %v2065
      %v2166 = vmul.f32 %v1806, %v2067
      %v2167 = vmul.f32 %v1807, %v2069
      %v2168 = vmul.f32 %v1808, %v2071
      %v2169 = vmul.f32 %v1809, %v2073
      %v2170 = vmul.f32 %v1810, %v2075
      %v2171 = vmul.f32 %v1811, %v2077
      %v2172 = vmul.f32 %v1812, %v2079
      %v2173 = vmul.f32 %v1813, %v2081
      %v2174 = vmul.f32 %v1814, %v2083
      %v2175 = vmul.f32 %v1815, %v2085
      %v2176 = vmul.f32 %v1816, %v2087
      %v2177 = vmul.f32 %v1817, %v2089
      %v2178 = vmul.f32 %v1818, %v2091
      %v2179 = vmul.f32 %v1819, %v2093
      %v2180 = vmul.f32 %v1820, %v2095
      %v2181 = vmul.f32 %v1821, %v2097
      %v2182 = vmul.f32 %v1822, %v2099
      %v2183 = vmul.f32 %v1823, %v2101
      %v2184 = vmul.f32 %v1824, %v2103
      %v2185 = vmul.f32 %v1825, %v2105
      %v2186 = vmul.f32 %v1826, %v2107
      %v2187 = vmul.f32 %v1827, %v2109
      %v2188 = vmul.f32 %v1828, %v2111
      %v2189 = vmul.f32 %v1829, %v2113
      %v2190 = vmul.f32 %v1830, %v2115
      %v2191 = vmul.f32 %v1831, %v2117
      %v2192 = vmul.f32 %v1832, %v2119
      %v2193 = vmul.f32 %v1833, %v2121
      %v2194 = vsub.f32 1.0, %v2122
      %v2195 = vsub.f32 1.0, %v2123
      %v2196 = vsub.f32 1.0, %v2124
      %v2197 = vsub.f32 1.0, %v2125
      %v2198 = vsub.f32 1.0, %v2126
      %v2199 = vsub.f32 1.0, %v2127
      %v2200 = vsub.f32 1.0, %v2128
      %v2201 = vsub.f32 1.0, %v2129
      %v2202 = vsub.f32 1.0, %v2130
      %v2203 = vsub.f32 1.0, %v2131
      %v2204 = vsub.f32 1.0, %v2132
      %v2205 = vsub.f32 1.0, %v2133
      %v2206 = vsub.f32 1.0, %v2134
      %v2207 = vsub.f32 1.0, %v2135
      %v2208 = vsub.f32 1.0, %v2136
      %v2209 = vsub.f32 1.0, %v2137
      %v2210 = vsub.f32 1.0, %v2138
      %v2211 = vsub.f32 1.0, %v2139
      %v2212 = vsub.f32 1.0, %v2140
      %v2213 = vsub.f32 1.0, %v2141
      %v2214 = vsub.f32 1.0, %v2142
      %v2215 = vsub.f32 1.0, %v2143
      %v2216 = vsub.f32 1.0, %v2144
      %v2217 = vsub.f32 1.0, %v2145
      %v2218 = vsub.f32 1.0, %v2146
      %v2219 = vsub.f32 1.0, %v2147
      %v2220 = vsub.f32 1.0, %v2148
      %v2221 = vsub.f32 1.0, %v2149
      %v2222 = vsub.f32 1.0, %v2150
      %v2223 = vsub.f32 1.0, %v2151
      %v2224 = vsub.f32 1.0, %v2152
      %v2225 = vsub.f32 1.0, %v2153
      %v2226 = vsub.f32 1.0, %v2154
      %v2227 = vsub.f32 1.0, %v2155
      %v2228 = vsub.f32 1.0, %v2156
      %v2229 = vsub.f32 1.0, %v2157
      %v2230 = vsub.f32 1.0, %v2158
      %v2231 = vsub.f32 1.0, %v2159
      %v2232 = vsub.f32 1.0, %v2160
      %v2233 = vsub.f32 1.0, %v2161
      %v2234 = vsub.f32 1.0, %v2162
      %v2235 = vsub.f32 1.0, %v2163
      %v2236 = vsub.f32 1.0, %v2164
      %v2237 = vsub.f32 1.0, %v2165
      %v2238 = vsub.f32 1.0, %v2166
      %v2239 = vsub.f32 1.0, %v2167
      %v2240 = vsub.f32 1.0, %v2168
      %v2241 = vsub.f32 1.0, %v2169
      %v2242 = vsub.f32 1.0, %v2170
      %v2243 = vsub.f32 1.0, %v2171
      %v2244 = vsub.f32 1.0, %v2172
      %v2245 = vsub.f32 1.0, %v2173
      %v2246 = vsub.f32 1.0, %v2174
      %v2247 = vsub.f32 1.0, %v2175
      %v2248 = vsub.f32 1.0, %v2176
      %v2249 = vsub.f32 1.0, %v2177
      %v2250 = vsub.f32 1.0, %v2178
      %v2251 = vsub.f32 1.0, %v2179
      %v2252 = vsub.f32 1.0, %v2180
      %v2253 = vsub.f32 1.0, %v2181
      %v2254 = vsub.f32 1.0, %v2182
      %v2255 = vsub.f32 1.0, %v2183
      %v2256 = vsub.f32 1.0, %v2184
      %v2257 = vsub.f32 1.0, %v2185
      %v2258 = vsub.f32 1.0, %v2186
      %v2259 = vsub.f32 1.0, %v2187
      %v2260 = vsub.f32 1.0, %v2188
      %v2261 = vsub.f32 1.0, %v2189
      %v2262 = vsub.f32 1.0, %v2190
      %v2263 = vsub.f32 1.0, %v2191
      %v2264 = vsub.f32 1.0, %v2192
      %v2265 = vsub.f32 1.0, %v2193
      %vm2266 = vcmp.ge.f32.partialorder %v648, 0.0
      %vm2267 = vcmp.ge.f32.partialorder %v650, 0.0
      %vm2268 = vcmp.ge.f32.partialorder %v652, 0.0
      %vm2269 = vcmp.ge.f32.partialorder %v654, 0.0
      %vm2270 = vcmp.ge.f32.partialorder %v658, 0.0
      %vm2271 = vcmp.ge.f32.partialorder %v660, 0.0
      %vm2272 = vcmp.ge.f32.partialorder %v662, 0.0
      %vm2273 = vcmp.ge.f32.partialorder %v664, 0.0
      %vm2274 = vcmp.ge.f32.partialorder %v668, 0.0
      %vm2275 = vcmp.ge.f32.partialorder %v670, 0.0
      %vm2276 = vcmp.ge.f32.partialorder %v672, 0.0
      %vm2277 = vcmp.ge.f32.partialorder %v674, 0.0
      %vm2278 = vcmp.ge.f32.partialorder %v678, 0.0
      %vm2279 = vcmp.ge.f32.partialorder %v680, 0.0
      %vm2280 = vcmp.ge.f32.partialorder %v682, 0.0
      %vm2281 = vcmp.ge.f32.partialorder %v684, 0.0
      %vm2282 = vcmp.ge.f32.partialorder %v688, 0.0
      %vm2283 = vcmp.ge.f32.partialorder %v690, 0.0
      %vm2284 = vcmp.ge.f32.partialorder %v692, 0.0
      %vm2285 = vcmp.ge.f32.partialorder %v694, 0.0
      %vm2286 = vcmp.ge.f32.partialorder %v698, 0.0
      %vm2287 = vcmp.ge.f32.partialorder %v700, 0.0
      %vm2288 = vcmp.ge.f32.partialorder %v702, 0.0
      %vm2289 = vcmp.ge.f32.partialorder %v704, 0.0
      %vm2290 = vcmp.ge.f32.partialorder %v708, 0.0
      %vm2291 = vcmp.ge.f32.partialorder %v710, 0.0
      %vm2292 = vcmp.ge.f32.partialorder %v712, 0.0
      %vm2293 = vcmp.ge.f32.partialorder %v714, 0.0
      %vm2294 = vcmp.ge.f32.partialorder %v718, 0.0
      %vm2295 = vcmp.ge.f32.partialorder %v720, 0.0
      %vm2296 = vcmp.ge.f32.partialorder %v722, 0.0
      %vm2297 = vcmp.ge.f32.partialorder %v724, 0.0
      %vm2298 = vcmp.ge.f32.partialorder %v728, 0.0
      %vm2299 = vcmp.ge.f32.partialorder %v730, 0.0
      %vm2300 = vcmp.ge.f32.partialorder %v732, 0.0
      %vm2301 = vcmp.ge.f32.partialorder %v734, 0.0
      %vm2302 = vcmp.ge.f32.partialorder %v738, 0.0
      %vm2303 = vcmp.ge.f32.partialorder %v740, 0.0
      %vm2304 = vcmp.ge.f32.partialorder %v742, 0.0
      %vm2305 = vcmp.ge.f32.partialorder %v744, 0.0
      %vm2306 = vcmp.ge.f32.partialorder %v748, 0.0
      %vm2307 = vcmp.ge.f32.partialorder %v750, 0.0
      %vm2308 = vcmp.ge.f32.partialorder %v752, 0.0
      %vm2309 = vcmp.ge.f32.partialorder %v754, 0.0
      %vm2310 = vcmp.ge.f32.partialorder %v758, 0.0
      %vm2311 = vcmp.ge.f32.partialorder %v760, 0.0
      %vm2312 = vcmp.ge.f32.partialorder %v762, 0.0
      %vm2313 = vcmp.ge.f32.partialorder %v764, 0.0
      %vm2314 = vcmp.ge.f32.partialorder %v768, 0.0
      %vm2315 = vcmp.ge.f32.partialorder %v770, 0.0
      %vm2316 = vcmp.ge.f32.partialorder %v772, 0.0
      %vm2317 = vcmp.ge.f32.partialorder %v774, 0.0
      %vm2318 = vcmp.ge.f32.partialorder %v778, 0.0
      %vm2319 = vcmp.ge.f32.partialorder %v780, 0.0
      %vm2320 = vcmp.ge.f32.partialorder %v782, 0.0
      %vm2321 = vcmp.ge.f32.partialorder %v784, 0.0
      %vm2322 = vcmp.ge.f32.partialorder %v788, 0.0
      %vm2323 = vcmp.ge.f32.partialorder %v790, 0.0
      %vm2324 = vcmp.ge.f32.partialorder %v792, 0.0
      %vm2325 = vcmp.ge.f32.partialorder %v794, 0.0
      %vm2326 = vcmp.ge.f32.partialorder %v798, 0.0
      %vm2327 = vcmp.ge.f32.partialorder %v800, 0.0
      %vm2328 = vcmp.ge.f32.partialorder %v802, 0.0
      %vm2329 = vcmp.ge.f32.partialorder %v804, 0.0
      %vm2330 = vcmp.ge.f32.partialorder %v808, 0.0
      %vm2331 = vcmp.ge.f32.partialorder %v810, 0.0
      %vm2332 = vcmp.ge.f32.partialorder %v812, 0.0
      %vm2333 = vcmp.ge.f32.partialorder %v814, 0.0
      %vm2334 = vcmp.ge.f32.partialorder %v818, 0.0
      %vm2335 = vcmp.ge.f32.partialorder %v820, 0.0
      %vm2336 = vcmp.ge.f32.partialorder %v822, 0.0
      %vm2337 = vcmp.ge.f32.partialorder %v824, 0.0
      %v2338 = vsub.f32 0.0, %v2194
      %v2339 = vsub.f32 0.0, %v2195
      %v2340 = vsub.f32 0.0, %v2196
      %v2341 = vsub.f32 0.0, %v2197
      %v2342 = vsub.f32 0.0, %v2198
      %v2343 = vsub.f32 0.0, %v2199
      %v2344 = vsub.f32 0.0, %v2200
      %v2345 = vsub.f32 0.0, %v2201
      %v2346 = vsub.f32 0.0, %v2202
      %v2347 = vsub.f32 0.0, %v2203
      %v2348 = vsub.f32 0.0, %v2204
      %v2349 = vsub.f32 0.0, %v2205
      %v2350 = vsub.f32 0.0, %v2206
      %v2351 = vsub.f32 0.0, %v2207
      %v2352 = vsub.f32 0.0, %v2208
      %v2353 = vsub.f32 0.0, %v2209
      %v2354 = vsub.f32 0.0, %v2210
      %v2355 = vsub.f32 0.0, %v2211
      %v2356 = vsub.f32 0.0, %v2212
      %v2357 = vsub.f32 0.0, %v2213
      %v2358 = vsub.f32 0.0, %v2214
      %v2359 = vsub.f32 0.0, %v2215
      %v2360 = vsub.f32 0.0, %v2216
      %v2361 = vsub.f32 0.0, %v2217
      %v2362 = vsub.f32 0.0, %v2218
      %v2363 = vsub.f32 0.0, %v2219
      %v2364 = vsub.f32 0.0, %v2220
      %v2365 = vsub.f32 0.0, %v2221
      %v2366 = vsub.f32 0.0, %v2222
      %v2367 = vsub.f32 0.0, %v2223
      %v2368 = vsub.f32 0.0, %v2224
      %v2369 = vsub.f32 0.0, %v2225
      %v2370 = vsub.f32 0.0, %v2226
      %v2371 = vsub.f32 0.0, %v2227
      %v2372 = vsub.f32 0.0, %v2228
      %v2373 = vsub.f32 0.0, %v2229
      %v2374 = vsub.f32 0.0, %v2230
      %v2375 = vsub.f32 0.0, %v2231
      %v2376 = vsub.f32 0.0, %v2232
      %v2377 = vsub.f32 0.0, %v2233
      %v2378 = vsub.f32 0.0, %v2234
      %v2379 = vsub.f32 0.0, %v2235
      %v2380 = vsub.f32 0.0, %v2236
      %v2381 = vsub.f32 0.0, %v2237
      %v2382 = vsub.f32 0.0, %v2238
      %v2383 = vsub.f32 0.0, %v2239
      %v2384 = vsub.f32 0.0, %v2240
      %v2385 = vsub.f32 0.0, %v2241
      %v2386 = vsub.f32 0.0, %v2242
      %v2387 = vsub.f32 0.0, %v2243
      %v2388 = vsub.f32 0.0, %v2244
      %v2389 = vsub.f32 0.0, %v2245
      %v2390 = vsub.f32 0.0, %v2246
      %v2391 = vsub.f32 0.0, %v2247
      %v2392 = vsub.f32 0.0, %v2248
      %v2393 = vsub.f32 0.0, %v2249
      %v2394 = vsub.f32 0.0, %v2250
      %v2395 = vsub.f32 0.0, %v2251
      %v2396 = vsub.f32 0.0, %v2252
      %v2397 = vsub.f32 0.0, %v2253
      %v2398 = vsub.f32 0.0, %v2254
      %v2399 = vsub.f32 0.0, %v2255
      %v2400 = vsub.f32 0.0, %v2256
      %v2401 = vsub.f32 0.0, %v2257
      %v2402 = vsub.f32 0.0, %v2258
      %v2403 = vsub.f32 0.0, %v2259
      %v2404 = vsub.f32 0.0, %v2260
      %v2405 = vsub.f32 0.0, %v2261
      %v2406 = vsub.f32 0.0, %v2262
      %v2407 = vsub.f32 0.0, %v2263
      %v2408 = vsub.f32 0.0, %v2264
      %v2409 = vsub.f32 0.0, %v2265
      %v2410 = vsel %vm2266, %v2194, %v2338
      %v2411 = vsel %vm2267, %v2195, %v2339
      %v2412 = vsel %vm2268, %v2196, %v2340
      %v2413 = vsel %vm2269, %v2197, %v2341
      %v2414 = vsel %vm2270, %v2198, %v2342
      %v2415 = vsel %vm2271, %v2199, %v2343
      %v2416 = vsel %vm2272, %v2200, %v2344
      %v2417 = vsel %vm2273, %v2201, %v2345
      %v2418 = vsel %vm2274, %v2202, %v2346
      %v2419 = vsel %vm2275, %v2203, %v2347
      %v2420 = vsel %vm2276, %v2204, %v2348
      %v2421 = vsel %vm2277, %v2205, %v2349
      %v2422 = vsel %vm2278, %v2206, %v2350
      %v2423 = vsel %vm2279, %v2207, %v2351
      %v2424 = vsel %vm2280, %v2208, %v2352
      %v2425 = vsel %vm2281, %v2209, %v2353
      %v2426 = vsel %vm2282, %v2210, %v2354
      %v2427 = vsel %vm2283, %v2211, %v2355
      %v2428 = vsel %vm2284, %v2212, %v2356
      %v2429 = vsel %vm2285, %v2213, %v2357
      %v2430 = vsel %vm2286, %v2214, %v2358
      %v2431 = vsel %vm2287, %v2215, %v2359
      %v2432 = vsel %vm2288, %v2216, %v2360
      %v2433 = vsel %vm2289, %v2217, %v2361
      %v2434 = vsel %vm2290, %v2218, %v2362
      %v2435 = vsel %vm2291, %v2219, %v2363
      %v2436 = vsel %vm2292, %v2220, %v2364
      %v2437 = vsel %vm2293, %v2221, %v2365
      %v2438 = vsel %vm2294, %v2222, %v2366
      %v2439 = vsel %vm2295, %v2223, %v2367
      %v2440 = vsel %vm2296, %v2224, %v2368
      %v2441 = vsel %vm2297, %v2225, %v2369
      %v2442 = vsel %vm2298, %v2226, %v2370
      %v2443 = vsel %vm2299, %v2227, %v2371
      %v2444 = vsel %vm2300, %v2228, %v2372
      %v2445 = vsel %vm2301, %v2229, %v2373
      %v2446 = vsel %vm2302, %v2230, %v2374
      %v2447 = vsel %vm2303, %v2231, %v2375
      %v2448 = vsel %vm2304, %v2232, %v2376
      %v2449 = vsel %vm2305, %v2233, %v2377
      %v2450 = vsel %vm2306, %v2234, %v2378
      %v2451 = vsel %vm2307, %v2235, %v2379
      %v2452 = vsel %vm2308, %v2236, %v2380
      %v2453 = vsel %vm2309, %v2237, %v2381
      %v2454 = vsel %vm2310, %v2238, %v2382
      %v2455 = vsel %vm2311, %v2239, %v2383
      %v2456 = vsel %vm2312, %v2240, %v2384
      %v2457 = vsel %vm2313, %v2241, %v2385
      %v2458 = vsel %vm2314, %v2242, %v2386
      %v2459 = vsel %vm2315, %v2243, %v2387
      %v2460 = vsel %vm2316, %v2244, %v2388
      %v2461 = vsel %vm2317, %v2245, %v2389
      %v2462 = vsel %vm2318, %v2246, %v2390
      %v2463 = vsel %vm2319, %v2247, %v2391
      %v2464 = vsel %vm2320, %v2248, %v2392
      %v2465 = vsel %vm2321, %v2249, %v2393
      %v2466 = vsel %vm2322, %v2250, %v2394
      %v2467 = vsel %vm2323, %v2251, %v2395
      %v2468 = vsel %vm2324, %v2252, %v2396
      %v2469 = vsel %vm2325, %v2253, %v2397
      %v2470 = vsel %vm2326, %v2254, %v2398
      %v2471 = vsel %vm2327, %v2255, %v2399
      %v2472 = vsel %vm2328, %v2256, %v2400
      %v2473 = vsel %vm2329, %v2257, %v2401
      %v2474 = vsel %vm2330, %v2258, %v2402
      %v2475 = vsel %vm2331, %v2259, %v2403
      %v2476 = vsel %vm2332, %v2260, %v2404
      %v2477 = vsel %vm2333, %v2261, %v2405
      %v2478 = vsel %vm2334, %v2262, %v2406
      %v2479 = vsel %vm2335, %v2263, %v2407
      %v2480 = vsel %vm2336, %v2264, %v2408
      %v2481 = vsel %vm2337, %v2265, %v2409
      %v2482 = vmul.f32 %v648, 0.5
      %v2483 = vmul.f32 %v650, 0.5
      %v2484 = vmul.f32 %v652, 0.5
      %v2485 = vmul.f32 %v654, 0.5
      %v2486 = vmul.f32 %v658, 0.5
      %v2487 = vmul.f32 %v660, 0.5
      %v2488 = vmul.f32 %v662, 0.5
      %v2489 = vmul.f32 %v664, 0.5
      %v2490 = vmul.f32 %v668, 0.5
      %v2491 = vmul.f32 %v670, 0.5
      %v2492 = vmul.f32 %v672, 0.5
      %v2493 = vmul.f32 %v674, 0.5
      %v2494 = vmul.f32 %v678, 0.5
      %v2495 = vmul.f32 %v680, 0.5
      %v2496 = vmul.f32 %v682, 0.5
      %v2497 = vmul.f32 %v684, 0.5
      %v2498 = vmul.f32 %v688, 0.5
      %v2499 = vmul.f32 %v690, 0.5
      %v2500 = vmul.f32 %v692, 0.5
      %v2501 = vmul.f32 %v694, 0.5
      %v2502 = vmul.f32 %v698, 0.5
      %v2503 = vmul.f32 %v700, 0.5
      %v2504 = vmul.f32 %v702, 0.5
      %v2505 = vmul.f32 %v704, 0.5
      %v2506 = vmul.f32 %v708, 0.5
      %v2507 = vmul.f32 %v710, 0.5
      %v2508 = vmul.f32 %v712, 0.5
      %v2509 = vmul.f32 %v714, 0.5
      %v2510 = vmul.f32 %v718, 0.5
      %v2511 = vmul.f32 %v720, 0.5
      %v2512 = vmul.f32 %v722, 0.5
      %v2513 = vmul.f32 %v724, 0.5
      %v2514 = vmul.f32 %v728, 0.5
      %v2515 = vmul.f32 %v730, 0.5
      %v2516 = vmul.f32 %v732, 0.5
      %v2517 = vmul.f32 %v734, 0.5
      %v2518 = vmul.f32 %v738, 0.5
      %v2519 = vmul.f32 %v740, 0.5
      %v2520 = vmul.f32 %v742, 0.5
      %v2521 = vmul.f32 %v744, 0.5
      %v2522 = vmul.f32 %v748, 0.5
      %v2523 = vmul.f32 %v750, 0.5
      %v2524 = vmul.f32 %v752, 0.5
      %v2525 = vmul.f32 %v754, 0.5
      %v2526 = vmul.f32 %v758, 0.5
      %v2527 = vmul.f32 %v760, 0.5
      %v2528 = vmul.f32 %v762, 0.5
      %v2529 = vmul.f32 %v764, 0.5
      %v2530 = vmul.f32 %v768, 0.5
      %v2531 = vmul.f32 %v770, 0.5
      %v2532 = vmul.f32 %v772, 0.5
      %v2533 = vmul.f32 %v774, 0.5
      %v2534 = vmul.f32 %v778, 0.5
      %v2535 = vmul.f32 %v780, 0.5
      %v2536 = vmul.f32 %v782, 0.5
      %v2537 = vmul.f32 %v784, 0.5
      %v2538 = vmul.f32 %v788, 0.5
      %v2539 = vmul.f32 %v790, 0.5
      %v2540 = vmul.f32 %v792, 0.5
      %v2541 = vmul.f32 %v794, 0.5
      %v2542 = vmul.f32 %v798, 0.5
      %v2543 = vmul.f32 %v800, 0.5
      %v2544 = vmul.f32 %v802, 0.5
      %v2545 = vmul.f32 %v804, 0.5
      %v2546 = vmul.f32 %v808, 0.5
      %v2547 = vmul.f32 %v810, 0.5
      %v2548 = vmul.f32 %v812, 0.5
      %v2549 = vmul.f32 %v814, 0.5
      %v2550 = vmul.f32 %v818, 0.5
      %v2551 = vmul.f32 %v820, 0.5
      %v2552 = vmul.f32 %v822, 0.5
      %v2553 = vmul.f32 %v824, 0.5
      %v2554 = vadd.f32 %v2410, 1.0
      %v2555 = vadd.f32 %v2411, 1.0
      %v2556 = vadd.f32 %v2412, 1.0
      %v2557 = vadd.f32 %v2413, 1.0
      %v2558 = vadd.f32 %v2414, 1.0
      %v2559 = vadd.f32 %v2415, 1.0
      %v2560 = vadd.f32 %v2416, 1.0
      %v2561 = vadd.f32 %v2417, 1.0
      %v2562 = vadd.f32 %v2418, 1.0
      %v2563 = vadd.f32 %v2419, 1.0
      %v2564 = vadd.f32 %v2420, 1.0
      %v2565 = vadd.f32 %v2421, 1.0
      %v2566 = vadd.f32 %v2422, 1.0
      %v2567 = vadd.f32 %v2423, 1.0
      %v2568 = vadd.f32 %v2424, 1.0
      %v2569 = vadd.f32 %v2425, 1.0
      %v2570 = vadd.f32 %v2426, 1.0
      %v2571 = vadd.f32 %v2427, 1.0
      %v2572 = vadd.f32 %v2428, 1.0
      %v2573 = vadd.f32 %v2429, 1.0
      %v2574 = vadd.f32 %v2430, 1.0
      %v2575 = vadd.f32 %v2431, 1.0
      %v2576 = vadd.f32 %v2432, 1.0
      %v2577 = vadd.f32 %v2433, 1.0
      %v2578 = vadd.f32 %v2434, 1.0
      %v2579 = vadd.f32 %v2435, 1.0
      %v2580 = vadd.f32 %v2436, 1.0
      %v2581 = vadd.f32 %v2437, 1.0
      %v2582 = vadd.f32 %v2438, 1.0
      %v2583 = vadd.f32 %v2439, 1.0
      %v2584 = vadd.f32 %v2440, 1.0
      %v2585 = vadd.f32 %v2441, 1.0
      %v2586 = vadd.f32 %v2442, 1.0
      %v2587 = vadd.f32 %v2443, 1.0
      %v2588 = vadd.f32 %v2444, 1.0
      %v2589 = vadd.f32 %v2445, 1.0
      %v2590 = vadd.f32 %v2446, 1.0
      %v2591 = vadd.f32 %v2447, 1.0
      %v2592 = vadd.f32 %v2448, 1.0
      %v2593 = vadd.f32 %v2449, 1.0
      %v2594 = vadd.f32 %v2450, 1.0
      %v2595 = vadd.f32 %v2451, 1.0
      %v2596 = vadd.f32 %v2452, 1.0
      %v2597 = vadd.f32 %v2453, 1.0
      %v2598 = vadd.f32 %v2454, 1.0
      %v2599 = vadd.f32 %v2455, 1.0
      %v2600 = vadd.f32 %v2456, 1.0
      %v2601 = vadd.f32 %v2457, 1.0
      %v2602 = vadd.f32 %v2458, 1.0
      %v2603 = vadd.f32 %v2459, 1.0
      %v2604 = vadd.f32 %v2460, 1.0
      %v2605 = vadd.f32 %v2461, 1.0
      %v2606 = vadd.f32 %v2462, 1.0
      %v2607 = vadd.f32 %v2463, 1.0
      %v2608 = vadd.f32 %v2464, 1.0
      %v2609 = vadd.f32 %v2465, 1.0
      %v2610 = vadd.f32 %v2466, 1.0
      %v2611 = vadd.f32 %v2467, 1.0
      %v2612 = vadd.f32 %v2468, 1.0
      %v2613 = vadd.f32 %v2469, 1.0
      %v2614 = vadd.f32 %v2470, 1.0
      %v2615 = vadd.f32 %v2471, 1.0
      %v2616 = vadd.f32 %v2472, 1.0
      %v2617 = vadd.f32 %v2473, 1.0
      %v2618 = vadd.f32 %v2474, 1.0
      %v2619 = vadd.f32 %v2475, 1.0
      %v2620 = vadd.f32 %v2476, 1.0
      %v2621 = vadd.f32 %v2477, 1.0
      %v2622 = vadd.f32 %v2478, 1.0
      %v2623 = vadd.f32 %v2479, 1.0
      %v2624 = vadd.f32 %v2480, 1.0
      %v2625 = vadd.f32 %v2481, 1.0
      %v2626 = vmul.f32 %v2482, %v2554
      %v2627 = vmul.f32 %v2483, %v2555
      %v2628 = vmul.f32 %v2484, %v2556
      %v2629 = vmul.f32 %v2485, %v2557
      %v2630 = vmul.f32 %v2486, %v2558
      %v2631 = vmul.f32 %v2487, %v2559
      %v2632 = vmul.f32 %v2488, %v2560
      %v2633 = vmul.f32 %v2489, %v2561
      %v2634 = vmul.f32 %v2490, %v2562
      %v2635 = vmul.f32 %v2491, %v2563
      %v2636 = vmul.f32 %v2492, %v2564
      %v2637 = vmul.f32 %v2493, %v2565
      %v2638 = vmul.f32 %v2494, %v2566
      %v2639 = vmul.f32 %v2495, %v2567
      %v2640 = vmul.f32 %v2496, %v2568
      %v2641 = vmul.f32 %v2497, %v2569
      %v2642 = vmul.f32 %v2498, %v2570
      %v2643 = vmul.f32 %v2499, %v2571
      %v2644 = vmul.f32 %v2500, %v2572
      %v2645 = vmul.f32 %v2501, %v2573
      %v2646 = vmul.f32 %v2502, %v2574
      %v2647 = vmul.f32 %v2503, %v2575
      %v2648 = vmul.f32 %v2504, %v2576
      %v2649 = vmul.f32 %v2505, %v2577
      %v2650 = vmul.f32 %v2506, %v2578
      %v2651 = vmul.f32 %v2507, %v2579
      %v2652 = vmul.f32 %v2508, %v2580
      %v2653 = vmul.f32 %v2509, %v2581
      %v2654 = vmul.f32 %v2510, %v2582
      %v2655 = vmul.f32 %v2511, %v2583
      %v2656 = vmul.f32 %v2512, %v2584
      %v2657 = vmul.f32 %v2513, %v2585
      %v2658 = vmul.f32 %v2514, %v2586
      %v2659 = vmul.f32 %v2515, %v2587
      %v2660 = vmul.f32 %v2516, %v2588
      %v2661 = vmul.f32 %v2517, %v2589
      %v2662 = vmul.f32 %v2518, %v2590
      %v2663 = vmul.f32 %v2519, %v2591
      %v2664 = vmul.f32 %v2520, %v2592
      %v2665 = vmul.f32 %v2521, %v2593
      %v2666 = vmul.f32 %v2522, %v2594
      %v2667 = vmul.f32 %v2523, %v2595
      %v2668 = vmul.f32 %v2524, %v2596
      %v2669 = vmul.f32 %v2525, %v2597
      %v2670 = vmul.f32 %v2526, %v2598
      %v2671 = vmul.f32 %v2527, %v2599
      %v2672 = vmul.f32 %v2528, %v2600
      %v2673 = vmul.f32 %v2529, %v2601
      %v2674 = vmul.f32 %v2530, %v2602
      %v2675 = vmul.f32 %v2531, %v2603
      %v2676 = vmul.f32 %v2532, %v2604
      %v2677 = vmul.f32 %v2533, %v2605
      %v2678 = vmul.f32 %v2534, %v2606
      %v2679 = vmul.f32 %v2535, %v2607
      %v2680 = vmul.f32 %v2536, %v2608
      %v2681 = vmul.f32 %v2537, %v2609
      %v2682 = vmul.f32 %v2538, %v2610
      %v2683 = vmul.f32 %v2539, %v2611
      %v2684 = vmul.f32 %v2540, %v2612
      %v2685 = vmul.f32 %v2541, %v2613
      %v2686 = vmul.f32 %v2542, %v2614
      %v2687 = vmul.f32 %v2543, %v2615
      %v2688 = vmul.f32 %v2544, %v2616
      %v2689 = vmul.f32 %v2545, %v2617
      %v2690 = vmul.f32 %v2546, %v2618
      %v2691 = vmul.f32 %v2547, %v2619
      %v2692 = vmul.f32 %v2548, %v2620
      %v2693 = vmul.f32 %v2549, %v2621
      %v2694 = vmul.f32 %v2550, %v2622
      %v2695 = vmul.f32 %v2551, %v2623
      %v2696 = vmul.f32 %v2552, %v2624
      %v2697 = vmul.f32 %v2553, %v2625
      %v2698 = vld [vmem:[%s2] sm:$0xff]
      %v2699 = vld [vmem:[%s2 + $0x8] sm:$0xff]
      %v2700 = vld [vmem:[%s2 + $0x10] sm:$0x1]
      %v2701 = vld [vmem:[%s2 + $0x18] sm:$0x1]
      %v2702 = vlaneseq
      %v2703 = vshrl.u32 %v2702, 7
      %v2704 = vsub.s32 0, %v2703
      %v2705 = vrot.slane %v2698, %v2704
      %v2706 = vlaneseq
      %v2707 = vshrl.u32 %v2706, 7
      %v2708 = vsub.s32 0, %v2707
      %v2709 = vrot.slane %v2699, %v2708
      %v2710 = vmul.f32 %v2705, %v2632
      %v2711 = vmul.f32 %v2709, %v2633
      %v2712 = vmul.f32 %v2705, %v2634
      %v2713 = vmul.f32 %v2709, %v2635
      %v2714 = vmul.f32 %v2705, %v2636
      %v2715 = vmul.f32 %v2709, %v2637
      %v2716 = vmul.f32 %v2705, %v2638
      %v2717 = vmul.f32 %v2709, %v2639
      %v2718 = vmul.f32 %v2705, %v2640
      %v2719 = vmul.f32 %v2709, %v2641
      %v2720 = vmul.f32 %v2705, %v2642
      %v2721 = vmul.f32 %v2709, %v2643
      %v2722 = vmul.f32 %v2705, %v2644
      %v2723 = vmul.f32 %v2709, %v2645
      %v2724 = vmul.f32 %v2705, %v2646
      %v2725 = vmul.f32 %v2709, %v2647
      %v2726 = vmul.f32 %v2705, %v2648
      %v2727 = vmul.f32 %v2709, %v2649
      %v2728 = vmul.f32 %v2705, %v2650
      %v2729 = vmul.f32 %v2709, %v2651
      %v2730 = vmul.f32 %v2705, %v2652
      %v2731 = vmul.f32 %v2709, %v2653
      %v2732 = vmul.f32 %v2705, %v2654
      %v2733 = vmul.f32 %v2709, %v2655
      %v2734 = vmul.f32 %v2705, %v2656
      %v2735 = vmul.f32 %v2709, %v2657
      %v2736 = vmul.f32 %v2705, %v2658
      %v2737 = vmul.f32 %v2709, %v2659
      %v2738 = vmul.f32 %v2705, %v2660
      %v2739 = vmul.f32 %v2709, %v2661
      %v2740 = vmul.f32 %v2705, %v2662
      %v2741 = vmul.f32 %v2709, %v2663
      %v2742 = vmul.f32 %v2705, %v2664
      %v2743 = vmul.f32 %v2709, %v2665
      %v2744 = vmul.f32 %v2705, %v2666
      %v2745 = vmul.f32 %v2709, %v2667
      %v2746 = vmul.f32 %v2705, %v2668
      %v2747 = vmul.f32 %v2709, %v2669
      %v2748 = vmul.f32 %v2705, %v2670
      %v2749 = vmul.f32 %v2709, %v2671
      %v2750 = vmul.f32 %v2705, %v2672
      %v2751 = vmul.f32 %v2709, %v2673
      %v2752 = vmul.f32 %v2705, %v2674
      %v2753 = vmul.f32 %v2709, %v2675
      %v2754 = vmul.f32 %v2705, %v2676
      %v2755 = vmul.f32 %v2709, %v2677
      %v2756 = vmul.f32 %v2705, %v2678
      %v2757 = vmul.f32 %v2709, %v2679
      %v2758 = vlaneseq
      %v2759 = vshrl.u32 %v2758, 7
      %v2760 = vsub.s32 1, %v2759
      %v2761 = vrot.slane %v2698, %v2760
      %v2762 = vlaneseq
      %v2763 = vshrl.u32 %v2762, 7
      %v2764 = vsub.s32 1, %v2763
      %v2765 = vrot.slane %v2699, %v2764
      %v2766 = vmul.f32 %v2761, %v2632
      %v2767 = vmul.f32 %v2765, %v2633
      %v2768 = vmul.f32 %v2761, %v2634
      %v2769 = vmul.f32 %v2765, %v2635
      %v2770 = vmul.f32 %v2761, %v2636
      %v2771 = vmul.f32 %v2765, %v2637
      %v2772 = vmul.f32 %v2761, %v2638
      %v2773 = vmul.f32 %v2765, %v2639
      %v2774 = vmul.f32 %v2761, %v2640
      %v2775 = vmul.f32 %v2765, %v2641
      %v2776 = vmul.f32 %v2761, %v2642
      %v2777 = vmul.f32 %v2765, %v2643
      %v2778 = vmul.f32 %v2761, %v2644
      %v2779 = vmul.f32 %v2765, %v2645
      %v2780 = vmul.f32 %v2761, %v2646
      %v2781 = vmul.f32 %v2765, %v2647
      %v2782 = vmul.f32 %v2761, %v2648
      %v2783 = vmul.f32 %v2765, %v2649
      %v2784 = vmul.f32 %v2761, %v2650
      %v2785 = vmul.f32 %v2765, %v2651
      %v2786 = vmul.f32 %v2761, %v2652
      %v2787 = vmul.f32 %v2765, %v2653
      %v2788 = vmul.f32 %v2761, %v2654
      %v2789 = vmul.f32 %v2765, %v2655
      %v2790 = vmul.f32 %v2761, %v2656
      %v2791 = vmul.f32 %v2765, %v2657
      %v2792 = vmul.f32 %v2761, %v2658
      %v2793 = vmul.f32 %v2765, %v2659
      %v2794 = vmul.f32 %v2761, %v2660
      %v2795 = vmul.f32 %v2765, %v2661
      %v2796 = vmul.f32 %v2761, %v2662
      %v2797 = vmul.f32 %v2765, %v2663
      %v2798 = vmul.f32 %v2761, %v2664
      %v2799 = vmul.f32 %v2765, %v2665
      %v2800 = vmul.f32 %v2761, %v2666
      %v2801 = vmul.f32 %v2765, %v2667
      %v2802 = vmul.f32 %v2761, %v2668
      %v2803 = vmul.f32 %v2765, %v2669
      %v2804 = vmul.f32 %v2761, %v2670
      %v2805 = vmul.f32 %v2765, %v2671
      %v2806 = vmul.f32 %v2761, %v2672
      %v2807 = vmul.f32 %v2765, %v2673
      %v2808 = vmul.f32 %v2761, %v2674
      %v2809 = vmul.f32 %v2765, %v2675
      %v2810 = vmul.f32 %v2761, %v2676
      %v2811 = vmul.f32 %v2765, %v2677
      %v2812 = vmul.f32 %v2761, %v2678
      %v2813 = vmul.f32 %v2765, %v2679
      %vm2862 = vcmask 1046528
      %v2863 = vrot.slane %v2766, 1
      %v2864 = vrot.slane %v2768, 1
      %v2865 = vsel %vm2862, %v2863, %v2864
      %v2866 = vrot.slane %v2767, 1
      %v2867 = vrot.slane %v2769, 1
      %v2868 = vsel %vm2862, %v2866, %v2867
      %v2869 = vrot.slane %v2770, 1
      %v2870 = vsel %vm2862, %v2864, %v2869
      %v2871 = vrot.slane %v2771, 1
      %v2872 = vsel %vm2862, %v2867, %v2871
      %v2873 = vrot.slane %v2772, 1
      %v2874 = vrot.slane %v2774, 1
      %v2875 = vsel %vm2862, %v2873, %v2874
      %v2876 = vrot.slane %v2773, 1
      %v2877 = vrot.slane %v2775, 1
      %v2878 = vsel %vm2862, %v2876, %v2877
      %v2879 = vrot.slane %v2776, 1
      %v2880 = vsel %vm2862, %v2874, %v2879
      %v2881 = vrot.slane %v2777, 1
      %v2882 = vsel %vm2862, %v2877, %v2881
      %v2883 = vrot.slane %v2778, 1
      %v2884 = vrot.slane %v2780, 1
      %v2885 = vsel %vm2862, %v2883, %v2884
      %v2886 = vrot.slane %v2779, 1
      %v2887 = vrot.slane %v2781, 1
      %v2888 = vsel %vm2862, %v2886, %v2887
      %v2889 = vrot.slane %v2782, 1
      %v2890 = vsel %vm2862, %v2884, %v2889
      %v2891 = vrot.slane %v2783, 1
      %v2892 = vsel %vm2862, %v2887, %v2891
      %v2893 = vrot.slane %v2784, 1
      %v2894 = vrot.slane %v2786, 1
      %v2895 = vsel %vm2862, %v2893, %v2894
      %v2896 = vrot.slane %v2785, 1
      %v2897 = vrot.slane %v2787, 1
      %v2898 = vsel %vm2862, %v2896, %v2897
      %v2899 = vrot.slane %v2788, 1
      %v2900 = vsel %vm2862, %v2894, %v2899
      %v2901 = vrot.slane %v2789, 1
      %v2902 = vsel %vm2862, %v2897, %v2901
      %v2903 = vrot.slane %v2790, 1
      %v2904 = vrot.slane %v2792, 1
      %v2905 = vsel %vm2862, %v2903, %v2904
      %v2906 = vrot.slane %v2791, 1
      %v2907 = vrot.slane %v2793, 1
      %v2908 = vsel %vm2862, %v2906, %v2907
      %v2909 = vrot.slane %v2794, 1
      %v2910 = vsel %vm2862, %v2904, %v2909
      %v2911 = vrot.slane %v2795, 1
      %v2912 = vsel %vm2862, %v2907, %v2911
      %v2913 = vrot.slane %v2796, 1
      %v2914 = vrot.slane %v2798, 1
      %v2915 = vsel %vm2862, %v2913, %v2914
      %v2916 = vrot.slane %v2797, 1
      %v2917 = vrot.slane %v2799, 1
      %v2918 = vsel %vm2862, %v2916, %v2917
      %v2919 = vrot.slane %v2800, 1
      %v2920 = vsel %vm2862, %v2914, %v2919
      %v2921 = vrot.slane %v2801, 1
      %v2922 = vsel %vm2862, %v2917, %v2921
      %v2923 = vrot.slane %v2802, 1
      %v2924 = vrot.slane %v2804, 1
      %v2925 = vsel %vm2862, %v2923, %v2924
      %v2926 = vrot.slane %v2803, 1
      %v2927 = vrot.slane %v2805, 1
      %v2928 = vsel %vm2862, %v2926, %v2927
      %v2929 = vrot.slane %v2806, 1
      %v2930 = vsel %vm2862, %v2924, %v2929
      %v2931 = vrot.slane %v2807, 1
      %v2932 = vsel %vm2862, %v2927, %v2931
      %v2933 = vrot.slane %v2808, 1
      %v2934 = vrot.slane %v2810, 1
      %v2935 = vsel %vm2862, %v2933, %v2934
      %v2936 = vrot.slane %v2809, 1
      %v2937 = vrot.slane %v2811, 1
      %v2938 = vsel %vm2862, %v2936, %v2937
      %v2939 = vrot.slane %v2812, 1
      %v2940 = vsel %vm2862, %v2934, %v2939
      %v2941 = vrot.slane %v2813, 1
      %v2942 = vsel %vm2862, %v2937, %v2941
      %v2991 = vadd.f32 %v2710, %v2865
      %v2992 = vadd.f32 %v2711, %v2868
      %v2993 = vadd.f32 %v2712, %v2870
      %v2994 = vadd.f32 %v2713, %v2872
      %v2995 = vadd.f32 %v2714, %v2869
      %v2996 = vadd.f32 %v2715, %v2871
      %v2997 = vadd.f32 %v2716, %v2875
      %v2998 = vadd.f32 %v2717, %v2878
      %v2999 = vadd.f32 %v2718, %v2880
      %v3000 = vadd.f32 %v2719, %v2882
      %v3001 = vadd.f32 %v2720, %v2879
      %v3002 = vadd.f32 %v2721, %v2881
      %v3003 = vadd.f32 %v2722, %v2885
      %v3004 = vadd.f32 %v2723, %v2888
      %v3005 = vadd.f32 %v2724, %v2890
      %v3006 = vadd.f32 %v2725, %v2892
      %v3007 = vadd.f32 %v2726, %v2889
      %v3008 = vadd.f32 %v2727, %v2891
      %v3009 = vadd.f32 %v2728, %v2895
      %v3010 = vadd.f32 %v2729, %v2898
      %v3011 = vadd.f32 %v2730, %v2900
      %v3012 = vadd.f32 %v2731, %v2902
      %v3013 = vadd.f32 %v2732, %v2899
      %v3014 = vadd.f32 %v2733, %v2901
      %v3015 = vadd.f32 %v2734, %v2905
      %v3016 = vadd.f32 %v2735, %v2908
      %v3017 = vadd.f32 %v2736, %v2910
      %v3018 = vadd.f32 %v2737, %v2912
      %v3019 = vadd.f32 %v2738, %v2909
      %v3020 = vadd.f32 %v2739, %v2911
      %v3021 = vadd.f32 %v2740, %v2915
      %v3022 = vadd.f32 %v2741, %v2918
      %v3023 = vadd.f32 %v2742, %v2920
      %v3024 = vadd.f32 %v2743, %v2922
      %v3025 = vadd.f32 %v2744, %v2919
      %v3026 = vadd.f32 %v2745, %v2921
      %v3027 = vadd.f32 %v2746, %v2925
      %v3028 = vadd.f32 %v2747, %v2928
      %v3029 = vadd.f32 %v2748, %v2930
      %v3030 = vadd.f32 %v2749, %v2932
      %v3031 = vadd.f32 %v2750, %v2929
      %v3032 = vadd.f32 %v2751, %v2931
      %v3033 = vadd.f32 %v2752, %v2935
      %v3034 = vadd.f32 %v2753, %v2938
      %v3035 = vadd.f32 %v2754, %v2940
      %v3036 = vadd.f32 %v2755, %v2942
      %v3037 = vadd.f32 %v2756, %v2939
      %v3038 = vadd.f32 %v2757, %v2941
      %v3039 = vlaneseq
      %v3040 = vshrl.u32 %v3039, 7
      %v3041 = vsub.s32 2, %v3040
      %v3042 = vrot.slane %v2698, %v3041
      %v3043 = vlaneseq
      %v3044 = vshrl.u32 %v3043, 7
      %v3045 = vsub.s32 2, %v3044
      %v3046 = vrot.slane %v2699, %v3045
      %v3047 = vmul.f32 %v3042, %v2632
      %v3048 = vmul.f32 %v3046, %v2633
      %v3049 = vmul.f32 %v3042, %v2634
      %v3050 = vmul.f32 %v3046, %v2635
      %v3051 = vmul.f32 %v3042, %v2636
      %v3052 = vmul.f32 %v3046, %v2637
      %v3053 = vmul.f32 %v3042, %v2638
      %v3054 = vmul.f32 %v3046, %v2639
      %v3055 = vmul.f32 %v3042, %v2640
      %v3056 = vmul.f32 %v3046, %v2641
      %v3057 = vmul.f32 %v3042, %v2642
      %v3058 = vmul.f32 %v3046, %v2643
      %v3059 = vmul.f32 %v3042, %v2644
      %v3060 = vmul.f32 %v3046, %v2645
      %v3061 = vmul.f32 %v3042, %v2646
      %v3062 = vmul.f32 %v3046, %v2647
      %v3063 = vmul.f32 %v3042, %v2648
      %v3064 = vmul.f32 %v3046, %v2649
      %v3065 = vmul.f32 %v3042, %v2650
      %v3066 = vmul.f32 %v3046, %v2651
      %v3067 = vmul.f32 %v3042, %v2652
      %v3068 = vmul.f32 %v3046, %v2653
      %v3069 = vmul.f32 %v3042, %v2654
      %v3070 = vmul.f32 %v3046, %v2655
      %v3071 = vmul.f32 %v3042, %v2656
      %v3072 = vmul.f32 %v3046, %v2657
      %v3073 = vmul.f32 %v3042, %v2658
      %v3074 = vmul.f32 %v3046, %v2659
      %v3075 = vmul.f32 %v3042, %v2660
      %v3076 = vmul.f32 %v3046, %v2661
      %v3077 = vmul.f32 %v3042, %v2662
      %v3078 = vmul.f32 %v3046, %v2663
      %v3079 = vmul.f32 %v3042, %v2664
      %v3080 = vmul.f32 %v3046, %v2665
      %v3081 = vmul.f32 %v3042, %v2666
      %v3082 = vmul.f32 %v3046, %v2667
      %v3083 = vmul.f32 %v3042, %v2668
      %v3084 = vmul.f32 %v3046, %v2669
      %v3085 = vmul.f32 %v3042, %v2670
      %v3086 = vmul.f32 %v3046, %v2671
      %v3087 = vmul.f32 %v3042, %v2672
      %v3088 = vmul.f32 %v3046, %v2673
      %v3089 = vmul.f32 %v3042, %v2674
      %v3090 = vmul.f32 %v3046, %v2675
      %v3091 = vmul.f32 %v3042, %v2676
      %v3092 = vmul.f32 %v3046, %v2677
      %v3093 = vmul.f32 %v3042, %v2678
      %v3094 = vmul.f32 %v3046, %v2679
      %vm3143 = vcmask 1045504
      %v3144 = vrot.slane %v3047, 2
      %v3145 = vrot.slane %v3049, 2
      %v3146 = vsel %vm3143, %v3144, %v3145
      %v3147 = vrot.slane %v3048, 2
      %v3148 = vrot.slane %v3050, 2
      %v3149 = vsel %vm3143, %v3147, %v3148
      %v3150 = vrot.slane %v3051, 2
      %v3151 = vsel %vm3143, %v3145, %v3150
      %v3152 = vrot.slane %v3052, 2
      %v3153 = vsel %vm3143, %v3148, %v3152
      %v3154 = vrot.slane %v3053, 2
      %v3155 = vrot.slane %v3055, 2
      %v3156 = vsel %vm3143, %v3154, %v3155
      %v3157 = vrot.slane %v3054, 2
      %v3158 = vrot.slane %v3056, 2
      %v3159 = vsel %vm3143, %v3157, %v3158
      %v3160 = vrot.slane %v3057, 2
      %v3161 = vsel %vm3143, %v3155, %v3160
      %v3162 = vrot.slane %v3058, 2
      %v3163 = vsel %vm3143, %v3158, %v3162
      %v3164 = vrot.slane %v3059, 2
      %v3165 = vrot.slane %v3061, 2
      %v3166 = vsel %vm3143, %v3164, %v3165
      %v3167 = vrot.slane %v3060, 2
      %v3168 = vrot.slane %v3062, 2
      %v3169 = vsel %vm3143, %v3167, %v3168
      %v3170 = vrot.slane %v3063, 2
      %v3171 = vsel %vm3143, %v3165, %v3170
      %v3172 = vrot.slane %v3064, 2
      %v3173 = vsel %vm3143, %v3168, %v3172
      %v3174 = vrot.slane %v3065, 2
      %v3175 = vrot.slane %v3067, 2
      %v3176 = vsel %vm3143, %v3174, %v3175
      %v3177 = vrot.slane %v3066, 2
      %v3178 = vrot.slane %v3068, 2
      %v3179 = vsel %vm3143, %v3177, %v3178
      %v3180 = vrot.slane %v3069, 2
      %v3181 = vsel %vm3143, %v3175, %v3180
      %v3182 = vrot.slane %v3070, 2
      %v3183 = vsel %vm3143, %v3178, %v3182
      %v3184 = vrot.slane %v3071, 2
      %v3185 = vrot.slane %v3073, 2
      %v3186 = vsel %vm3143, %v3184, %v3185
      %v3187 = vrot.slane %v3072, 2
      %v3188 = vrot.slane %v3074, 2
      %v3189 = vsel %vm3143, %v3187, %v3188
      %v3190 = vrot.slane %v3075, 2
      %v3191 = vsel %vm3143, %v3185, %v3190
      %v3192 = vrot.slane %v3076, 2
      %v3193 = vsel %vm3143, %v3188, %v3192
      %v3194 = vrot.slane %v3077, 2
      %v3195 = vrot.slane %v3079, 2
      %v3196 = vsel %vm3143, %v3194, %v3195
      %v3197 = vrot.slane %v3078, 2
      %v3198 = vrot.slane %v3080, 2
      %v3199 = vsel %vm3143, %v3197, %v3198
      %v3200 = vrot.slane %v3081, 2
      %v3201 = vsel %vm3143, %v3195, %v3200
      %v3202 = vrot.slane %v3082, 2
      %v3203 = vsel %vm3143, %v3198, %v3202
      %v3204 = vrot.slane %v3083, 2
      %v3205 = vrot.slane %v3085, 2
      %v3206 = vsel %vm3143, %v3204, %v3205
      %v3207 = vrot.slane %v3084, 2
      %v3208 = vrot.slane %v3086, 2
      %v3209 = vsel %vm3143, %v3207, %v3208
      %v3210 = vrot.slane %v3087, 2
      %v3211 = vsel %vm3143, %v3205, %v3210
      %v3212 = vrot.slane %v3088, 2
      %v3213 = vsel %vm3143, %v3208, %v3212
      %v3214 = vrot.slane %v3089, 2
      %v3215 = vrot.slane %v3091, 2
      %v3216 = vsel %vm3143, %v3214, %v3215
      %v3217 = vrot.slane %v3090, 2
      %v3218 = vrot.slane %v3092, 2
      %v3219 = vsel %vm3143, %v3217, %v3218
      %v3220 = vrot.slane %v3093, 2
      %v3221 = vsel %vm3143, %v3215, %v3220
      %v3222 = vrot.slane %v3094, 2
      %v3223 = vsel %vm3143, %v3218, %v3222
      %v3272 = vadd.f32 %v2991, %v3146
      %v3273 = vadd.f32 %v2992, %v3149
      %v3274 = vadd.f32 %v2993, %v3151
      %v3275 = vadd.f32 %v2994, %v3153
      %v3276 = vadd.f32 %v2995, %v3150
      %v3277 = vadd.f32 %v2996, %v3152
      %v3278 = vadd.f32 %v2997, %v3156
      %v3279 = vadd.f32 %v2998, %v3159
      %v3280 = vadd.f32 %v2999, %v3161
      %v3281 = vadd.f32 %v3000, %v3163
      %v3282 = vadd.f32 %v3001, %v3160
      %v3283 = vadd.f32 %v3002, %v3162
      %v3284 = vadd.f32 %v3003, %v3166
      %v3285 = vadd.f32 %v3004, %v3169
      %v3286 = vadd.f32 %v3005, %v3171
      %v3287 = vadd.f32 %v3006, %v3173
      %v3288 = vadd.f32 %v3007, %v3170
      %v3289 = vadd.f32 %v3008, %v3172
      %v3290 = vadd.f32 %v3009, %v3176
      %v3291 = vadd.f32 %v3010, %v3179
      %v3292 = vadd.f32 %v3011, %v3181
      %v3293 = vadd.f32 %v3012, %v3183
      %v3294 = vadd.f32 %v3013, %v3180
      %v3295 = vadd.f32 %v3014, %v3182
      %v3296 = vadd.f32 %v3015, %v3186
      %v3297 = vadd.f32 %v3016, %v3189
      %v3298 = vadd.f32 %v3017, %v3191
      %v3299 = vadd.f32 %v3018, %v3193
      %v3300 = vadd.f32 %v3019, %v3190
      %v3301 = vadd.f32 %v3020, %v3192
      %v3302 = vadd.f32 %v3021, %v3196
      %v3303 = vadd.f32 %v3022, %v3199
      %v3304 = vadd.f32 %v3023, %v3201
      %v3305 = vadd.f32 %v3024, %v3203
      %v3306 = vadd.f32 %v3025, %v3200
      %v3307 = vadd.f32 %v3026, %v3202
      %v3308 = vadd.f32 %v3027, %v3206
      %v3309 = vadd.f32 %v3028, %v3209
      %v3310 = vadd.f32 %v3029, %v3211
      %v3311 = vadd.f32 %v3030, %v3213
      %v3312 = vadd.f32 %v3031, %v3210
      %v3313 = vadd.f32 %v3032, %v3212
      %v3314 = vadd.f32 %v3033, %v3216
      %v3315 = vadd.f32 %v3034, %v3219
      %v3316 = vadd.f32 %v3035, %v3221
      %v3317 = vadd.f32 %v3036, %v3223
      %v3318 = vadd.f32 %v3037, %v3220
      %v3319 = vadd.f32 %v3038, %v3222
      %v3320 = vlaneseq
      %v3321 = vshrl.u32 %v3320, 7
      %v3322 = vsub.s32 3, %v3321
      %v3323 = vrot.slane %v2698, %v3322
      %v3324 = vlaneseq
      %v3325 = vshrl.u32 %v3324, 7
      %v3326 = vsub.s32 3, %v3325
      %v3327 = vrot.slane %v2699, %v3326
      %v3328 = vmul.f32 %v3323, %v2638
      %v3329 = vmul.f32 %v3327, %v2639
      %v3330 = vmul.f32 %v3323, %v2640
      %v3331 = vmul.f32 %v3327, %v2641
      %v3332 = vmul.f32 %v3323, %v2642
      %v3333 = vmul.f32 %v3327, %v2643
      %v3334 = vmul.f32 %v3323, %v2644
      %v3335 = vmul.f32 %v3327, %v2645
      %v3336 = vmul.f32 %v3323, %v2646
      %v3337 = vmul.f32 %v3327, %v2647
      %v3338 = vmul.f32 %v3323, %v2648
      %v3339 = vmul.f32 %v3327, %v2649
      %v3340 = vmul.f32 %v3323, %v2650
      %v3341 = vmul.f32 %v3327, %v2651
      %v3342 = vmul.f32 %v3323, %v2652
      %v3343 = vmul.f32 %v3327, %v2653
      %v3344 = vmul.f32 %v3323, %v2654
      %v3345 = vmul.f32 %v3327, %v2655
      %v3346 = vmul.f32 %v3323, %v2656
      %v3347 = vmul.f32 %v3327, %v2657
      %v3348 = vmul.f32 %v3323, %v2658
      %v3349 = vmul.f32 %v3327, %v2659
      %v3350 = vmul.f32 %v3323, %v2660
      %v3351 = vmul.f32 %v3327, %v2661
      %v3352 = vmul.f32 %v3323, %v2662
      %v3353 = vmul.f32 %v3327, %v2663
      %v3354 = vmul.f32 %v3323, %v2664
      %v3355 = vmul.f32 %v3327, %v2665
      %v3356 = vmul.f32 %v3323, %v2666
      %v3357 = vmul.f32 %v3327, %v2667
      %v3358 = vmul.f32 %v3323, %v2668
      %v3359 = vmul.f32 %v3327, %v2669
      %v3360 = vmul.f32 %v3323, %v2670
      %v3361 = vmul.f32 %v3327, %v2671
      %v3362 = vmul.f32 %v3323, %v2672
      %v3363 = vmul.f32 %v3327, %v2673
      %v3364 = vmul.f32 %v3323, %v2674
      %v3365 = vmul.f32 %v3327, %v2675
      %v3366 = vmul.f32 %v3323, %v2676
      %v3367 = vmul.f32 %v3327, %v2677
      %v3368 = vmul.f32 %v3323, %v2678
      %v3369 = vmul.f32 %v3327, %v2679
      %v3370 = vmul.f32 %v3323, %v2680
      %v3371 = vmul.f32 %v3327, %v2681
      %v3372 = vmul.f32 %v3323, %v2682
      %v3373 = vmul.f32 %v3327, %v2683
      %v3374 = vmul.f32 %v3323, %v2684
      %v3375 = vmul.f32 %v3327, %v2685
      %v3376 = vadd.f32 %v3272, %v3328
      %v3377 = vadd.f32 %v3273, %v3329
      %v3378 = vadd.f32 %v3274, %v3330
      %v3379 = vadd.f32 %v3275, %v3331
      %v3380 = vadd.f32 %v3276, %v3332
      %v3381 = vadd.f32 %v3277, %v3333
      %v3382 = vadd.f32 %v3278, %v3334
      %v3383 = vadd.f32 %v3279, %v3335
      %v3384 = vadd.f32 %v3280, %v3336
      %v3385 = vadd.f32 %v3281, %v3337
      %v3386 = vadd.f32 %v3282, %v3338
      %v3387 = vadd.f32 %v3283, %v3339
      %v3388 = vadd.f32 %v3284, %v3340
      %v3389 = vadd.f32 %v3285, %v3341
      %v3390 = vadd.f32 %v3286, %v3342
      %v3391 = vadd.f32 %v3287, %v3343
      %v3392 = vadd.f32 %v3288, %v3344
      %v3393 = vadd.f32 %v3289, %v3345
      %v3394 = vadd.f32 %v3290, %v3346
      %v3395 = vadd.f32 %v3291, %v3347
      %v3396 = vadd.f32 %v3292, %v3348
      %v3397 = vadd.f32 %v3293, %v3349
      %v3398 = vadd.f32 %v3294, %v3350
      %v3399 = vadd.f32 %v3295, %v3351
      %v3400 = vadd.f32 %v3296, %v3352
      %v3401 = vadd.f32 %v3297, %v3353
      %v3402 = vadd.f32 %v3298, %v3354
      %v3403 = vadd.f32 %v3299, %v3355
      %v3404 = vadd.f32 %v3300, %v3356
      %v3405 = vadd.f32 %v3301, %v3357
      %v3406 = vadd.f32 %v3302, %v3358
      %v3407 = vadd.f32 %v3303, %v3359
      %v3408 = vadd.f32 %v3304, %v3360
      %v3409 = vadd.f32 %v3305, %v3361
      %v3410 = vadd.f32 %v3306, %v3362
      %v3411 = vadd.f32 %v3307, %v3363
      %v3412 = vadd.f32 %v3308, %v3364
      %v3413 = vadd.f32 %v3309, %v3365
      %v3414 = vadd.f32 %v3310, %v3366
      %v3415 = vadd.f32 %v3311, %v3367
      %v3416 = vadd.f32 %v3312, %v3368
      %v3417 = vadd.f32 %v3313, %v3369
      %v3418 = vadd.f32 %v3314, %v3370
      %v3419 = vadd.f32 %v3315, %v3371
      %v3420 = vadd.f32 %v3316, %v3372
      %v3421 = vadd.f32 %v3317, %v3373
      %v3422 = vadd.f32 %v3318, %v3374
      %v3423 = vadd.f32 %v3319, %v3375
      %v3424 = vlaneseq
      %v3425 = vshrl.u32 %v3424, 7
      %v3426 = vsub.s32 4, %v3425
      %v3427 = vrot.slane %v2698, %v3426
      %v3428 = vlaneseq
      %v3429 = vshrl.u32 %v3428, 7
      %v3430 = vsub.s32 4, %v3429
      %v3431 = vrot.slane %v2699, %v3430
      %v3432 = vmul.f32 %v3427, %v2638
      %v3433 = vmul.f32 %v3431, %v2639
      %v3434 = vmul.f32 %v3427, %v2640
      %v3435 = vmul.f32 %v3431, %v2641
      %v3436 = vmul.f32 %v3427, %v2642
      %v3437 = vmul.f32 %v3431, %v2643
      %v3438 = vmul.f32 %v3427, %v2644
      %v3439 = vmul.f32 %v3431, %v2645
      %v3440 = vmul.f32 %v3427, %v2646
      %v3441 = vmul.f32 %v3431, %v2647
      %v3442 = vmul.f32 %v3427, %v2648
      %v3443 = vmul.f32 %v3431, %v2649
      %v3444 = vmul.f32 %v3427, %v2650
      %v3445 = vmul.f32 %v3431, %v2651
      %v3446 = vmul.f32 %v3427, %v2652
      %v3447 = vmul.f32 %v3431, %v2653
      %v3448 = vmul.f32 %v3427, %v2654
      %v3449 = vmul.f32 %v3431, %v2655
      %v3450 = vmul.f32 %v3427, %v2656
      %v3451 = vmul.f32 %v3431, %v2657
      %v3452 = vmul.f32 %v3427, %v2658
      %v3453 = vmul.f32 %v3431, %v2659
      %v3454 = vmul.f32 %v3427, %v2660
      %v3455 = vmul.f32 %v3431, %v2661
      %v3456 = vmul.f32 %v3427, %v2662
      %v3457 = vmul.f32 %v3431, %v2663
      %v3458 = vmul.f32 %v3427, %v2664
      %v3459 = vmul.f32 %v3431, %v2665
      %v3460 = vmul.f32 %v3427, %v2666
      %v3461 = vmul.f32 %v3431, %v2667
      %v3462 = vmul.f32 %v3427, %v2668
      %v3463 = vmul.f32 %v3431, %v2669
      %v3464 = vmul.f32 %v3427, %v2670
      %v3465 = vmul.f32 %v3431, %v2671
      %v3466 = vmul.f32 %v3427, %v2672
      %v3467 = vmul.f32 %v3431, %v2673
      %v3468 = vmul.f32 %v3427, %v2674
      %v3469 = vmul.f32 %v3431, %v2675
      %v3470 = vmul.f32 %v3427, %v2676
      %v3471 = vmul.f32 %v3431, %v2677
      %v3472 = vmul.f32 %v3427, %v2678
      %v3473 = vmul.f32 %v3431, %v2679
      %v3474 = vmul.f32 %v3427, %v2680
      %v3475 = vmul.f32 %v3431, %v2681
      %v3476 = vmul.f32 %v3427, %v2682
      %v3477 = vmul.f32 %v3431, %v2683
      %v3478 = vmul.f32 %v3427, %v2684
      %v3479 = vmul.f32 %v3431, %v2685
      %v3528 = vrot.slane %v3432, 1
      %v3529 = vrot.slane %v3434, 1
      %v3530 = vsel %vm2862, %v3528, %v3529
      %v3531 = vrot.slane %v3433, 1
      %v3532 = vrot.slane %v3435, 1
      %v3533 = vsel %vm2862, %v3531, %v3532
      %v3534 = vrot.slane %v3436, 1
      %v3535 = vsel %vm2862, %v3529, %v3534
      %v3536 = vrot.slane %v3437, 1
      %v3537 = vsel %vm2862, %v3532, %v3536
      %v3538 = vrot.slane %v3438, 1
      %v3539 = vrot.slane %v3440, 1
      %v3540 = vsel %vm2862, %v3538, %v3539
      %v3541 = vrot.slane %v3439, 1
      %v3542 = vrot.slane %v3441, 1
      %v3543 = vsel %vm2862, %v3541, %v3542
      %v3544 = vrot.slane %v3442, 1
      %v3545 = vsel %vm2862, %v3539, %v3544
      %v3546 = vrot.slane %v3443, 1
      %v3547 = vsel %vm2862, %v3542, %v3546
      %v3548 = vrot.slane %v3444, 1
      %v3549 = vrot.slane %v3446, 1
      %v3550 = vsel %vm2862, %v3548, %v3549
      %v3551 = vrot.slane %v3445, 1
      %v3552 = vrot.slane %v3447, 1
      %v3553 = vsel %vm2862, %v3551, %v3552
      %v3554 = vrot.slane %v3448, 1
      %v3555 = vsel %vm2862, %v3549, %v3554
      %v3556 = vrot.slane %v3449, 1
      %v3557 = vsel %vm2862, %v3552, %v3556
      %v3558 = vrot.slane %v3450, 1
      %v3559 = vrot.slane %v3452, 1
      %v3560 = vsel %vm2862, %v3558, %v3559
      %v3561 = vrot.slane %v3451, 1
      %v3562 = vrot.slane %v3453, 1
      %v3563 = vsel %vm2862, %v3561, %v3562
      %v3564 = vrot.slane %v3454, 1
      %v3565 = vsel %vm2862, %v3559, %v3564
      %v3566 = vrot.slane %v3455, 1
      %v3567 = vsel %vm2862, %v3562, %v3566
      %v3568 = vrot.slane %v3456, 1
      %v3569 = vrot.slane %v3458, 1
      %v3570 = vsel %vm2862, %v3568, %v3569
      %v3571 = vrot.slane %v3457, 1
      %v3572 = vrot.slane %v3459, 1
      %v3573 = vsel %vm2862, %v3571, %v3572
      %v3574 = vrot.slane %v3460, 1
      %v3575 = vsel %vm2862, %v3569, %v3574
      %v3576 = vrot.slane %v3461, 1
      %v3577 = vsel %vm2862, %v3572, %v3576
      %v3578 = vrot.slane %v3462, 1
      %v3579 = vrot.slane %v3464, 1
      %v3580 = vsel %vm2862, %v3578, %v3579
      %v3581 = vrot.slane %v3463, 1
      %v3582 = vrot.slane %v3465, 1
      %v3583 = vsel %vm2862, %v3581, %v3582
      %v3584 = vrot.slane %v3466, 1
      %v3585 = vsel %vm2862, %v3579, %v3584
      %v3586 = vrot.slane %v3467, 1
      %v3587 = vsel %vm2862, %v3582, %v3586
      %v3588 = vrot.slane %v3468, 1
      %v3589 = vrot.slane %v3470, 1
      %v3590 = vsel %vm2862, %v3588, %v3589
      %v3591 = vrot.slane %v3469, 1
      %v3592 = vrot.slane %v3471, 1
      %v3593 = vsel %vm2862, %v3591, %v3592
      %v3594 = vrot.slane %v3472, 1
      %v3595 = vsel %vm2862, %v3589, %v3594
      %v3596 = vrot.slane %v3473, 1
      %v3597 = vsel %vm2862, %v3592, %v3596
      %v3598 = vrot.slane %v3474, 1
      %v3599 = vrot.slane %v3476, 1
      %v3600 = vsel %vm2862, %v3598, %v3599
      %v3601 = vrot.slane %v3475, 1
      %v3602 = vrot.slane %v3477, 1
      %v3603 = vsel %vm2862, %v3601, %v3602
      %v3604 = vrot.slane %v3478, 1
      %v3605 = vsel %vm2862, %v3599, %v3604
      %v3606 = vrot.slane %v3479, 1
      %v3607 = vsel %vm2862, %v3602, %v3606
      %v3656 = vadd.f32 %v3376, %v3530
      %v3657 = vadd.f32 %v3377, %v3533
      %v3658 = vadd.f32 %v3378, %v3535
      %v3659 = vadd.f32 %v3379, %v3537
      %v3660 = vadd.f32 %v3380, %v3534
      %v3661 = vadd.f32 %v3381, %v3536
      %v3662 = vadd.f32 %v3382, %v3540
      %v3663 = vadd.f32 %v3383, %v3543
      %v3664 = vadd.f32 %v3384, %v3545
      %v3665 = vadd.f32 %v3385, %v3547
      %v3666 = vadd.f32 %v3386, %v3544
      %v3667 = vadd.f32 %v3387, %v3546
      %v3668 = vadd.f32 %v3388, %v3550
      %v3669 = vadd.f32 %v3389, %v3553
      %v3670 = vadd.f32 %v3390, %v3555
      %v3671 = vadd.f32 %v3391, %v3557
      %v3672 = vadd.f32 %v3392, %v3554
      %v3673 = vadd.f32 %v3393, %v3556
      %v3674 = vadd.f32 %v3394, %v3560
      %v3675 = vadd.f32 %v3395, %v3563
      %v3676 = vadd.f32 %v3396, %v3565
      %v3677 = vadd.f32 %v3397, %v3567
      %v3678 = vadd.f32 %v3398, %v3564
      %v3679 = vadd.f32 %v3399, %v3566
      %v3680 = vadd.f32 %v3400, %v3570
      %v3681 = vadd.f32 %v3401, %v3573
      %v3682 = vadd.f32 %v3402, %v3575
      %v3683 = vadd.f32 %v3403, %v3577
      %v3684 = vadd.f32 %v3404, %v3574
      %v3685 = vadd.f32 %v3405, %v3576
      %v3686 = vadd.f32 %v3406, %v3580
      %v3687 = vadd.f32 %v3407, %v3583
      %v3688 = vadd.f32 %v3408, %v3585
      %v3689 = vadd.f32 %v3409, %v3587
      %v3690 = vadd.f32 %v3410, %v3584
      %v3691 = vadd.f32 %v3411, %v3586
      %v3692 = vadd.f32 %v3412, %v3590
      %v3693 = vadd.f32 %v3413, %v3593
      %v3694 = vadd.f32 %v3414, %v3595
      %v3695 = vadd.f32 %v3415, %v3597
      %v3696 = vadd.f32 %v3416, %v3594
      %v3697 = vadd.f32 %v3417, %v3596
      %v3698 = vadd.f32 %v3418, %v3600
      %v3699 = vadd.f32 %v3419, %v3603
      %v3700 = vadd.f32 %v3420, %v3605
      %v3701 = vadd.f32 %v3421, %v3607
      %v3702 = vadd.f32 %v3422, %v3604
      %v3703 = vadd.f32 %v3423, %v3606
      %v3704 = vlaneseq
      %v3705 = vshrl.u32 %v3704, 7
      %v3706 = vsub.s32 5, %v3705
      %v3707 = vrot.slane %v2698, %v3706
      %v3708 = vlaneseq
      %v3709 = vshrl.u32 %v3708, 7
      %v3710 = vsub.s32 5, %v3709
      %v3711 = vrot.slane %v2699, %v3710
      %v3712 = vmul.f32 %v3707, %v2638
      %v3713 = vmul.f32 %v3711, %v2639
      %v3714 = vmul.f32 %v3707, %v2640
      %v3715 = vmul.f32 %v3711, %v2641
      %v3716 = vmul.f32 %v3707, %v2642
      %v3717 = vmul.f32 %v3711, %v2643
      %v3718 = vmul.f32 %v3707, %v2644
      %v3719 = vmul.f32 %v3711, %v2645
      %v3720 = vmul.f32 %v3707, %v2646
      %v3721 = vmul.f32 %v3711, %v2647
      %v3722 = vmul.f32 %v3707, %v2648
      %v3723 = vmul.f32 %v3711, %v2649
      %v3724 = vmul.f32 %v3707, %v2650
      %v3725 = vmul.f32 %v3711, %v2651
      %v3726 = vmul.f32 %v3707, %v2652
      %v3727 = vmul.f32 %v3711, %v2653
      %v3728 = vmul.f32 %v3707, %v2654
      %v3729 = vmul.f32 %v3711, %v2655
      %v3730 = vmul.f32 %v3707, %v2656
      %v3731 = vmul.f32 %v3711, %v2657
      %v3732 = vmul.f32 %v3707, %v2658
      %v3733 = vmul.f32 %v3711, %v2659
      %v3734 = vmul.f32 %v3707, %v2660
      %v3735 = vmul.f32 %v3711, %v2661
      %v3736 = vmul.f32 %v3707, %v2662
      %v3737 = vmul.f32 %v3711, %v2663
      %v3738 = vmul.f32 %v3707, %v2664
      %v3739 = vmul.f32 %v3711, %v2665
      %v3740 = vmul.f32 %v3707, %v2666
      %v3741 = vmul.f32 %v3711, %v2667
      %v3742 = vmul.f32 %v3707, %v2668
      %v3743 = vmul.f32 %v3711, %v2669
      %v3744 = vmul.f32 %v3707, %v2670
      %v3745 = vmul.f32 %v3711, %v2671
      %v3746 = vmul.f32 %v3707, %v2672
      %v3747 = vmul.f32 %v3711, %v2673
      %v3748 = vmul.f32 %v3707, %v2674
      %v3749 = vmul.f32 %v3711, %v2675
      %v3750 = vmul.f32 %v3707, %v2676
      %v3751 = vmul.f32 %v3711, %v2677
      %v3752 = vmul.f32 %v3707, %v2678
      %v3753 = vmul.f32 %v3711, %v2679
      %v3754 = vmul.f32 %v3707, %v2680
      %v3755 = vmul.f32 %v3711, %v2681
      %v3756 = vmul.f32 %v3707, %v2682
      %v3757 = vmul.f32 %v3711, %v2683
      %v3758 = vmul.f32 %v3707, %v2684
      %v3759 = vmul.f32 %v3711, %v2685
      %v3808 = vrot.slane %v3712, 2
      %v3809 = vrot.slane %v3714, 2
      %v3810 = vsel %vm3143, %v3808, %v3809
      %v3811 = vrot.slane %v3713, 2
      %v3812 = vrot.slane %v3715, 2
      %v3813 = vsel %vm3143, %v3811, %v3812
      %v3814 = vrot.slane %v3716, 2
      %v3815 = vsel %vm3143, %v3809, %v3814
      %v3816 = vrot.slane %v3717, 2
      %v3817 = vsel %vm3143, %v3812, %v3816
      %v3818 = vrot.slane %v3718, 2
      %v3819 = vrot.slane %v3720, 2
      %v3820 = vsel %vm3143, %v3818, %v3819
      %v3821 = vrot.slane %v3719, 2
      %v3822 = vrot.slane %v3721, 2
      %v3823 = vsel %vm3143, %v3821, %v3822
      %v3824 = vrot.slane %v3722, 2
      %v3825 = vsel %vm3143, %v3819, %v3824
      %v3826 = vrot.slane %v3723, 2
      %v3827 = vsel %vm3143, %v3822, %v3826
      %v3828 = vrot.slane %v3724, 2
      %v3829 = vrot.slane %v3726, 2
      %v3830 = vsel %vm3143, %v3828, %v3829
      %v3831 = vrot.slane %v3725, 2
      %v3832 = vrot.slane %v3727, 2
      %v3833 = vsel %vm3143, %v3831, %v3832
      %v3834 = vrot.slane %v3728, 2
      %v3835 = vsel %vm3143, %v3829, %v3834
      %v3836 = vrot.slane %v3729, 2
      %v3837 = vsel %vm3143, %v3832, %v3836
      %v3838 = vrot.slane %v3730, 2
      %v3839 = vrot.slane %v3732, 2
      %v3840 = vsel %vm3143, %v3838, %v3839
      %v3841 = vrot.slane %v3731, 2
      %v3842 = vrot.slane %v3733, 2
      %v3843 = vsel %vm3143, %v3841, %v3842
      %v3844 = vrot.slane %v3734, 2
      %v3845 = vsel %vm3143, %v3839, %v3844
      %v3846 = vrot.slane %v3735, 2
      %v3847 = vsel %vm3143, %v3842, %v3846
      %v3848 = vrot.slane %v3736, 2
      %v3849 = vrot.slane %v3738, 2
      %v3850 = vsel %vm3143, %v3848, %v3849
      %v3851 = vrot.slane %v3737, 2
      %v3852 = vrot.slane %v3739, 2
      %v3853 = vsel %vm3143, %v3851, %v3852
      %v3854 = vrot.slane %v3740, 2
      %v3855 = vsel %vm3143, %v3849, %v3854
      %v3856 = vrot.slane %v3741, 2
      %v3857 = vsel %vm3143, %v3852, %v3856
      %v3858 = vrot.slane %v3742, 2
      %v3859 = vrot.slane %v3744, 2
      %v3860 = vsel %vm3143, %v3858, %v3859
      %v3861 = vrot.slane %v3743, 2
      %v3862 = vrot.slane %v3745, 2
      %v3863 = vsel %vm3143, %v3861, %v3862
      %v3864 = vrot.slane %v3746, 2
      %v3865 = vsel %vm3143, %v3859, %v3864
      %v3866 = vrot.slane %v3747, 2
      %v3867 = vsel %vm3143, %v3862, %v3866
      %v3868 = vrot.slane %v3748, 2
      %v3869 = vrot.slane %v3750, 2
      %v3870 = vsel %vm3143, %v3868, %v3869
      %v3871 = vrot.slane %v3749, 2
      %v3872 = vrot.slane %v3751, 2
      %v3873 = vsel %vm3143, %v3871, %v3872
      %v3874 = vrot.slane %v3752, 2
      %v3875 = vsel %vm3143, %v3869, %v3874
      %v3876 = vrot.slane %v3753, 2
      %v3877 = vsel %vm3143, %v3872, %v3876
      %v3878 = vrot.slane %v3754, 2
      %v3879 = vrot.slane %v3756, 2
      %v3880 = vsel %vm3143, %v3878, %v3879
      %v3881 = vrot.slane %v3755, 2
      %v3882 = vrot.slane %v3757, 2
      %v3883 = vsel %vm3143, %v3881, %v3882
      %v3884 = vrot.slane %v3758, 2
      %v3885 = vsel %vm3143, %v3879, %v3884
      %v3886 = vrot.slane %v3759, 2
      %v3887 = vsel %vm3143, %v3882, %v3886
      %v3936 = vadd.f32 %v3656, %v3810
      %v3937 = vadd.f32 %v3657, %v3813
      %v3938 = vadd.f32 %v3658, %v3815
      %v3939 = vadd.f32 %v3659, %v3817
      %v3940 = vadd.f32 %v3660, %v3814
      %v3941 = vadd.f32 %v3661, %v3816
      %v3942 = vadd.f32 %v3662, %v3820
      %v3943 = vadd.f32 %v3663, %v3823
      %v3944 = vadd.f32 %v3664, %v3825
      %v3945 = vadd.f32 %v3665, %v3827
      %v3946 = vadd.f32 %v3666, %v3824
      %v3947 = vadd.f32 %v3667, %v3826
      %v3948 = vadd.f32 %v3668, %v3830
      %v3949 = vadd.f32 %v3669, %v3833
      %v3950 = vadd.f32 %v3670, %v3835
      %v3951 = vadd.f32 %v3671, %v3837
      %v3952 = vadd.f32 %v3672, %v3834
      %v3953 = vadd.f32 %v3673, %v3836
      %v3954 = vadd.f32 %v3674, %v3840
      %v3955 = vadd.f32 %v3675, %v3843
      %v3956 = vadd.f32 %v3676, %v3845
      %v3957 = vadd.f32 %v3677, %v3847
      %v3958 = vadd.f32 %v3678, %v3844
      %v3959 = vadd.f32 %v3679, %v3846
      %v3960 = vadd.f32 %v3680, %v3850
      %v3961 = vadd.f32 %v3681, %v3853
      %v3962 = vadd.f32 %v3682, %v3855
      %v3963 = vadd.f32 %v3683, %v3857
      %v3964 = vadd.f32 %v3684, %v3854
      %v3965 = vadd.f32 %v3685, %v3856
      %v3966 = vadd.f32 %v3686, %v3860
      %v3967 = vadd.f32 %v3687, %v3863
      %v3968 = vadd.f32 %v3688, %v3865
      %v3969 = vadd.f32 %v3689, %v3867
      %v3970 = vadd.f32 %v3690, %v3864
      %v3971 = vadd.f32 %v3691, %v3866
      %v3972 = vadd.f32 %v3692, %v3870
      %v3973 = vadd.f32 %v3693, %v3873
      %v3974 = vadd.f32 %v3694, %v3875
      %v3975 = vadd.f32 %v3695, %v3877
      %v3976 = vadd.f32 %v3696, %v3874
      %v3977 = vadd.f32 %v3697, %v3876
      %v3978 = vadd.f32 %v3698, %v3880
      %v3979 = vadd.f32 %v3699, %v3883
      %v3980 = vadd.f32 %v3700, %v3885
      %v3981 = vadd.f32 %v3701, %v3887
      %v3982 = vadd.f32 %v3702, %v3884
      %v3983 = vadd.f32 %v3703, %v3886
      %v3984 = vlaneseq
      %v3985 = vshrl.u32 %v3984, 7
      %v3986 = vsub.s32 6, %v3985
      %v3987 = vrot.slane %v2698, %v3986
      %v3988 = vlaneseq
      %v3989 = vshrl.u32 %v3988, 7
      %v3990 = vsub.s32 6, %v3989
      %v3991 = vrot.slane %v2699, %v3990
      %v3992 = vmul.f32 %v3987, %v2644
      %v3993 = vmul.f32 %v3991, %v2645
      %v3994 = vmul.f32 %v3987, %v2646
      %v3995 = vmul.f32 %v3991, %v2647
      %v3996 = vmul.f32 %v3987, %v2648
      %v3997 = vmul.f32 %v3991, %v2649
      %v3998 = vmul.f32 %v3987, %v2650
      %v3999 = vmul.f32 %v3991, %v2651
      %v4000 = vmul.f32 %v3987, %v2652
      %v4001 = vmul.f32 %v3991, %v2653
      %v4002 = vmul.f32 %v3987, %v2654
      %v4003 = vmul.f32 %v3991, %v2655
      %v4004 = vmul.f32 %v3987, %v2656
      %v4005 = vmul.f32 %v3991, %v2657
      %v4006 = vmul.f32 %v3987, %v2658
      %v4007 = vmul.f32 %v3991, %v2659
      %v4008 = vmul.f32 %v3987, %v2660
      %v4009 = vmul.f32 %v3991, %v2661
      %v4010 = vmul.f32 %v3987, %v2662
      %v4011 = vmul.f32 %v3991, %v2663
      %v4012 = vmul.f32 %v3987, %v2664
      %v4013 = vmul.f32 %v3991, %v2665
      %v4014 = vmul.f32 %v3987, %v2666
      %v4015 = vmul.f32 %v3991, %v2667
      %v4016 = vmul.f32 %v3987, %v2668
      %v4017 = vmul.f32 %v3991, %v2669
      %v4018 = vmul.f32 %v3987, %v2670
      %v4019 = vmul.f32 %v3991, %v2671
      %v4020 = vmul.f32 %v3987, %v2672
      %v4021 = vmul.f32 %v3991, %v2673
      %v4022 = vmul.f32 %v3987, %v2674
      %v4023 = vmul.f32 %v3991, %v2675
      %v4024 = vmul.f32 %v3987, %v2676
      %v4025 = vmul.f32 %v3991, %v2677
      %v4026 = vmul.f32 %v3987, %v2678
      %v4027 = vmul.f32 %v3991, %v2679
      %v4028 = vmul.f32 %v3987, %v2680
      %v4029 = vmul.f32 %v3991, %v2681
      %v4030 = vmul.f32 %v3987, %v2682
      %v4031 = vmul.f32 %v3991, %v2683
      %v4032 = vmul.f32 %v3987, %v2684
      %v4033 = vmul.f32 %v3991, %v2685
      %v4034 = vmul.f32 %v3987, %v2686
      %v4035 = vmul.f32 %v3991, %v2687
      %v4036 = vmul.f32 %v3987, %v2688
      %v4037 = vmul.f32 %v3991, %v2689
      %v4038 = vmul.f32 %v3987, %v2690
      %v4039 = vmul.f32 %v3991, %v2691
      %v4040 = vadd.f32 %v3936, %v3992
      %v4041 = vadd.f32 %v3937, %v3993
      %v4042 = vadd.f32 %v3938, %v3994
      %v4043 = vadd.f32 %v3939, %v3995
      %v4044 = vadd.f32 %v3940, %v3996
      %v4045 = vadd.f32 %v3941, %v3997
      %v4046 = vadd.f32 %v3942, %v3998
      %v4047 = vadd.f32 %v3943, %v3999
      %v4048 = vadd.f32 %v3944, %v4000
      %v4049 = vadd.f32 %v3945, %v4001
      %v4050 = vadd.f32 %v3946, %v4002
      %v4051 = vadd.f32 %v3947, %v4003
      %v4052 = vadd.f32 %v3948, %v4004
      %v4053 = vadd.f32 %v3949, %v4005
      %v4054 = vadd.f32 %v3950, %v4006
      %v4055 = vadd.f32 %v3951, %v4007
      %v4056 = vadd.f32 %v3952, %v4008
      %v4057 = vadd.f32 %v3953, %v4009
      %v4058 = vadd.f32 %v3954, %v4010
      %v4059 = vadd.f32 %v3955, %v4011
      %v4060 = vadd.f32 %v3956, %v4012
      %v4061 = vadd.f32 %v3957, %v4013
      %v4062 = vadd.f32 %v3958, %v4014
      %v4063 = vadd.f32 %v3959, %v4015
      %v4064 = vadd.f32 %v3960, %v4016
      %v4065 = vadd.f32 %v3961, %v4017
      %v4066 = vadd.f32 %v3962, %v4018
      %v4067 = vadd.f32 %v3963, %v4019
      %v4068 = vadd.f32 %v3964, %v4020
      %v4069 = vadd.f32 %v3965, %v4021
      %v4070 = vadd.f32 %v3966, %v4022
      %v4071 = vadd.f32 %v3967, %v4023
      %v4072 = vadd.f32 %v3968, %v4024
      %v4073 = vadd.f32 %v3969, %v4025
      %v4074 = vadd.f32 %v3970, %v4026
      %v4075 = vadd.f32 %v3971, %v4027
      %v4076 = vadd.f32 %v3972, %v4028
      %v4077 = vadd.f32 %v3973, %v4029
      %v4078 = vadd.f32 %v3974, %v4030
      %v4079 = vadd.f32 %v3975, %v4031
      %v4080 = vadd.f32 %v3976, %v4032
      %v4081 = vadd.f32 %v3977, %v4033
      %v4082 = vadd.f32 %v3978, %v4034
      %v4083 = vadd.f32 %v3979, %v4035
      %v4084 = vadd.f32 %v3980, %v4036
      %v4085 = vadd.f32 %v3981, %v4037
      %v4086 = vadd.f32 %v3982, %v4038
      %v4087 = vadd.f32 %v3983, %v4039
      %v4088 = vlaneseq
      %v4089 = vshrl.u32 %v4088, 7
      %v4090 = vsub.s32 7, %v4089
      %v4091 = vrot.slane %v2698, %v4090
      %v4092 = vlaneseq
      %v4093 = vshrl.u32 %v4092, 7
      %v4094 = vsub.s32 7, %v4093
      %v4095 = vrot.slane %v2699, %v4094
      %v4096 = vmul.f32 %v4091, %v2644
      %v4097 = vmul.f32 %v4095, %v2645
      %v4098 = vmul.f32 %v4091, %v2646
      %v4099 = vmul.f32 %v4095, %v2647
      %v4100 = vmul.f32 %v4091, %v2648
      %v4101 = vmul.f32 %v4095, %v2649
      %v4102 = vmul.f32 %v4091, %v2650
      %v4103 = vmul.f32 %v4095, %v2651
      %v4104 = vmul.f32 %v4091, %v2652
      %v4105 = vmul.f32 %v4095, %v2653
      %v4106 = vmul.f32 %v4091, %v2654
      %v4107 = vmul.f32 %v4095, %v2655
      %v4108 = vmul.f32 %v4091, %v2656
      %v4109 = vmul.f32 %v4095, %v2657
      %v4110 = vmul.f32 %v4091, %v2658
      %v4111 = vmul.f32 %v4095, %v2659
      %v4112 = vmul.f32 %v4091, %v2660
      %v4113 = vmul.f32 %v4095, %v2661
      %v4114 = vmul.f32 %v4091, %v2662
      %v4115 = vmul.f32 %v4095, %v2663
      %v4116 = vmul.f32 %v4091, %v2664
      %v4117 = vmul.f32 %v4095, %v2665
      %v4118 = vmul.f32 %v4091, %v2666
      %v4119 = vmul.f32 %v4095, %v2667
      %v4120 = vmul.f32 %v4091, %v2668
      %v4121 = vmul.f32 %v4095, %v2669
      %v4122 = vmul.f32 %v4091, %v2670
      %v4123 = vmul.f32 %v4095, %v2671
      %v4124 = vmul.f32 %v4091, %v2672
      %v4125 = vmul.f32 %v4095, %v2673
      %v4126 = vmul.f32 %v4091, %v2674
      %v4127 = vmul.f32 %v4095, %v2675
      %v4128 = vmul.f32 %v4091, %v2676
      %v4129 = vmul.f32 %v4095, %v2677
      %v4130 = vmul.f32 %v4091, %v2678
      %v4131 = vmul.f32 %v4095, %v2679
      %v4132 = vmul.f32 %v4091, %v2680
      %v4133 = vmul.f32 %v4095, %v2681
      %v4134 = vmul.f32 %v4091, %v2682
      %v4135 = vmul.f32 %v4095, %v2683
      %v4136 = vmul.f32 %v4091, %v2684
      %v4137 = vmul.f32 %v4095, %v2685
      %v4138 = vmul.f32 %v4091, %v2686
      %v4139 = vmul.f32 %v4095, %v2687
      %v4140 = vmul.f32 %v4091, %v2688
      %v4141 = vmul.f32 %v4095, %v2689
      %v4142 = vmul.f32 %v4091, %v2690
      %v4143 = vmul.f32 %v4095, %v2691
      %v4192 = vrot.slane %v4096, 1
      %v4193 = vrot.slane %v4098, 1
      %v4194 = vsel %vm2862, %v4192, %v4193
      %v4195 = vrot.slane %v4097, 1
      %v4196 = vrot.slane %v4099, 1
      %v4197 = vsel %vm2862, %v4195, %v4196
      %v4198 = vrot.slane %v4100, 1
      %v4199 = vsel %vm2862, %v4193, %v4198
      %v4200 = vrot.slane %v4101, 1
      %v4201 = vsel %vm2862, %v4196, %v4200
      %v4202 = vrot.slane %v4102, 1
      %v4203 = vrot.slane %v4104, 1
      %v4204 = vsel %vm2862, %v4202, %v4203
      %v4205 = vrot.slane %v4103, 1
      %v4206 = vrot.slane %v4105, 1
      %v4207 = vsel %vm2862, %v4205, %v4206
      %v4208 = vrot.slane %v4106, 1
      %v4209 = vsel %vm2862, %v4203, %v4208
      %v4210 = vrot.slane %v4107, 1
      %v4211 = vsel %vm2862, %v4206, %v4210
      %v4212 = vrot.slane %v4108, 1
      %v4213 = vrot.slane %v4110, 1
      %v4214 = vsel %vm2862, %v4212, %v4213
      %v4215 = vrot.slane %v4109, 1
      %v4216 = vrot.slane %v4111, 1
      %v4217 = vsel %vm2862, %v4215, %v4216
      %v4218 = vrot.slane %v4112, 1
      %v4219 = vsel %vm2862, %v4213, %v4218
      %v4220 = vrot.slane %v4113, 1
      %v4221 = vsel %vm2862, %v4216, %v4220
      %v4222 = vrot.slane %v4114, 1
      %v4223 = vrot.slane %v4116, 1
      %v4224 = vsel %vm2862, %v4222, %v4223
      %v4225 = vrot.slane %v4115, 1
      %v4226 = vrot.slane %v4117, 1
      %v4227 = vsel %vm2862, %v4225, %v4226
      %v4228 = vrot.slane %v4118, 1
      %v4229 = vsel %vm2862, %v4223, %v4228
      %v4230 = vrot.slane %v4119, 1
      %v4231 = vsel %vm2862, %v4226, %v4230
      %v4232 = vrot.slane %v4120, 1
      %v4233 = vrot.slane %v4122, 1
      %v4234 = vsel %vm2862, %v4232, %v4233
      %v4235 = vrot.slane %v4121, 1
      %v4236 = vrot.slane %v4123, 1
      %v4237 = vsel %vm2862, %v4235, %v4236
      %v4238 = vrot.slane %v4124, 1
      %v4239 = vsel %vm2862, %v4233, %v4238
      %v4240 = vrot.slane %v4125, 1
      %v4241 = vsel %vm2862, %v4236, %v4240
      %v4242 = vrot.slane %v4126, 1
      %v4243 = vrot.slane %v4128, 1
      %v4244 = vsel %vm2862, %v4242, %v4243
      %v4245 = vrot.slane %v4127, 1
      %v4246 = vrot.slane %v4129, 1
      %v4247 = vsel %vm2862, %v4245, %v4246
      %v4248 = vrot.slane %v4130, 1
      %v4249 = vsel %vm2862, %v4243, %v4248
      %v4250 = vrot.slane %v4131, 1
      %v4251 = vsel %vm2862, %v4246, %v4250
      %v4252 = vrot.slane %v4132, 1
      %v4253 = vrot.slane %v4134, 1
      %v4254 = vsel %vm2862, %v4252, %v4253
      %v4255 = vrot.slane %v4133, 1
      %v4256 = vrot.slane %v4135, 1
      %v4257 = vsel %vm2862, %v4255, %v4256
      %v4258 = vrot.slane %v4136, 1
      %v4259 = vsel %vm2862, %v4253, %v4258
      %v4260 = vrot.slane %v4137, 1
      %v4261 = vsel %vm2862, %v4256, %v4260
      %v4262 = vrot.slane %v4138, 1
      %v4263 = vrot.slane %v4140, 1
      %v4264 = vsel %vm2862, %v4262, %v4263
      %v4265 = vrot.slane %v4139, 1
      %v4266 = vrot.slane %v4141, 1
      %v4267 = vsel %vm2862, %v4265, %v4266
      %v4268 = vrot.slane %v4142, 1
      %v4269 = vsel %vm2862, %v4263, %v4268
      %v4270 = vrot.slane %v4143, 1
      %v4271 = vsel %vm2862, %v4266, %v4270
      %v4320 = vadd.f32 %v4040, %v4194
      %v4321 = vadd.f32 %v4041, %v4197
      %v4322 = vadd.f32 %v4042, %v4199
      %v4323 = vadd.f32 %v4043, %v4201
      %v4324 = vadd.f32 %v4044, %v4198
      %v4325 = vadd.f32 %v4045, %v4200
      %v4326 = vadd.f32 %v4046, %v4204
      %v4327 = vadd.f32 %v4047, %v4207
      %v4328 = vadd.f32 %v4048, %v4209
      %v4329 = vadd.f32 %v4049, %v4211
      %v4330 = vadd.f32 %v4050, %v4208
      %v4331 = vadd.f32 %v4051, %v4210
      %v4332 = vadd.f32 %v4052, %v4214
      %v4333 = vadd.f32 %v4053, %v4217
      %v4334 = vadd.f32 %v4054, %v4219
      %v4335 = vadd.f32 %v4055, %v4221
      %v4336 = vadd.f32 %v4056, %v4218
      %v4337 = vadd.f32 %v4057, %v4220
      %v4338 = vadd.f32 %v4058, %v4224
      %v4339 = vadd.f32 %v4059, %v4227
      %v4340 = vadd.f32 %v4060, %v4229
      %v4341 = vadd.f32 %v4061, %v4231
      %v4342 = vadd.f32 %v4062, %v4228
      %v4343 = vadd.f32 %v4063, %v4230
      %v4344 = vadd.f32 %v4064, %v4234
      %v4345 = vadd.f32 %v4065, %v4237
      %v4346 = vadd.f32 %v4066, %v4239
      %v4347 = vadd.f32 %v4067, %v4241
      %v4348 = vadd.f32 %v4068, %v4238
      %v4349 = vadd.f32 %v4069, %v4240
      %v4350 = vadd.f32 %v4070, %v4244
      %v4351 = vadd.f32 %v4071, %v4247
      %v4352 = vadd.f32 %v4072, %v4249
      %v4353 = vadd.f32 %v4073, %v4251
      %v4354 = vadd.f32 %v4074, %v4248
      %v4355 = vadd.f32 %v4075, %v4250
      %v4356 = vadd.f32 %v4076, %v4254
      %v4357 = vadd.f32 %v4077, %v4257
      %v4358 = vadd.f32 %v4078, %v4259
      %v4359 = vadd.f32 %v4079, %v4261
      %v4360 = vadd.f32 %v4080, %v4258
      %v4361 = vadd.f32 %v4081, %v4260
      %v4362 = vadd.f32 %v4082, %v4264
      %v4363 = vadd.f32 %v4083, %v4267
      %v4364 = vadd.f32 %v4084, %v4269
      %v4365 = vadd.f32 %v4085, %v4271
      %v4366 = vadd.f32 %v4086, %v4268
      %v4367 = vadd.f32 %v4087, %v4270
      %v4368 = vlaneseq
      %v4369 = vshrl.u32 %v4368, 7
      %v4370 = vsub.s32 0, %v4369
      %v4371 = vrot.slane %v2700, %v4370
      %v4372 = vlaneseq
      %v4373 = vshrl.u32 %v4372, 7
      %v4374 = vsub.s32 0, %v4373
      %v4375 = vrot.slane %v2701, %v4374
      %v4376 = vmul.f32 %v4371, %v2644
      %v4377 = vmul.f32 %v4375, %v2645
      %v4378 = vmul.f32 %v4371, %v2646
      %v4379 = vmul.f32 %v4375, %v2647
      %v4380 = vmul.f32 %v4371, %v2648
      %v4381 = vmul.f32 %v4375, %v2649
      %v4382 = vmul.f32 %v4371, %v2650
      %v4383 = vmul.f32 %v4375, %v2651
      %v4384 = vmul.f32 %v4371, %v2652
      %v4385 = vmul.f32 %v4375, %v2653
      %v4386 = vmul.f32 %v4371, %v2654
      %v4387 = vmul.f32 %v4375, %v2655
      %v4388 = vmul.f32 %v4371, %v2656
      %v4389 = vmul.f32 %v4375, %v2657
      %v4390 = vmul.f32 %v4371, %v2658
      %v4391 = vmul.f32 %v4375, %v2659
      %v4392 = vmul.f32 %v4371, %v2660
      %v4393 = vmul.f32 %v4375, %v2661
      %v4394 = vmul.f32 %v4371, %v2662
      %v4395 = vmul.f32 %v4375, %v2663
      %v4396 = vmul.f32 %v4371, %v2664
      %v4397 = vmul.f32 %v4375, %v2665
      %v4398 = vmul.f32 %v4371, %v2666
      %v4399 = vmul.f32 %v4375, %v2667
      %v4400 = vmul.f32 %v4371, %v2668
      %v4401 = vmul.f32 %v4375, %v2669
      %v4402 = vmul.f32 %v4371, %v2670
      %v4403 = vmul.f32 %v4375, %v2671
      %v4404 = vmul.f32 %v4371, %v2672
      %v4405 = vmul.f32 %v4375, %v2673
      %v4406 = vmul.f32 %v4371, %v2674
      %v4407 = vmul.f32 %v4375, %v2675
      %v4408 = vmul.f32 %v4371, %v2676
      %v4409 = vmul.f32 %v4375, %v2677
      %v4410 = vmul.f32 %v4371, %v2678
      %v4411 = vmul.f32 %v4375, %v2679
      %v4412 = vmul.f32 %v4371, %v2680
      %v4413 = vmul.f32 %v4375, %v2681
      %v4414 = vmul.f32 %v4371, %v2682
      %v4415 = vmul.f32 %v4375, %v2683
      %v4416 = vmul.f32 %v4371, %v2684
      %v4417 = vmul.f32 %v4375, %v2685
      %v4418 = vmul.f32 %v4371, %v2686
      %v4419 = vmul.f32 %v4375, %v2687
      %v4420 = vmul.f32 %v4371, %v2688
      %v4421 = vmul.f32 %v4375, %v2689
      %v4422 = vmul.f32 %v4371, %v2690
      %v4423 = vmul.f32 %v4375, %v2691
      %v4472 = vrot.slane %v4376, 2
      %v4473 = vrot.slane %v4378, 2
      %v4474 = vsel %vm3143, %v4472, %v4473
      %v4475 = vrot.slane %v4377, 2
      %v4476 = vrot.slane %v4379, 2
      %v4477 = vsel %vm3143, %v4475, %v4476
      %v4478 = vrot.slane %v4380, 2
      %v4479 = vsel %vm3143, %v4473, %v4478
      %v4480 = vrot.slane %v4381, 2
      %v4481 = vsel %vm3143, %v4476, %v4480
      %v4482 = vrot.slane %v4382, 2
      %v4483 = vrot.slane %v4384, 2
      %v4484 = vsel %vm3143, %v4482, %v4483
      %v4485 = vrot.slane %v4383, 2
      %v4486 = vrot.slane %v4385, 2
      %v4487 = vsel %vm3143, %v4485, %v4486
      %v4488 = vrot.slane %v4386, 2
      %v4489 = vsel %vm3143, %v4483, %v4488
      %v4490 = vrot.slane %v4387, 2
      %v4491 = vsel %vm3143, %v4486, %v4490
      %v4492 = vrot.slane %v4388, 2
      %v4493 = vrot.slane %v4390, 2
      %v4494 = vsel %vm3143, %v4492, %v4493
      %v4495 = vrot.slane %v4389, 2
      %v4496 = vrot.slane %v4391, 2
      %v4497 = vsel %vm3143, %v4495, %v4496
      %v4498 = vrot.slane %v4392, 2
      %v4499 = vsel %vm3143, %v4493, %v4498
      %v4500 = vrot.slane %v4393, 2
      %v4501 = vsel %vm3143, %v4496, %v4500
      %v4502 = vrot.slane %v4394, 2
      %v4503 = vrot.slane %v4396, 2
      %v4504 = vsel %vm3143, %v4502, %v4503
      %v4505 = vrot.slane %v4395, 2
      %v4506 = vrot.slane %v4397, 2
      %v4507 = vsel %vm3143, %v4505, %v4506
      %v4508 = vrot.slane %v4398, 2
      %v4509 = vsel %vm3143, %v4503, %v4508
      %v4510 = vrot.slane %v4399, 2
      %v4511 = vsel %vm3143, %v4506, %v4510
      %v4512 = vrot.slane %v4400, 2
      %v4513 = vrot.slane %v4402, 2
      %v4514 = vsel %vm3143, %v4512, %v4513
      %v4515 = vrot.slane %v4401, 2
      %v4516 = vrot.slane %v4403, 2
      %v4517 = vsel %vm3143, %v4515, %v4516
      %v4518 = vrot.slane %v4404, 2
      %v4519 = vsel %vm3143, %v4513, %v4518
      %v4520 = vrot.slane %v4405, 2
      %v4521 = vsel %vm3143, %v4516, %v4520
      %v4522 = vrot.slane %v4406, 2
      %v4523 = vrot.slane %v4408, 2
      %v4524 = vsel %vm3143, %v4522, %v4523
      %v4525 = vrot.slane %v4407, 2
      %v4526 = vrot.slane %v4409, 2
      %v4527 = vsel %vm3143, %v4525, %v4526
      %v4528 = vrot.slane %v4410, 2
      %v4529 = vsel %vm3143, %v4523, %v4528
      %v4530 = vrot.slane %v4411, 2
      %v4531 = vsel %vm3143, %v4526, %v4530
      %v4532 = vrot.slane %v4412, 2
      %v4533 = vrot.slane %v4414, 2
      %v4534 = vsel %vm3143, %v4532, %v4533
      %v4535 = vrot.slane %v4413, 2
      %v4536 = vrot.slane %v4415, 2
      %v4537 = vsel %vm3143, %v4535, %v4536
      %v4538 = vrot.slane %v4416, 2
      %v4539 = vsel %vm3143, %v4533, %v4538
      %v4540 = vrot.slane %v4417, 2
      %v4541 = vsel %vm3143, %v4536, %v4540
      %v4542 = vrot.slane %v4418, 2
      %v4543 = vrot.slane %v4420, 2
      %v4544 = vsel %vm3143, %v4542, %v4543
      %v4545 = vrot.slane %v4419, 2
      %v4546 = vrot.slane %v4421, 2
      %v4547 = vsel %vm3143, %v4545, %v4546
      %v4548 = vrot.slane %v4422, 2
      %v4549 = vsel %vm3143, %v4543, %v4548
      %v4550 = vrot.slane %v4423, 2
      %v4551 = vsel %vm3143, %v4546, %v4550
      %v4600 = vadd.f32 %v4320, %v4474
      %v4601 = vadd.f32 %v4321, %v4477
      %v4602 = vadd.f32 %v4322, %v4479
      %v4603 = vadd.f32 %v4323, %v4481
      %v4604 = vadd.f32 %v4324, %v4478
      %v4605 = vadd.f32 %v4325, %v4480
      %v4606 = vadd.f32 %v4326, %v4484
      %v4607 = vadd.f32 %v4327, %v4487
      %v4608 = vadd.f32 %v4328, %v4489
      %v4609 = vadd.f32 %v4329, %v4491
      %v4610 = vadd.f32 %v4330, %v4488
      %v4611 = vadd.f32 %v4331, %v4490
      %v4612 = vadd.f32 %v4332, %v4494
      %v4613 = vadd.f32 %v4333, %v4497
      %v4614 = vadd.f32 %v4334, %v4499
      %v4615 = vadd.f32 %v4335, %v4501
      %v4616 = vadd.f32 %v4336, %v4498
      %v4617 = vadd.f32 %v4337, %v4500
      %v4618 = vadd.f32 %v4338, %v4504
      %v4619 = vadd.f32 %v4339, %v4507
      %v4620 = vadd.f32 %v4340, %v4509
      %v4621 = vadd.f32 %v4341, %v4511
      %v4622 = vadd.f32 %v4342, %v4508
      %v4623 = vadd.f32 %v4343, %v4510
      %v4624 = vadd.f32 %v4344, %v4514
      %v4625 = vadd.f32 %v4345, %v4517
      %v4626 = vadd.f32 %v4346, %v4519
      %v4627 = vadd.f32 %v4347, %v4521
      %v4628 = vadd.f32 %v4348, %v4518
      %v4629 = vadd.f32 %v4349, %v4520
      %v4630 = vadd.f32 %v4350, %v4524
      %v4631 = vadd.f32 %v4351, %v4527
      %v4632 = vadd.f32 %v4352, %v4529
      %v4633 = vadd.f32 %v4353, %v4531
      %v4634 = vadd.f32 %v4354, %v4528
      %v4635 = vadd.f32 %v4355, %v4530
      %v4636 = vadd.f32 %v4356, %v4534
      %v4637 = vadd.f32 %v4357, %v4537
      %v4638 = vadd.f32 %v4358, %v4539
      %v4639 = vadd.f32 %v4359, %v4541
      %v4640 = vadd.f32 %v4360, %v4538
      %v4641 = vadd.f32 %v4361, %v4540
      %v4642 = vadd.f32 %v4362, %v4544
      %v4643 = vadd.f32 %v4363, %v4547
      %v4644 = vadd.f32 %v4364, %v4549
      %v4645 = vadd.f32 %v4365, %v4551
      %v4646 = vadd.f32 %v4366, %v4548
      %v4647 = vadd.f32 %v4367, %v4550
      %v4648 = vadd.f32 %v4600, %v4601
      %v4649 = vadd.f32 %v4602, %v4603
      %v4650 = vadd.f32 %v4604, %v4605
      %v4651 = vadd.f32 %v4606, %v4607
      %v4652 = vadd.f32 %v4608, %v4609
      %v4653 = vadd.f32 %v4610, %v4611
      %v4654 = vadd.f32 %v4612, %v4613
      %v4655 = vadd.f32 %v4614, %v4615
      %v4656 = vadd.f32 %v4616, %v4617
      %v4657 = vadd.f32 %v4618, %v4619
      %v4658 = vadd.f32 %v4620, %v4621
      %v4659 = vadd.f32 %v4622, %v4623
      %v4660 = vadd.f32 %v4624, %v4625
      %v4661 = vadd.f32 %v4626, %v4627
      %v4662 = vadd.f32 %v4628, %v4629
      %v4663 = vadd.f32 %v4630, %v4631
      %v4664 = vadd.f32 %v4632, %v4633
      %v4665 = vadd.f32 %v4634, %v4635
      %v4666 = vadd.f32 %v4636, %v4637
      %v4667 = vadd.f32 %v4638, %v4639
      %v4668 = vadd.f32 %v4640, %v4641
      %v4669 = vadd.f32 %v4642, %v4643
      %v4670 = vadd.f32 %v4644, %v4645
      %v4671 = vadd.f32 %v4646, %v4647
      %v4672 = vld [vmem:[%s3] sm:$0x1]
      %v4674 = vlaneseq
      %v4675 = vshrl.u32 %v4674, 7
      %v4676 = vsub.s32 0, %v4675
      %v4677 = vrot.slane %v4672, %v4676
      %v4679 = vadd.f32 %v4648, %v4677
      %v4680 = vadd.f32 %v4649, %v4677
      %v4681 = vadd.f32 %v4650, %v4677
      %v4682 = vadd.f32 %v4651, %v4677
      %v4683 = vadd.f32 %v4652, %v4677
      %v4684 = vadd.f32 %v4653, %v4677
      %v4685 = vadd.f32 %v4654, %v4677
      %v4686 = vadd.f32 %v4655, %v4677
      %v4687 = vadd.f32 %v4656, %v4677
      %v4688 = vadd.f32 %v4657, %v4677
      %v4689 = vadd.f32 %v4658, %v4677
      %v4690 = vadd.f32 %v4659, %v4677
      %v4691 = vadd.f32 %v4660, %v4677
      %v4692 = vadd.f32 %v4661, %v4677
      %v4693 = vadd.f32 %v4662, %v4677
      %v4694 = vadd.f32 %v4663, %v4677
      %v4695 = vadd.f32 %v4664, %v4677
      %v4696 = vadd.f32 %v4665, %v4677
      %v4697 = vadd.f32 %v4666, %v4677
      %v4698 = vadd.f32 %v4667, %v4677
      %v4699 = vadd.f32 %v4668, %v4677
      %v4700 = vadd.f32 %v4669, %v4677
      %v4701 = vadd.f32 %v4670, %v4677
      %v4702 = vadd.f32 %v4671, %v4677
      %v4703 = vand.u32 2147483647, %v4679
      %v4704 = vand.u32 2147483647, %v4680
      %v4705 = vand.u32 2147483647, %v4681
      %v4706 = vand.u32 2147483647, %v4682
      %v4707 = vand.u32 2147483647, %v4683
      %v4708 = vand.u32 2147483647, %v4684
      %v4709 = vand.u32 2147483647, %v4685
      %v4710 = vand.u32 2147483647, %v4686
      %v4711 = vand.u32 2147483647, %v4687
      %v4712 = vand.u32 2147483647, %v4688
      %v4713 = vand.u32 2147483647, %v4689
      %v4714 = vand.u32 2147483647, %v4690
      %v4715 = vand.u32 2147483647, %v4691
      %v4716 = vand.u32 2147483647, %v4692
      %v4717 = vand.u32 2147483647, %v4693
      %v4718 = vand.u32 2147483647, %v4694
      %v4719 = vand.u32 2147483647, %v4695
      %v4720 = vand.u32 2147483647, %v4696
      %v4721 = vand.u32 2147483647, %v4697
      %v4722 = vand.u32 2147483647, %v4698
      %v4723 = vand.u32 2147483647, %v4699
      %v4724 = vand.u32 2147483647, %v4700
      %v4725 = vand.u32 2147483647, %v4701
      %v4726 = vand.u32 2147483647, %v4702
      %v4727 = vmul.f32 %v4703, 0.70710677
      %v4728 = vmul.f32 %v4704, 0.70710677
      %v4729 = vmul.f32 %v4705, 0.70710677
      %v4730 = vmul.f32 %v4706, 0.70710677
      %v4731 = vmul.f32 %v4707, 0.70710677
      %v4732 = vmul.f32 %v4708, 0.70710677
      %v4733 = vmul.f32 %v4709, 0.70710677
      %v4734 = vmul.f32 %v4710, 0.70710677
      %v4735 = vmul.f32 %v4711, 0.70710677
      %v4736 = vmul.f32 %v4712, 0.70710677
      %v4737 = vmul.f32 %v4713, 0.70710677
      %v4738 = vmul.f32 %v4714, 0.70710677
      %v4739 = vmul.f32 %v4715, 0.70710677
      %v4740 = vmul.f32 %v4716, 0.70710677
      %v4741 = vmul.f32 %v4717, 0.70710677
      %v4742 = vmul.f32 %v4718, 0.70710677
      %v4743 = vmul.f32 %v4719, 0.70710677
      %v4744 = vmul.f32 %v4720, 0.70710677
      %v4745 = vmul.f32 %v4721, 0.70710677
      %v4746 = vmul.f32 %v4722, 0.70710677
      %v4747 = vmul.f32 %v4723, 0.70710677
      %v4748 = vmul.f32 %v4724, 0.70710677
      %v4749 = vmul.f32 %v4725, 0.70710677
      %v4750 = vmul.f32 %v4726, 0.70710677
      %v4751 = vmul.f32 %v4727, 0.3275911
      %v4752 = vmul.f32 %v4728, 0.3275911
      %v4753 = vmul.f32 %v4729, 0.3275911
      %v4754 = vmul.f32 %v4730, 0.3275911
      %v4755 = vmul.f32 %v4731, 0.3275911
      %v4756 = vmul.f32 %v4732, 0.3275911
      %v4757 = vmul.f32 %v4733, 0.3275911
      %v4758 = vmul.f32 %v4734, 0.3275911
      %v4759 = vmul.f32 %v4735, 0.3275911
      %v4760 = vmul.f32 %v4736, 0.3275911
      %v4761 = vmul.f32 %v4737, 0.3275911
      %v4762 = vmul.f32 %v4738, 0.3275911
      %v4763 = vmul.f32 %v4739, 0.3275911
      %v4764 = vmul.f32 %v4740, 0.3275911
      %v4765 = vmul.f32 %v4741, 0.3275911
      %v4766 = vmul.f32 %v4742, 0.3275911
      %v4767 = vmul.f32 %v4743, 0.3275911
      %v4768 = vmul.f32 %v4744, 0.3275911
      %v4769 = vmul.f32 %v4745, 0.3275911
      %v4770 = vmul.f32 %v4746, 0.3275911
      %v4771 = vmul.f32 %v4747, 0.3275911
      %v4772 = vmul.f32 %v4748, 0.3275911
      %v4773 = vmul.f32 %v4749, 0.3275911
      %v4774 = vmul.f32 %v4750, 0.3275911
      %v4775 = vadd.f32 %v4751, 1.0
      %v4776 = vadd.f32 %v4752, 1.0
      %v4777 = vadd.f32 %v4753, 1.0
      %v4778 = vadd.f32 %v4754, 1.0
      %v4779 = vadd.f32 %v4755, 1.0
      %v4780 = vadd.f32 %v4756, 1.0
      %v4781 = vadd.f32 %v4757, 1.0
      %v4782 = vadd.f32 %v4758, 1.0
      %v4783 = vadd.f32 %v4759, 1.0
      %v4784 = vadd.f32 %v4760, 1.0
      %v4785 = vadd.f32 %v4761, 1.0
      %v4786 = vadd.f32 %v4762, 1.0
      %v4787 = vadd.f32 %v4763, 1.0
      %v4788 = vadd.f32 %v4764, 1.0
      %v4789 = vadd.f32 %v4765, 1.0
      %v4790 = vadd.f32 %v4766, 1.0
      %v4791 = vadd.f32 %v4767, 1.0
      %v4792 = vadd.f32 %v4768, 1.0
      %v4793 = vadd.f32 %v4769, 1.0
      %v4794 = vadd.f32 %v4770, 1.0
      %v4795 = vadd.f32 %v4771, 1.0
      %v4796 = vadd.f32 %v4772, 1.0
      %v4797 = vadd.f32 %v4773, 1.0
      %v4798 = vadd.f32 %v4774, 1.0
      %v4799 = vrcp.pop %v4775
      %v4800 = vrcp.pop %v4776
      %v4801 = vrcp.pop %v4777
      %v4802 = vrcp.pop %v4778
      %v4803 = vrcp.pop %v4779
      %v4804 = vrcp.pop %v4780
      %v4805 = vrcp.pop %v4781
      %v4806 = vrcp.pop %v4782
      %v4807 = vrcp.pop %v4783
      %v4808 = vrcp.pop %v4784
      %v4809 = vrcp.pop %v4785
      %v4810 = vrcp.pop %v4786
      %v4811 = vrcp.pop %v4787
      %v4812 = vrcp.pop %v4788
      %v4813 = vrcp.pop %v4789
      %v4814 = vrcp.pop %v4790
      %v4815 = vrcp.pop %v4791
      %v4816 = vrcp.pop %v4792
      %v4817 = vrcp.pop %v4793
      %v4818 = vrcp.pop %v4794
      %v4819 = vrcp.pop %v4795
      %v4820 = vrcp.pop %v4796
      %v4821 = vrcp.pop %v4797
      %v4822 = vrcp.pop %v4798
      %v4823 = vmul.f32 %v4799, 1.0614054
      %v4824 = vmul.f32 %v4800, 1.0614054
      %v4825 = vmul.f32 %v4801, 1.0614054
      %v4826 = vmul.f32 %v4802, 1.0614054
      %v4827 = vmul.f32 %v4803, 1.0614054
      %v4828 = vmul.f32 %v4804, 1.0614054
      %v4829 = vmul.f32 %v4805, 1.0614054
      %v4830 = vmul.f32 %v4806, 1.0614054
      %v4831 = vmul.f32 %v4807, 1.0614054
      %v4832 = vmul.f32 %v4808, 1.0614054
      %v4833 = vmul.f32 %v4809, 1.0614054
      %v4834 = vmul.f32 %v4810, 1.0614054
      %v4835 = vmul.f32 %v4811, 1.0614054
      %v4836 = vmul.f32 %v4812, 1.0614054
      %v4837 = vmul.f32 %v4813, 1.0614054
      %v4838 = vmul.f32 %v4814, 1.0614054
      %v4839 = vmul.f32 %v4815, 1.0614054
      %v4840 = vmul.f32 %v4816, 1.0614054
      %v4841 = vmul.f32 %v4817, 1.0614054
      %v4842 = vmul.f32 %v4818, 1.0614054
      %v4843 = vmul.f32 %v4819, 1.0614054
      %v4844 = vmul.f32 %v4820, 1.0614054
      %v4845 = vmul.f32 %v4821, 1.0614054
      %v4846 = vmul.f32 %v4822, 1.0614054
      %v4847 = vsub.f32 %v4823, 1.4531521
      %v4848 = vsub.f32 %v4824, 1.4531521
      %v4849 = vsub.f32 %v4825, 1.4531521
      %v4850 = vsub.f32 %v4826, 1.4531521
      %v4851 = vsub.f32 %v4827, 1.4531521
      %v4852 = vsub.f32 %v4828, 1.4531521
      %v4853 = vsub.f32 %v4829, 1.4531521
      %v4854 = vsub.f32 %v4830, 1.4531521
      %v4855 = vsub.f32 %v4831, 1.4531521
      %v4856 = vsub.f32 %v4832, 1.4531521
      %v4857 = vsub.f32 %v4833, 1.4531521
      %v4858 = vsub.f32 %v4834, 1.4531521
      %v4859 = vsub.f32 %v4835, 1.4531521
      %v4860 = vsub.f32 %v4836, 1.4531521
      %v4861 = vsub.f32 %v4837, 1.4531521
      %v4862 = vsub.f32 %v4838, 1.4531521
      %v4863 = vsub.f32 %v4839, 1.4531521
      %v4864 = vsub.f32 %v4840, 1.4531521
      %v4865 = vsub.f32 %v4841, 1.4531521
      %v4866 = vsub.f32 %v4842, 1.4531521
      %v4867 = vsub.f32 %v4843, 1.4531521
      %v4868 = vsub.f32 %v4844, 1.4531521
      %v4869 = vsub.f32 %v4845, 1.4531521
      %v4870 = vsub.f32 %v4846, 1.4531521
      %v4871 = vmul.f32 %v4847, %v4799
      %v4872 = vmul.f32 %v4848, %v4800
      %v4873 = vmul.f32 %v4849, %v4801
      %v4874 = vmul.f32 %v4850, %v4802
      %v4875 = vmul.f32 %v4851, %v4803
      %v4876 = vmul.f32 %v4852, %v4804
      %v4877 = vmul.f32 %v4853, %v4805
      %v4878 = vmul.f32 %v4854, %v4806
      %v4879 = vmul.f32 %v4855, %v4807
      %v4880 = vmul.f32 %v4856, %v4808
      %v4881 = vmul.f32 %v4857, %v4809
      %v4882 = vmul.f32 %v4858, %v4810
      %v4883 = vmul.f32 %v4859, %v4811
      %v4884 = vmul.f32 %v4860, %v4812
      %v4885 = vmul.f32 %v4861, %v4813
      %v4886 = vmul.f32 %v4862, %v4814
      %v4887 = vmul.f32 %v4863, %v4815
      %v4888 = vmul.f32 %v4864, %v4816
      %v4889 = vmul.f32 %v4865, %v4817
      %v4890 = vmul.f32 %v4866, %v4818
      %v4891 = vmul.f32 %v4867, %v4819
      %v4892 = vmul.f32 %v4868, %v4820
      %v4893 = vmul.f32 %v4869, %v4821
      %v4894 = vmul.f32 %v4870, %v4822
      %v4895 = vadd.f32 %v4871, 1.4214138
      %v4896 = vadd.f32 %v4872, 1.4214138
      %v4897 = vadd.f32 %v4873, 1.4214138
      %v4898 = vadd.f32 %v4874, 1.4214138
      %v4899 = vadd.f32 %v4875, 1.4214138
      %v4900 = vadd.f32 %v4876, 1.4214138
      %v4901 = vadd.f32 %v4877, 1.4214138
      %v4902 = vadd.f32 %v4878, 1.4214138
      %v4903 = vadd.f32 %v4879, 1.4214138
      %v4904 = vadd.f32 %v4880, 1.4214138
      %v4905 = vadd.f32 %v4881, 1.4214138
      %v4906 = vadd.f32 %v4882, 1.4214138
      %v4907 = vadd.f32 %v4883, 1.4214138
      %v4908 = vadd.f32 %v4884, 1.4214138
      %v4909 = vadd.f32 %v4885, 1.4214138
      %v4910 = vadd.f32 %v4886, 1.4214138
      %v4911 = vadd.f32 %v4887, 1.4214138
      %v4912 = vadd.f32 %v4888, 1.4214138
      %v4913 = vadd.f32 %v4889, 1.4214138
      %v4914 = vadd.f32 %v4890, 1.4214138
      %v4915 = vadd.f32 %v4891, 1.4214138
      %v4916 = vadd.f32 %v4892, 1.4214138
      %v4917 = vadd.f32 %v4893, 1.4214138
      %v4918 = vadd.f32 %v4894, 1.4214138
      %v4919 = vmul.f32 %v4895, %v4799
      %v4920 = vmul.f32 %v4896, %v4800
      %v4921 = vmul.f32 %v4897, %v4801
      %v4922 = vmul.f32 %v4898, %v4802
      %v4923 = vmul.f32 %v4899, %v4803
      %v4924 = vmul.f32 %v4900, %v4804
      %v4925 = vmul.f32 %v4901, %v4805
      %v4926 = vmul.f32 %v4902, %v4806
      %v4927 = vmul.f32 %v4903, %v4807
      %v4928 = vmul.f32 %v4904, %v4808
      %v4929 = vmul.f32 %v4905, %v4809
      %v4930 = vmul.f32 %v4906, %v4810
      %v4931 = vmul.f32 %v4907, %v4811
      %v4932 = vmul.f32 %v4908, %v4812
      %v4933 = vmul.f32 %v4909, %v4813
      %v4934 = vmul.f32 %v4910, %v4814
      %v4935 = vmul.f32 %v4911, %v4815
      %v4936 = vmul.f32 %v4912, %v4816
      %v4937 = vmul.f32 %v4913, %v4817
      %v4938 = vmul.f32 %v4914, %v4818
      %v4939 = vmul.f32 %v4915, %v4819
      %v4940 = vmul.f32 %v4916, %v4820
      %v4941 = vmul.f32 %v4917, %v4821
      %v4942 = vmul.f32 %v4918, %v4822
      %v4943 = vsub.f32 %v4919, 0.28449672
      %v4944 = vsub.f32 %v4920, 0.28449672
      %v4945 = vsub.f32 %v4921, 0.28449672
      %v4946 = vsub.f32 %v4922, 0.28449672
      %v4947 = vsub.f32 %v4923, 0.28449672
      %v4948 = vsub.f32 %v4924, 0.28449672
      %v4949 = vsub.f32 %v4925, 0.28449672
      %v4950 = vsub.f32 %v4926, 0.28449672
      %v4951 = vsub.f32 %v4927, 0.28449672
      %v4952 = vsub.f32 %v4928, 0.28449672
      %v4953 = vsub.f32 %v4929, 0.28449672
      %v4954 = vsub.f32 %v4930, 0.28449672
      %v4955 = vsub.f32 %v4931, 0.28449672
      %v4956 = vsub.f32 %v4932, 0.28449672
      %v4957 = vsub.f32 %v4933, 0.28449672
      %v4958 = vsub.f32 %v4934, 0.28449672
      %v4959 = vsub.f32 %v4935, 0.28449672
      %v4960 = vsub.f32 %v4936, 0.28449672
      %v4961 = vsub.f32 %v4937, 0.28449672
      %v4962 = vsub.f32 %v4938, 0.28449672
      %v4963 = vsub.f32 %v4939, 0.28449672
      %v4964 = vsub.f32 %v4940, 0.28449672
      %v4965 = vsub.f32 %v4941, 0.28449672
      %v4966 = vsub.f32 %v4942, 0.28449672
      %v4967 = vmul.f32 %v4943, %v4799
      %v4968 = vmul.f32 %v4944, %v4800
      %v4969 = vmul.f32 %v4945, %v4801
      %v4970 = vmul.f32 %v4946, %v4802
      %v4971 = vmul.f32 %v4947, %v4803
      %v4972 = vmul.f32 %v4948, %v4804
      %v4973 = vmul.f32 %v4949, %v4805
      %v4974 = vmul.f32 %v4950, %v4806
      %v4975 = vmul.f32 %v4951, %v4807
      %v4976 = vmul.f32 %v4952, %v4808
      %v4977 = vmul.f32 %v4953, %v4809
      %v4978 = vmul.f32 %v4954, %v4810
      %v4979 = vmul.f32 %v4955, %v4811
      %v4980 = vmul.f32 %v4956, %v4812
      %v4981 = vmul.f32 %v4957, %v4813
      %v4982 = vmul.f32 %v4958, %v4814
      %v4983 = vmul.f32 %v4959, %v4815
      %v4984 = vmul.f32 %v4960, %v4816
      %v4985 = vmul.f32 %v4961, %v4817
      %v4986 = vmul.f32 %v4962, %v4818
      %v4987 = vmul.f32 %v4963, %v4819
      %v4988 = vmul.f32 %v4964, %v4820
      %v4989 = vmul.f32 %v4965, %v4821
      %v4990 = vmul.f32 %v4966, %v4822
      %v4991 = vadd.f32 %v4967, 0.2548296
      %v4992 = vadd.f32 %v4968, 0.2548296
      %v4993 = vadd.f32 %v4969, 0.2548296
      %v4994 = vadd.f32 %v4970, 0.2548296
      %v4995 = vadd.f32 %v4971, 0.2548296
      %v4996 = vadd.f32 %v4972, 0.2548296
      %v4997 = vadd.f32 %v4973, 0.2548296
      %v4998 = vadd.f32 %v4974, 0.2548296
      %v4999 = vadd.f32 %v4975, 0.2548296
      %v5000 = vadd.f32 %v4976, 0.2548296
      %v5001 = vadd.f32 %v4977, 0.2548296
      %v5002 = vadd.f32 %v4978, 0.2548296
      %v5003 = vadd.f32 %v4979, 0.2548296
      %v5004 = vadd.f32 %v4980, 0.2548296
      %v5005 = vadd.f32 %v4981, 0.2548296
      %v5006 = vadd.f32 %v4982, 0.2548296
      %v5007 = vadd.f32 %v4983, 0.2548296
      %v5008 = vadd.f32 %v4984, 0.2548296
      %v5009 = vadd.f32 %v4985, 0.2548296
      %v5010 = vadd.f32 %v4986, 0.2548296
      %v5011 = vadd.f32 %v4987, 0.2548296
      %v5012 = vadd.f32 %v4988, 0.2548296
      %v5013 = vadd.f32 %v4989, 0.2548296
      %v5014 = vadd.f32 %v4990, 0.2548296
      %v5015 = vmul.f32 %v4991, %v4799
      %v5016 = vmul.f32 %v4992, %v4800
      %v5017 = vmul.f32 %v4993, %v4801
      %v5018 = vmul.f32 %v4994, %v4802
      %v5019 = vmul.f32 %v4995, %v4803
      %v5020 = vmul.f32 %v4996, %v4804
      %v5021 = vmul.f32 %v4997, %v4805
      %v5022 = vmul.f32 %v4998, %v4806
      %v5023 = vmul.f32 %v4999, %v4807
      %v5024 = vmul.f32 %v5000, %v4808
      %v5025 = vmul.f32 %v5001, %v4809
      %v5026 = vmul.f32 %v5002, %v4810
      %v5027 = vmul.f32 %v5003, %v4811
      %v5028 = vmul.f32 %v5004, %v4812
      %v5029 = vmul.f32 %v5005, %v4813
      %v5030 = vmul.f32 %v5006, %v4814
      %v5031 = vmul.f32 %v5007, %v4815
      %v5032 = vmul.f32 %v5008, %v4816
      %v5033 = vmul.f32 %v5009, %v4817
      %v5034 = vmul.f32 %v5010, %v4818
      %v5035 = vmul.f32 %v5011, %v4819
      %v5036 = vmul.f32 %v5012, %v4820
      %v5037 = vmul.f32 %v5013, %v4821
      %v5038 = vmul.f32 %v5014, %v4822
      %v5039 = vsub.f32 0.0, %v4727
      %v5040 = vsub.f32 0.0, %v4728
      %v5041 = vsub.f32 0.0, %v4729
      %v5042 = vsub.f32 0.0, %v4730
      %v5043 = vsub.f32 0.0, %v4731
      %v5044 = vsub.f32 0.0, %v4732
      %v5045 = vsub.f32 0.0, %v4733
      %v5046 = vsub.f32 0.0, %v4734
      %v5047 = vsub.f32 0.0, %v4735
      %v5048 = vsub.f32 0.0, %v4736
      %v5049 = vsub.f32 0.0, %v4737
      %v5050 = vsub.f32 0.0, %v4738
      %v5051 = vsub.f32 0.0, %v4739
      %v5052 = vsub.f32 0.0, %v4740
      %v5053 = vsub.f32 0.0, %v4741
      %v5054 = vsub.f32 0.0, %v4742
      %v5055 = vsub.f32 0.0, %v4743
      %v5056 = vsub.f32 0.0, %v4744
      %v5057 = vsub.f32 0.0, %v4745
      %v5058 = vsub.f32 0.0, %v4746
      %v5059 = vsub.f32 0.0, %v4747
      %v5060 = vsub.f32 0.0, %v4748
      %v5061 = vsub.f32 0.0, %v4749
      %v5062 = vsub.f32 0.0, %v4750
      %v5063 = vmul.f32 %v5039, %v4727
      %v5064 = vmul.f32 %v5040, %v4728
      %v5065 = vmul.f32 %v5041, %v4729
      %v5066 = vmul.f32 %v5042, %v4730
      %v5067 = vmul.f32 %v5043, %v4731
      %v5068 = vmul.f32 %v5044, %v4732
      %v5069 = vmul.f32 %v5045, %v4733
      %v5070 = vmul.f32 %v5046, %v4734
      %v5071 = vmul.f32 %v5047, %v4735
      %v5072 = vmul.f32 %v5048, %v4736
      %v5073 = vmul.f32 %v5049, %v4737
      %v5074 = vmul.f32 %v5050, %v4738
      %v5075 = vmul.f32 %v5051, %v4739
      %v5076 = vmul.f32 %v5052, %v4740
      %v5077 = vmul.f32 %v5053, %v4741
      %v5078 = vmul.f32 %v5054, %v4742
      %v5079 = vmul.f32 %v5055, %v4743
      %v5080 = vmul.f32 %v5056, %v4744
      %v5081 = vmul.f32 %v5057, %v4745
      %v5082 = vmul.f32 %v5058, %v4746
      %v5083 = vmul.f32 %v5059, %v4747
      %v5084 = vmul.f32 %v5060, %v4748
      %v5085 = vmul.f32 %v5061, %v4749
      %v5086 = vmul.f32 %v5062, %v4750
      %v5087 = vmul.f32 %v5063, 1.442695
      %v5088 = vpow.pop %v5087
      %v5089 = vmul.f32 %v5064, 1.442695
      %v5090 = vpow.pop %v5089
      %v5091 = vmul.f32 %v5065, 1.442695
      %v5092 = vpow.pop %v5091
      %v5093 = vmul.f32 %v5066, 1.442695
      %v5094 = vpow.pop %v5093
      %v5095 = vmul.f32 %v5067, 1.442695
      %v5096 = vpow.pop %v5095
      %v5097 = vmul.f32 %v5068, 1.442695
      %v5098 = vpow.pop %v5097
      %v5099 = vmul.f32 %v5069, 1.442695
      %v5100 = vpow.pop %v5099
      %v5101 = vmul.f32 %v5070, 1.442695
      %v5102 = vpow.pop %v5101
      %v5103 = vmul.f32 %v5071, 1.442695
      %v5104 = vpow.pop %v5103
      %v5105 = vmul.f32 %v5072, 1.442695
      %v5106 = vpow.pop %v5105
      %v5107 = vmul.f32 %v5073, 1.442695
      %v5108 = vpow.pop %v5107
      %v5109 = vmul.f32 %v5074, 1.442695
      %v5110 = vpow.pop %v5109
      %v5111 = vmul.f32 %v5075, 1.442695
      %v5112 = vpow.pop %v5111
      %v5113 = vmul.f32 %v5076, 1.442695
      %v5114 = vpow.pop %v5113
      %v5115 = vmul.f32 %v5077, 1.442695
      %v5116 = vpow.pop %v5115
      %v5117 = vmul.f32 %v5078, 1.442695
      %v5118 = vpow.pop %v5117
      %v5119 = vmul.f32 %v5079, 1.442695
      %v5120 = vpow.pop %v5119
      %v5121 = vmul.f32 %v5080, 1.442695
      %v5122 = vpow.pop %v5121
      %v5123 = vmul.f32 %v5081, 1.442695
      %v5124 = vpow.pop %v5123
      %v5125 = vmul.f32 %v5082, 1.442695
      %v5126 = vpow.pop %v5125
      %v5127 = vmul.f32 %v5083, 1.442695
      %v5128 = vpow.pop %v5127
      %v5129 = vmul.f32 %v5084, 1.442695
      %v5130 = vpow.pop %v5129
      %v5131 = vmul.f32 %v5085, 1.442695
      %v5132 = vpow.pop %v5131
      %v5133 = vmul.f32 %v5086, 1.442695
      %v5134 = vpow.pop %v5133
      %v5135 = vmul.f32 %v5015, %v5088
      %v5136 = vmul.f32 %v5016, %v5090
      %v5137 = vmul.f32 %v5017, %v5092
      %v5138 = vmul.f32 %v5018, %v5094
      %v5139 = vmul.f32 %v5019, %v5096
      %v5140 = vmul.f32 %v5020, %v5098
      %v5141 = vmul.f32 %v5021, %v5100
      %v5142 = vmul.f32 %v5022, %v5102
      %v5143 = vmul.f32 %v5023, %v5104
      %v5144 = vmul.f32 %v5024, %v5106
      %v5145 = vmul.f32 %v5025, %v5108
      %v5146 = vmul.f32 %v5026, %v5110
      %v5147 = vmul.f32 %v5027, %v5112
      %v5148 = vmul.f32 %v5028, %v5114
      %v5149 = vmul.f32 %v5029, %v5116
      %v5150 = vmul.f32 %v5030, %v5118
      %v5151 = vmul.f32 %v5031, %v5120
      %v5152 = vmul.f32 %v5032, %v5122
      %v5153 = vmul.f32 %v5033, %v5124
      %v5154 = vmul.f32 %v5034, %v5126
      %v5155 = vmul.f32 %v5035, %v5128
      %v5156 = vmul.f32 %v5036, %v5130
      %v5157 = vmul.f32 %v5037, %v5132
      %v5158 = vmul.f32 %v5038, %v5134
      %v5159 = vsub.f32 1.0, %v5135
      %v5160 = vsub.f32 1.0, %v5136
      %v5161 = vsub.f32 1.0, %v5137
      %v5162 = vsub.f32 1.0, %v5138
      %v5163 = vsub.f32 1.0, %v5139
      %v5164 = vsub.f32 1.0, %v5140
      %v5165 = vsub.f32 1.0, %v5141
      %v5166 = vsub.f32 1.0, %v5142
      %v5167 = vsub.f32 1.0, %v5143
      %v5168 = vsub.f32 1.0, %v5144
      %v5169 = vsub.f32 1.0, %v5145
      %v5170 = vsub.f32 1.0, %v5146
      %v5171 = vsub.f32 1.0, %v5147
      %v5172 = vsub.f32 1.0, %v5148
      %v5173 = vsub.f32 1.0, %v5149
      %v5174 = vsub.f32 1.0, %v5150
      %v5175 = vsub.f32 1.0, %v5151
      %v5176 = vsub.f32 1.0, %v5152
      %v5177 = vsub.f32 1.0, %v5153
      %v5178 = vsub.f32 1.0, %v5154
      %v5179 = vsub.f32 1.0, %v5155
      %v5180 = vsub.f32 1.0, %v5156
      %v5181 = vsub.f32 1.0, %v5157
      %v5182 = vsub.f32 1.0, %v5158
      %vm5183 = vcmp.ge.f32.partialorder %v4679, 0.0
      %vm5184 = vcmp.ge.f32.partialorder %v4680, 0.0
      %vm5185 = vcmp.ge.f32.partialorder %v4681, 0.0
      %vm5186 = vcmp.ge.f32.partialorder %v4682, 0.0
      %vm5187 = vcmp.ge.f32.partialorder %v4683, 0.0
      %vm5188 = vcmp.ge.f32.partialorder %v4684, 0.0
      %vm5189 = vcmp.ge.f32.partialorder %v4685, 0.0
      %vm5190 = vcmp.ge.f32.partialorder %v4686, 0.0
      %vm5191 = vcmp.ge.f32.partialorder %v4687, 0.0
      %vm5192 = vcmp.ge.f32.partialorder %v4688, 0.0
      %vm5193 = vcmp.ge.f32.partialorder %v4689, 0.0
      %vm5194 = vcmp.ge.f32.partialorder %v4690, 0.0
      %vm5195 = vcmp.ge.f32.partialorder %v4691, 0.0
      %vm5196 = vcmp.ge.f32.partialorder %v4692, 0.0
      %vm5197 = vcmp.ge.f32.partialorder %v4693, 0.0
      %vm5198 = vcmp.ge.f32.partialorder %v4694, 0.0
      %vm5199 = vcmp.ge.f32.partialorder %v4695, 0.0
      %vm5200 = vcmp.ge.f32.partialorder %v4696, 0.0
      %vm5201 = vcmp.ge.f32.partialorder %v4697, 0.0
      %vm5202 = vcmp.ge.f32.partialorder %v4698, 0.0
      %vm5203 = vcmp.ge.f32.partialorder %v4699, 0.0
      %vm5204 = vcmp.ge.f32.partialorder %v4700, 0.0
      %vm5205 = vcmp.ge.f32.partialorder %v4701, 0.0
      %vm5206 = vcmp.ge.f32.partialorder %v4702, 0.0
      %v5207 = vsub.f32 0.0, %v5159
      %v5208 = vsub.f32 0.0, %v5160
      %v5209 = vsub.f32 0.0, %v5161
      %v5210 = vsub.f32 0.0, %v5162
      %v5211 = vsub.f32 0.0, %v5163
      %v5212 = vsub.f32 0.0, %v5164
      %v5213 = vsub.f32 0.0, %v5165
      %v5214 = vsub.f32 0.0, %v5166
      %v5215 = vsub.f32 0.0, %v5167
      %v5216 = vsub.f32 0.0, %v5168
      %v5217 = vsub.f32 0.0, %v5169
      %v5218 = vsub.f32 0.0, %v5170
      %v5219 = vsub.f32 0.0, %v5171
      %v5220 = vsub.f32 0.0, %v5172
      %v5221 = vsub.f32 0.0, %v5173
      %v5222 = vsub.f32 0.0, %v5174
      %v5223 = vsub.f32 0.0, %v5175
      %v5224 = vsub.f32 0.0, %v5176
      %v5225 = vsub.f32 0.0, %v5177
      %v5226 = vsub.f32 0.0, %v5178
      %v5227 = vsub.f32 0.0, %v5179
      %v5228 = vsub.f32 0.0, %v5180
      %v5229 = vsub.f32 0.0, %v5181
      %v5230 = vsub.f32 0.0, %v5182
      %v5231 = vsel %vm5183, %v5159, %v5207
      %v5232 = vsel %vm5184, %v5160, %v5208
      %v5233 = vsel %vm5185, %v5161, %v5209
      %v5234 = vsel %vm5186, %v5162, %v5210
      %v5235 = vsel %vm5187, %v5163, %v5211
      %v5236 = vsel %vm5188, %v5164, %v5212
      %v5237 = vsel %vm5189, %v5165, %v5213
      %v5238 = vsel %vm5190, %v5166, %v5214
      %v5239 = vsel %vm5191, %v5167, %v5215
      %v5240 = vsel %vm5192, %v5168, %v5216
      %v5241 = vsel %vm5193, %v5169, %v5217
      %v5242 = vsel %vm5194, %v5170, %v5218
      %v5243 = vsel %vm5195, %v5171, %v5219
      %v5244 = vsel %vm5196, %v5172, %v5220
      %v5245 = vsel %vm5197, %v5173, %v5221
      %v5246 = vsel %vm5198, %v5174, %v5222
      %v5247 = vsel %vm5199, %v5175, %v5223
      %v5248 = vsel %vm5200, %v5176, %v5224
      %v5249 = vsel %vm5201, %v5177, %v5225
      %v5250 = vsel %vm5202, %v5178, %v5226
      %v5251 = vsel %vm5203, %v5179, %v5227
      %v5252 = vsel %vm5204, %v5180, %v5228
      %v5253 = vsel %vm5205, %v5181, %v5229
      %v5254 = vsel %vm5206, %v5182, %v5230
      %v5255 = vmul.f32 %v4679, 0.5
      %v5256 = vmul.f32 %v4680, 0.5
      %v5257 = vmul.f32 %v4681, 0.5
      %v5258 = vmul.f32 %v4682, 0.5
      %v5259 = vmul.f32 %v4683, 0.5
      %v5260 = vmul.f32 %v4684, 0.5
      %v5261 = vmul.f32 %v4685, 0.5
      %v5262 = vmul.f32 %v4686, 0.5
      %v5263 = vmul.f32 %v4687, 0.5
      %v5264 = vmul.f32 %v4688, 0.5
      %v5265 = vmul.f32 %v4689, 0.5
      %v5266 = vmul.f32 %v4690, 0.5
      %v5267 = vmul.f32 %v4691, 0.5
      %v5268 = vmul.f32 %v4692, 0.5
      %v5269 = vmul.f32 %v4693, 0.5
      %v5270 = vmul.f32 %v4694, 0.5
      %v5271 = vmul.f32 %v4695, 0.5
      %v5272 = vmul.f32 %v4696, 0.5
      %v5273 = vmul.f32 %v4697, 0.5
      %v5274 = vmul.f32 %v4698, 0.5
      %v5275 = vmul.f32 %v4699, 0.5
      %v5276 = vmul.f32 %v4700, 0.5
      %v5277 = vmul.f32 %v4701, 0.5
      %v5278 = vmul.f32 %v4702, 0.5
      %v5279 = vadd.f32 %v5231, 1.0
      %v5280 = vadd.f32 %v5232, 1.0
      %v5281 = vadd.f32 %v5233, 1.0
      %v5282 = vadd.f32 %v5234, 1.0
      %v5283 = vadd.f32 %v5235, 1.0
      %v5284 = vadd.f32 %v5236, 1.0
      %v5285 = vadd.f32 %v5237, 1.0
      %v5286 = vadd.f32 %v5238, 1.0
      %v5287 = vadd.f32 %v5239, 1.0
      %v5288 = vadd.f32 %v5240, 1.0
      %v5289 = vadd.f32 %v5241, 1.0
      %v5290 = vadd.f32 %v5242, 1.0
      %v5291 = vadd.f32 %v5243, 1.0
      %v5292 = vadd.f32 %v5244, 1.0
      %v5293 = vadd.f32 %v5245, 1.0
      %v5294 = vadd.f32 %v5246, 1.0
      %v5295 = vadd.f32 %v5247, 1.0
      %v5296 = vadd.f32 %v5248, 1.0
      %v5297 = vadd.f32 %v5249, 1.0
      %v5298 = vadd.f32 %v5250, 1.0
      %v5299 = vadd.f32 %v5251, 1.0
      %v5300 = vadd.f32 %v5252, 1.0
      %v5301 = vadd.f32 %v5253, 1.0
      %v5302 = vadd.f32 %v5254, 1.0
      %v5303 = vmul.f32 %v5255, %v5279
      %v5304 = vmul.f32 %v5256, %v5280
      %v5305 = vmul.f32 %v5257, %v5281
      %v5306 = vmul.f32 %v5258, %v5282
      %v5307 = vmul.f32 %v5259, %v5283
      %v5308 = vmul.f32 %v5260, %v5284
      %v5309 = vmul.f32 %v5261, %v5285
      %v5310 = vmul.f32 %v5262, %v5286
      %v5311 = vmul.f32 %v5263, %v5287
      %v5312 = vmul.f32 %v5264, %v5288
      %v5313 = vmul.f32 %v5265, %v5289
      %v5314 = vmul.f32 %v5266, %v5290
      %v5315 = vmul.f32 %v5267, %v5291
      %v5316 = vmul.f32 %v5268, %v5292
      %v5317 = vmul.f32 %v5269, %v5293
      %v5318 = vmul.f32 %v5270, %v5294
      %v5319 = vmul.f32 %v5271, %v5295
      %v5320 = vmul.f32 %v5272, %v5296
      %v5321 = vmul.f32 %v5273, %v5297
      %v5322 = vmul.f32 %v5274, %v5298
      %v5323 = vmul.f32 %v5275, %v5299
      %v5324 = vmul.f32 %v5276, %v5300
      %v5325 = vmul.f32 %v5277, %v5301
      %v5326 = vmul.f32 %v5278, %v5302
      %v5351 = vrot.slane %v5303, 1
      %v5352 = vrot.slane %v5304, 1
      %v5353 = vsel %vm2862, %v5351, %v5352
      %v5354 = vrot.slane %v5305, 1
      %v5355 = vsel %vm2862, %v5352, %v5354
      %v5356 = vrot.slane %v5306, 1
      %v5357 = vrot.slane %v5307, 1
      %v5358 = vsel %vm2862, %v5356, %v5357
      %v5359 = vrot.slane %v5308, 1
      %v5360 = vsel %vm2862, %v5357, %v5359
      %v5361 = vrot.slane %v5309, 1
      %v5362 = vrot.slane %v5310, 1
      %v5363 = vsel %vm2862, %v5361, %v5362
      %v5364 = vrot.slane %v5311, 1
      %v5365 = vsel %vm2862, %v5362, %v5364
      %v5366 = vrot.slane %v5312, 1
      %v5367 = vrot.slane %v5313, 1
      %v5368 = vsel %vm2862, %v5366, %v5367
      %v5369 = vrot.slane %v5314, 1
      %v5370 = vsel %vm2862, %v5367, %v5369
      %v5371 = vrot.slane %v5315, 1
      %v5372 = vrot.slane %v5316, 1
      %v5373 = vsel %vm2862, %v5371, %v5372
      %v5374 = vrot.slane %v5317, 1
      %v5375 = vsel %vm2862, %v5372, %v5374
      %v5376 = vrot.slane %v5318, 1
      %v5377 = vrot.slane %v5319, 1
      %v5378 = vsel %vm2862, %v5376, %v5377
      %v5379 = vrot.slane %v5320, 1
      %v5380 = vsel %vm2862, %v5377, %v5379
      %v5381 = vrot.slane %v5321, 1
      %v5382 = vrot.slane %v5322, 1
      %v5383 = vsel %vm2862, %v5381, %v5382
      %v5384 = vrot.slane %v5323, 1
      %v5385 = vsel %vm2862, %v5382, %v5384
      %v5386 = vrot.slane %v5324, 1
      %v5387 = vrot.slane %v5325, 1
      %v5388 = vsel %vm2862, %v5386, %v5387
      %v5389 = vrot.slane %v5326, 1
      %v5390 = vsel %vm2862, %v5387, %v5389
      %v5407 = vpack.c.bf16 %v5355, %v5353
      %v5408 = vpack.c.bf16 %v5360, %v5358
      %v5409 = vpack.c.bf16 %v5365, %v5363
      %v5410 = vpack.c.bf16 %v5370, %v5368
      %v5411 = vpack.c.bf16 %v5375, %v5373
      %v5412 = vpack.c.bf16 %v5380, %v5378
      %v5413 = vpack.c.bf16 %v5385, %v5383
      %v5414 = vpack.c.bf16 %v5390, %v5388
      %v5415 = vld [vmem:[%s6] sm:$0xf]
      %v5416 = vld [vmem:[%s6 + $0x4] sm:$0xf]
      %v5417 = vld [vmem:[%s6 + $0x8] sm:$0xf]
      %v5418 = vld [vmem:[%s6 + $0xc] sm:$0xf]
      %v5419 = vld [vmem:[%s6 + $0x10] sm:$0xf]
      %v5420 = vld [vmem:[%s6 + $0x14] sm:$0xf]
      %v5421 = vld [vmem:[%s6 + $0x18] sm:$0xf]
      %v5422 = vld [vmem:[%s6 + $0x1c] sm:$0xf]
      %v5423 = vld [vmem:[%s6 + $0x20] sm:$0xf]
      %v5424 = vld [vmem:[%s6 + $0x24] sm:$0xf]
      %v5425 = vld [vmem:[%s6 + $0x28] sm:$0xf]
      %v5426 = vld [vmem:[%s6 + $0x2c] sm:$0xf]
      %v5427 = vld [vmem:[%s6 + $0x30] sm:$0xf]
      %v5428 = vld [vmem:[%s6 + $0x34] sm:$0xf]
      %v5429 = vld [vmem:[%s6 + $0x38] sm:$0xf]
      %v5430 = vld [vmem:[%s6 + $0x3c] sm:$0xf]
      %v5431 = vld [vmem:[%s4] sm:$0xff]
      %v5432 = vld [vmem:[%s4 + $0x8] sm:$0xff]
      %v5433 = vld [vmem:[%s4 + $0x10] sm:$0x1]
      %v5434 = vld [vmem:[%s4 + $0x18] sm:$0x1]
      %v5435 = vlaneseq
      %v5436 = vshrl.u32 %v5435, 7
      %v5437 = vsub.s32 0, %v5436
      %v5438 = vrot.slane %v5431, %v5437
      %v5439 = vlaneseq
      %v5440 = vshrl.u32 %v5439, 7
      %v5441 = vsub.s32 0, %v5440
      %v5442 = vrot.slane %v5432, %v5441
      %v5443 = vmul.f32 %v5438, %v2626
      %v5444 = vmul.f32 %v5442, %v2627
      %v5445 = vmul.f32 %v5438, %v2628
      %v5446 = vmul.f32 %v5442, %v2629
      %v5447 = vmul.f32 %v5438, %v2632
      %v5448 = vmul.f32 %v5442, %v2633
      %v5449 = vmul.f32 %v5438, %v2634
      %v5450 = vmul.f32 %v5442, %v2635
      %v5451 = vmul.f32 %v5438, %v2638
      %v5452 = vmul.f32 %v5442, %v2639
      %v5453 = vmul.f32 %v5438, %v2640
      %v5454 = vmul.f32 %v5442, %v2641
      %v5455 = vmul.f32 %v5438, %v2644
      %v5456 = vmul.f32 %v5442, %v2645
      %v5457 = vmul.f32 %v5438, %v2646
      %v5458 = vmul.f32 %v5442, %v2647
      %v5459 = vmul.f32 %v5438, %v2650
      %v5460 = vmul.f32 %v5442, %v2651
      %v5461 = vmul.f32 %v5438, %v2652
      %v5462 = vmul.f32 %v5442, %v2653
      %v5463 = vmul.f32 %v5438, %v2656
      %v5464 = vmul.f32 %v5442, %v2657
      %v5465 = vmul.f32 %v5438, %v2658
      %v5466 = vmul.f32 %v5442, %v2659
      %v5467 = vmul.f32 %v5438, %v2662
      %v5468 = vmul.f32 %v5442, %v2663
      %v5469 = vmul.f32 %v5438, %v2664
      %v5470 = vmul.f32 %v5442, %v2665
      %v5471 = vmul.f32 %v5438, %v2668
      %v5472 = vmul.f32 %v5442, %v2669
      %v5473 = vmul.f32 %v5438, %v2670
      %v5474 = vmul.f32 %v5442, %v2671
      %v5475 = vlaneseq
      %v5476 = vshrl.u32 %v5475, 7
      %v5477 = vsub.s32 1, %v5476
      %v5478 = vrot.slane %v5431, %v5477
      %v5479 = vlaneseq
      %v5480 = vshrl.u32 %v5479, 7
      %v5481 = vsub.s32 1, %v5480
      %v5482 = vrot.slane %v5432, %v5481
      %v5483 = vmul.f32 %v5478, %v2626
      %v5484 = vmul.f32 %v5482, %v2627
      %v5485 = vmul.f32 %v5478, %v2628
      %v5486 = vmul.f32 %v5482, %v2629
      %v5487 = vmul.f32 %v5478, %v2630
      %v5488 = vmul.f32 %v5482, %v2631
      %v5489 = vmul.f32 %v5478, %v2632
      %v5490 = vmul.f32 %v5482, %v2633
      %v5491 = vmul.f32 %v5478, %v2634
      %v5492 = vmul.f32 %v5482, %v2635
      %v5493 = vmul.f32 %v5478, %v2636
      %v5494 = vmul.f32 %v5482, %v2637
      %v5495 = vmul.f32 %v5478, %v2638
      %v5496 = vmul.f32 %v5482, %v2639
      %v5497 = vmul.f32 %v5478, %v2640
      %v5498 = vmul.f32 %v5482, %v2641
      %v5499 = vmul.f32 %v5478, %v2642
      %v5500 = vmul.f32 %v5482, %v2643
      %v5501 = vmul.f32 %v5478, %v2644
      %v5502 = vmul.f32 %v5482, %v2645
      %v5503 = vmul.f32 %v5478, %v2646
      %v5504 = vmul.f32 %v5482, %v2647
      %v5505 = vmul.f32 %v5478, %v2648
      %v5506 = vmul.f32 %v5482, %v2649
      %v5507 = vmul.f32 %v5478, %v2650
      %v5508 = vmul.f32 %v5482, %v2651
      %v5509 = vmul.f32 %v5478, %v2652
      %v5510 = vmul.f32 %v5482, %v2653
      %v5511 = vmul.f32 %v5478, %v2654
      %v5512 = vmul.f32 %v5482, %v2655
      %v5513 = vmul.f32 %v5478, %v2656
      %v5514 = vmul.f32 %v5482, %v2657
      %v5515 = vmul.f32 %v5478, %v2658
      %v5516 = vmul.f32 %v5482, %v2659
      %v5517 = vmul.f32 %v5478, %v2660
      %v5518 = vmul.f32 %v5482, %v2661
      %v5519 = vmul.f32 %v5478, %v2662
      %v5520 = vmul.f32 %v5482, %v2663
      %v5521 = vmul.f32 %v5478, %v2664
      %v5522 = vmul.f32 %v5482, %v2665
      %v5523 = vmul.f32 %v5478, %v2666
      %v5524 = vmul.f32 %v5482, %v2667
      %v5525 = vmul.f32 %v5478, %v2668
      %v5526 = vmul.f32 %v5482, %v2669
      %v5527 = vmul.f32 %v5478, %v2670
      %v5528 = vmul.f32 %v5482, %v2671
      %v5529 = vmul.f32 %v5478, %v2672
      %v5530 = vmul.f32 %v5482, %v2673
      %v5579 = vrot.slane %v5483, 2
      %v5580 = vrot.slane %v5485, 2
      %v5581 = vsel %vm3143, %v5579, %v5580
      %v5582 = vrot.slane %v5484, 2
      %v5583 = vrot.slane %v5486, 2
      %v5584 = vsel %vm3143, %v5582, %v5583
      %v5585 = vrot.slane %v5487, 2
      %v5586 = vsel %vm3143, %v5580, %v5585
      %v5587 = vrot.slane %v5488, 2
      %v5588 = vsel %vm3143, %v5583, %v5587
      %v5589 = vrot.slane %v5489, 2
      %v5590 = vrot.slane %v5491, 2
      %v5591 = vsel %vm3143, %v5589, %v5590
      %v5592 = vrot.slane %v5490, 2
      %v5593 = vrot.slane %v5492, 2
      %v5594 = vsel %vm3143, %v5592, %v5593
      %v5595 = vrot.slane %v5493, 2
      %v5596 = vsel %vm3143, %v5590, %v5595
      %v5597 = vrot.slane %v5494, 2
      %v5598 = vsel %vm3143, %v5593, %v5597
      %v5599 = vrot.slane %v5495, 2
      %v5600 = vrot.slane %v5497, 2
      %v5601 = vsel %vm3143, %v5599, %v5600
      %v5602 = vrot.slane %v5496, 2
      %v5603 = vrot.slane %v5498, 2
      %v5604 = vsel %vm3143, %v5602, %v5603
      %v5605 = vrot.slane %v5499, 2
      %v5606 = vsel %vm3143, %v5600, %v5605
      %v5607 = vrot.slane %v5500, 2
      %v5608 = vsel %vm3143, %v5603, %v5607
      %v5609 = vrot.slane %v5501, 2
      %v5610 = vrot.slane %v5503, 2
      %v5611 = vsel %vm3143, %v5609, %v5610
      %v5612 = vrot.slane %v5502, 2
      %v5613 = vrot.slane %v5504, 2
      %v5614 = vsel %vm3143, %v5612, %v5613
      %v5615 = vrot.slane %v5505, 2
      %v5616 = vsel %vm3143, %v5610, %v5615
      %v5617 = vrot.slane %v5506, 2
      %v5618 = vsel %vm3143, %v5613, %v5617
      %v5619 = vrot.slane %v5507, 2
      %v5620 = vrot.slane %v5509, 2
      %v5621 = vsel %vm3143, %v5619, %v5620
      %v5622 = vrot.slane %v5508, 2
      %v5623 = vrot.slane %v5510, 2
      %v5624 = vsel %vm3143, %v5622, %v5623
      %v5625 = vrot.slane %v5511, 2
      %v5626 = vsel %vm3143, %v5620, %v5625
      %v5627 = vrot.slane %v5512, 2
      %v5628 = vsel %vm3143, %v5623, %v5627
      %v5629 = vrot.slane %v5513, 2
      %v5630 = vrot.slane %v5515, 2
      %v5631 = vsel %vm3143, %v5629, %v5630
      %v5632 = vrot.slane %v5514, 2
      %v5633 = vrot.slane %v5516, 2
      %v5634 = vsel %vm3143, %v5632, %v5633
      %v5635 = vrot.slane %v5517, 2
      %v5636 = vsel %vm3143, %v5630, %v5635
      %v5637 = vrot.slane %v5518, 2
      %v5638 = vsel %vm3143, %v5633, %v5637
      %v5639 = vrot.slane %v5519, 2
      %v5640 = vrot.slane %v5521, 2
      %v5641 = vsel %vm3143, %v5639, %v5640
      %v5642 = vrot.slane %v5520, 2
      %v5643 = vrot.slane %v5522, 2
      %v5644 = vsel %vm3143, %v5642, %v5643
      %v5645 = vrot.slane %v5523, 2
      %v5646 = vsel %vm3143, %v5640, %v5645
      %v5647 = vrot.slane %v5524, 2
      %v5648 = vsel %vm3143, %v5643, %v5647
      %v5649 = vrot.slane %v5525, 2
      %v5650 = vrot.slane %v5527, 2
      %v5651 = vsel %vm3143, %v5649, %v5650
      %v5652 = vrot.slane %v5526, 2
      %v5653 = vrot.slane %v5528, 2
      %v5654 = vsel %vm3143, %v5652, %v5653
      %v5655 = vrot.slane %v5529, 2
      %v5656 = vsel %vm3143, %v5650, %v5655
      %v5657 = vrot.slane %v5530, 2
      %v5658 = vsel %vm3143, %v5653, %v5657
      %v5691 = vadd.f32 %v5443, %v5581
      %v5692 = vadd.f32 %v5444, %v5584
      %v5693 = vadd.f32 %v5445, %v5586
      %v5694 = vadd.f32 %v5446, %v5588
      %v5695 = vadd.f32 %v5447, %v5591
      %v5696 = vadd.f32 %v5448, %v5594
      %v5697 = vadd.f32 %v5449, %v5596
      %v5698 = vadd.f32 %v5450, %v5598
      %v5699 = vadd.f32 %v5451, %v5601
      %v5700 = vadd.f32 %v5452, %v5604
      %v5701 = vadd.f32 %v5453, %v5606
      %v5702 = vadd.f32 %v5454, %v5608
      %v5703 = vadd.f32 %v5455, %v5611
      %v5704 = vadd.f32 %v5456, %v5614
      %v5705 = vadd.f32 %v5457, %v5616
      %v5706 = vadd.f32 %v5458, %v5618
      %v5707 = vadd.f32 %v5459, %v5621
      %v5708 = vadd.f32 %v5460, %v5624
      %v5709 = vadd.f32 %v5461, %v5626
      %v5710 = vadd.f32 %v5462, %v5628
      %v5711 = vadd.f32 %v5463, %v5631
      %v5712 = vadd.f32 %v5464, %v5634
      %v5713 = vadd.f32 %v5465, %v5636
      %v5714 = vadd.f32 %v5466, %v5638
      %v5715 = vadd.f32 %v5467, %v5641
      %v5716 = vadd.f32 %v5468, %v5644
      %v5717 = vadd.f32 %v5469, %v5646
      %v5718 = vadd.f32 %v5470, %v5648
      %v5719 = vadd.f32 %v5471, %v5651
      %v5720 = vadd.f32 %v5472, %v5654
      %v5721 = vadd.f32 %v5473, %v5656
      %v5722 = vadd.f32 %v5474, %v5658
      %v5723 = vlaneseq
      %v5724 = vshrl.u32 %v5723, 7
      %v5725 = vsub.s32 2, %v5724
      %v5726 = vrot.slane %v5431, %v5725
      %v5727 = vlaneseq
      %v5728 = vshrl.u32 %v5727, 7
      %v5729 = vsub.s32 2, %v5728
      %v5730 = vrot.slane %v5432, %v5729
      %v5731 = vmul.f32 %v5726, %v2626
      %v5732 = vmul.f32 %v5730, %v2627
      %v5733 = vmul.f32 %v5726, %v2628
      %v5734 = vmul.f32 %v5730, %v2629
      %v5735 = vmul.f32 %v5726, %v2630
      %v5736 = vmul.f32 %v5730, %v2631
      %v5737 = vmul.f32 %v5726, %v2632
      %v5738 = vmul.f32 %v5730, %v2633
      %v5739 = vmul.f32 %v5726, %v2634
      %v5740 = vmul.f32 %v5730, %v2635
      %v5741 = vmul.f32 %v5726, %v2636
      %v5742 = vmul.f32 %v5730, %v2637
      %v5743 = vmul.f32 %v5726, %v2638
      %v5744 = vmul.f32 %v5730, %v2639
      %v5745 = vmul.f32 %v5726, %v2640
      %v5746 = vmul.f32 %v5730, %v2641
      %v5747 = vmul.f32 %v5726, %v2642
      %v5748 = vmul.f32 %v5730, %v2643
      %v5749 = vmul.f32 %v5726, %v2644
      %v5750 = vmul.f32 %v5730, %v2645
      %v5751 = vmul.f32 %v5726, %v2646
      %v5752 = vmul.f32 %v5730, %v2647
      %v5753 = vmul.f32 %v5726, %v2648
      %v5754 = vmul.f32 %v5730, %v2649
      %v5755 = vmul.f32 %v5726, %v2650
      %v5756 = vmul.f32 %v5730, %v2651
      %v5757 = vmul.f32 %v5726, %v2652
      %v5758 = vmul.f32 %v5730, %v2653
      %v5759 = vmul.f32 %v5726, %v2654
      %v5760 = vmul.f32 %v5730, %v2655
      %v5761 = vmul.f32 %v5726, %v2656
      %v5762 = vmul.f32 %v5730, %v2657
      %v5763 = vmul.f32 %v5726, %v2658
      %v5764 = vmul.f32 %v5730, %v2659
      %v5765 = vmul.f32 %v5726, %v2660
      %v5766 = vmul.f32 %v5730, %v2661
      %v5767 = vmul.f32 %v5726, %v2662
      %v5768 = vmul.f32 %v5730, %v2663
      %v5769 = vmul.f32 %v5726, %v2664
      %v5770 = vmul.f32 %v5730, %v2665
      %v5771 = vmul.f32 %v5726, %v2666
      %v5772 = vmul.f32 %v5730, %v2667
      %v5773 = vmul.f32 %v5726, %v2668
      %v5774 = vmul.f32 %v5730, %v2669
      %v5775 = vmul.f32 %v5726, %v2670
      %v5776 = vmul.f32 %v5730, %v2671
      %v5777 = vmul.f32 %v5726, %v2672
      %v5778 = vmul.f32 %v5730, %v2673
      %vm5827 = vcmask 1043456
      %v5828 = vrot.slane %v5731, 4
      %v5829 = vrot.slane %v5733, 4
      %v5830 = vsel %vm5827, %v5828, %v5829
      %v5831 = vrot.slane %v5732, 4
      %v5832 = vrot.slane %v5734, 4
      %v5833 = vsel %vm5827, %v5831, %v5832
      %v5834 = vrot.slane %v5735, 4
      %v5835 = vsel %vm5827, %v5829, %v5834
      %v5836 = vrot.slane %v5736, 4
      %v5837 = vsel %vm5827, %v5832, %v5836
      %v5838 = vrot.slane %v5737, 4
      %v5839 = vrot.slane %v5739, 4
      %v5840 = vsel %vm5827, %v5838, %v5839
      %v5841 = vrot.slane %v5738, 4
      %v5842 = vrot.slane %v5740, 4
      %v5843 = vsel %vm5827, %v5841, %v5842
      %v5844 = vrot.slane %v5741, 4
      %v5845 = vsel %vm5827, %v5839, %v5844
      %v5846 = vrot.slane %v5742, 4
      %v5847 = vsel %vm5827, %v5842, %v5846
      %v5848 = vrot.slane %v5743, 4
      %v5849 = vrot.slane %v5745, 4
      %v5850 = vsel %vm5827, %v5848, %v5849
      %v5851 = vrot.slane %v5744, 4
      %v5852 = vrot.slane %v5746, 4
      %v5853 = vsel %vm5827, %v5851, %v5852
      %v5854 = vrot.slane %v5747, 4
      %v5855 = vsel %vm5827, %v5849, %v5854
      %v5856 = vrot.slane %v5748, 4
      %v5857 = vsel %vm5827, %v5852, %v5856
      %v5858 = vrot.slane %v5749, 4
      %v5859 = vrot.slane %v5751, 4
      %v5860 = vsel %vm5827, %v5858, %v5859
      %v5861 = vrot.slane %v5750, 4
      %v5862 = vrot.slane %v5752, 4
      %v5863 = vsel %vm5827, %v5861, %v5862
      %v5864 = vrot.slane %v5753, 4
      %v5865 = vsel %vm5827, %v5859, %v5864
      %v5866 = vrot.slane %v5754, 4
      %v5867 = vsel %vm5827, %v5862, %v5866
      %v5868 = vrot.slane %v5755, 4
      %v5869 = vrot.slane %v5757, 4
      %v5870 = vsel %vm5827, %v5868, %v5869
      %v5871 = vrot.slane %v5756, 4
      %v5872 = vrot.slane %v5758, 4
      %v5873 = vsel %vm5827, %v5871, %v5872
      %v5874 = vrot.slane %v5759, 4
      %v5875 = vsel %vm5827, %v5869, %v5874
      %v5876 = vrot.slane %v5760, 4
      %v5877 = vsel %vm5827, %v5872, %v5876
      %v5878 = vrot.slane %v5761, 4
      %v5879 = vrot.slane %v5763, 4
      %v5880 = vsel %vm5827, %v5878, %v5879
      %v5881 = vrot.slane %v5762, 4
      %v5882 = vrot.slane %v5764, 4
      %v5883 = vsel %vm5827, %v5881, %v5882
      %v5884 = vrot.slane %v5765, 4
      %v5885 = vsel %vm5827, %v5879, %v5884
      %v5886 = vrot.slane %v5766, 4
      %v5887 = vsel %vm5827, %v5882, %v5886
      %v5888 = vrot.slane %v5767, 4
      %v5889 = vrot.slane %v5769, 4
      %v5890 = vsel %vm5827, %v5888, %v5889
      %v5891 = vrot.slane %v5768, 4
      %v5892 = vrot.slane %v5770, 4
      %v5893 = vsel %vm5827, %v5891, %v5892
      %v5894 = vrot.slane %v5771, 4
      %v5895 = vsel %vm5827, %v5889, %v5894
      %v5896 = vrot.slane %v5772, 4
      %v5897 = vsel %vm5827, %v5892, %v5896
      %v5898 = vrot.slane %v5773, 4
      %v5899 = vrot.slane %v5775, 4
      %v5900 = vsel %vm5827, %v5898, %v5899
      %v5901 = vrot.slane %v5774, 4
      %v5902 = vrot.slane %v5776, 4
      %v5903 = vsel %vm5827, %v5901, %v5902
      %v5904 = vrot.slane %v5777, 4
      %v5905 = vsel %vm5827, %v5899, %v5904
      %v5906 = vrot.slane %v5778, 4
      %v5907 = vsel %vm5827, %v5902, %v5906
      %v5940 = vadd.f32 %v5691, %v5830
      %v5941 = vadd.f32 %v5692, %v5833
      %v5942 = vadd.f32 %v5693, %v5835
      %v5943 = vadd.f32 %v5694, %v5837
      %v5944 = vadd.f32 %v5695, %v5840
      %v5945 = vadd.f32 %v5696, %v5843
      %v5946 = vadd.f32 %v5697, %v5845
      %v5947 = vadd.f32 %v5698, %v5847
      %v5948 = vadd.f32 %v5699, %v5850
      %v5949 = vadd.f32 %v5700, %v5853
      %v5950 = vadd.f32 %v5701, %v5855
      %v5951 = vadd.f32 %v5702, %v5857
      %v5952 = vadd.f32 %v5703, %v5860
      %v5953 = vadd.f32 %v5704, %v5863
      %v5954 = vadd.f32 %v5705, %v5865
      %v5955 = vadd.f32 %v5706, %v5867
      %v5956 = vadd.f32 %v5707, %v5870
      %v5957 = vadd.f32 %v5708, %v5873
      %v5958 = vadd.f32 %v5709, %v5875
      %v5959 = vadd.f32 %v5710, %v5877
      %v5960 = vadd.f32 %v5711, %v5880
      %v5961 = vadd.f32 %v5712, %v5883
      %v5962 = vadd.f32 %v5713, %v5885
      %v5963 = vadd.f32 %v5714, %v5887
      %v5964 = vadd.f32 %v5715, %v5890
      %v5965 = vadd.f32 %v5716, %v5893
      %v5966 = vadd.f32 %v5717, %v5895
      %v5967 = vadd.f32 %v5718, %v5897
      %v5968 = vadd.f32 %v5719, %v5900
      %v5969 = vadd.f32 %v5720, %v5903
      %v5970 = vadd.f32 %v5721, %v5905
      %v5971 = vadd.f32 %v5722, %v5907
      %v5972 = vlaneseq
      %v5973 = vshrl.u32 %v5972, 7
      %v5974 = vsub.s32 3, %v5973
      %v5975 = vrot.slane %v5431, %v5974
      %v5976 = vlaneseq
      %v5977 = vshrl.u32 %v5976, 7
      %v5978 = vsub.s32 3, %v5977
      %v5979 = vrot.slane %v5432, %v5978
      %v5980 = vmul.f32 %v5975, %v2638
      %v5981 = vmul.f32 %v5979, %v2639
      %v5982 = vmul.f32 %v5975, %v2640
      %v5983 = vmul.f32 %v5979, %v2641
      %v5984 = vmul.f32 %v5975, %v2644
      %v5985 = vmul.f32 %v5979, %v2645
      %v5986 = vmul.f32 %v5975, %v2646
      %v5987 = vmul.f32 %v5979, %v2647
      %v5988 = vmul.f32 %v5975, %v2650
      %v5989 = vmul.f32 %v5979, %v2651
      %v5990 = vmul.f32 %v5975, %v2652
      %v5991 = vmul.f32 %v5979, %v2653
      %v5992 = vmul.f32 %v5975, %v2656
      %v5993 = vmul.f32 %v5979, %v2657
      %v5994 = vmul.f32 %v5975, %v2658
      %v5995 = vmul.f32 %v5979, %v2659
      %v5996 = vmul.f32 %v5975, %v2662
      %v5997 = vmul.f32 %v5979, %v2663
      %v5998 = vmul.f32 %v5975, %v2664
      %v5999 = vmul.f32 %v5979, %v2665
      %v6000 = vmul.f32 %v5975, %v2668
      %v6001 = vmul.f32 %v5979, %v2669
      %v6002 = vmul.f32 %v5975, %v2670
      %v6003 = vmul.f32 %v5979, %v2671
      %v6004 = vmul.f32 %v5975, %v2674
      %v6005 = vmul.f32 %v5979, %v2675
      %v6006 = vmul.f32 %v5975, %v2676
      %v6007 = vmul.f32 %v5979, %v2677
      %v6008 = vmul.f32 %v5975, %v2680
      %v6009 = vmul.f32 %v5979, %v2681
      %v6010 = vmul.f32 %v5975, %v2682
      %v6011 = vmul.f32 %v5979, %v2683
      %v6012 = vadd.f32 %v5940, %v5980
      %v6013 = vadd.f32 %v5941, %v5981
      %v6014 = vadd.f32 %v5942, %v5982
      %v6015 = vadd.f32 %v5943, %v5983
      %v6016 = vadd.f32 %v5944, %v5984
      %v6017 = vadd.f32 %v5945, %v5985
      %v6018 = vadd.f32 %v5946, %v5986
      %v6019 = vadd.f32 %v5947, %v5987
      %v6020 = vadd.f32 %v5948, %v5988
      %v6021 = vadd.f32 %v5949, %v5989
      %v6022 = vadd.f32 %v5950, %v5990
      %v6023 = vadd.f32 %v5951, %v5991
      %v6024 = vadd.f32 %v5952, %v5992
      %v6025 = vadd.f32 %v5953, %v5993
      %v6026 = vadd.f32 %v5954, %v5994
      %v6027 = vadd.f32 %v5955, %v5995
      %v6028 = vadd.f32 %v5956, %v5996
      %v6029 = vadd.f32 %v5957, %v5997
      %v6030 = vadd.f32 %v5958, %v5998
      %v6031 = vadd.f32 %v5959, %v5999
      %v6032 = vadd.f32 %v5960, %v6000
      %v6033 = vadd.f32 %v5961, %v6001
      %v6034 = vadd.f32 %v5962, %v6002
      %v6035 = vadd.f32 %v5963, %v6003
      %v6036 = vadd.f32 %v5964, %v6004
      %v6037 = vadd.f32 %v5965, %v6005
      %v6038 = vadd.f32 %v5966, %v6006
      %v6039 = vadd.f32 %v5967, %v6007
      %v6040 = vadd.f32 %v5968, %v6008
      %v6041 = vadd.f32 %v5969, %v6009
      %v6042 = vadd.f32 %v5970, %v6010
      %v6043 = vadd.f32 %v5971, %v6011
      %v6044 = vlaneseq
      %v6045 = vshrl.u32 %v6044, 7
      %v6046 = vsub.s32 4, %v6045
      %v6047 = vrot.slane %v5431, %v6046
      %v6048 = vlaneseq
      %v6049 = vshrl.u32 %v6048, 7
      %v6050 = vsub.s32 4, %v6049
      %v6051 = vrot.slane %v5432, %v6050
      %v6052 = vmul.f32 %v6047, %v2638
      %v6053 = vmul.f32 %v6051, %v2639
      %v6054 = vmul.f32 %v6047, %v2640
      %v6055 = vmul.f32 %v6051, %v2641
      %v6056 = vmul.f32 %v6047, %v2642
      %v6057 = vmul.f32 %v6051, %v2643
      %v6058 = vmul.f32 %v6047, %v2644
      %v6059 = vmul.f32 %v6051, %v2645
      %v6060 = vmul.f32 %v6047, %v2646
      %v6061 = vmul.f32 %v6051, %v2647
      %v6062 = vmul.f32 %v6047, %v2648
      %v6063 = vmul.f32 %v6051, %v2649
      %v6064 = vmul.f32 %v6047, %v2650
      %v6065 = vmul.f32 %v6051, %v2651
      %v6066 = vmul.f32 %v6047, %v2652
      %v6067 = vmul.f32 %v6051, %v2653
      %v6068 = vmul.f32 %v6047, %v2654
      %v6069 = vmul.f32 %v6051, %v2655
      %v6070 = vmul.f32 %v6047, %v2656
      %v6071 = vmul.f32 %v6051, %v2657
      %v6072 = vmul.f32 %v6047, %v2658
      %v6073 = vmul.f32 %v6051, %v2659
      %v6074 = vmul.f32 %v6047, %v2660
      %v6075 = vmul.f32 %v6051, %v2661
      %v6076 = vmul.f32 %v6047, %v2662
      %v6077 = vmul.f32 %v6051, %v2663
      %v6078 = vmul.f32 %v6047, %v2664
      %v6079 = vmul.f32 %v6051, %v2665
      %v6080 = vmul.f32 %v6047, %v2666
      %v6081 = vmul.f32 %v6051, %v2667
      %v6082 = vmul.f32 %v6047, %v2668
      %v6083 = vmul.f32 %v6051, %v2669
      %v6084 = vmul.f32 %v6047, %v2670
      %v6085 = vmul.f32 %v6051, %v2671
      %v6086 = vmul.f32 %v6047, %v2672
      %v6087 = vmul.f32 %v6051, %v2673
      %v6088 = vmul.f32 %v6047, %v2674
      %v6089 = vmul.f32 %v6051, %v2675
      %v6090 = vmul.f32 %v6047, %v2676
      %v6091 = vmul.f32 %v6051, %v2677
      %v6092 = vmul.f32 %v6047, %v2678
      %v6093 = vmul.f32 %v6051, %v2679
      %v6094 = vmul.f32 %v6047, %v2680
      %v6095 = vmul.f32 %v6051, %v2681
      %v6096 = vmul.f32 %v6047, %v2682
      %v6097 = vmul.f32 %v6051, %v2683
      %v6098 = vmul.f32 %v6047, %v2684
      %v6099 = vmul.f32 %v6051, %v2685
      %v6148 = vrot.slane %v6052, 2
      %v6149 = vrot.slane %v6054, 2
      %v6150 = vsel %vm3143, %v6148, %v6149
      %v6151 = vrot.slane %v6053, 2
      %v6152 = vrot.slane %v6055, 2
      %v6153 = vsel %vm3143, %v6151, %v6152
      %v6154 = vrot.slane %v6056, 2
      %v6155 = vsel %vm3143, %v6149, %v6154
      %v6156 = vrot.slane %v6057, 2
      %v6157 = vsel %vm3143, %v6152, %v6156
      %v6158 = vrot.slane %v6058, 2
      %v6159 = vrot.slane %v6060, 2
      %v6160 = vsel %vm3143, %v6158, %v6159
      %v6161 = vrot.slane %v6059, 2
      %v6162 = vrot.slane %v6061, 2
      %v6163 = vsel %vm3143, %v6161, %v6162
      %v6164 = vrot.slane %v6062, 2
      %v6165 = vsel %vm3143, %v6159, %v6164
      %v6166 = vrot.slane %v6063, 2
      %v6167 = vsel %vm3143, %v6162, %v6166
      %v6168 = vrot.slane %v6064, 2
      %v6169 = vrot.slane %v6066, 2
      %v6170 = vsel %vm3143, %v6168, %v6169
      %v6171 = vrot.slane %v6065, 2
      %v6172 = vrot.slane %v6067, 2
      %v6173 = vsel %vm3143, %v6171, %v6172
      %v6174 = vrot.slane %v6068, 2
      %v6175 = vsel %vm3143, %v6169, %v6174
      %v6176 = vrot.slane %v6069, 2
      %v6177 = vsel %vm3143, %v6172, %v6176
      %v6178 = vrot.slane %v6070, 2
      %v6179 = vrot.slane %v6072, 2
      %v6180 = vsel %vm3143, %v6178, %v6179
      %v6181 = vrot.slane %v6071, 2
      %v6182 = vrot.slane %v6073, 2
      %v6183 = vsel %vm3143, %v6181, %v6182
      %v6184 = vrot.slane %v6074, 2
      %v6185 = vsel %vm3143, %v6179, %v6184
      %v6186 = vrot.slane %v6075, 2
      %v6187 = vsel %vm3143, %v6182, %v6186
      %v6188 = vrot.slane %v6076, 2
      %v6189 = vrot.slane %v6078, 2
      %v6190 = vsel %vm3143, %v6188, %v6189
      %v6191 = vrot.slane %v6077, 2
      %v6192 = vrot.slane %v6079, 2
      %v6193 = vsel %vm3143, %v6191, %v6192
      %v6194 = vrot.slane %v6080, 2
      %v6195 = vsel %vm3143, %v6189, %v6194
      %v6196 = vrot.slane %v6081, 2
      %v6197 = vsel %vm3143, %v6192, %v6196
      %v6198 = vrot.slane %v6082, 2
      %v6199 = vrot.slane %v6084, 2
      %v6200 = vsel %vm3143, %v6198, %v6199
      %v6201 = vrot.slane %v6083, 2
      %v6202 = vrot.slane %v6085, 2
      %v6203 = vsel %vm3143, %v6201, %v6202
      %v6204 = vrot.slane %v6086, 2
      %v6205 = vsel %vm3143, %v6199, %v6204
      %v6206 = vrot.slane %v6087, 2
      %v6207 = vsel %vm3143, %v6202, %v6206
      %v6208 = vrot.slane %v6088, 2
      %v6209 = vrot.slane %v6090, 2
      %v6210 = vsel %vm3143, %v6208, %v6209
      %v6211 = vrot.slane %v6089, 2
      %v6212 = vrot.slane %v6091, 2
      %v6213 = vsel %vm3143, %v6211, %v6212
      %v6214 = vrot.slane %v6092, 2
      %v6215 = vsel %vm3143, %v6209, %v6214
      %v6216 = vrot.slane %v6093, 2
      %v6217 = vsel %vm3143, %v6212, %v6216
      %v6218 = vrot.slane %v6094, 2
      %v6219 = vrot.slane %v6096, 2
      %v6220 = vsel %vm3143, %v6218, %v6219
      %v6221 = vrot.slane %v6095, 2
      %v6222 = vrot.slane %v6097, 2
      %v6223 = vsel %vm3143, %v6221, %v6222
      %v6224 = vrot.slane %v6098, 2
      %v6225 = vsel %vm3143, %v6219, %v6224
      %v6226 = vrot.slane %v6099, 2
      %v6227 = vsel %vm3143, %v6222, %v6226
      %v6260 = vadd.f32 %v6012, %v6150
      %v6261 = vadd.f32 %v6013, %v6153
      %v6262 = vadd.f32 %v6014, %v6155
      %v6263 = vadd.f32 %v6015, %v6157
      %v6264 = vadd.f32 %v6016, %v6160
      %v6265 = vadd.f32 %v6017, %v6163
      %v6266 = vadd.f32 %v6018, %v6165
      %v6267 = vadd.f32 %v6019, %v6167
      %v6268 = vadd.f32 %v6020, %v6170
      %v6269 = vadd.f32 %v6021, %v6173
      %v6270 = vadd.f32 %v6022, %v6175
      %v6271 = vadd.f32 %v6023, %v6177
      %v6272 = vadd.f32 %v6024, %v6180
      %v6273 = vadd.f32 %v6025, %v6183
      %v6274 = vadd.f32 %v6026, %v6185
      %v6275 = vadd.f32 %v6027, %v6187
      %v6276 = vadd.f32 %v6028, %v6190
      %v6277 = vadd.f32 %v6029, %v6193
      %v6278 = vadd.f32 %v6030, %v6195
      %v6279 = vadd.f32 %v6031, %v6197
      %v6280 = vadd.f32 %v6032, %v6200
      %v6281 = vadd.f32 %v6033, %v6203
      %v6282 = vadd.f32 %v6034, %v6205
      %v6283 = vadd.f32 %v6035, %v6207
      %v6284 = vadd.f32 %v6036, %v6210
      %v6285 = vadd.f32 %v6037, %v6213
      %v6286 = vadd.f32 %v6038, %v6215
      %v6287 = vadd.f32 %v6039, %v6217
      %v6288 = vadd.f32 %v6040, %v6220
      %v6289 = vadd.f32 %v6041, %v6223
      %v6290 = vadd.f32 %v6042, %v6225
      %v6291 = vadd.f32 %v6043, %v6227
      %v6292 = vlaneseq
      %v6293 = vshrl.u32 %v6292, 7
      %v6294 = vsub.s32 5, %v6293
      %v6295 = vrot.slane %v5431, %v6294
      %v6296 = vlaneseq
      %v6297 = vshrl.u32 %v6296, 7
      %v6298 = vsub.s32 5, %v6297
      %v6299 = vrot.slane %v5432, %v6298
      %v6300 = vmul.f32 %v6295, %v2638
      %v6301 = vmul.f32 %v6299, %v2639
      %v6302 = vmul.f32 %v6295, %v2640
      %v6303 = vmul.f32 %v6299, %v2641
      %v6304 = vmul.f32 %v6295, %v2642
      %v6305 = vmul.f32 %v6299, %v2643
      %v6306 = vmul.f32 %v6295, %v2644
      %v6307 = vmul.f32 %v6299, %v2645
      %v6308 = vmul.f32 %v6295, %v2646
      %v6309 = vmul.f32 %v6299, %v2647
      %v6310 = vmul.f32 %v6295, %v2648
      %v6311 = vmul.f32 %v6299, %v2649
      %v6312 = vmul.f32 %v6295, %v2650
      %v6313 = vmul.f32 %v6299, %v2651
      %v6314 = vmul.f32 %v6295, %v2652
      %v6315 = vmul.f32 %v6299, %v2653
      %v6316 = vmul.f32 %v6295, %v2654
      %v6317 = vmul.f32 %v6299, %v2655
      %v6318 = vmul.f32 %v6295, %v2656
      %v6319 = vmul.f32 %v6299, %v2657
      %v6320 = vmul.f32 %v6295, %v2658
      %v6321 = vmul.f32 %v6299, %v2659
      %v6322 = vmul.f32 %v6295, %v2660
      %v6323 = vmul.f32 %v6299, %v2661
      %v6324 = vmul.f32 %v6295, %v2662
      %v6325 = vmul.f32 %v6299, %v2663
      %v6326 = vmul.f32 %v6295, %v2664
      %v6327 = vmul.f32 %v6299, %v2665
      %v6328 = vmul.f32 %v6295, %v2666
      %v6329 = vmul.f32 %v6299, %v2667
      %v6330 = vmul.f32 %v6295, %v2668
      %v6331 = vmul.f32 %v6299, %v2669
      %v6332 = vmul.f32 %v6295, %v2670
      %v6333 = vmul.f32 %v6299, %v2671
      %v6334 = vmul.f32 %v6295, %v2672
      %v6335 = vmul.f32 %v6299, %v2673
      %v6336 = vmul.f32 %v6295, %v2674
      %v6337 = vmul.f32 %v6299, %v2675
      %v6338 = vmul.f32 %v6295, %v2676
      %v6339 = vmul.f32 %v6299, %v2677
      %v6340 = vmul.f32 %v6295, %v2678
      %v6341 = vmul.f32 %v6299, %v2679
      %v6342 = vmul.f32 %v6295, %v2680
      %v6343 = vmul.f32 %v6299, %v2681
      %v6344 = vmul.f32 %v6295, %v2682
      %v6345 = vmul.f32 %v6299, %v2683
      %v6346 = vmul.f32 %v6295, %v2684
      %v6347 = vmul.f32 %v6299, %v2685
      %v6396 = vrot.slane %v6300, 4
      %v6397 = vrot.slane %v6302, 4
      %v6398 = vsel %vm5827, %v6396, %v6397
      %v6399 = vrot.slane %v6301, 4
      %v6400 = vrot.slane %v6303, 4
      %v6401 = vsel %vm5827, %v6399, %v6400
      %v6402 = vrot.slane %v6304, 4
      %v6403 = vsel %vm5827, %v6397, %v6402
      %v6404 = vrot.slane %v6305, 4
      %v6405 = vsel %vm5827, %v6400, %v6404
      %v6406 = vrot.slane %v6306, 4
      %v6407 = vrot.slane %v6308, 4
      %v6408 = vsel %vm5827, %v6406, %v6407
      %v6409 = vrot.slane %v6307, 4
      %v6410 = vrot.slane %v6309, 4
      %v6411 = vsel %vm5827, %v6409, %v6410
      %v6412 = vrot.slane %v6310, 4
      %v6413 = vsel %vm5827, %v6407, %v6412
      %v6414 = vrot.slane %v6311, 4
      %v6415 = vsel %vm5827, %v6410, %v6414
      %v6416 = vrot.slane %v6312, 4
      %v6417 = vrot.slane %v6314, 4
      %v6418 = vsel %vm5827, %v6416, %v6417
      %v6419 = vrot.slane %v6313, 4
      %v6420 = vrot.slane %v6315, 4
      %v6421 = vsel %vm5827, %v6419, %v6420
      %v6422 = vrot.slane %v6316, 4
      %v6423 = vsel %vm5827, %v6417, %v6422
      %v6424 = vrot.slane %v6317, 4
      %v6425 = vsel %vm5827, %v6420, %v6424
      %v6426 = vrot.slane %v6318, 4
      %v6427 = vrot.slane %v6320, 4
      %v6428 = vsel %vm5827, %v6426, %v6427
      %v6429 = vrot.slane %v6319, 4
      %v6430 = vrot.slane %v6321, 4
      %v6431 = vsel %vm5827, %v6429, %v6430
      %v6432 = vrot.slane %v6322, 4
      %v6433 = vsel %vm5827, %v6427, %v6432
      %v6434 = vrot.slane %v6323, 4
      %v6435 = vsel %vm5827, %v6430, %v6434
      %v6436 = vrot.slane %v6324, 4
      %v6437 = vrot.slane %v6326, 4
      %v6438 = vsel %vm5827, %v6436, %v6437
      %v6439 = vrot.slane %v6325, 4
      %v6440 = vrot.slane %v6327, 4
      %v6441 = vsel %vm5827, %v6439, %v6440
      %v6442 = vrot.slane %v6328, 4
      %v6443 = vsel %vm5827, %v6437, %v6442
      %v6444 = vrot.slane %v6329, 4
      %v6445 = vsel %vm5827, %v6440, %v6444
      %v6446 = vrot.slane %v6330, 4
      %v6447 = vrot.slane %v6332, 4
      %v6448 = vsel %vm5827, %v6446, %v6447
      %v6449 = vrot.slane %v6331, 4
      %v6450 = vrot.slane %v6333, 4
      %v6451 = vsel %vm5827, %v6449, %v6450
      %v6452 = vrot.slane %v6334, 4
      %v6453 = vsel %vm5827, %v6447, %v6452
      %v6454 = vrot.slane %v6335, 4
      %v6455 = vsel %vm5827, %v6450, %v6454
      %v6456 = vrot.slane %v6336, 4
      %v6457 = vrot.slane %v6338, 4
      %v6458 = vsel %vm5827, %v6456, %v6457
      %v6459 = vrot.slane %v6337, 4
      %v6460 = vrot.slane %v6339, 4
      %v6461 = vsel %vm5827, %v6459, %v6460
      %v6462 = vrot.slane %v6340, 4
      %v6463 = vsel %vm5827, %v6457, %v6462
      %v6464 = vrot.slane %v6341, 4
      %v6465 = vsel %vm5827, %v6460, %v6464
      %v6466 = vrot.slane %v6342, 4
      %v6467 = vrot.slane %v6344, 4
      %v6468 = vsel %vm5827, %v6466, %v6467
      %v6469 = vrot.slane %v6343, 4
      %v6470 = vrot.slane %v6345, 4
      %v6471 = vsel %vm5827, %v6469, %v6470
      %v6472 = vrot.slane %v6346, 4
      %v6473 = vsel %vm5827, %v6467, %v6472
      %v6474 = vrot.slane %v6347, 4
      %v6475 = vsel %vm5827, %v6470, %v6474
      %v6508 = vadd.f32 %v6260, %v6398
      %v6509 = vadd.f32 %v6261, %v6401
      %v6510 = vadd.f32 %v6262, %v6403
      %v6511 = vadd.f32 %v6263, %v6405
      %v6512 = vadd.f32 %v6264, %v6408
      %v6513 = vadd.f32 %v6265, %v6411
      %v6514 = vadd.f32 %v6266, %v6413
      %v6515 = vadd.f32 %v6267, %v6415
      %v6516 = vadd.f32 %v6268, %v6418
      %v6517 = vadd.f32 %v6269, %v6421
      %v6518 = vadd.f32 %v6270, %v6423
      %v6519 = vadd.f32 %v6271, %v6425
      %v6520 = vadd.f32 %v6272, %v6428
      %v6521 = vadd.f32 %v6273, %v6431
      %v6522 = vadd.f32 %v6274, %v6433
      %v6523 = vadd.f32 %v6275, %v6435
      %v6524 = vadd.f32 %v6276, %v6438
      %v6525 = vadd.f32 %v6277, %v6441
      %v6526 = vadd.f32 %v6278, %v6443
      %v6527 = vadd.f32 %v6279, %v6445
      %v6528 = vadd.f32 %v6280, %v6448
      %v6529 = vadd.f32 %v6281, %v6451
      %v6530 = vadd.f32 %v6282, %v6453
      %v6531 = vadd.f32 %v6283, %v6455
      %v6532 = vadd.f32 %v6284, %v6458
      %v6533 = vadd.f32 %v6285, %v6461
      %v6534 = vadd.f32 %v6286, %v6463
      %v6535 = vadd.f32 %v6287, %v6465
      %v6536 = vadd.f32 %v6288, %v6468
      %v6537 = vadd.f32 %v6289, %v6471
      %v6538 = vadd.f32 %v6290, %v6473
      %v6539 = vadd.f32 %v6291, %v6475
      %v6540 = vlaneseq
      %v6541 = vshrl.u32 %v6540, 7
      %v6542 = vsub.s32 6, %v6541
      %v6543 = vrot.slane %v5431, %v6542
      %v6544 = vlaneseq
      %v6545 = vshrl.u32 %v6544, 7
      %v6546 = vsub.s32 6, %v6545
      %v6547 = vrot.slane %v5432, %v6546
      %v6548 = vmul.f32 %v6543, %v2650
      %v6549 = vmul.f32 %v6547, %v2651
      %v6550 = vmul.f32 %v6543, %v2652
      %v6551 = vmul.f32 %v6547, %v2653
      %v6552 = vmul.f32 %v6543, %v2656
      %v6553 = vmul.f32 %v6547, %v2657
      %v6554 = vmul.f32 %v6543, %v2658
      %v6555 = vmul.f32 %v6547, %v2659
      %v6556 = vmul.f32 %v6543, %v2662
      %v6557 = vmul.f32 %v6547, %v2663
      %v6558 = vmul.f32 %v6543, %v2664
      %v6559 = vmul.f32 %v6547, %v2665
      %v6560 = vmul.f32 %v6543, %v2668
      %v6561 = vmul.f32 %v6547, %v2669
      %v6562 = vmul.f32 %v6543, %v2670
      %v6563 = vmul.f32 %v6547, %v2671
      %v6564 = vmul.f32 %v6543, %v2674
      %v6565 = vmul.f32 %v6547, %v2675
      %v6566 = vmul.f32 %v6543, %v2676
      %v6567 = vmul.f32 %v6547, %v2677
      %v6568 = vmul.f32 %v6543, %v2680
      %v6569 = vmul.f32 %v6547, %v2681
      %v6570 = vmul.f32 %v6543, %v2682
      %v6571 = vmul.f32 %v6547, %v2683
      %v6572 = vmul.f32 %v6543, %v2686
      %v6573 = vmul.f32 %v6547, %v2687
      %v6574 = vmul.f32 %v6543, %v2688
      %v6575 = vmul.f32 %v6547, %v2689
      %v6576 = vmul.f32 %v6543, %v2692
      %v6577 = vmul.f32 %v6547, %v2693
      %v6578 = vmul.f32 %v6543, %v2694
      %v6579 = vmul.f32 %v6547, %v2695
      %v6580 = vadd.f32 %v6508, %v6548
      %v6581 = vadd.f32 %v6509, %v6549
      %v6582 = vadd.f32 %v6510, %v6550
      %v6583 = vadd.f32 %v6511, %v6551
      %v6584 = vadd.f32 %v6512, %v6552
      %v6585 = vadd.f32 %v6513, %v6553
      %v6586 = vadd.f32 %v6514, %v6554
      %v6587 = vadd.f32 %v6515, %v6555
      %v6588 = vadd.f32 %v6516, %v6556
      %v6589 = vadd.f32 %v6517, %v6557
      %v6590 = vadd.f32 %v6518, %v6558
      %v6591 = vadd.f32 %v6519, %v6559
      %v6592 = vadd.f32 %v6520, %v6560
      %v6593 = vadd.f32 %v6521, %v6561
      %v6594 = vadd.f32 %v6522, %v6562
      %v6595 = vadd.f32 %v6523, %v6563
      %v6596 = vadd.f32 %v6524, %v6564
      %v6597 = vadd.f32 %v6525, %v6565
      %v6598 = vadd.f32 %v6526, %v6566
      %v6599 = vadd.f32 %v6527, %v6567
      %v6600 = vadd.f32 %v6528, %v6568
      %v6601 = vadd.f32 %v6529, %v6569
      %v6602 = vadd.f32 %v6530, %v6570
      %v6603 = vadd.f32 %v6531, %v6571
      %v6604 = vadd.f32 %v6532, %v6572
      %v6605 = vadd.f32 %v6533, %v6573
      %v6606 = vadd.f32 %v6534, %v6574
      %v6607 = vadd.f32 %v6535, %v6575
      %v6608 = vadd.f32 %v6536, %v6576
      %v6609 = vadd.f32 %v6537, %v6577
      %v6610 = vadd.f32 %v6538, %v6578
      %v6611 = vadd.f32 %v6539, %v6579
      %v6612 = vlaneseq
      %v6613 = vshrl.u32 %v6612, 7
      %v6614 = vsub.s32 7, %v6613
      %v6615 = vrot.slane %v5431, %v6614
      %v6616 = vlaneseq
      %v6617 = vshrl.u32 %v6616, 7
      %v6618 = vsub.s32 7, %v6617
      %v6619 = vrot.slane %v5432, %v6618
      %v6620 = vmul.f32 %v6615, %v2650
      %v6621 = vmul.f32 %v6619, %v2651
      %v6622 = vmul.f32 %v6615, %v2652
      %v6623 = vmul.f32 %v6619, %v2653
      %v6624 = vmul.f32 %v6615, %v2654
      %v6625 = vmul.f32 %v6619, %v2655
      %v6626 = vmul.f32 %v6615, %v2656
      %v6627 = vmul.f32 %v6619, %v2657
      %v6628 = vmul.f32 %v6615, %v2658
      %v6629 = vmul.f32 %v6619, %v2659
      %v6630 = vmul.f32 %v6615, %v2660
      %v6631 = vmul.f32 %v6619, %v2661
      %v6632 = vmul.f32 %v6615, %v2662
      %v6633 = vmul.f32 %v6619, %v2663
      %v6634 = vmul.f32 %v6615, %v2664
      %v6635 = vmul.f32 %v6619, %v2665
      %v6636 = vmul.f32 %v6615, %v2666
      %v6637 = vmul.f32 %v6619, %v2667
      %v6638 = vmul.f32 %v6615, %v2668
      %v6639 = vmul.f32 %v6619, %v2669
      %v6640 = vmul.f32 %v6615, %v2670
      %v6641 = vmul.f32 %v6619, %v2671
      %v6642 = vmul.f32 %v6615, %v2672
      %v6643 = vmul.f32 %v6619, %v2673
      %v6644 = vmul.f32 %v6615, %v2674
      %v6645 = vmul.f32 %v6619, %v2675
      %v6646 = vmul.f32 %v6615, %v2676
      %v6647 = vmul.f32 %v6619, %v2677
      %v6648 = vmul.f32 %v6615, %v2678
      %v6649 = vmul.f32 %v6619, %v2679
      %v6650 = vmul.f32 %v6615, %v2680
      %v6651 = vmul.f32 %v6619, %v2681
      %v6652 = vmul.f32 %v6615, %v2682
      %v6653 = vmul.f32 %v6619, %v2683
      %v6654 = vmul.f32 %v6615, %v2684
      %v6655 = vmul.f32 %v6619, %v2685
      %v6656 = vmul.f32 %v6615, %v2686
      %v6657 = vmul.f32 %v6619, %v2687
      %v6658 = vmul.f32 %v6615, %v2688
      %v6659 = vmul.f32 %v6619, %v2689
      %v6660 = vmul.f32 %v6615, %v2690
      %v6661 = vmul.f32 %v6619, %v2691
      %v6662 = vmul.f32 %v6615, %v2692
      %v6663 = vmul.f32 %v6619, %v2693
      %v6664 = vmul.f32 %v6615, %v2694
      %v6665 = vmul.f32 %v6619, %v2695
      %v6666 = vmul.f32 %v6615, %v2696
      %v6667 = vmul.f32 %v6619, %v2697
      %v6716 = vrot.slane %v6620, 2
      %v6717 = vrot.slane %v6622, 2
      %v6718 = vsel %vm3143, %v6716, %v6717
      %v6719 = vrot.slane %v6621, 2
      %v6720 = vrot.slane %v6623, 2
      %v6721 = vsel %vm3143, %v6719, %v6720
      %v6722 = vrot.slane %v6624, 2
      %v6723 = vsel %vm3143, %v6717, %v6722
      %v6724 = vrot.slane %v6625, 2
      %v6725 = vsel %vm3143, %v6720, %v6724
      %v6726 = vrot.slane %v6626, 2
      %v6727 = vrot.slane %v6628, 2
      %v6728 = vsel %vm3143, %v6726, %v6727
      %v6729 = vrot.slane %v6627, 2
      %v6730 = vrot.slane %v6629, 2
      %v6731 = vsel %vm3143, %v6729, %v6730
      %v6732 = vrot.slane %v6630, 2
      %v6733 = vsel %vm3143, %v6727, %v6732
      %v6734 = vrot.slane %v6631, 2
      %v6735 = vsel %vm3143, %v6730, %v6734
      %v6736 = vrot.slane %v6632, 2
      %v6737 = vrot.slane %v6634, 2
      %v6738 = vsel %vm3143, %v6736, %v6737
      %v6739 = vrot.slane %v6633, 2
      %v6740 = vrot.slane %v6635, 2
      %v6741 = vsel %vm3143, %v6739, %v6740
      %v6742 = vrot.slane %v6636, 2
      %v6743 = vsel %vm3143, %v6737, %v6742
      %v6744 = vrot.slane %v6637, 2
      %v6745 = vsel %vm3143, %v6740, %v6744
      %v6746 = vrot.slane %v6638, 2
      %v6747 = vrot.slane %v6640, 2
      %v6748 = vsel %vm3143, %v6746, %v6747
      %v6749 = vrot.slane %v6639, 2
      %v6750 = vrot.slane %v6641, 2
      %v6751 = vsel %vm3143, %v6749, %v6750
      %v6752 = vrot.slane %v6642, 2
      %v6753 = vsel %vm3143, %v6747, %v6752
      %v6754 = vrot.slane %v6643, 2
      %v6755 = vsel %vm3143, %v6750, %v6754
      %v6756 = vrot.slane %v6644, 2
      %v6757 = vrot.slane %v6646, 2
      %v6758 = vsel %vm3143, %v6756, %v6757
      %v6759 = vrot.slane %v6645, 2
      %v6760 = vrot.slane %v6647, 2
      %v6761 = vsel %vm3143, %v6759, %v6760
      %v6762 = vrot.slane %v6648, 2
      %v6763 = vsel %vm3143, %v6757, %v6762
      %v6764 = vrot.slane %v6649, 2
      %v6765 = vsel %vm3143, %v6760, %v6764
      %v6766 = vrot.slane %v6650, 2
      %v6767 = vrot.slane %v6652, 2
      %v6768 = vsel %vm3143, %v6766, %v6767
      %v6769 = vrot.slane %v6651, 2
      %v6770 = vrot.slane %v6653, 2
      %v6771 = vsel %vm3143, %v6769, %v6770
      %v6772 = vrot.slane %v6654, 2
      %v6773 = vsel %vm3143, %v6767, %v6772
      %v6774 = vrot.slane %v6655, 2
      %v6775 = vsel %vm3143, %v6770, %v6774
      %v6776 = vrot.slane %v6656, 2
      %v6777 = vrot.slane %v6658, 2
      %v6778 = vsel %vm3143, %v6776, %v6777
      %v6779 = vrot.slane %v6657, 2
      %v6780 = vrot.slane %v6659, 2
      %v6781 = vsel %vm3143, %v6779, %v6780
      %v6782 = vrot.slane %v6660, 2
      %v6783 = vsel %vm3143, %v6777, %v6782
      %v6784 = vrot.slane %v6661, 2
      %v6785 = vsel %vm3143, %v6780, %v6784
      %v6786 = vrot.slane %v6662, 2
      %v6787 = vrot.slane %v6664, 2
      %v6788 = vsel %vm3143, %v6786, %v6787
      %v6789 = vrot.slane %v6663, 2
      %v6790 = vrot.slane %v6665, 2
      %v6791 = vsel %vm3143, %v6789, %v6790
      %v6792 = vrot.slane %v6666, 2
      %v6793 = vsel %vm3143, %v6787, %v6792
      %v6794 = vrot.slane %v6667, 2
      %v6795 = vsel %vm3143, %v6790, %v6794
      %v6828 = vadd.f32 %v6580, %v6718
      %v6829 = vadd.f32 %v6581, %v6721
      %v6830 = vadd.f32 %v6582, %v6723
      %v6831 = vadd.f32 %v6583, %v6725
      %v6832 = vadd.f32 %v6584, %v6728
      %v6833 = vadd.f32 %v6585, %v6731
      %v6834 = vadd.f32 %v6586, %v6733
      %v6835 = vadd.f32 %v6587, %v6735
      %v6836 = vadd.f32 %v6588, %v6738
      %v6837 = vadd.f32 %v6589, %v6741
      %v6838 = vadd.f32 %v6590, %v6743
      %v6839 = vadd.f32 %v6591, %v6745
      %v6840 = vadd.f32 %v6592, %v6748
      %v6841 = vadd.f32 %v6593, %v6751
      %v6842 = vadd.f32 %v6594, %v6753
      %v6843 = vadd.f32 %v6595, %v6755
      %v6844 = vadd.f32 %v6596, %v6758
      %v6845 = vadd.f32 %v6597, %v6761
      %v6846 = vadd.f32 %v6598, %v6763
      %v6847 = vadd.f32 %v6599, %v6765
      %v6848 = vadd.f32 %v6600, %v6768
      %v6849 = vadd.f32 %v6601, %v6771
      %v6850 = vadd.f32 %v6602, %v6773
      %v6851 = vadd.f32 %v6603, %v6775
      %v6852 = vadd.f32 %v6604, %v6778
      %v6853 = vadd.f32 %v6605, %v6781
      %v6854 = vadd.f32 %v6606, %v6783
      %v6855 = vadd.f32 %v6607, %v6785
      %v6856 = vadd.f32 %v6608, %v6788
      %v6857 = vadd.f32 %v6609, %v6791
      %v6858 = vadd.f32 %v6610, %v6793
      %v6859 = vadd.f32 %v6611, %v6795
      %v6860 = vlaneseq
      %v6861 = vshrl.u32 %v6860, 7
      %v6862 = vsub.s32 0, %v6861
      %v6863 = vrot.slane %v5433, %v6862
      %v6864 = vlaneseq
      %v6865 = vshrl.u32 %v6864, 7
      %v6866 = vsub.s32 0, %v6865
      %v6867 = vrot.slane %v5434, %v6866
      %v6868 = vmul.f32 %v6863, %v2650
      %v6869 = vmul.f32 %v6867, %v2651
      %v6870 = vmul.f32 %v6863, %v2652
      %v6871 = vmul.f32 %v6867, %v2653
      %v6872 = vmul.f32 %v6863, %v2654
      %v6873 = vmul.f32 %v6867, %v2655
      %v6874 = vmul.f32 %v6863, %v2656
      %v6875 = vmul.f32 %v6867, %v2657
      %v6876 = vmul.f32 %v6863, %v2658
      %v6877 = vmul.f32 %v6867, %v2659
      %v6878 = vmul.f32 %v6863, %v2660
      %v6879 = vmul.f32 %v6867, %v2661
      %v6880 = vmul.f32 %v6863, %v2662
      %v6881 = vmul.f32 %v6867, %v2663
      %v6882 = vmul.f32 %v6863, %v2664
      %v6883 = vmul.f32 %v6867, %v2665
      %v6884 = vmul.f32 %v6863, %v2666
      %v6885 = vmul.f32 %v6867, %v2667
      %v6886 = vmul.f32 %v6863, %v2668
      %v6887 = vmul.f32 %v6867, %v2669
      %v6888 = vmul.f32 %v6863, %v2670
      %v6889 = vmul.f32 %v6867, %v2671
      %v6890 = vmul.f32 %v6863, %v2672
      %v6891 = vmul.f32 %v6867, %v2673
      %v6892 = vmul.f32 %v6863, %v2674
      %v6893 = vmul.f32 %v6867, %v2675
      %v6894 = vmul.f32 %v6863, %v2676
      %v6895 = vmul.f32 %v6867, %v2677
      %v6896 = vmul.f32 %v6863, %v2678
      %v6897 = vmul.f32 %v6867, %v2679
      %v6898 = vmul.f32 %v6863, %v2680
      %v6899 = vmul.f32 %v6867, %v2681
      %v6900 = vmul.f32 %v6863, %v2682
      %v6901 = vmul.f32 %v6867, %v2683
      %v6902 = vmul.f32 %v6863, %v2684
      %v6903 = vmul.f32 %v6867, %v2685
      %v6904 = vmul.f32 %v6863, %v2686
      %v6905 = vmul.f32 %v6867, %v2687
      %v6906 = vmul.f32 %v6863, %v2688
      %v6907 = vmul.f32 %v6867, %v2689
      %v6908 = vmul.f32 %v6863, %v2690
      %v6909 = vmul.f32 %v6867, %v2691
      %v6910 = vmul.f32 %v6863, %v2692
      %v6911 = vmul.f32 %v6867, %v2693
      %v6912 = vmul.f32 %v6863, %v2694
      %v6913 = vmul.f32 %v6867, %v2695
      %v6914 = vmul.f32 %v6863, %v2696
      %v6915 = vmul.f32 %v6867, %v2697
      %v6964 = vrot.slane %v6868, 4
      %v6965 = vrot.slane %v6870, 4
      %v6966 = vsel %vm5827, %v6964, %v6965
      %v6967 = vrot.slane %v6869, 4
      %v6968 = vrot.slane %v6871, 4
      %v6969 = vsel %vm5827, %v6967, %v6968
      %v6970 = vrot.slane %v6872, 4
      %v6971 = vsel %vm5827, %v6965, %v6970
      %v6972 = vrot.slane %v6873, 4
      %v6973 = vsel %vm5827, %v6968, %v6972
      %v6974 = vrot.slane %v6874, 4
      %v6975 = vrot.slane %v6876, 4
      %v6976 = vsel %vm5827, %v6974, %v6975
      %v6977 = vrot.slane %v6875, 4
      %v6978 = vrot.slane %v6877, 4
      %v6979 = vsel %vm5827, %v6977, %v6978
      %v6980 = vrot.slane %v6878, 4
      %v6981 = vsel %vm5827, %v6975, %v6980
      %v6982 = vrot.slane %v6879, 4
      %v6983 = vsel %vm5827, %v6978, %v6982
      %v6984 = vrot.slane %v6880, 4
      %v6985 = vrot.slane %v6882, 4
      %v6986 = vsel %vm5827, %v6984, %v6985
      %v6987 = vrot.slane %v6881, 4
      %v6988 = vrot.slane %v6883, 4
      %v6989 = vsel %vm5827, %v6987, %v6988
      %v6990 = vrot.slane %v6884, 4
      %v6991 = vsel %vm5827, %v6985, %v6990
      %v6992 = vrot.slane %v6885, 4
      %v6993 = vsel %vm5827, %v6988, %v6992
      %v6994 = vrot.slane %v6886, 4
      %v6995 = vrot.slane %v6888, 4
      %v6996 = vsel %vm5827, %v6994, %v6995
      %v6997 = vrot.slane %v6887, 4
      %v6998 = vrot.slane %v6889, 4
      %v6999 = vsel %vm5827, %v6997, %v6998
      %v7000 = vrot.slane %v6890, 4
      %v7001 = vsel %vm5827, %v6995, %v7000
      %v7002 = vrot.slane %v6891, 4
      %v7003 = vsel %vm5827, %v6998, %v7002
      %v7004 = vrot.slane %v6892, 4
      %v7005 = vrot.slane %v6894, 4
      %v7006 = vsel %vm5827, %v7004, %v7005
      %v7007 = vrot.slane %v6893, 4
      %v7008 = vrot.slane %v6895, 4
      %v7009 = vsel %vm5827, %v7007, %v7008
      %v7010 = vrot.slane %v6896, 4
      %v7011 = vsel %vm5827, %v7005, %v7010
      %v7012 = vrot.slane %v6897, 4
      %v7013 = vsel %vm5827, %v7008, %v7012
      %v7014 = vrot.slane %v6898, 4
      %v7015 = vrot.slane %v6900, 4
      %v7016 = vsel %vm5827, %v7014, %v7015
      %v7017 = vrot.slane %v6899, 4
      %v7018 = vrot.slane %v6901, 4
      %v7019 = vsel %vm5827, %v7017, %v7018
      %v7020 = vrot.slane %v6902, 4
      %v7021 = vsel %vm5827, %v7015, %v7020
      %v7022 = vrot.slane %v6903, 4
      %v7023 = vsel %vm5827, %v7018, %v7022
      %v7024 = vrot.slane %v6904, 4
      %v7025 = vrot.slane %v6906, 4
      %v7026 = vsel %vm5827, %v7024, %v7025
      %v7027 = vrot.slane %v6905, 4
      %v7028 = vrot.slane %v6907, 4
      %v7029 = vsel %vm5827, %v7027, %v7028
      %v7030 = vrot.slane %v6908, 4
      %v7031 = vsel %vm5827, %v7025, %v7030
      %v7032 = vrot.slane %v6909, 4
      %v7033 = vsel %vm5827, %v7028, %v7032
      %v7034 = vrot.slane %v6910, 4
      %v7035 = vrot.slane %v6912, 4
      %v7036 = vsel %vm5827, %v7034, %v7035
      %v7037 = vrot.slane %v6911, 4
      %v7038 = vrot.slane %v6913, 4
      %v7039 = vsel %vm5827, %v7037, %v7038
      %v7040 = vrot.slane %v6914, 4
      %v7041 = vsel %vm5827, %v7035, %v7040
      %v7042 = vrot.slane %v6915, 4
      %v7043 = vsel %vm5827, %v7038, %v7042
      %v7076 = vadd.f32 %v6828, %v6966
      %v7077 = vadd.f32 %v6829, %v6969
      %v7078 = vadd.f32 %v6830, %v6971
      %v7079 = vadd.f32 %v6831, %v6973
      %v7080 = vadd.f32 %v6832, %v6976
      %v7081 = vadd.f32 %v6833, %v6979
      %v7082 = vadd.f32 %v6834, %v6981
      %v7083 = vadd.f32 %v6835, %v6983
      %v7084 = vadd.f32 %v6836, %v6986
      %v7085 = vadd.f32 %v6837, %v6989
      %v7086 = vadd.f32 %v6838, %v6991
      %v7087 = vadd.f32 %v6839, %v6993
      %v7088 = vadd.f32 %v6840, %v6996
      %v7089 = vadd.f32 %v6841, %v6999
      %v7090 = vadd.f32 %v6842, %v7001
      %v7091 = vadd.f32 %v6843, %v7003
      %v7092 = vadd.f32 %v6844, %v7006
      %v7093 = vadd.f32 %v6845, %v7009
      %v7094 = vadd.f32 %v6846, %v7011
      %v7095 = vadd.f32 %v6847, %v7013
      %v7096 = vadd.f32 %v6848, %v7016
      %v7097 = vadd.f32 %v6849, %v7019
      %v7098 = vadd.f32 %v6850, %v7021
      %v7099 = vadd.f32 %v6851, %v7023
      %v7100 = vadd.f32 %v6852, %v7026
      %v7101 = vadd.f32 %v6853, %v7029
      %v7102 = vadd.f32 %v6854, %v7031
      %v7103 = vadd.f32 %v6855, %v7033
      %v7104 = vadd.f32 %v6856, %v7036
      %v7105 = vadd.f32 %v6857, %v7039
      %v7106 = vadd.f32 %v6858, %v7041
      %v7107 = vadd.f32 %v6859, %v7043
      %v7108 = vadd.f32 %v7076, %v7077
      %v7109 = vadd.f32 %v7078, %v7079
      %v7110 = vadd.f32 %v7080, %v7081
      %v7111 = vadd.f32 %v7082, %v7083
      %v7112 = vadd.f32 %v7084, %v7085
      %v7113 = vadd.f32 %v7086, %v7087
      %v7114 = vadd.f32 %v7088, %v7089
      %v7115 = vadd.f32 %v7090, %v7091
      %v7116 = vadd.f32 %v7092, %v7093
      %v7117 = vadd.f32 %v7094, %v7095
      %v7118 = vadd.f32 %v7096, %v7097
      %v7119 = vadd.f32 %v7098, %v7099
      %v7120 = vadd.f32 %v7100, %v7101
      %v7121 = vadd.f32 %v7102, %v7103
      %v7122 = vadd.f32 %v7104, %v7105
      %v7123 = vadd.f32 %v7106, %v7107
      %v7124 = vld [vmem:[%s5] sm:$0x1]
      %v7126 = vlaneseq
      %v7127 = vshrl.u32 %v7126, 7
      %v7128 = vsub.s32 0, %v7127
      %v7129 = vrot.slane %v7124, %v7128
      %v7131 = vadd.f32 %v7108, %v7129
      %v7132 = vadd.f32 %v7109, %v7129
      %v7133 = vadd.f32 %v7110, %v7129
      %v7134 = vadd.f32 %v7111, %v7129
      %v7135 = vadd.f32 %v7112, %v7129
      %v7136 = vadd.f32 %v7113, %v7129
      %v7137 = vadd.f32 %v7114, %v7129
      %v7138 = vadd.f32 %v7115, %v7129
      %v7139 = vadd.f32 %v7116, %v7129
      %v7140 = vadd.f32 %v7117, %v7129
      %v7141 = vadd.f32 %v7118, %v7129
      %v7142 = vadd.f32 %v7119, %v7129
      %v7143 = vadd.f32 %v7120, %v7129
      %v7144 = vadd.f32 %v7121, %v7129
      %v7145 = vadd.f32 %v7122, %v7129
      %v7146 = vadd.f32 %v7123, %v7129
      %v7147 = vand.u32 2147483647, %v7131
      %v7148 = vand.u32 2147483647, %v7132
      %v7149 = vand.u32 2147483647, %v7133
      %v7150 = vand.u32 2147483647, %v7134
      %v7151 = vand.u32 2147483647, %v7135
      %v7152 = vand.u32 2147483647, %v7136
      %v7153 = vand.u32 2147483647, %v7137
      %v7154 = vand.u32 2147483647, %v7138
      %v7155 = vand.u32 2147483647, %v7139
      %v7156 = vand.u32 2147483647, %v7140
      %v7157 = vand.u32 2147483647, %v7141
      %v7158 = vand.u32 2147483647, %v7142
      %v7159 = vand.u32 2147483647, %v7143
      %v7160 = vand.u32 2147483647, %v7144
      %v7161 = vand.u32 2147483647, %v7145
      %v7162 = vand.u32 2147483647, %v7146
      %v7163 = vmul.f32 %v7147, 0.70710677
      %v7164 = vmul.f32 %v7148, 0.70710677
      %v7165 = vmul.f32 %v7149, 0.70710677
      %v7166 = vmul.f32 %v7150, 0.70710677
      %v7167 = vmul.f32 %v7151, 0.70710677
      %v7168 = vmul.f32 %v7152, 0.70710677
      %v7169 = vmul.f32 %v7153, 0.70710677
      %v7170 = vmul.f32 %v7154, 0.70710677
      %v7171 = vmul.f32 %v7155, 0.70710677
      %v7172 = vmul.f32 %v7156, 0.70710677
      %v7173 = vmul.f32 %v7157, 0.70710677
      %v7174 = vmul.f32 %v7158, 0.70710677
      %v7175 = vmul.f32 %v7159, 0.70710677
      %v7176 = vmul.f32 %v7160, 0.70710677
      %v7177 = vmul.f32 %v7161, 0.70710677
      %v7178 = vmul.f32 %v7162, 0.70710677
      %v7179 = vmul.f32 %v7163, 0.3275911
      %v7180 = vmul.f32 %v7164, 0.3275911
      %v7181 = vmul.f32 %v7165, 0.3275911
      %v7182 = vmul.f32 %v7166, 0.3275911
      %v7183 = vmul.f32 %v7167, 0.3275911
      %v7184 = vmul.f32 %v7168, 0.3275911
      %v7185 = vmul.f32 %v7169, 0.3275911
      %v7186 = vmul.f32 %v7170, 0.3275911
      %v7187 = vmul.f32 %v7171, 0.3275911
      %v7188 = vmul.f32 %v7172, 0.3275911
      %v7189 = vmul.f32 %v7173, 0.3275911
      %v7190 = vmul.f32 %v7174, 0.3275911
      %v7191 = vmul.f32 %v7175, 0.3275911
      %v7192 = vmul.f32 %v7176, 0.3275911
      %v7193 = vmul.f32 %v7177, 0.3275911
      %v7194 = vmul.f32 %v7178, 0.3275911
      %v7195 = vadd.f32 %v7179, 1.0
      %v7196 = vadd.f32 %v7180, 1.0
      %v7197 = vadd.f32 %v7181, 1.0
      %v7198 = vadd.f32 %v7182, 1.0
      %v7199 = vadd.f32 %v7183, 1.0
      %v7200 = vadd.f32 %v7184, 1.0
      %v7201 = vadd.f32 %v7185, 1.0
      %v7202 = vadd.f32 %v7186, 1.0
      %v7203 = vadd.f32 %v7187, 1.0
      %v7204 = vadd.f32 %v7188, 1.0
      %v7205 = vadd.f32 %v7189, 1.0
      %v7206 = vadd.f32 %v7190, 1.0
      %v7207 = vadd.f32 %v7191, 1.0
      %v7208 = vadd.f32 %v7192, 1.0
      %v7209 = vadd.f32 %v7193, 1.0
      %v7210 = vadd.f32 %v7194, 1.0
      %v7211 = vrcp.pop %v7195
      %v7212 = vrcp.pop %v7196
      %v7213 = vrcp.pop %v7197
      %v7214 = vrcp.pop %v7198
      %v7215 = vrcp.pop %v7199
      %v7216 = vrcp.pop %v7200
      %v7217 = vrcp.pop %v7201
      %v7218 = vrcp.pop %v7202
      %v7219 = vrcp.pop %v7203
      %v7220 = vrcp.pop %v7204
      %v7221 = vrcp.pop %v7205
      %v7222 = vrcp.pop %v7206
      %v7223 = vrcp.pop %v7207
      %v7224 = vrcp.pop %v7208
      %v7225 = vrcp.pop %v7209
      %v7226 = vrcp.pop %v7210
      %v7227 = vmul.f32 %v7211, 1.0614054
      %v7228 = vmul.f32 %v7212, 1.0614054
      %v7229 = vmul.f32 %v7213, 1.0614054
      %v7230 = vmul.f32 %v7214, 1.0614054
      %v7231 = vmul.f32 %v7215, 1.0614054
      %v7232 = vmul.f32 %v7216, 1.0614054
      %v7233 = vmul.f32 %v7217, 1.0614054
      %v7234 = vmul.f32 %v7218, 1.0614054
      %v7235 = vmul.f32 %v7219, 1.0614054
      %v7236 = vmul.f32 %v7220, 1.0614054
      %v7237 = vmul.f32 %v7221, 1.0614054
      %v7238 = vmul.f32 %v7222, 1.0614054
      %v7239 = vmul.f32 %v7223, 1.0614054
      %v7240 = vmul.f32 %v7224, 1.0614054
      %v7241 = vmul.f32 %v7225, 1.0614054
      %v7242 = vmul.f32 %v7226, 1.0614054
      %v7243 = vsub.f32 %v7227, 1.4531521
      %v7244 = vsub.f32 %v7228, 1.4531521
      %v7245 = vsub.f32 %v7229, 1.4531521
      %v7246 = vsub.f32 %v7230, 1.4531521
      %v7247 = vsub.f32 %v7231, 1.4531521
      %v7248 = vsub.f32 %v7232, 1.4531521
      %v7249 = vsub.f32 %v7233, 1.4531521
      %v7250 = vsub.f32 %v7234, 1.4531521
      %v7251 = vsub.f32 %v7235, 1.4531521
      %v7252 = vsub.f32 %v7236, 1.4531521
      %v7253 = vsub.f32 %v7237, 1.4531521
      %v7254 = vsub.f32 %v7238, 1.4531521
      %v7255 = vsub.f32 %v7239, 1.4531521
      %v7256 = vsub.f32 %v7240, 1.4531521
      %v7257 = vsub.f32 %v7241, 1.4531521
      %v7258 = vsub.f32 %v7242, 1.4531521
      %v7259 = vmul.f32 %v7243, %v7211
      %v7260 = vmul.f32 %v7244, %v7212
      %v7261 = vmul.f32 %v7245, %v7213
      %v7262 = vmul.f32 %v7246, %v7214
      %v7263 = vmul.f32 %v7247, %v7215
      %v7264 = vmul.f32 %v7248, %v7216
      %v7265 = vmul.f32 %v7249, %v7217
      %v7266 = vmul.f32 %v7250, %v7218
      %v7267 = vmul.f32 %v7251, %v7219
      %v7268 = vmul.f32 %v7252, %v7220
      %v7269 = vmul.f32 %v7253, %v7221
      %v7270 = vmul.f32 %v7254, %v7222
      %v7271 = vmul.f32 %v7255, %v7223
      %v7272 = vmul.f32 %v7256, %v7224
      %v7273 = vmul.f32 %v7257, %v7225
      %v7274 = vmul.f32 %v7258, %v7226
      %v7275 = vadd.f32 %v7259, 1.4214138
      %v7276 = vadd.f32 %v7260, 1.4214138
      %v7277 = vadd.f32 %v7261, 1.4214138
      %v7278 = vadd.f32 %v7262, 1.4214138
      %v7279 = vadd.f32 %v7263, 1.4214138
      %v7280 = vadd.f32 %v7264, 1.4214138
      %v7281 = vadd.f32 %v7265, 1.4214138
      %v7282 = vadd.f32 %v7266, 1.4214138
      %v7283 = vadd.f32 %v7267, 1.4214138
      %v7284 = vadd.f32 %v7268, 1.4214138
      %v7285 = vadd.f32 %v7269, 1.4214138
      %v7286 = vadd.f32 %v7270, 1.4214138
      %v7287 = vadd.f32 %v7271, 1.4214138
      %v7288 = vadd.f32 %v7272, 1.4214138
      %v7289 = vadd.f32 %v7273, 1.4214138
      %v7290 = vadd.f32 %v7274, 1.4214138
      %v7291 = vmul.f32 %v7275, %v7211
      %v7292 = vmul.f32 %v7276, %v7212
      %v7293 = vmul.f32 %v7277, %v7213
      %v7294 = vmul.f32 %v7278, %v7214
      %v7295 = vmul.f32 %v7279, %v7215
      %v7296 = vmul.f32 %v7280, %v7216
      %v7297 = vmul.f32 %v7281, %v7217
      %v7298 = vmul.f32 %v7282, %v7218
      %v7299 = vmul.f32 %v7283, %v7219
      %v7300 = vmul.f32 %v7284, %v7220
      %v7301 = vmul.f32 %v7285, %v7221
      %v7302 = vmul.f32 %v7286, %v7222
      %v7303 = vmul.f32 %v7287, %v7223
      %v7304 = vmul.f32 %v7288, %v7224
      %v7305 = vmul.f32 %v7289, %v7225
      %v7306 = vmul.f32 %v7290, %v7226
      %v7307 = vsub.f32 %v7291, 0.28449672
      %v7308 = vsub.f32 %v7292, 0.28449672
      %v7309 = vsub.f32 %v7293, 0.28449672
      %v7310 = vsub.f32 %v7294, 0.28449672
      %v7311 = vsub.f32 %v7295, 0.28449672
      %v7312 = vsub.f32 %v7296, 0.28449672
      %v7313 = vsub.f32 %v7297, 0.28449672
      %v7314 = vsub.f32 %v7298, 0.28449672
      %v7315 = vsub.f32 %v7299, 0.28449672
      %v7316 = vsub.f32 %v7300, 0.28449672
      %v7317 = vsub.f32 %v7301, 0.28449672
      %v7318 = vsub.f32 %v7302, 0.28449672
      %v7319 = vsub.f32 %v7303, 0.28449672
      %v7320 = vsub.f32 %v7304, 0.28449672
      %v7321 = vsub.f32 %v7305, 0.28449672
      %v7322 = vsub.f32 %v7306, 0.28449672
      %v7323 = vmul.f32 %v7307, %v7211
      %v7324 = vmul.f32 %v7308, %v7212
      %v7325 = vmul.f32 %v7309, %v7213
      %v7326 = vmul.f32 %v7310, %v7214
      %v7327 = vmul.f32 %v7311, %v7215
      %v7328 = vmul.f32 %v7312, %v7216
      %v7329 = vmul.f32 %v7313, %v7217
      %v7330 = vmul.f32 %v7314, %v7218
      %v7331 = vmul.f32 %v7315, %v7219
      %v7332 = vmul.f32 %v7316, %v7220
      %v7333 = vmul.f32 %v7317, %v7221
      %v7334 = vmul.f32 %v7318, %v7222
      %v7335 = vmul.f32 %v7319, %v7223
      %v7336 = vmul.f32 %v7320, %v7224
      %v7337 = vmul.f32 %v7321, %v7225
      %v7338 = vmul.f32 %v7322, %v7226
      %v7339 = vadd.f32 %v7323, 0.2548296
      %v7340 = vadd.f32 %v7324, 0.2548296
      %v7341 = vadd.f32 %v7325, 0.2548296
      %v7342 = vadd.f32 %v7326, 0.2548296
      %v7343 = vadd.f32 %v7327, 0.2548296
      %v7344 = vadd.f32 %v7328, 0.2548296
      %v7345 = vadd.f32 %v7329, 0.2548296
      %v7346 = vadd.f32 %v7330, 0.2548296
      %v7347 = vadd.f32 %v7331, 0.2548296
      %v7348 = vadd.f32 %v7332, 0.2548296
      %v7349 = vadd.f32 %v7333, 0.2548296
      %v7350 = vadd.f32 %v7334, 0.2548296
      %v7351 = vadd.f32 %v7335, 0.2548296
      %v7352 = vadd.f32 %v7336, 0.2548296
      %v7353 = vadd.f32 %v7337, 0.2548296
      %v7354 = vadd.f32 %v7338, 0.2548296
      %v7355 = vmul.f32 %v7339, %v7211
      %v7356 = vmul.f32 %v7340, %v7212
      %v7357 = vmul.f32 %v7341, %v7213
      %v7358 = vmul.f32 %v7342, %v7214
      %v7359 = vmul.f32 %v7343, %v7215
      %v7360 = vmul.f32 %v7344, %v7216
      %v7361 = vmul.f32 %v7345, %v7217
      %v7362 = vmul.f32 %v7346, %v7218
      %v7363 = vmul.f32 %v7347, %v7219
      %v7364 = vmul.f32 %v7348, %v7220
      %v7365 = vmul.f32 %v7349, %v7221
      %v7366 = vmul.f32 %v7350, %v7222
      %v7367 = vmul.f32 %v7351, %v7223
      %v7368 = vmul.f32 %v7352, %v7224
      %v7369 = vmul.f32 %v7353, %v7225
      %v7370 = vmul.f32 %v7354, %v7226
      %v7371 = vsub.f32 0.0, %v7163
      %v7372 = vsub.f32 0.0, %v7164
      %v7373 = vsub.f32 0.0, %v7165
      %v7374 = vsub.f32 0.0, %v7166
      %v7375 = vsub.f32 0.0, %v7167
      %v7376 = vsub.f32 0.0, %v7168
      %v7377 = vsub.f32 0.0, %v7169
      %v7378 = vsub.f32 0.0, %v7170
      %v7379 = vsub.f32 0.0, %v7171
      %v7380 = vsub.f32 0.0, %v7172
      %v7381 = vsub.f32 0.0, %v7173
      %v7382 = vsub.f32 0.0, %v7174
      %v7383 = vsub.f32 0.0, %v7175
      %v7384 = vsub.f32 0.0, %v7176
      %v7385 = vsub.f32 0.0, %v7177
      %v7386 = vsub.f32 0.0, %v7178
      %v7387 = vmul.f32 %v7371, %v7163
      %v7388 = vmul.f32 %v7372, %v7164
      %v7389 = vmul.f32 %v7373, %v7165
      %v7390 = vmul.f32 %v7374, %v7166
      %v7391 = vmul.f32 %v7375, %v7167
      %v7392 = vmul.f32 %v7376, %v7168
      %v7393 = vmul.f32 %v7377, %v7169
      %v7394 = vmul.f32 %v7378, %v7170
      %v7395 = vmul.f32 %v7379, %v7171
      %v7396 = vmul.f32 %v7380, %v7172
      %v7397 = vmul.f32 %v7381, %v7173
      %v7398 = vmul.f32 %v7382, %v7174
      %v7399 = vmul.f32 %v7383, %v7175
      %v7400 = vmul.f32 %v7384, %v7176
      %v7401 = vmul.f32 %v7385, %v7177
      %v7402 = vmul.f32 %v7386, %v7178
      %v7403 = vmul.f32 %v7387, 1.442695
      %v7404 = vpow.pop %v7403
      %v7405 = vmul.f32 %v7388, 1.442695
      %v7406 = vpow.pop %v7405
      %v7407 = vmul.f32 %v7389, 1.442695
      %v7408 = vpow.pop %v7407
      %v7409 = vmul.f32 %v7390, 1.442695
      %v7410 = vpow.pop %v7409
      %v7411 = vmul.f32 %v7391, 1.442695
      %v7412 = vpow.pop %v7411
      %v7413 = vmul.f32 %v7392, 1.442695
      %v7414 = vpow.pop %v7413
      %v7415 = vmul.f32 %v7393, 1.442695
      %v7416 = vpow.pop %v7415
      %v7417 = vmul.f32 %v7394, 1.442695
      %v7418 = vpow.pop %v7417
      %v7419 = vmul.f32 %v7395, 1.442695
      %v7420 = vpow.pop %v7419
      %v7421 = vmul.f32 %v7396, 1.442695
      %v7422 = vpow.pop %v7421
      %v7423 = vmul.f32 %v7397, 1.442695
      %v7424 = vpow.pop %v7423
      %v7425 = vmul.f32 %v7398, 1.442695
      %v7426 = vpow.pop %v7425
      %v7427 = vmul.f32 %v7399, 1.442695
      %v7428 = vpow.pop %v7427
      %v7429 = vmul.f32 %v7400, 1.442695
      %v7430 = vpow.pop %v7429
      %v7431 = vmul.f32 %v7401, 1.442695
      %v7432 = vpow.pop %v7431
      %v7433 = vmul.f32 %v7402, 1.442695
      %v7434 = vpow.pop %v7433
      %v7435 = vmul.f32 %v7355, %v7404
      %v7436 = vmul.f32 %v7356, %v7406
      %v7437 = vmul.f32 %v7357, %v7408
      %v7438 = vmul.f32 %v7358, %v7410
      %v7439 = vmul.f32 %v7359, %v7412
      %v7440 = vmul.f32 %v7360, %v7414
      %v7441 = vmul.f32 %v7361, %v7416
      %v7442 = vmul.f32 %v7362, %v7418
      %v7443 = vmul.f32 %v7363, %v7420
      %v7444 = vmul.f32 %v7364, %v7422
      %v7445 = vmul.f32 %v7365, %v7424
      %v7446 = vmul.f32 %v7366, %v7426
      %v7447 = vmul.f32 %v7367, %v7428
      %v7448 = vmul.f32 %v7368, %v7430
      %v7449 = vmul.f32 %v7369, %v7432
      %v7450 = vmul.f32 %v7370, %v7434
      %v7451 = vsub.f32 1.0, %v7435
      %v7452 = vsub.f32 1.0, %v7436
      %v7453 = vsub.f32 1.0, %v7437
      %v7454 = vsub.f32 1.0, %v7438
      %v7455 = vsub.f32 1.0, %v7439
      %v7456 = vsub.f32 1.0, %v7440
      %v7457 = vsub.f32 1.0, %v7441
      %v7458 = vsub.f32 1.0, %v7442
      %v7459 = vsub.f32 1.0, %v7443
      %v7460 = vsub.f32 1.0, %v7444
      %v7461 = vsub.f32 1.0, %v7445
      %v7462 = vsub.f32 1.0, %v7446
      %v7463 = vsub.f32 1.0, %v7447
      %v7464 = vsub.f32 1.0, %v7448
      %v7465 = vsub.f32 1.0, %v7449
      %v7466 = vsub.f32 1.0, %v7450
      %vm7467 = vcmp.ge.f32.partialorder %v7131, 0.0
      %vm7468 = vcmp.ge.f32.partialorder %v7132, 0.0
      %vm7469 = vcmp.ge.f32.partialorder %v7133, 0.0
      %vm7470 = vcmp.ge.f32.partialorder %v7134, 0.0
      %vm7471 = vcmp.ge.f32.partialorder %v7135, 0.0
      %vm7472 = vcmp.ge.f32.partialorder %v7136, 0.0
      %vm7473 = vcmp.ge.f32.partialorder %v7137, 0.0
      %vm7474 = vcmp.ge.f32.partialorder %v7138, 0.0
      %vm7475 = vcmp.ge.f32.partialorder %v7139, 0.0
      %vm7476 = vcmp.ge.f32.partialorder %v7140, 0.0
      %vm7477 = vcmp.ge.f32.partialorder %v7141, 0.0
      %vm7478 = vcmp.ge.f32.partialorder %v7142, 0.0
      %vm7479 = vcmp.ge.f32.partialorder %v7143, 0.0
      %vm7480 = vcmp.ge.f32.partialorder %v7144, 0.0
      %vm7481 = vcmp.ge.f32.partialorder %v7145, 0.0
      %vm7482 = vcmp.ge.f32.partialorder %v7146, 0.0
      %v7483 = vsub.f32 0.0, %v7451
      %v7484 = vsub.f32 0.0, %v7452
      %v7485 = vsub.f32 0.0, %v7453
      %v7486 = vsub.f32 0.0, %v7454
      %v7487 = vsub.f32 0.0, %v7455
      %v7488 = vsub.f32 0.0, %v7456
      %v7489 = vsub.f32 0.0, %v7457
      %v7490 = vsub.f32 0.0, %v7458
      %v7491 = vsub.f32 0.0, %v7459
      %v7492 = vsub.f32 0.0, %v7460
      %v7493 = vsub.f32 0.0, %v7461
      %v7494 = vsub.f32 0.0, %v7462
      %v7495 = vsub.f32 0.0, %v7463
      %v7496 = vsub.f32 0.0, %v7464
      %v7497 = vsub.f32 0.0, %v7465
      %v7498 = vsub.f32 0.0, %v7466
      %v7499 = vsel %vm7467, %v7451, %v7483
      %v7500 = vsel %vm7468, %v7452, %v7484
      %v7501 = vsel %vm7469, %v7453, %v7485
      %v7502 = vsel %vm7470, %v7454, %v7486
      %v7503 = vsel %vm7471, %v7455, %v7487
      %v7504 = vsel %vm7472, %v7456, %v7488
      %v7505 = vsel %vm7473, %v7457, %v7489
      %v7506 = vsel %vm7474, %v7458, %v7490
      %v7507 = vsel %vm7475, %v7459, %v7491
      %v7508 = vsel %vm7476, %v7460, %v7492
      %v7509 = vsel %vm7477, %v7461, %v7493
      %v7510 = vsel %vm7478, %v7462, %v7494
      %v7511 = vsel %vm7479, %v7463, %v7495
      %v7512 = vsel %vm7480, %v7464, %v7496
      %v7513 = vsel %vm7481, %v7465, %v7497
      %v7514 = vsel %vm7482, %v7466, %v7498
      %v7515 = vmul.f32 %v7131, 0.5
      %v7516 = vmul.f32 %v7132, 0.5
      %v7517 = vmul.f32 %v7133, 0.5
      %v7518 = vmul.f32 %v7134, 0.5
      %v7519 = vmul.f32 %v7135, 0.5
      %v7520 = vmul.f32 %v7136, 0.5
      %v7521 = vmul.f32 %v7137, 0.5
      %v7522 = vmul.f32 %v7138, 0.5
      %v7523 = vmul.f32 %v7139, 0.5
      %v7524 = vmul.f32 %v7140, 0.5
      %v7525 = vmul.f32 %v7141, 0.5
      %v7526 = vmul.f32 %v7142, 0.5
      %v7527 = vmul.f32 %v7143, 0.5
      %v7528 = vmul.f32 %v7144, 0.5
      %v7529 = vmul.f32 %v7145, 0.5
      %v7530 = vmul.f32 %v7146, 0.5
      %v7531 = vadd.f32 %v7499, 1.0
      %v7532 = vadd.f32 %v7500, 1.0
      %v7533 = vadd.f32 %v7501, 1.0
      %v7534 = vadd.f32 %v7502, 1.0
      %v7535 = vadd.f32 %v7503, 1.0
      %v7536 = vadd.f32 %v7504, 1.0
      %v7537 = vadd.f32 %v7505, 1.0
      %v7538 = vadd.f32 %v7506, 1.0
      %v7539 = vadd.f32 %v7507, 1.0
      %v7540 = vadd.f32 %v7508, 1.0
      %v7541 = vadd.f32 %v7509, 1.0
      %v7542 = vadd.f32 %v7510, 1.0
      %v7543 = vadd.f32 %v7511, 1.0
      %v7544 = vadd.f32 %v7512, 1.0
      %v7545 = vadd.f32 %v7513, 1.0
      %v7546 = vadd.f32 %v7514, 1.0
      %v7547 = vmul.f32 %v7515, %v7531
      %v7548 = vmul.f32 %v7516, %v7532
      %v7549 = vmul.f32 %v7517, %v7533
      %v7550 = vmul.f32 %v7518, %v7534
      %v7551 = vmul.f32 %v7519, %v7535
      %v7552 = vmul.f32 %v7520, %v7536
      %v7553 = vmul.f32 %v7521, %v7537
      %v7554 = vmul.f32 %v7522, %v7538
      %v7555 = vmul.f32 %v7523, %v7539
      %v7556 = vmul.f32 %v7524, %v7540
      %v7557 = vmul.f32 %v7525, %v7541
      %v7558 = vmul.f32 %v7526, %v7542
      %v7559 = vmul.f32 %v7527, %v7543
      %v7560 = vmul.f32 %v7528, %v7544
      %v7561 = vmul.f32 %v7529, %v7545
      %v7562 = vmul.f32 %v7530, %v7546
      %v7563 = vpack.c.bf16 %v7548, %v7547
      %v7564 = vpack.c.bf16 %v7550, %v7549
      %v7565 = vpack.c.bf16 %v7552, %v7551
      %v7566 = vpack.c.bf16 %v7554, %v7553
      %v7567 = vpack.c.bf16 %v7556, %v7555
      %v7568 = vpack.c.bf16 %v7558, %v7557
      %v7569 = vpack.c.bf16 %v7560, %v7559
      %v7570 = vpack.c.bf16 %v7562, %v7561
      %v7571 = vld [vmem:[%s7] sm:$0xf]
      %v7572 = vld [vmem:[%s7 + $0x4] sm:$0xf]
      %v7573 = vld [vmem:[%s7 + $0x8] sm:$0xf]
      %v7574 = vld [vmem:[%s7 + $0xc] sm:$0xf]
      %v7575 = vld [vmem:[%s7 + $0x10] sm:$0xf]
      %v7576 = vld [vmem:[%s7 + $0x14] sm:$0xf]
      %v7577 = vld [vmem:[%s7 + $0x18] sm:$0xf]
      %v7578 = vld [vmem:[%s7 + $0x1c] sm:$0xf]
      %v7579 = vld [vmem:[%s7 + $0x20] sm:$0xf]
      %v7580 = vld [vmem:[%s7 + $0x24] sm:$0xf]
      %v7581 = vld [vmem:[%s7 + $0x28] sm:$0xf]
      %v7582 = vld [vmem:[%s7 + $0x2c] sm:$0xf]
      %v7583 = vld [vmem:[%s7 + $0x30] sm:$0xf]
      %v7584 = vld [vmem:[%s7 + $0x34] sm:$0xf]
      %v7585 = vld [vmem:[%s7 + $0x38] sm:$0xf]
      %v7586 = vld [vmem:[%s7 + $0x3c] sm:$0xf]
      %v7603 = vunpack.c.l.b16 %v7571
      %v7604 = vunpack.c.l.b16 %v7572
      %v7605 = vunpack.c.l.b16 %v7573
      %v7606 = vunpack.c.l.b16 %v7574
      %v7607 = vunpack.c.l.b16 %v7575
      %v7608 = vunpack.c.l.b16 %v7576
      %v7609 = vunpack.c.l.b16 %v7577
      %v7610 = vunpack.c.l.b16 %v7578
      %v7611 = vunpack.c.l.b16 %v7579
      %v7612 = vunpack.c.l.b16 %v7580
      %v7613 = vunpack.c.l.b16 %v7581
      %v7614 = vunpack.c.l.b16 %v7582
      %v7615 = vunpack.c.l.b16 %v7583
      %v7616 = vunpack.c.l.b16 %v7584
      %v7617 = vunpack.c.l.b16 %v7585
      %v7618 = vunpack.c.l.b16 %v7586
      %v7619 = vpack.c.b16 %v7604, %v7603
      %v7620 = vpack.c.b16 %v7606, %v7605
      %v7621 = vpack.c.b16 %v7608, %v7607
      %v7622 = vpack.c.b16 %v7610, %v7609
      %v7623 = vpack.c.b16 %v7612, %v7611
      %v7624 = vpack.c.b16 %v7614, %v7613
      %v7625 = vpack.c.b16 %v7616, %v7615
      %v7626 = vpack.c.b16 %v7618, %v7617
      %7635 = vmatprep.subr.bf16.mxu0 0
      %7636 = vmatpush1.bf16.msra.mxu0 %v7619
      %7637 = vmatprep.subr.bf16.mxu0 0
      %7638 = vmatpush1.bf16.msra.mxu0 %v7620
      %7639 = vmatprep.subr.bf16.mxu0 0
      %7640 = vmatpush1.bf16.msra.mxu0 %v7621
      %7641 = vmatprep.subr.bf16.mxu0 0
      %7642 = vmatpush1.bf16.msra.mxu0 %v7622
      %7643 = vmatprep.subr.bf16.mxu0 0
      %7644 = vmatpush1.bf16.msra.mxu0 %v7623
      %7645 = vmatprep.subr.bf16.mxu0 0
      %7646 = vmatpush1.bf16.msra.mxu0 %v7624
      %7647 = vmatprep.subr.bf16.mxu0 0
      %7648 = vmatpush1.bf16.msra.mxu0 %v7625
      %7649 = vmatprep.subr.bf16.mxu0 0
      %7650 = vmatpush1.bf16.msra.mxu0 %v7626
      %7651 = vmatprep.subr.bf16.mxu0 0
      %7652 = vmatpush1.bf16.msra.mxu0 0
      %7653 = vmatprep.subr.bf16.mxu0 0
      %7654 = vmatpush1.bf16.msra.mxu0 0
      %7655 = vmatprep.subr.bf16.mxu0 0
      %7656 = vmatpush1.bf16.msra.mxu0 0
      %7657 = vmatprep.subr.bf16.mxu0 0
      %7658 = vmatpush1.bf16.msra.mxu0 0
      %7659 = vmatprep.subr.bf16.mxu0 0
      %7660 = vmatpush1.bf16.msra.mxu0 0
      %7661 = vmatprep.subr.bf16.mxu0 0
      %7662 = vmatpush1.bf16.msra.mxu0 0
      %7663 = vmatprep.subr.bf16.mxu0 0
      %7664 = vmatpush1.bf16.msra.mxu0 0
      %7665 = vmatprep.subr.bf16.mxu0 0
      %7666 = vmatpush1.bf16.msra.mxu0 0
      %7667 = vmatprep.mubr.bf16.mxu0 0
      %7668 = vmatmul.mubr.bf16.gmra.mrb[0].mxu0 %v7563
      %v7669 = vpop.f32.mrb[0].mxu0
      %v7670 = vadd.f32 0.0, %v7669
      %v7671 = vpop.f32.mrb[0].mxu0
      %v7672 = vpop.f32.mrb[0].mxu0
      %v7673 = vadd.f32 0.0, %v7672
      %v7674 = vpop.f32.mrb[0].mxu0
      %7675 = vmatprep.mubr.bf16.mxu0 0
      %7676 = vmatmul.mubr.bf16.gmra.mrb[0].mxu0 %v7564
      %v7677 = vpop.f32.mrb[0].mxu0
      %v7678 = vadd.f32 0.0, %v7677
      %v7679 = vpop.f32.mrb[0].mxu0
      %v7680 = vpop.f32.mrb[0].mxu0
      %v7681 = vadd.f32 0.0, %v7680
      %v7682 = vpop.f32.mrb[0].mxu0
      %7683 = vmatprep.mubr.bf16.mxu0 0
      %7684 = vmatmul.mubr.bf16.gmra.mrb[0].mxu0 %v7565
      %v7685 = vpop.f32.mrb[0].mxu0
      %v7686 = vadd.f32 0.0, %v7685
      %v7687 = vpop.f32.mrb[0].mxu0
      %v7688 = vpop.f32.mrb[0].mxu0
      %v7689 = vadd.f32 0.0, %v7688
      %v7690 = vpop.f32.mrb[0].mxu0
      %7691 = vmatprep.mubr.bf16.mxu0 0
      %7692 = vmatmul.mubr.bf16.gmra.mrb[0].mxu0 %v7566
      %v7693 = vpop.f32.mrb[0].mxu0
      %v7694 = vadd.f32 0.0, %v7693
      %v7695 = vpop.f32.mrb[0].mxu0
      %v7696 = vpop.f32.mrb[0].mxu0
      %v7697 = vadd.f32 0.0, %v7696
      %v7698 = vpop.f32.mrb[0].mxu0
      %7699 = vmatprep.mubr.bf16.mxu0 0
      %7700 = vmatmul.mubr.bf16.gmra.mrb[0].mxu0 %v7567
      %v7701 = vpop.f32.mrb[0].mxu0
      %v7702 = vadd.f32 0.0, %v7701
      %v7703 = vpop.f32.mrb[0].mxu0
      %v7704 = vpop.f32.mrb[0].mxu0
      %v7705 = vadd.f32 0.0, %v7704
      %v7706 = vpop.f32.mrb[0].mxu0
      %7707 = vmatprep.mubr.bf16.mxu0 0
      %7708 = vmatmul.mubr.bf16.gmra.mrb[0].mxu0 %v7568
      %v7709 = vpop.f32.mrb[0].mxu0
      %v7710 = vadd.f32 0.0, %v7709
      %v7711 = vpop.f32.mrb[0].mxu0
      %v7712 = vpop.f32.mrb[0].mxu0
      %v7713 = vadd.f32 0.0, %v7712
      %v7714 = vpop.f32.mrb[0].mxu0
      %7715 = vmatprep.mubr.bf16.mxu0 0
      %7716 = vmatmul.mubr.bf16.gmra.mrb[0].mxu0 %v7569
      %v7717 = vpop.f32.mrb[0].mxu0
      %v7718 = vadd.f32 0.0, %v7717
      %v7719 = vpop.f32.mrb[0].mxu0
      %v7720 = vpop.f32.mrb[0].mxu0
      %v7721 = vadd.f32 0.0, %v7720
      %v7722 = vpop.f32.mrb[0].mxu0
      %7723 = vmatprep.mubr.bf16.mxu0 0
      %7724 = vmatmul.mubr.bf16.gmra.mrb[0].mxu0 %v7570
      %v7725 = vpop.f32.mrb[0].mxu0
      %v7726 = vadd.f32 0.0, %v7725
      %v7727 = vpop.f32.mrb[0].mxu0
      %v7728 = vpop.f32.mrb[0].mxu0
      %v7729 = vadd.f32 0.0, %v7728
      %v7730 = vpop.f32.mrb[0].mxu0
      %7731 = vdwg.mxu0
      %v7748 = vunpack.c.l.b16 %v5415
      %v7749 = vunpack.c.l.b16 %v5416
      %v7750 = vunpack.c.l.b16 %v5417
      %v7751 = vunpack.c.l.b16 %v5418
      %v7752 = vunpack.c.l.b16 %v5419
      %v7753 = vunpack.c.l.b16 %v5420
      %v7754 = vunpack.c.l.b16 %v5421
      %v7755 = vunpack.c.l.b16 %v5422
      %v7756 = vunpack.c.l.b16 %v5423
      %v7757 = vunpack.c.l.b16 %v5424
      %v7758 = vunpack.c.l.b16 %v5425
      %v7759 = vunpack.c.l.b16 %v5426
      %v7760 = vunpack.c.l.b16 %v5427
      %v7761 = vunpack.c.l.b16 %v5428
      %v7762 = vunpack.c.l.b16 %v5429
      %v7763 = vunpack.c.l.b16 %v5430
      %v7764 = vpack.c.b16 %v7749, %v7748
      %v7765 = vpack.c.b16 %v7751, %v7750
      %v7766 = vpack.c.b16 %v7753, %v7752
      %v7767 = vpack.c.b16 %v7755, %v7754
      %v7768 = vpack.c.b16 %v7757, %v7756
      %v7769 = vpack.c.b16 %v7759, %v7758
      %v7770 = vpack.c.b16 %v7761, %v7760
      %v7771 = vpack.c.b16 %v7763, %v7762
      %7780 = vmatprep.subr.bf16.mxu0 0
      %7781 = vmatpush1.bf16.msra.mxu0 %v7764
      %7782 = vmatprep.subr.bf16.mxu0 0
      %7783 = vmatpush1.bf16.msra.mxu0 %v7765
      %7784 = vmatprep.subr.bf16.mxu0 0
      %7785 = vmatpush1.bf16.msra.mxu0 %v7766
      %7786 = vmatprep.subr.bf16.mxu0 0
      %7787 = vmatpush1.bf16.msra.mxu0 %v7767
      %7788 = vmatprep.subr.bf16.mxu0 0
      %7789 = vmatpush1.bf16.msra.mxu0 %v7768
      %7790 = vmatprep.subr.bf16.mxu0 0
      %7791 = vmatpush1.bf16.msra.mxu0 %v7769
      %7792 = vmatprep.subr.bf16.mxu0 0
      %7793 = vmatpush1.bf16.msra.mxu0 %v7770
      %7794 = vmatprep.subr.bf16.mxu0 0
      %7795 = vmatpush1.bf16.msra.mxu0 %v7771
      %7796 = vmatprep.subr.bf16.mxu0 0
      %7797 = vmatpush1.bf16.msra.mxu0 0
      %7798 = vmatprep.subr.bf16.mxu0 0
      %7799 = vmatpush1.bf16.msra.mxu0 0
      %7800 = vmatprep.subr.bf16.mxu0 0
      %7801 = vmatpush1.bf16.msra.mxu0 0
      %7802 = vmatprep.subr.bf16.mxu0 0
      %7803 = vmatpush1.bf16.msra.mxu0 0
      %7804 = vmatprep.subr.bf16.mxu0 0
      %7805 = vmatpush1.bf16.msra.mxu0 0
      %7806 = vmatprep.subr.bf16.mxu0 0
      %7807 = vmatpush1.bf16.msra.mxu0 0
      %7808 = vmatprep.subr.bf16.mxu0 0
      %7809 = vmatpush1.bf16.msra.mxu0 0
      %7810 = vmatprep.subr.bf16.mxu0 0
      %7811 = vmatpush1.bf16.msra.mxu0 0
      %7812 = vmatprep.mubr.bf16.mxu0 0
      %7813 = vmatmul.mubr.bf16.gmra.mrb[0].mxu0 %v5407
      %v7814 = vpop.f32.mrb[0].mxu0
      %v7815 = vadd.f32 %v7670, %v7814
      %v7816 = vpop.f32.mrb[0].mxu0
      %v7817 = vpop.f32.mrb[0].mxu0
      %v7818 = vadd.f32 %v7673, %v7817
      %v7819 = vpop.f32.mrb[0].mxu0
      %7820 = vmatprep.mubr.bf16.mxu0 0
      %7821 = vmatmul.mubr.bf16.gmra.mrb[0].mxu0 %v5408
      %v7822 = vpop.f32.mrb[0].mxu0
      %v7823 = vadd.f32 %v7678, %v7822
      %v7824 = vpop.f32.mrb[0].mxu0
      %v7825 = vpop.f32.mrb[0].mxu0
      %v7826 = vadd.f32 %v7681, %v7825
      %v7827 = vpop.f32.mrb[0].mxu0
      %7828 = vmatprep.mubr.bf16.mxu0 0
      %7829 = vmatmul.mubr.bf16.gmra.mrb[0].mxu0 %v5409
      %v7830 = vpop.f32.mrb[0].mxu0
      %v7831 = vadd.f32 %v7686, %v7830
      %v7832 = vpop.f32.mrb[0].mxu0
      %v7833 = vpop.f32.mrb[0].mxu0
      %v7834 = vadd.f32 %v7689, %v7833
      %v7835 = vpop.f32.mrb[0].mxu0
      %7836 = vmatprep.mubr.bf16.mxu0 0
      %7837 = vmatmul.mubr.bf16.gmra.mrb[0].mxu0 %v5410
      %v7838 = vpop.f32.mrb[0].mxu0
      %v7839 = vadd.f32 %v7694, %v7838
      %v7840 = vpop.f32.mrb[0].mxu0
      %v7841 = vpop.f32.mrb[0].mxu0
      %v7842 = vadd.f32 %v7697, %v7841
      %v7843 = vpop.f32.mrb[0].mxu0
      %7844 = vmatprep.mubr.bf16.mxu0 0
      %7845 = vmatmul.mubr.bf16.gmra.mrb[0].mxu0 %v5411
      %v7846 = vpop.f32.mrb[0].mxu0
      %v7847 = vadd.f32 %v7702, %v7846
      %v7848 = vpop.f32.mrb[0].mxu0
      %v7849 = vpop.f32.mrb[0].mxu0
      %v7850 = vadd.f32 %v7705, %v7849
      %v7851 = vpop.f32.mrb[0].mxu0
      %7852 = vmatprep.mubr.bf16.mxu0 0
      %7853 = vmatmul.mubr.bf16.gmra.mrb[0].mxu0 %v5412
      %v7854 = vpop.f32.mrb[0].mxu0
      %v7855 = vadd.f32 %v7710, %v7854
      %v7856 = vpop.f32.mrb[0].mxu0
      %v7857 = vpop.f32.mrb[0].mxu0
      %v7858 = vadd.f32 %v7713, %v7857
      %v7859 = vpop.f32.mrb[0].mxu0
      %7860 = vmatprep.mubr.bf16.mxu0 0
      %7861 = vmatmul.mubr.bf16.gmra.mrb[0].mxu0 %v5413
      %v7862 = vpop.f32.mrb[0].mxu0
      %v7863 = vadd.f32 %v7718, %v7862
      %v7864 = vpop.f32.mrb[0].mxu0
      %v7865 = vpop.f32.mrb[0].mxu0
      %v7866 = vadd.f32 %v7721, %v7865
      %v7867 = vpop.f32.mrb[0].mxu0
      %7868 = vmatprep.mubr.bf16.mxu0 0
      %7869 = vmatmul.mubr.bf16.gmra.mrb[0].mxu0 %v5414
      %v7870 = vpop.f32.mrb[0].mxu0
      %v7871 = vadd.f32 %v7726, %v7870
      %v7872 = vpop.f32.mrb[0].mxu0
      %v7873 = vpop.f32.mrb[0].mxu0
      %v7874 = vadd.f32 %v7729, %v7873
      %v7875 = vpop.f32.mrb[0].mxu0
      %7876 = vdwg.mxu0
      %v7877 = vld [vmem:[%s8] sm:$0x1]
      %v7879 = vlaneseq
      %v7880 = vshrl.u32 %v7879, 7
      %v7881 = vsub.s32 0, %v7880
      %v7882 = vrot.slane %v7877, %v7881
      %v7884 = vadd.f32 %v7815, %v7882
      %v7885 = vadd.f32 %v7818, %v7882
      %v7886 = vadd.f32 %v7823, %v7882
      %v7887 = vadd.f32 %v7826, %v7882
      %v7888 = vadd.f32 %v7831, %v7882
      %v7889 = vadd.f32 %v7834, %v7882
      %v7890 = vadd.f32 %v7839, %v7882
      %v7891 = vadd.f32 %v7842, %v7882
      %v7892 = vadd.f32 %v7847, %v7882
      %v7893 = vadd.f32 %v7850, %v7882
      %v7894 = vadd.f32 %v7855, %v7882
      %v7895 = vadd.f32 %v7858, %v7882
      %v7896 = vadd.f32 %v7863, %v7882
      %v7897 = vadd.f32 %v7866, %v7882
      %v7898 = vadd.f32 %v7871, %v7882
      %v7899 = vadd.f32 %v7874, %v7882
      %7900 = vst [vmem:[%s370] sm:$0xff] %v7884
      %7901 = vst [vmem:[%s370 + $0x8] sm:$0xff] %v7885
      %7902 = vst [vmem:[%s370 + $0x10] sm:$0xff] %v7886
      %7903 = vst [vmem:[%s370 + $0x18] sm:$0xff] %v7887
      %7904 = vst [vmem:[%s370 + $0x20] sm:$0xff] %v7888
      %7905 = vst [vmem:[%s370 + $0x28] sm:$0xff] %v7889
      %7906 = vst [vmem:[%s370 + $0x30] sm:$0xff] %v7890
      %7907 = vst [vmem:[%s370 + $0x38] sm:$0xff] %v7891
      %7908 = vst [vmem:[%s370 + $0x40] sm:$0xff] %v7892
      %7909 = vst [vmem:[%s370 + $0x48] sm:$0xff] %v7893
      %7910 = vst [vmem:[%s370 + $0x50] sm:$0xff] %v7894
      %7911 = vst [vmem:[%s370 + $0x58] sm:$0xff] %v7895
      %7912 = vst [vmem:[%s370 + $0x60] sm:$0xff] %v7896
      %7913 = vst [vmem:[%s370 + $0x68] sm:$0xff] %v7897
      %7914 = vst [vmem:[%s370 + $0x70] sm:$0xff] %v7898
      %7915 = vst [vmem:[%s370 + $0x78] sm:$0xff] %v7899
      %s7916 = smul.u32 8, %s25
      %p7917 = scmp.lt.s32.totalorder %s24, 1
      %s7918 = scalar_select %p7917, %s24, 1
      %p7919 = scmp.lt.s32.totalorder %s7916, 15
      %s7920 = scalar_select %p7919, %s7916, 15
      %s7921 = smul.addr %s7920, 2
      %s7922 = smul.addr %s7918, 32
      %s7923 = sadd.s32 %s7921, %s7922
      %s7924 = smul.addr %s7923, 8
      %s7925 = scalar_lea.vmem %s9, %s7924
      // Predicated region
      $region57: #{atrous_mlp_forward.1} parent=55 // pred_check
        %p7926 = pneg %p248
      $region58: #{atrous_mlp_forward.1} parent=55 // pred_check_branch
        %7928 = sbr.rel (%p7926) target = $region60
      $region59: #{atrous_mlp_forward.1} parent=55 // pred_region
        %s7929 = smul.u32 8, %s25
      $region60: #{atrous_mlp_forward.1} parent=55 // pred_fallthru
        _
    $region56: #{atrous_mlp_forward.1} parent=5 // pred_fallthru
      _
    %p7930 = scmp.le.s32.totalorder 2, %s15
    // Predicated region
    $region61: #{atrous_mlp_forward.1} parent=5 // pred_check
      %p7931 = pneg %p7930
    $region62: #{atrous_mlp_forward.1} parent=5 // pred_check_branch
      %7933 = sbr.rel (%p7931) target = $region64
    $region63: #{atrous_mlp_forward.1} parent=5 // pred_region
      %s7934 = ssub.s32 %s15, 2
      // Predicated region
      $region65: #{atrous_mlp_forward.1} parent=63 // pred_check
        %p7935 = pneg %p254
      $region66: #{atrous_mlp_forward.1} parent=63 // pred_check_branch
        %7937 = sbr.rel (%p7935) target = $region68
      $region67: #{atrous_mlp_forward.1} parent=63 // pred_region
        %s7938 = smul.u32 8, %s27
        %p7939 = scmp.lt.s32.totalorder %s26, 1
        %s7940 = scalar_select %p7939, %s26, 1
        %p7941 = scmp.lt.s32.totalorder %s7938, 15
        %s7942 = scalar_select %p7941, %s7938, 15
        %s7943 = smul.addr %s7942, 2
        %s7944 = smul.addr %s7940, 32
        %s7945 = sadd.s32 %s7943, %s7944
        %s7946 = smul.addr %s7945, 8
        %s7947 = scalar_lea.vmem %s9, %s7946
      $region68: #{atrous_mlp_forward.1} parent=63 // pred_fallthru
        _
    $region64: #{atrous_mlp_forward.1} parent=5 // pred_fallthru
      _
  $region6: #{atrous_mlp_forward.1} parent=0 // loop_footer
    %s19 = sadd.s32 1, %s15
  $region7: #{atrous_mlp_forward.1} parent=0 // loop_footer_branch
    %14 = sbr.rel target = $region3
  $region8: #{atrous_mlp_forward.1} parent=0 // loop_exit
    _

</llo_original>
